<compile_context>
chip_gen: v7x
topology: tpu7x:2x2x1
jax: 0.10.0
libtpu: 0.0.40
codegen_flags: <defaults>
</compile_context>

<pallas_src>
import jax
import jax.numpy as jnp
import numpy as np
from jax.experimental import pallas as pl
from jax.experimental.pallas import tpu as pltpu

C_IN = 2    # ComplexConv2d(in_channels=2, out_channels=2, kernel_size=3, padding=1)
C_OUT = 2
KSIZE = 3


def _decoder_kernel(xr_ref, xi_ref,        # (Bblk, C, H, W) VMEM inputs (real, imag)
                    wr_ref, wi_ref,        # (C_OUT*C_IN*9,) SMEM conv_r / conv_i weights
                    br_ref, bi_ref,        # (C_OUT,) SMEM conv_r / conv_i biases
                    lnc_ref,               # (5, W) VMEM precomputed LN constants
                    or_ref, oi_ref,        # (Bblk, C, H, W) VMEM outputs (real, imag)
                    pad_r, pad_i):         # (C, H+2, W+2) VMEM padded-image scratch
    Bblk = xr_ref.shape[0]
    H = xr_ref.shape[2]
    W = xr_ref.shape[3]

    # Zero the padded scratch ONCE per grid step instead of once per conv:
    # only the 1-element halo border needs to stay zero and it is never
    # overwritten, while the interior is fully rewritten by every conv before
    # it is read.  (Done per step, not only at program_id==0, so that each
    # TensorCore's private scratch is initialized when the "parallel" grid is
    # sharded across cores.)
    pad_r[...] = jnp.zeros_like(pad_r)
    pad_i[...] = jnp.zeros_like(pad_i)

    # Combined complex-bias scalars, computed once per step.
    bias_rr = [br_ref[co] - bi_ref[co] for co in range(C_OUT)]   # real-part bias
    bias_ii = [br_ref[co] + bi_ref[co] for co in range(C_OUT)]   # imag-part bias

    def complex_conv(ar, ai):
        """3x3, stride 1, padding 1 complex conv.  ar/ai: lists of C_IN (H, W) planes."""
        for ci in range(C_IN):
            pad_r[ci, 1:H + 1, 1:W + 1] = ar[ci]
            pad_i[ci, 1:H + 1, 1:W + 1] = ai[ci]
        # (conv_r + j*conv_i)(xr + j*xi), each real conv carrying its own bias:
        #   real = conv_r(xr) - conv_i(xi) + (b_r - b_i)
        #   imag = conv_r(xi) + conv_i(xr) + (b_r + b_i)
        acc_r = [jnp.full((H, W), bias_rr[co], dtype=jnp.float32) for co in range(C_OUT)]
        acc_i = [jnp.full((H, W), bias_ii[co], dtype=jnp.float32) for co in range(C_OUT)]
        # Shifted-window reads hoisted out of the `co` loop: each of the
        # 9*C_IN windows (real & imag) is read once and reused for every
        # output channel.
        for ci in range(C_IN):
            for dy in range(KSIZE):
                for dx in range(KSIZE):
                    win_r = pad_r[ci, dy:dy + H, dx:dx + W]
                    win_i = pad_i[ci, dy:dy + H, dx:dx + W]
                    for co in range(C_OUT):
                        idx = ((co * C_IN + ci) * KSIZE + dy) * KSIZE + dx
                        w_r = wr_ref[idx]
                        w_i = wi_ref[idx]
                        acc_r[co] = acc_r[co] + w_r * win_r - w_i * win_i
                        acc_i[co] = acc_i[co] + w_r * win_i + w_i * win_r
        return acc_r, acc_i

    # Precomputed weight-only LayerNorm terms (wa, wb, wd, bias_r, bias_i).
    lnc = lnc_ref[...]                                   # (5, W)
    wa = lnc[0:1, :]
    wb = lnc[1:2, :]
    wd = lnc[2:3, :]
    bias_r = lnc[3:4, :]
    bias_i = lnc[4:5, :]
    inv_nm1 = 1.0 / (W - 1)                              # torch.var is unbiased

    for b in range(Bblk):
        x_r = [xr_ref[b, c] for c in range(C_IN)]
        x_i = [xi_ref[b, c] for c in range(C_IN)]

        # x = conv(x); residual = x
        r1_r, r1_i = complex_conv(x_r, x_i)
        # x = conv(x); x = complex_relu(x)
        r2_r, r2_i = complex_conv(r1_r, r1_i)
        r2_r = [jnp.maximum(v, 0.0) for v in r2_r]
        r2_i = [jnp.maximum(v, 0.0) for v in r2_i]
        # x = conv(x); x += residual
        r3_r, r3_i = complex_conv(r2_r, r2_i)
        r3_r = [a + c for a, c in zip(r3_r, r1_r)]
        r3_i = [a + c for a, c in zip(r3_i, r1_i)]

        # ---- Complex LayerNorm over the last dim (embed_dim == W) ----
        for co in range(C_OUT):
            zr = r3_r[co]                                 # (H, W)
            zi = r3_i[co]
            mean_r = jnp.mean(zr, axis=-1, keepdims=True)
            mean_i = jnp.mean(zi, axis=-1, keepdims=True)
            cr = zr - mean_r
            cim = zi - mean_i
            var_r = jnp.sum(cr * cr, axis=-1, keepdims=True) * inv_nm1
            var_i = jnp.sum(cim * cim, axis=-1, keepdims=True) * inv_nm1
            cov = jnp.mean(cr * cim, axis=-1, keepdims=True)   # biased (torch.mean)

            # sqrt_2x2([[var_r, cov], [cov, var_i]]); clamp guards fp round-off.
            s = jnp.sqrt(jnp.maximum(var_r * var_i - cov * cov, 0.0))
            t = jnp.sqrt(var_r + var_i + 2.0 * s)
            a = (var_r + s) / t
            bb = cov / t
            d = (var_i + s) / t
            det = a * d - bb * bb
            i00 = d / det
            i01 = -bb / det                               # symmetric: i10 == i01
            i11 = a / det

            # mult_mat = sqrt_2x2(weights_mult) @ inv_2x2(cov_sqr)
            m00 = wa * i00 + wb * i01
            m01 = wa * i01 + wb * i11
            m10 = wb * i00 + wd * i01
            m11 = wb * i01 + wd * i11

            or_ref[b, co] = m00 * cr + m01 * cim + bias_r
            oi_ref[b, co] = m10 * cr + m11 * cim + bias_i


def transformer_decoder(x, params, num_parallel_blocks=2):
    """x: complex64 [B, 2, H, W] (NCHW). Returns complex64 [B, 2, H, W].

    num_parallel_blocks: number of grid steps the batch is split into.  Use 2
    (default) so v7x's two TensorCores each take half the batch; 1 gives the
    absolute minimum per-step overhead on single-core v5e/v6e.
    """
    B, C, H, W = x.shape
    assert C == C_IN

    nb = max(1, min(num_parallel_blocks, B))
    while B % nb != 0:                       # keep the batch evenly divisible
        nb -= 1
    bblk = B // nb

    xr = jnp.real(x).astype(jnp.float32)
    xi = jnp.imag(x).astype(jnp.float32)
    wr_flat = params["wr"].reshape(-1).astype(jnp.float32)
    wi_flat = params["wi"].reshape(-1).astype(jnp.float32)
    br = params["br"].astype(jnp.float32)
    bi = params["bi"].astype(jnp.float32)

    # Weight-only LayerNorm quantities precomputed once (instead of redoing
    # sigmoid + 3 sqrt + divides every grid step inside the kernel).
    lnw = params["lnw"].astype(jnp.float32)              # (3, W)
    lnb = params["lnb"].astype(jnp.float32)              # (2, W)
    rvw = lnw[0] * lnw[0]
    ivw = lnw[1] * lnw[1]
    cw = (jax.nn.sigmoid(lnw[2]) - 0.5) * 2.0 * jnp.sqrt(rvw * ivw)
    sw = jnp.sqrt(rvw * ivw - cw * cw)
    tw = jnp.sqrt(rvw + ivw + 2.0 * sw)
    lnc = jnp.stack([(rvw + sw) / tw,                    # wa
                     cw / tw,                            # wb
                     (ivw + sw) / tw,                    # wd
                     lnb[0], lnb[1]], axis=0)            # bias_r, bias_i -> (5, W)

    grid_spec = pltpu.PrefetchScalarGridSpec(
        num_scalar_prefetch=0,
        grid=(nb,),
        in_specs=[
            pl.BlockSpec((bblk, C, H, W), lambda b: (b, 0, 0, 0)),
            pl.BlockSpec((bblk, C, H, W), lambda b: (b, 0, 0, 0)),
            pl.BlockSpec(memory_space=pltpu.MemorySpace.SMEM),   # conv_r weights
            pl.BlockSpec(memory_space=pltpu.MemorySpace.SMEM),   # conv_i weights
            pl.BlockSpec(memory_space=pltpu.MemorySpace.SMEM),   # conv_r bias
            pl.BlockSpec(memory_space=pltpu.MemorySpace.SMEM),   # conv_i bias
            pl.BlockSpec((5, W), lambda b: (0, 0)),              # LN constants
        ],
        out_specs=[
            pl.BlockSpec((bblk, C, H, W), lambda b: (b, 0, 0, 0)),
            pl.BlockSpec((bblk, C, H, W), lambda b: (b, 0, 0, 0)),
        ],
        scratch_shapes=[
            pltpu.VMEM((C, H + 2, W + 2), jnp.float32),
            pltpu.VMEM((C, H + 2, W + 2), jnp.float32),
        ],
    )

    out_r, out_i = pl.pallas_call(
        _decoder_kernel,
        out_shape=(jax.ShapeDtypeStruct((B, C, H, W), jnp.float32),
                   jax.ShapeDtypeStruct((B, C, H, W), jnp.float32)),
        grid_spec=grid_spec,
        compiler_params=pltpu.CompilerParams(dimension_semantics=("parallel",)),
    )(xr, xi, wr_flat, wi_flat, br, bi, lnc)
    return jax.lax.complex(out_r, out_i)


def _reference(x, params):
    """Pure-JAX reference with identical semantics (for validation)."""
    wr, wi, br, bi = params["wr"], params["wi"], params["br"], params["bi"]
    lnw, lnb = params["lnw"], params["lnb"]

    def rconv(a, w, b):
        y = jax.lax.conv_general_dilated(
            a, w, window_strides=(1, 1), padding="SAME",
            dimension_numbers=("NCHW", "OIHW", "NCHW"))
        return y + b[None, :, None, None]

    def cconv(z):
        zr, zi = jnp.real(z), jnp.imag(z)
        real = rconv(zr, wr, br) - rconv(zi, wi, bi)
        imag = rconv(zi, wr, br) + rconv(zr, wi, bi)
        return jax.lax.complex(real, imag)

    x1 = cconv(x)
    x2 = cconv(x1)
    x2 = jax.lax.complex(jnp.maximum(x2.real, 0.0), jnp.maximum(x2.imag, 0.0))
    x3 = cconv(x2) + x1

    zr, zi = jnp.real(x3), jnp.imag(x3)
    W = zr.shape[-1]
    mean_r = zr.mean(-1, keepdims=True)
    mean_i = zi.mean(-1, keepdims=True)
    cr, ci = zr - mean_r, zi - mean_i
    var_r = (cr * cr).sum(-1, keepdims=True) / (W - 1)
    var_i = (ci * ci).sum(-1, keepdims=True) / (W - 1)
    cov = (cr * ci).mean(-1, keepdims=True)
    s = jnp.sqrt(var_r * var_i - cov * cov)
    t = jnp.sqrt(var_r + var_i + 2 * s)
    a, b, d = (var_r + s) / t, cov / t, (var_i + s) / t
    det = a * d - b * b
    i00, i01, i11 = d / det, -b / det, a / det
    rvw, ivw = lnw[0] ** 2, lnw[1] ** 2
    cw = (jax.nn.sigmoid(lnw[2]) - 0.5) * 2.0 * jnp.sqrt(rvw * ivw)
    sw = jnp.sqrt(rvw * ivw - cw * cw)
    tw = jnp.sqrt(rvw + ivw + 2 * sw)
    wa, wb, wd = (rvw + sw) / tw, cw / tw, (ivw + sw) / tw
    m00 = wa * i00 + wb * i01
    m01 = wa * i01 + wb * i11
    m10 = wb * i00 + wd * i01
    m11 = wb * i01 + wd * i11
    out_r = m00 * cr + m01 * ci + lnb[0]
    out_i = m10 * cr + m11 * ci + lnb[1]
    return jax.lax.complex(out_r, out_i)


if __name__ == "__main__":
    B, C, H, W = 2, 2, 16, 16          # embed_dim = W = 16
    key = jax.random.PRNGKey(0)
    k1, k2, k3, k4, k5, k6 = jax.random.split(key, 6)
    params = {
        # ComplexConv2d: two real Conv2d(2, 2, 3, padding=1) (real & imag kernels)
        "wr": jax.random.normal(k1, (C_OUT, C_IN, KSIZE, KSIZE), jnp.float32) * 0.25,
        "wi": jax.random.normal(k2, (C_OUT, C_IN, KSIZE, KSIZE), jnp.float32) * 0.25,
        "br": jax.random.normal(k3, (C_OUT,), jnp.float32) * 0.1,
        "bi": jax.random.normal(k4, (C_OUT,), jnp.float32) * 0.1,
        # Complex_LayerNorm init: weights = [1, 1, 0] per embed position, bias = 0
        "lnw": jnp.stack([jnp.ones((W,), jnp.float32),
                          jnp.ones((W,), jnp.float32),
                          jnp.zeros((W,), jnp.float32)], axis=0),
        "lnb": jnp.zeros((2, W), jnp.float32),
    }

    x = jax.lax.complex(jax.random.normal(k5, (B, C, H, W), jnp.float32),
                        jax.random.normal(k6, (B, C, H, W), jnp.float32))

    out = jax.block_until_ready(transformer_decoder(x, params))
    ref = jax.block_until_ready(_reference(x, params))

    assert out.shape == (B, C, H, W) and out.dtype == jnp.complex64
    np.testing.assert_allclose(np.asarray(out), np.asarray(ref), rtol=1e-3, atol=1e-3)
    print("KERNEL_OK")
</pallas_src>

<mosaic_0001>
module attributes {stable_mosaic.version = 11 : i64} {
  func.func @_decoder_kernel(%arg0: i32, %arg1: memref<1x2x16x16xf32, #tpu.memory_space<vmem>>, %arg2: memref<1x2x16x16xf32, #tpu.memory_space<vmem>>, %arg3: memref<36xf32, #tpu.memory_space<smem>>, %arg4: memref<36xf32, #tpu.memory_space<smem>>, %arg5: memref<2xf32, #tpu.memory_space<smem>>, %arg6: memref<2xf32, #tpu.memory_space<smem>>, %arg7: memref<5x16xf32, #tpu.memory_space<vmem>>, %arg8: memref<1x2x16x16xf32, #tpu.memory_space<vmem>>, %arg9: memref<1x2x16x16xf32, #tpu.memory_space<vmem>>, %arg10: memref<2x18x18xf32, #tpu.memory_space<vmem>>, %arg11: memref<2x18x18xf32, #tpu.memory_space<vmem>>) attributes {dimension_semantics = [#tpu.dimension_semantics<parallel>], iteration_bounds = array<i64: 2>, scalar_prefetch = 0 : i64, scratch_operands = 2 : i64, tpu.core_type = #tpu.core_type<tc>, window_params = [{transform_indices = @transform_0, window_bounds = array<i64: 1, 2, 16, 16>}, {transform_indices = @transform_1, window_bounds = array<i64: 1, 2, 16, 16>}, {transform_indices = @transform_2, window_bounds = array<i64: 36>}, {transform_indices = @transform_3, window_bounds = array<i64: 36>}, {transform_indices = @transform_4, window_bounds = array<i64: 2>}, {transform_indices = @transform_5, window_bounds = array<i64: 2>}, {pipeline_mode = #tpu.pipeline_mode<synchronous>, transform_indices = @transform_6, window_bounds = array<i64: 5, 16>}, {transform_indices = @transform_7, window_bounds = array<i64: 1, 2, 16, 16>}, {transform_indices = @transform_8, window_bounds = array<i64: 1, 2, 16, 16>}]} {
    %cst = arith.constant 0.000000e+00 : f32
    %0 = vector.broadcast %cst : f32 to vector<2x18x18xf32>
    %c0 = arith.constant 0 : index
    %c0_0 = arith.constant 0 : index
    %c0_1 = arith.constant 0 : index
    %1 = vector.load %arg10[%c0, %c0_0, %c0_1] : memref<2x18x18xf32, #tpu.memory_space<vmem>>, vector<2x18x18xf32>
    tpu.vector_store %arg10[%c0, %c0_0, %c0_1], %0 {strides = array<i32>} : memref<2x18x18xf32, #tpu.memory_space<vmem>>, vector<2x18x18xf32>,
    %cst_2 = arith.constant 0.000000e+00 : f32
    %2 = vector.broadcast %cst_2 : f32 to vector<2x18x18xf32>
    %c0_3 = arith.constant 0 : index
    %c0_4 = arith.constant 0 : index
    %c0_5 = arith.constant 0 : index
    %3 = vector.load %arg11[%c0_3, %c0_4, %c0_5] : memref<2x18x18xf32, #tpu.memory_space<vmem>>, vector<2x18x18xf32>
    tpu.vector_store %arg11[%c0_3, %c0_4, %c0_5], %2 {strides = array<i32>} : memref<2x18x18xf32, #tpu.memory_space<vmem>>, vector<2x18x18xf32>,
    %c0_6 = arith.constant 0 : index
    %4 = memref.load %arg5[%c0_6] : memref<2xf32, #tpu.memory_space<smem>>
    %c0_7 = arith.constant 0 : index
    %5 = memref.load %arg6[%c0_7] : memref<2xf32, #tpu.memory_space<smem>>
    %6 = arith.subf %4, %5 : f32
    %c1 = arith.constant 1 : index
    %7 = memref.load %arg5[%c1] : memref<2xf32, #tpu.memory_space<smem>>
    %c1_8 = arith.constant 1 : index
    %8 = memref.load %arg6[%c1_8] : memref<2xf32, #tpu.memory_space<smem>>
    %9 = arith.subf %7, %8 : f32
    %c0_9 = arith.constant 0 : index
    %10 = memref.load %arg5[%c0_9] : memref<2xf32, #tpu.memory_space<smem>>
    %c0_10 = arith.constant 0 : index
    %11 = memref.load %arg6[%c0_10] : memref<2xf32, #tpu.memory_space<smem>>
    %12 = arith.addf %10, %11 : f32
    %c1_11 = arith.constant 1 : index
    %13 = memref.load %arg5[%c1_11] : memref<2xf32, #tpu.memory_space<smem>>
    %c1_12 = arith.constant 1 : index
    %14 = memref.load %arg6[%c1_12] : memref<2xf32, #tpu.memory_space<smem>>
    %15 = arith.addf %13, %14 : f32
    %c0_13 = arith.constant 0 : index
    %c0_14 = arith.constant 0 : index
    %16 = vector.load %arg7[%c0_13, %c0_14] : memref<5x16xf32, #tpu.memory_space<vmem>>, vector<5x16xf32>
    %17 = vector.extract_strided_slice %16 {offsets = [0, 0], sizes = [1, 16], strides = [1, 1]} : vector<5x16xf32> to vector<1x16xf32>
    %18 = vector.extract_strided_slice %16 {offsets = [1, 0], sizes = [1, 16], strides = [1, 1]} : vector<5x16xf32> to vector<1x16xf32>
    %19 = vector.extract_strided_slice %16 {offsets = [2, 0], sizes = [1, 16], strides = [1, 1]} : vector<5x16xf32> to vector<1x16xf32>
    %20 = vector.extract_strided_slice %16 {offsets = [3, 0], sizes = [1, 16], strides = [1, 1]} : vector<5x16xf32> to vector<1x16xf32>
    %21 = vector.extract_strided_slice %16 {offsets = [4, 0], sizes = [1, 16], strides = [1, 1]} : vector<5x16xf32> to vector<1x16xf32>
    %c0_15 = arith.constant 0 : index
    %c0_16 = arith.constant 0 : index
    %c0_17 = arith.constant 0 : index
    %c0_18 = arith.constant 0 : index
    %22 = vector.load %arg1[%c0_15, %c0_16, %c0_17, %c0_18] : memref<1x2x16x16xf32, #tpu.memory_space<vmem>>, vector<1x1x16x16xf32>
    %23 = vector.shape_cast %22 : vector<1x1x16x16xf32> to vector<16x16xf32>
    %c0_19 = arith.constant 0 : index
    %c1_20 = arith.constant 1 : index
    %c0_21 = arith.constant 0 : index
    %c0_22 = arith.constant 0 : index
    %24 = vector.load %arg1[%c0_19, %c1_20, %c0_21, %c0_22] : memref<1x2x16x16xf32, #tpu.memory_space<vmem>>, vector<1x1x16x16xf32>
    %25 = vector.shape_cast %24 : vector<1x1x16x16xf32> to vector<16x16xf32>
    %c0_23 = arith.constant 0 : index
    %c0_24 = arith.constant 0 : index
    %c0_25 = arith.constant 0 : index
    %c0_26 = arith.constant 0 : index
    %26 = vector.load %arg2[%c0_23, %c0_24, %c0_25, %c0_26] : memref<1x2x16x16xf32, #tpu.memory_space<vmem>>, vector<1x1x16x16xf32>
    %27 = vector.shape_cast %26 : vector<1x1x16x16xf32> to vector<16x16xf32>
    %c0_27 = arith.constant 0 : index
    %c1_28 = arith.constant 1 : index
    %c0_29 = arith.constant 0 : index
    %c0_30 = arith.constant 0 : index
    %28 = vector.load %arg2[%c0_27, %c1_28, %c0_29, %c0_30] : memref<1x2x16x16xf32, #tpu.memory_space<vmem>>, vector<1x1x16x16xf32>
    %29 = vector.shape_cast %28 : vector<1x1x16x16xf32> to vector<16x16xf32>
    %c0_31 = arith.constant 0 : index
    %c1_32 = arith.constant 1 : index
    %c1_33 = arith.constant 1 : index
    %30 = vector.load %arg10[%c0_31, %c1_32, %c1_33] : memref<2x18x18xf32, #tpu.memory_space<vmem>>, vector<1x16x16xf32>
    %31 = vector.shape_cast %30 : vector<1x16x16xf32> to vector<16x16xf32>
    %32 = vector.shape_cast %23 : vector<16x16xf32> to vector<1x16x16xf32>
    tpu.vector_store %arg10[%c0_31, %c1_32, %c1_33], %32 {strides = array<i32>} : memref<2x18x18xf32, #tpu.memory_space<vmem>>, vector<1x16x16xf32>,
    %c0_34 = arith.constant 0 : index
    %c1_35 = arith.constant 1 : index
    %c1_36 = arith.constant 1 : index
    %33 = vector.load %arg11[%c0_34, %c1_35, %c1_36] : memref<2x18x18xf32, #tpu.memory_space<vmem>>, vector<1x16x16xf32>
    %34 = vector.shape_cast %33 : vector<1x16x16xf32> to vector<16x16xf32>
    %35 = vector.shape_cast %27 : vector<16x16xf32> to vector<1x16x16xf32>
    tpu.vector_store %arg11[%c0_34, %c1_35, %c1_36], %35 {strides = array<i32>} : memref<2x18x18xf32, #tpu.memory_space<vmem>>, vector<1x16x16xf32>,
    %c1_37 = arith.constant 1 : index
    %c1_38 = arith.constant 1 : index
    %c1_39 = arith.constant 1 : index
    %36 = vector.load %arg10[%c1_37, %c1_38, %c1_39] : memref<2x18x18xf32, #tpu.memory_space<vmem>>, vector<1x16x16xf32>
    %37 = vector.shape_cast %36 : vector<1x16x16xf32> to vector<16x16xf32>
    %38 = vector.shape_cast %25 : vector<16x16xf32> to vector<1x16x16xf32>
    tpu.vector_store %arg10[%c1_37, %c1_38, %c1_39], %38 {strides = array<i32>} : memref<2x18x18xf32, #tpu.memory_space<vmem>>, vector<1x16x16xf32>,
    %c1_40 = arith.constant 1 : index
    %c1_41 = arith.constant 1 : index
    %c1_42 = arith.constant 1 : index
    %39 = vector.load %arg11[%c1_40, %c1_41, %c1_42] : memref<2x18x18xf32, #tpu.memory_space<vmem>>, vector<1x16x16xf32>
    %40 = vector.shape_cast %39 : vector<1x16x16xf32> to vector<16x16xf32>
    %41 = vector.shape_cast %29 : vector<16x16xf32> to vector<1x16x16xf32>
    tpu.vector_store %arg11[%c1_40, %c1_41, %c1_42], %41 {strides = array<i32>} : memref<2x18x18xf32, #tpu.memory_space<vmem>>, vector<1x16x16xf32>,
    %42 = vector.broadcast %6 : f32 to vector<16x16xf32>
    %43 = vector.broadcast %9 : f32 to vector<16x16xf32>
    %44 = vector.broadcast %12 : f32 to vector<16x16xf32>
    %45 = vector.broadcast %15 : f32 to vector<16x16xf32>
    %c0_43 = arith.constant 0 : index
    %c0_44 = arith.constant 0 : index
    %c0_45 = arith.constant 0 : index
    %46 = vector.load %arg10[%c0_43, %c0_44, %c0_45] : memref<2x18x18xf32, #tpu.memory_space<vmem>>, vector<1x16x16xf32>
    %47 = vector.shape_cast %46 : vector<1x16x16xf32> to vector<16x16xf32>
    %c0_46 = arith.constant 0 : index
    %c0_47 = arith.constant 0 : index
    %c0_48 = arith.constant 0 : index
    %48 = vector.load %arg11[%c0_46, %c0_47, %c0_48] : memref<2x18x18xf32, #tpu.memory_space<vmem>>, vector<1x16x16xf32>
    %49 = vector.shape_cast %48 : vector<1x16x16xf32> to vector<16x16xf32>
    %c0_49 = arith.constant 0 : index
    %50 = memref.load %arg3[%c0_49] : memref<36xf32, #tpu.memory_space<smem>>
    %c0_50 = arith.constant 0 : index
    %51 = memref.load %arg4[%c0_50] : memref<36xf32, #tpu.memory_space<smem>>
    %52 = vector.broadcast %50 : f32 to vector<16x16xf32>
    %53 = arith.mulf %52, %47 : vector<16x16xf32>
    %54 = arith.addf %42, %53 : vector<16x16xf32>
    %55 = vector.broadcast %51 : f32 to vector<16x16xf32>
    %56 = arith.mulf %55, %49 : vector<16x16xf32>
    %57 = arith.subf %54, %56 : vector<16x16xf32>
    %58 = vector.broadcast %50 : f32 to vector<16x16xf32>
    %59 = arith.mulf %58, %49 : vector<16x16xf32>
    %60 = arith.addf %44, %59 : vector<16x16xf32>
    %61 = vector.broadcast %51 : f32 to vector<16x16xf32>
    %62 = arith.mulf %61, %47 : vector<16x16xf32>
    %63 = arith.addf %60, %62 : vector<16x16xf32>
    %c18 = arith.constant 18 : index
    %64 = memref.load %arg3[%c18] : memref<36xf32, #tpu.memory_space<smem>>
    %c18_51 = arith.constant 18 : index
    %65 = memref.load %arg4[%c18_51] : memref<36xf32, #tpu.memory_space<smem>>
    %66 = vector.broadcast %64 : f32 to vector<16x16xf32>
    %67 = arith.mulf %66, %47 : vector<16x16xf32>
    %68 = arith.addf %43, %67 : vector<16x16xf32>
    %69 = vector.broadcast %65 : f32 to vector<16x16xf32>
    %70 = arith.mulf %69, %49 : vector<16x16xf32>
    %71 = arith.subf %68, %70 : vector<16x16xf32>
    %72 = vector.broadcast %64 : f32 to vector<16x16xf32>
    %73 = arith.mulf %72, %49 : vector<16x16xf32>
    %74 = arith.addf %45, %73 : vector<16x16xf32>
    %75 = vector.broadcast %65 : f32 to vector<16x16xf32>
    %76 = arith.mulf %75, %47 : vector<16x16xf32>
    %77 = arith.addf %74, %76 : vector<16x16xf32>
    %c0_52 = arith.constant 0 : index
    %c0_53 = arith.constant 0 : index
    %c1_54 = arith.constant 1 : index
    %78 = vector.load %arg10[%c0_52, %c0_53, %c1_54] : memref<2x18x18xf32, #tpu.memory_space<vmem>>, vector<1x16x16xf32>
    %79 = vector.shape_cast %78 : vector<1x16x16xf32> to vector<16x16xf32>
    %c0_55 = arith.constant 0 : index
    %c0_56 = arith.constant 0 : index
    %c1_57 = arith.constant 1 : index
    %80 = vector.load %arg11[%c0_55, %c0_56, %c1_57] : memref<2x18x18xf32, #tpu.memory_space<vmem>>, vector<1x16x16xf32>
    %81 = vector.shape_cast %80 : vector<1x16x16xf32> to vector<16x16xf32>
    %c1_58 = arith.constant 1 : index
    %82 = memref.load %arg3[%c1_58] : memref<36xf32, #tpu.memory_space<smem>>
    %c1_59 = arith.constant 1 : index
    %83 = memref.load %arg4[%c1_59] : memref<36xf32, #tpu.memory_space<smem>>
    %84 = vector.broadcast %82 : f32 to vector<16x16xf32>
    %85 = arith.mulf %84, %79 : vector<16x16xf32>
    %86 = arith.addf %57, %85 : vector<16x16xf32>
    %87 = vector.broadcast %83 : f32 to vector<16x16xf32>
    %88 = arith.mulf %87, %81 : vector<16x16xf32>
    %89 = arith.subf %86, %88 : vector<16x16xf32>
    %90 = vector.broadcast %82 : f32 to vector<16x16xf32>
    %91 = arith.mulf %90, %81 : vector<16x16xf32>
    %92 = arith.addf %63, %91 : vector<16x16xf32>
    %93 = vector.broadcast %83 : f32 to vector<16x16xf32>
    %94 = arith.mulf %93, %79 : vector<16x16xf32>
    %95 = arith.addf %92, %94 : vector<16x16xf32>
    %c19 = arith.constant 19 : index
    %96 = memref.load %arg3[%c19] : memref<36xf32, #tpu.memory_space<smem>>
    %c19_60 = arith.constant 19 : index
    %97 = memref.load %arg4[%c19_60] : memref<36xf32, #tpu.memory_space<smem>>
    %98 = vector.broadcast %96 : f32 to vector<16x16xf32>
    %99 = arith.mulf %98, %79 : vector<16x16xf32>
    %100 = arith.addf %71, %99 : vector<16x16xf32>
    %101 = vector.broadcast %97 : f32 to vector<16x16xf32>
    %102 = arith.mulf %101, %81 : vector<16x16xf32>
    %103 = arith.subf %100, %102 : vector<16x16xf32>
    %104 = vector.broadcast %96 : f32 to vector<16x16xf32>
    %105 = arith.mulf %104, %81 : vector<16x16xf32>
    %106 = arith.addf %77, %105 : vector<16x16xf32>
    %107 = vector.broadcast %97 : f32 to vector<16x16xf32>
    %108 = arith.mulf %107, %79 : vector<16x16xf32>
    %109 = arith.addf %106, %108 : vector<16x16xf32>
    %c0_61 = arith.constant 0 : index
    %c0_62 = arith.constant 0 : index
    %c2 = arith.constant 2 : index
    %110 = vector.load %arg10[%c0_61, %c0_62, %c2] : memref<2x18x18xf32, #tpu.memory_space<vmem>>, vector<1x16x16xf32>
    %111 = vector.shape_cast %110 : vector<1x16x16xf32> to vector<16x16xf32>
    %c0_63 = arith.constant 0 : index
    %c0_64 = arith.constant 0 : index
    %c2_65 = arith.constant 2 : index
    %112 = vector.load %arg11[%c0_63, %c0_64, %c2_65] : memref<2x18x18xf32, #tpu.memory_space<vmem>>, vector<1x16x16xf32>
    %113 = vector.shape_cast %112 : vector<1x16x16xf32> to vector<16x16xf32>
    %c2_66 = arith.constant 2 : index
    %114 = memref.load %arg3[%c2_66] : memref<36xf32, #tpu.memory_space<smem>>
    %c2_67 = arith.constant 2 : index
    %115 = memref.load %arg4[%c2_67] : memref<36xf32, #tpu.memory_space<smem>>
    %116 = vector.broadcast %114 : f32 to vector<16x16xf32>
    %117 = arith.mulf %116, %111 : vector<16x16xf32>
    %118 = arith.addf %89, %117 : vector<16x16xf32>
    %119 = vector.broadcast %115 : f32 to vector<16x16xf32>
    %120 = arith.mulf %119, %113 : vector<16x16xf32>
    %121 = arith.subf %118, %120 : vector<16x16xf32>
    %122 = vector.broadcast %114 : f32 to vector<16x16xf32>
    %123 = arith.mulf %122, %113 : vector<16x16xf32>
    %124 = arith.addf %95, %123 : vector<16x16xf32>
    %125 = vector.broadcast %115 : f32 to vector<16x16xf32>
    %126 = arith.mulf %125, %111 : vector<16x16xf32>
    %127 = arith.addf %124, %126 : vector<16x16xf32>
    %c20 = arith.constant 20 : index
    %128 = memref.load %arg3[%c20] : memref<36xf32, #tpu.memory_space<smem>>
    %c20_68 = arith.constant 20 : index
    %129 = memref.load %arg4[%c20_68] : memref<36xf32, #tpu.memory_space<smem>>
    %130 = vector.broadcast %128 : f32 to vector<16x16xf32>
    %131 = arith.mulf %130, %111 : vector<16x16xf32>
    %132 = arith.addf %103, %131 : vector<16x16xf32>
    %133 = vector.broadcast %129 : f32 to vector<16x16xf32>
    %134 = arith.mulf %133, %113 : vector<16x16xf32>
    %135 = arith.subf %132, %134 : vector<16x16xf32>
    %136 = vector.broadcast %128 : f32 to vector<16x16xf32>
    %137 = arith.mulf %136, %113 : vector<16x16xf32>
    %138 = arith.addf %109, %137 : vector<16x16xf32>
    %139 = vector.broadcast %129 : f32 to vector<16x16xf32>
    %140 = arith.mulf %139, %111 : vector<16x16xf32>
    %141 = arith.addf %138, %140 : vector<16x16xf32>
    %c0_69 = arith.constant 0 : index
    %c1_70 = arith.constant 1 : index
    %c0_71 = arith.constant 0 : index
    %142 = vector.load %arg10[%c0_69, %c1_70, %c0_71] : memref<2x18x18xf32, #tpu.memory_space<vmem>>, vector<1x16x16xf32>
    %143 = vector.shape_cast %142 : vector<1x16x16xf32> to vector<16x16xf32>
    %c0_72 = arith.constant 0 : index
    %c1_73 = arith.constant 1 : index
    %c0_74 = arith.constant 0 : index
    %144 = vector.load %arg11[%c0_72, %c1_73, %c0_74] : memref<2x18x18xf32, #tpu.memory_space<vmem>>, vector<1x16x16xf32>
    %145 = vector.shape_cast %144 : vector<1x16x16xf32> to vector<16x16xf32>
    %c3 = arith.constant 3 : index
    %146 = memref.load %arg3[%c3] : memref<36xf32, #tpu.memory_space<smem>>
    %c3_75 = arith.constant 3 : index
    %147 = memref.load %arg4[%c3_75] : memref<36xf32, #tpu.memory_space<smem>>
    %148 = vector.broadcast %146 : f32 to vector<16x16xf32>
    %149 = arith.mulf %148, %143 : vector<16x16xf32>
    %150 = arith.addf %121, %149 : vector<16x16xf32>
    %151 = vector.broadcast %147 : f32 to vector<16x16xf32>
    %152 = arith.mulf %151, %145 : vector<16x16xf32>
    %153 = arith.subf %150, %152 : vector<16x16xf32>
    %154 = vector.broadcast %146 : f32 to vector<16x16xf32>
    %155 = arith.mulf %154, %145 : vector<16x16xf32>
    %156 = arith.addf %127, %155 : vector<16x16xf32>
    %157 = vector.broadcast %147 : f32 to vector<16x16xf32>
    %158 = arith.mulf %157, %143 : vector<16x16xf32>
    %159 = arith.addf %156, %158 : vector<16x16xf32>
    %c21 = arith.constant 21 : index
    %160 = memref.load %arg3[%c21] : memref<36xf32, #tpu.memory_space<smem>>
    %c21_76 = arith.constant 21 : index
    %161 = memref.load %arg4[%c21_76] : memref<36xf32, #tpu.memory_space<smem>>
    %162 = vector.broadcast %160 : f32 to vector<16x16xf32>
    %163 = arith.mulf %162, %143 : vector<16x16xf32>
    %164 = arith.addf %135, %163 : vector<16x16xf32>
    %165 = vector.broadcast %161 : f32 to vector<16x16xf32>
    %166 = arith.mulf %165, %145 : vector<16x16xf32>
    %167 = arith.subf %164, %166 : vector<16x16xf32>
    %168 = vector.broadcast %160 : f32 to vector<16x16xf32>
    %169 = arith.mulf %168, %145 : vector<16x16xf32>
    %170 = arith.addf %141, %169 : vector<16x16xf32>
    %171 = vector.broadcast %161 : f32 to vector<16x16xf32>
    %172 = arith.mulf %171, %143 : vector<16x16xf32>
    %173 = arith.addf %170, %172 : vector<16x16xf32>
    %c0_77 = arith.constant 0 : index
    %c1_78 = arith.constant 1 : index
    %c1_79 = arith.constant 1 : index
    %174 = vector.load %arg10[%c0_77, %c1_78, %c1_79] : memref<2x18x18xf32, #tpu.memory_space<vmem>>, vector<1x16x16xf32>
    %175 = vector.shape_cast %174 : vector<1x16x16xf32> to vector<16x16xf32>
    %c0_80 = arith.constant 0 : index
    %c1_81 = arith.constant 1 : index
    %c1_82 = arith.constant 1 : index
    %176 = vector.load %arg11[%c0_80, %c1_81, %c1_82] : memref<2x18x18xf32, #tpu.memory_space<vmem>>, vector<1x16x16xf32>
    %177 = vector.shape_cast %176 : vector<1x16x16xf32> to vector<16x16xf32>
    %c4 = arith.constant 4 : index
    %178 = memref.load %arg3[%c4] : memref<36xf32, #tpu.memory_space<smem>>
    %c4_83 = arith.constant 4 : index
    %179 = memref.load %arg4[%c4_83] : memref<36xf32, #tpu.memory_space<smem>>
    %180 = vector.broadcast %178 : f32 to vector<16x16xf32>
    %181 = arith.mulf %180, %175 : vector<16x16xf32>
    %182 = arith.addf %153, %181 : vector<16x16xf32>
    %183 = vector.broadcast %179 : f32 to vector<16x16xf32>
    %184 = arith.mulf %183, %177 : vector<16x16xf32>
    %185 = arith.subf %182, %184 : vector<16x16xf32>
    %186 = vector.broadcast %178 : f32 to vector<16x16xf32>
    %187 = arith.mulf %186, %177 : vector<16x16xf32>
    %188 = arith.addf %159, %187 : vector<16x16xf32>
    %189 = vector.broadcast %179 : f32 to vector<16x16xf32>
    %190 = arith.mulf %189, %175 : vector<16x16xf32>
    %191 = arith.addf %188, %190 : vector<16x16xf32>
    %c22 = arith.constant 22 : index
    %192 = memref.load %arg3[%c22] : memref<36xf32, #tpu.memory_space<smem>>
    %c22_84 = arith.constant 22 : index
    %193 = memref.load %arg4[%c22_84] : memref<36xf32, #tpu.memory_space<smem>>
    %194 = vector.broadcast %192 : f32 to vector<16x16xf32>
    %195 = arith.mulf %194, %175 : vector<16x16xf32>
    %196 = arith.addf %167, %195 : vector<16x16xf32>
    %197 = vector.broadcast %193 : f32 to vector<16x16xf32>
    %198 = arith.mulf %197, %177 : vector<16x16xf32>
    %199 = arith.subf %196, %198 : vector<16x16xf32>
    %200 = vector.broadcast %192 : f32 to vector<16x16xf32>
    %201 = arith.mulf %200, %177 : vector<16x16xf32>
    %202 = arith.addf %173, %201 : vector<16x16xf32>
    %203 = vector.broadcast %193 : f32 to vector<16x16xf32>
    %204 = arith.mulf %203, %175 : vector<16x16xf32>
    %205 = arith.addf %202, %204 : vector<16x16xf32>
    %c0_85 = arith.constant 0 : index
    %c1_86 = arith.constant 1 : index
    %c2_87 = arith.constant 2 : index
    %206 = vector.load %arg10[%c0_85, %c1_86, %c2_87] : memref<2x18x18xf32, #tpu.memory_space<vmem>>, vector<1x16x16xf32>
    %207 = vector.shape_cast %206 : vector<1x16x16xf32> to vector<16x16xf32>
    %c0_88 = arith.constant 0 : index
    %c1_89 = arith.constant 1 : index
    %c2_90 = arith.constant 2 : index
    %208 = vector.load %arg11[%c0_88, %c1_89, %c2_90] : memref<2x18x18xf32, #tpu.memory_space<vmem>>, vector<1x16x16xf32>
    %209 = vector.shape_cast %208 : vector<1x16x16xf32> to vector<16x16xf32>
    %c5 = arith.constant 5 : index
    %210 = memref.load %arg3[%c5] : memref<36xf32, #tpu.memory_space<smem>>
    %c5_91 = arith.constant 5 : index
    %211 = memref.load %arg4[%c5_91] : memref<36xf32, #tpu.memory_space<smem>>
    %212 = vector.broadcast %210 : f32 to vector<16x16xf32>
    %213 = arith.mulf %212, %207 : vector<16x16xf32>
    %214 = arith.addf %185, %213 : vector<16x16xf32>
    %215 = vector.broadcast %211 : f32 to vector<16x16xf32>
    %216 = arith.mulf %215, %209 : vector<16x16xf32>
    %217 = arith.subf %214, %216 : vector<16x16xf32>
    %218 = vector.broadcast %210 : f32 to vector<16x16xf32>
    %219 = arith.mulf %218, %209 : vector<16x16xf32>
    %220 = arith.addf %191, %219 : vector<16x16xf32>
    %221 = vector.broadcast %211 : f32 to vector<16x16xf32>
    %222 = arith.mulf %221, %207 : vector<16x16xf32>
    %223 = arith.addf %220, %222 : vector<16x16xf32>
    %c23 = arith.constant 23 : index
    %224 = memref.load %arg3[%c23] : memref<36xf32, #tpu.memory_space<smem>>
    %c23_92 = arith.constant 23 : index
    %225 = memref.load %arg4[%c23_92] : memref<36xf32, #tpu.memory_space<smem>>
    %226 = vector.broadcast %224 : f32 to vector<16x16xf32>
    %227 = arith.mulf %226, %207 : vector<16x16xf32>
    %228 = arith.addf %199, %227 : vector<16x16xf32>
    %229 = vector.broadcast %225 : f32 to vector<16x16xf32>
    %230 = arith.mulf %229, %209 : vector<16x16xf32>
    %231 = arith.subf %228, %230 : vector<16x16xf32>
    %232 = vector.broadcast %224 : f32 to vector<16x16xf32>
    %233 = arith.mulf %232, %209 : vector<16x16xf32>
    %234 = arith.addf %205, %233 : vector<16x16xf32>
    %235 = vector.broadcast %225 : f32 to vector<16x16xf32>
    %236 = arith.mulf %235, %207 : vector<16x16xf32>
    %237 = arith.addf %234, %236 : vector<16x16xf32>
    %c0_93 = arith.constant 0 : index
    %c2_94 = arith.constant 2 : index
    %c0_95 = arith.constant 0 : index
    %238 = vector.load %arg10[%c0_93, %c2_94, %c0_95] : memref<2x18x18xf32, #tpu.memory_space<vmem>>, vector<1x16x16xf32>
    %239 = vector.shape_cast %238 : vector<1x16x16xf32> to vector<16x16xf32>
    %c0_96 = arith.constant 0 : index
    %c2_97 = arith.constant 2 : index
    %c0_98 = arith.constant 0 : index
    %240 = vector.load %arg11[%c0_96, %c2_97, %c0_98] : memref<2x18x18xf32, #tpu.memory_space<vmem>>, vector<1x16x16xf32>
    %241 = vector.shape_cast %240 : vector<1x16x16xf32> to vector<16x16xf32>
    %c6 = arith.constant 6 : index
    %242 = memref.load %arg3[%c6] : memref<36xf32, #tpu.memory_space<smem>>
    %c6_99 = arith.constant 6 : index
    %243 = memref.load %arg4[%c6_99] : memref<36xf32, #tpu.memory_space<smem>>
    %244 = vector.broadcast %242 : f32 to vector<16x16xf32>
    %245 = arith.mulf %244, %239 : vector<16x16xf32>
    %246 = arith.addf %217, %245 : vector<16x16xf32>
    %247 = vector.broadcast %243 : f32 to vector<16x16xf32>
    %248 = arith.mulf %247, %241 : vector<16x16xf32>
    %249 = arith.subf %246, %248 : vector<16x16xf32>
    %250 = vector.broadcast %242 : f32 to vector<16x16xf32>
    %251 = arith.mulf %250, %241 : vector<16x16xf32>
    %252 = arith.addf %223, %251 : vector<16x16xf32>
    %253 = vector.broadcast %243 : f32 to vector<16x16xf32>
    %254 = arith.mulf %253, %239 : vector<16x16xf32>
    %255 = arith.addf %252, %254 : vector<16x16xf32>
    %c24 = arith.constant 24 : index
    %256 = memref.load %arg3[%c24] : memref<36xf32, #tpu.memory_space<smem>>
    %c24_100 = arith.constant 24 : index
    %257 = memref.load %arg4[%c24_100] : memref<36xf32, #tpu.memory_space<smem>>
    %258 = vector.broadcast %256 : f32 to vector<16x16xf32>
    %259 = arith.mulf %258, %239 : vector<16x16xf32>
    %260 = arith.addf %231, %259 : vector<16x16xf32>
    %261 = vector.broadcast %257 : f32 to vector<16x16xf32>
    %262 = arith.mulf %261, %241 : vector<16x16xf32>
    %263 = arith.subf %260, %262 : vector<16x16xf32>
    %264 = vector.broadcast %256 : f32 to vector<16x16xf32>
    %265 = arith.mulf %264, %241 : vector<16x16xf32>
    %266 = arith.addf %237, %265 : vector<16x16xf32>
    %267 = vector.broadcast %257 : f32 to vector<16x16xf32>
    %268 = arith.mulf %267, %239 : vector<16x16xf32>
    %269 = arith.addf %266, %268 : vector<16x16xf32>
    %c0_101 = arith.constant 0 : index
    %c2_102 = arith.constant 2 : index
    %c1_103 = arith.constant 1 : index
    %270 = vector.load %arg10[%c0_101, %c2_102, %c1_103] : memref<2x18x18xf32, #tpu.memory_space<vmem>>, vector<1x16x16xf32>
    %271 = vector.shape_cast %270 : vector<1x16x16xf32> to vector<16x16xf32>
    %c0_104 = arith.constant 0 : index
    %c2_105 = arith.constant 2 : index
    %c1_106 = arith.constant 1 : index
    %272 = vector.load %arg11[%c0_104, %c2_105, %c1_106] : memref<2x18x18xf32, #tpu.memory_space<vmem>>, vector<1x16x16xf32>
    %273 = vector.shape_cast %272 : vector<1x16x16xf32> to vector<16x16xf32>
    %c7 = arith.constant 7 : index
    %274 = memref.load %arg3[%c7] : memref<36xf32, #tpu.memory_space<smem>>
    %c7_107 = arith.constant 7 : index
    %275 = memref.load %arg4[%c7_107] : memref<36xf32, #tpu.memory_space<smem>>
    %276 = vector.broadcast %274 : f32 to vector<16x16xf32>
    %277 = arith.mulf %276, %271 : vector<16x16xf32>
    %278 = arith.addf %249, %277 : vector<16x16xf32>
    %279 = vector.broadcast %275 : f32 to vector<16x16xf32>
    %280 = arith.mulf %279, %273 : vector<16x16xf32>
    %281 = arith.subf %278, %280 : vector<16x16xf32>
    %282 = vector.broadcast %274 : f32 to vector<16x16xf32>
    %283 = arith.mulf %282, %273 : vector<16x16xf32>
    %284 = arith.addf %255, %283 : vector<16x16xf32>
    %285 = vector.broadcast %275 : f32 to vector<16x16xf32>
    %286 = arith.mulf %285, %271 : vector<16x16xf32>
    %287 = arith.addf %284, %286 : vector<16x16xf32>
    %c25 = arith.constant 25 : index
    %288 = memref.load %arg3[%c25] : memref<36xf32, #tpu.memory_space<smem>>
    %c25_108 = arith.constant 25 : index
    %289 = memref.load %arg4[%c25_108] : memref<36xf32, #tpu.memory_space<smem>>
    %290 = vector.broadcast %288 : f32 to vector<16x16xf32>
    %291 = arith.mulf %290, %271 : vector<16x16xf32>
    %292 = arith.addf %263, %291 : vector<16x16xf32>
    %293 = vector.broadcast %289 : f32 to vector<16x16xf32>
    %294 = arith.mulf %293, %273 : vector<16x16xf32>
    %295 = arith.subf %292, %294 : vector<16x16xf32>
    %296 = vector.broadcast %288 : f32 to vector<16x16xf32>
    %297 = arith.mulf %296, %273 : vector<16x16xf32>
    %298 = arith.addf %269, %297 : vector<16x16xf32>
    %299 = vector.broadcast %289 : f32 to vector<16x16xf32>
    %300 = arith.mulf %299, %271 : vector<16x16xf32>
    %301 = arith.addf %298, %300 : vector<16x16xf32>
    %c0_109 = arith.constant 0 : index
    %c2_110 = arith.constant 2 : index
    %c2_111 = arith.constant 2 : index
    %302 = vector.load %arg10[%c0_109, %c2_110, %c2_111] : memref<2x18x18xf32, #tpu.memory_space<vmem>>, vector<1x16x16xf32>
    %303 = vector.shape_cast %302 : vector<1x16x16xf32> to vector<16x16xf32>
    %c0_112 = arith.constant 0 : index
    %c2_113 = arith.constant 2 : index
    %c2_114 = arith.constant 2 : index
    %304 = vector.load %arg11[%c0_112, %c2_113, %c2_114] : memref<2x18x18xf32, #tpu.memory_space<vmem>>, vector<1x16x16xf32>
    %305 = vector.shape_cast %304 : vector<1x16x16xf32> to vector<16x16xf32>
    %c8 = arith.constant 8 : index
    %306 = memref.load %arg3[%c8] : memref<36xf32, #tpu.memory_space<smem>>
    %c8_115 = arith.constant 8 : index
    %307 = memref.load %arg4[%c8_115] : memref<36xf32, #tpu.memory_space<smem>>
    %308 = vector.broadcast %306 : f32 to vector<16x16xf32>
    %309 = arith.mulf %308, %303 : vector<16x16xf32>
    %310 = arith.addf %281, %309 : vector<16x16xf32>
    %311 = vector.broadcast %307 : f32 to vector<16x16xf32>
    %312 = arith.mulf %311, %305 : vector<16x16xf32>
    %313 = arith.subf %310, %312 : vector<16x16xf32>
    %314 = vector.broadcast %306 : f32 to vector<16x16xf32>
    %315 = arith.mulf %314, %305 : vector<16x16xf32>
    %316 = arith.addf %287, %315 : vector<16x16xf32>
    %317 = vector.broadcast %307 : f32 to vector<16x16xf32>
    %318 = arith.mulf %317, %303 : vector<16x16xf32>
    %319 = arith.addf %316, %318 : vector<16x16xf32>
    %c26 = arith.constant 26 : index
    %320 = memref.load %arg3[%c26] : memref<36xf32, #tpu.memory_space<smem>>
    %c26_116 = arith.constant 26 : index
    %321 = memref.load %arg4[%c26_116] : memref<36xf32, #tpu.memory_space<smem>>
    %322 = vector.broadcast %320 : f32 to vector<16x16xf32>
    %323 = arith.mulf %322, %303 : vector<16x16xf32>
    %324 = arith.addf %295, %323 : vector<16x16xf32>
    %325 = vector.broadcast %321 : f32 to vector<16x16xf32>
    %326 = arith.mulf %325, %305 : vector<16x16xf32>
    %327 = arith.subf %324, %326 : vector<16x16xf32>
    %328 = vector.broadcast %320 : f32 to vector<16x16xf32>
    %329 = arith.mulf %328, %305 : vector<16x16xf32>
    %330 = arith.addf %301, %329 : vector<16x16xf32>
    %331 = vector.broadcast %321 : f32 to vector<16x16xf32>
    %332 = arith.mulf %331, %303 : vector<16x16xf32>
    %333 = arith.addf %330, %332 : vector<16x16xf32>
    %c1_117 = arith.constant 1 : index
    %c0_118 = arith.constant 0 : index
    %c0_119 = arith.constant 0 : index
    %334 = vector.load %arg10[%c1_117, %c0_118, %c0_119] : memref<2x18x18xf32, #tpu.memory_space<vmem>>, vector<1x16x16xf32>
    %335 = vector.shape_cast %334 : vector<1x16x16xf32> to vector<16x16xf32>
    %c1_120 = arith.constant 1 : index
    %c0_121 = arith.constant 0 : index
    %c0_122 = arith.constant 0 : index
    %336 = vector.load %arg11[%c1_120, %c0_121, %c0_122] : memref<2x18x18xf32, #tpu.memory_space<vmem>>, vector<1x16x16xf32>
    %337 = vector.shape_cast %336 : vector<1x16x16xf32> to vector<16x16xf32>
    %c9 = arith.constant 9 : index
    %338 = memref.load %arg3[%c9] : memref<36xf32, #tpu.memory_space<smem>>
    %c9_123 = arith.constant 9 : index
    %339 = memref.load %arg4[%c9_123] : memref<36xf32, #tpu.memory_space<smem>>
    %340 = vector.broadcast %338 : f32 to vector<16x16xf32>
    %341 = arith.mulf %340, %335 : vector<16x16xf32>
    %342 = arith.addf %313, %341 : vector<16x16xf32>
    %343 = vector.broadcast %339 : f32 to vector<16x16xf32>
    %344 = arith.mulf %343, %337 : vector<16x16xf32>
    %345 = arith.subf %342, %344 : vector<16x16xf32>
    %346 = vector.broadcast %338 : f32 to vector<16x16xf32>
    %347 = arith.mulf %346, %337 : vector<16x16xf32>
    %348 = arith.addf %319, %347 : vector<16x16xf32>
    %349 = vector.broadcast %339 : f32 to vector<16x16xf32>
    %350 = arith.mulf %349, %335 : vector<16x16xf32>
    %351 = arith.addf %348, %350 : vector<16x16xf32>
    %c27 = arith.constant 27 : index
    %352 = memref.load %arg3[%c27] : memref<36xf32, #tpu.memory_space<smem>>
    %c27_124 = arith.constant 27 : index
    %353 = memref.load %arg4[%c27_124] : memref<36xf32, #tpu.memory_space<smem>>
    %354 = vector.broadcast %352 : f32 to vector<16x16xf32>
    %355 = arith.mulf %354, %335 : vector<16x16xf32>
    %356 = arith.addf %327, %355 : vector<16x16xf32>
    %357 = vector.broadcast %353 : f32 to vector<16x16xf32>
    %358 = arith.mulf %357, %337 : vector<16x16xf32>
    %359 = arith.subf %356, %358 : vector<16x16xf32>
    %360 = vector.broadcast %352 : f32 to vector<16x16xf32>
    %361 = arith.mulf %360, %337 : vector<16x16xf32>
    %362 = arith.addf %333, %361 : vector<16x16xf32>
    %363 = vector.broadcast %353 : f32 to vector<16x16xf32>
    %364 = arith.mulf %363, %335 : vector<16x16xf32>
    %365 = arith.addf %362, %364 : vector<16x16xf32>
    %c1_125 = arith.constant 1 : index
    %c0_126 = arith.constant 0 : index
    %c1_127 = arith.constant 1 : index
    %366 = vector.load %arg10[%c1_125, %c0_126, %c1_127] : memref<2x18x18xf32, #tpu.memory_space<vmem>>, vector<1x16x16xf32>
    %367 = vector.shape_cast %366 : vector<1x16x16xf32> to vector<16x16xf32>
    %c1_128 = arith.constant 1 : index
    %c0_129 = arith.constant 0 : index
    %c1_130 = arith.constant 1 : index
    %368 = vector.load %arg11[%c1_128, %c0_129, %c1_130] : memref<2x18x18xf32, #tpu.memory_space<vmem>>, vector<1x16x16xf32>
    %369 = vector.shape_cast %368 : vector<1x16x16xf32> to vector<16x16xf32>
    %c10 = arith.constant 10 : index
    %370 = memref.load %arg3[%c10] : memref<36xf32, #tpu.memory_space<smem>>
    %c10_131 = arith.constant 10 : index
    %371 = memref.load %arg4[%c10_131] : memref<36xf32, #tpu.memory_space<smem>>
    %372 = vector.broadcast %370 : f32 to vector<16x16xf32>
    %373 = arith.mulf %372, %367 : vector<16x16xf32>
    %374 = arith.addf %345, %373 : vector<16x16xf32>
    %375 = vector.broadcast %371 : f32 to vector<16x16xf32>
    %376 = arith.mulf %375, %369 : vector<16x16xf32>
    %377 = arith.subf %374, %376 : vector<16x16xf32>
    %378 = vector.broadcast %370 : f32 to vector<16x16xf32>
    %379 = arith.mulf %378, %369 : vector<16x16xf32>
    %380 = arith.addf %351, %379 : vector<16x16xf32>
    %381 = vector.broadcast %371 : f32 to vector<16x16xf32>
    %382 = arith.mulf %381, %367 : vector<16x16xf32>
    %383 = arith.addf %380, %382 : vector<16x16xf32>
    %c28 = arith.constant 28 : index
    %384 = memref.load %arg3[%c28] : memref<36xf32, #tpu.memory_space<smem>>
    %c28_132 = arith.constant 28 : index
    %385 = memref.load %arg4[%c28_132] : memref<36xf32, #tpu.memory_space<smem>>
    %386 = vector.broadcast %384 : f32 to vector<16x16xf32>
    %387 = arith.mulf %386, %367 : vector<16x16xf32>
    %388 = arith.addf %359, %387 : vector<16x16xf32>
    %389 = vector.broadcast %385 : f32 to vector<16x16xf32>
    %390 = arith.mulf %389, %369 : vector<16x16xf32>
    %391 = arith.subf %388, %390 : vector<16x16xf32>
    %392 = vector.broadcast %384 : f32 to vector<16x16xf32>
    %393 = arith.mulf %392, %369 : vector<16x16xf32>
    %394 = arith.addf %365, %393 : vector<16x16xf32>
    %395 = vector.broadcast %385 : f32 to vector<16x16xf32>
    %396 = arith.mulf %395, %367 : vector<16x16xf32>
    %397 = arith.addf %394, %396 : vector<16x16xf32>
    %c1_133 = arith.constant 1 : index
    %c0_134 = arith.constant 0 : index
    %c2_135 = arith.constant 2 : index
    %398 = vector.load %arg10[%c1_133, %c0_134, %c2_135] : memref<2x18x18xf32, #tpu.memory_space<vmem>>, vector<1x16x16xf32>
    %399 = vector.shape_cast %398 : vector<1x16x16xf32> to vector<16x16xf32>
    %c1_136 = arith.constant 1 : index
    %c0_137 = arith.constant 0 : index
    %c2_138 = arith.constant 2 : index
    %400 = vector.load %arg11[%c1_136, %c0_137, %c2_138] : memref<2x18x18xf32, #tpu.memory_space<vmem>>, vector<1x16x16xf32>
    %401 = vector.shape_cast %400 : vector<1x16x16xf32> to vector<16x16xf32>
    %c11 = arith.constant 11 : index
    %402 = memref.load %arg3[%c11] : memref<36xf32, #tpu.memory_space<smem>>
    %c11_139 = arith.constant 11 : index
    %403 = memref.load %arg4[%c11_139] : memref<36xf32, #tpu.memory_space<smem>>
    %404 = vector.broadcast %402 : f32 to vector<16x16xf32>
    %405 = arith.mulf %404, %399 : vector<16x16xf32>
    %406 = arith.addf %377, %405 : vector<16x16xf32>
    %407 = vector.broadcast %403 : f32 to vector<16x16xf32>
    %408 = arith.mulf %407, %401 : vector<16x16xf32>
    %409 = arith.subf %406, %408 : vector<16x16xf32>
    %410 = vector.broadcast %402 : f32 to vector<16x16xf32>
    %411 = arith.mulf %410, %401 : vector<16x16xf32>
    %412 = arith.addf %383, %411 : vector<16x16xf32>
    %413 = vector.broadcast %403 : f32 to vector<16x16xf32>
    %414 = arith.mulf %413, %399 : vector<16x16xf32>
    %415 = arith.addf %412, %414 : vector<16x16xf32>
    %c29 = arith.constant 29 : index
    %416 = memref.load %arg3[%c29] : memref<36xf32, #tpu.memory_space<smem>>
    %c29_140 = arith.constant 29 : index
    %417 = memref.load %arg4[%c29_140] : memref<36xf32, #tpu.memory_space<smem>>
    %418 = vector.broadcast %416 : f32 to vector<16x16xf32>
    %419 = arith.mulf %418, %399 : vector<16x16xf32>
    %420 = arith.addf %391, %419 : vector<16x16xf32>
    %421 = vector.broadcast %417 : f32 to vector<16x16xf32>
    %422 = arith.mulf %421, %401 : vector<16x16xf32>
    %423 = arith.subf %420, %422 : vector<16x16xf32>
    %424 = vector.broadcast %416 : f32 to vector<16x16xf32>
    %425 = arith.mulf %424, %401 : vector<16x16xf32>
    %426 = arith.addf %397, %425 : vector<16x16xf32>
    %427 = vector.broadcast %417 : f32 to vector<16x16xf32>
    %428 = arith.mulf %427, %399 : vector<16x16xf32>
    %429 = arith.addf %426, %428 : vector<16x16xf32>
    %c1_141 = arith.constant 1 : index
    %c1_142 = arith.constant 1 : index
    %c0_143 = arith.constant 0 : index
    %430 = vector.load %arg10[%c1_141, %c1_142, %c0_143] : memref<2x18x18xf32, #tpu.memory_space<vmem>>, vector<1x16x16xf32>
    %431 = vector.shape_cast %430 : vector<1x16x16xf32> to vector<16x16xf32>
    %c1_144 = arith.constant 1 : index
    %c1_145 = arith.constant 1 : index
    %c0_146 = arith.constant 0 : index
    %432 = vector.load %arg11[%c1_144, %c1_145, %c0_146] : memref<2x18x18xf32, #tpu.memory_space<vmem>>, vector<1x16x16xf32>
    %433 = vector.shape_cast %432 : vector<1x16x16xf32> to vector<16x16xf32>
    %c12 = arith.constant 12 : index
    %434 = memref.load %arg3[%c12] : memref<36xf32, #tpu.memory_space<smem>>
    %c12_147 = arith.constant 12 : index
    %435 = memref.load %arg4[%c12_147] : memref<36xf32, #tpu.memory_space<smem>>
    %436 = vector.broadcast %434 : f32 to vector<16x16xf32>
    %437 = arith.mulf %436, %431 : vector<16x16xf32>
    %438 = arith.addf %409, %437 : vector<16x16xf32>
    %439 = vector.broadcast %435 : f32 to vector<16x16xf32>
    %440 = arith.mulf %439, %433 : vector<16x16xf32>
    %441 = arith.subf %438, %440 : vector<16x16xf32>
    %442 = vector.broadcast %434 : f32 to vector<16x16xf32>
    %443 = arith.mulf %442, %433 : vector<16x16xf32>
    %444 = arith.addf %415, %443 : vector<16x16xf32>
    %445 = vector.broadcast %435 : f32 to vector<16x16xf32>
    %446 = arith.mulf %445, %431 : vector<16x16xf32>
    %447 = arith.addf %444, %446 : vector<16x16xf32>
    %c30 = arith.constant 30 : index
    %448 = memref.load %arg3[%c30] : memref<36xf32, #tpu.memory_space<smem>>
    %c30_148 = arith.constant 30 : index
    %449 = memref.load %arg4[%c30_148] : memref<36xf32, #tpu.memory_space<smem>>
    %450 = vector.broadcast %448 : f32 to vector<16x16xf32>
    %451 = arith.mulf %450, %431 : vector<16x16xf32>
    %452 = arith.addf %423, %451 : vector<16x16xf32>
    %453 = vector.broadcast %449 : f32 to vector<16x16xf32>
    %454 = arith.mulf %453, %433 : vector<16x16xf32>
    %455 = arith.subf %452, %454 : vector<16x16xf32>
    %456 = vector.broadcast %448 : f32 to vector<16x16xf32>
    %457 = arith.mulf %456, %433 : vector<16x16xf32>
    %458 = arith.addf %429, %457 : vector<16x16xf32>
    %459 = vector.broadcast %449 : f32 to vector<16x16xf32>
    %460 = arith.mulf %459, %431 : vector<16x16xf32>
    %461 = arith.addf %458, %460 : vector<16x16xf32>
    %c1_149 = arith.constant 1 : index
    %c1_150 = arith.constant 1 : index
    %c1_151 = arith.constant 1 : index
    %462 = vector.load %arg10[%c1_149, %c1_150, %c1_151] : memref<2x18x18xf32, #tpu.memory_space<vmem>>, vector<1x16x16xf32>
    %463 = vector.shape_cast %462 : vector<1x16x16xf32> to vector<16x16xf32>
    %c1_152 = arith.constant 1 : index
    %c1_153 = arith.constant 1 : index
    %c1_154 = arith.constant 1 : index
    %464 = vector.load %arg11[%c1_152, %c1_153, %c1_154] : memref<2x18x18xf32, #tpu.memory_space<vmem>>, vector<1x16x16xf32>
    %465 = vector.shape_cast %464 : vector<1x16x16xf32> to vector<16x16xf32>
    %c13 = arith.constant 13 : index
    %466 = memref.load %arg3[%c13] : memref<36xf32, #tpu.memory_space<smem>>
    %c13_155 = arith.constant 13 : index
    %467 = memref.load %arg4[%c13_155] : memref<36xf32, #tpu.memory_space<smem>>
    %468 = vector.broadcast %466 : f32 to vector<16x16xf32>
    %469 = arith.mulf %468, %463 : vector<16x16xf32>
    %470 = arith.addf %441, %469 : vector<16x16xf32>
    %471 = vector.broadcast %467 : f32 to vector<16x16xf32>
    %472 = arith.mulf %471, %465 : vector<16x16xf32>
    %473 = arith.subf %470, %472 : vector<16x16xf32>
    %474 = vector.broadcast %466 : f32 to vector<16x16xf32>
    %475 = arith.mulf %474, %465 : vector<16x16xf32>
    %476 = arith.addf %447, %475 : vector<16x16xf32>
    %477 = vector.broadcast %467 : f32 to vector<16x16xf32>
    %478 = arith.mulf %477, %463 : vector<16x16xf32>
    %479 = arith.addf %476, %478 : vector<16x16xf32>
    %c31 = arith.constant 31 : index
    %480 = memref.load %arg3[%c31] : memref<36xf32, #tpu.memory_space<smem>>
    %c31_156 = arith.constant 31 : index
    %481 = memref.load %arg4[%c31_156] : memref<36xf32, #tpu.memory_space<smem>>
    %482 = vector.broadcast %480 : f32 to vector<16x16xf32>
    %483 = arith.mulf %482, %463 : vector<16x16xf32>
    %484 = arith.addf %455, %483 : vector<16x16xf32>
    %485 = vector.broadcast %481 : f32 to vector<16x16xf32>
    %486 = arith.mulf %485, %465 : vector<16x16xf32>
    %487 = arith.subf %484, %486 : vector<16x16xf32>
    %488 = vector.broadcast %480 : f32 to vector<16x16xf32>
    %489 = arith.mulf %488, %465 : vector<16x16xf32>
    %490 = arith.addf %461, %489 : vector<16x16xf32>
    %491 = vector.broadcast %481 : f32 to vector<16x16xf32>
    %492 = arith.mulf %491, %463 : vector<16x16xf32>
    %493 = arith.addf %490, %492 : vector<16x16xf32>
    %c1_157 = arith.constant 1 : index
    %c1_158 = arith.constant 1 : index
    %c2_159 = arith.constant 2 : index
    %494 = vector.load %arg10[%c1_157, %c1_158, %c2_159] : memref<2x18x18xf32, #tpu.memory_space<vmem>>, vector<1x16x16xf32>
    %495 = vector.shape_cast %494 : vector<1x16x16xf32> to vector<16x16xf32>
    %c1_160 = arith.constant 1 : index
    %c1_161 = arith.constant 1 : index
    %c2_162 = arith.constant 2 : index
    %496 = vector.load %arg11[%c1_160, %c1_161, %c2_162] : memref<2x18x18xf32, #tpu.memory_space<vmem>>, vector<1x16x16xf32>
    %497 = vector.shape_cast %496 : vector<1x16x16xf32> to vector<16x16xf32>
    %c14 = arith.constant 14 : index
    %498 = memref.load %arg3[%c14] : memref<36xf32, #tpu.memory_space<smem>>
    %c14_163 = arith.constant 14 : index
    %499 = memref.load %arg4[%c14_163] : memref<36xf32, #tpu.memory_space<smem>>
    %500 = vector.broadcast %498 : f32 to vector<16x16xf32>
    %501 = arith.mulf %500, %495 : vector<16x16xf32>
    %502 = arith.addf %473, %501 : vector<16x16xf32>
    %503 = vector.broadcast %499 : f32 to vector<16x16xf32>
    %504 = arith.mulf %503, %497 : vector<16x16xf32>
    %505 = arith.subf %502, %504 : vector<16x16xf32>
    %506 = vector.broadcast %498 : f32 to vector<16x16xf32>
    %507 = arith.mulf %506, %497 : vector<16x16xf32>
    %508 = arith.addf %479, %507 : vector<16x16xf32>
    %509 = vector.broadcast %499 : f32 to vector<16x16xf32>
    %510 = arith.mulf %509, %495 : vector<16x16xf32>
    %511 = arith.addf %508, %510 : vector<16x16xf32>
    %c32 = arith.constant 32 : index
    %512 = memref.load %arg3[%c32] : memref<36xf32, #tpu.memory_space<smem>>
    %c32_164 = arith.constant 32 : index
    %513 = memref.load %arg4[%c32_164] : memref<36xf32, #tpu.memory_space<smem>>
    %514 = vector.broadcast %512 : f32 to vector<16x16xf32>
    %515 = arith.mulf %514, %495 : vector<16x16xf32>
    %516 = arith.addf %487, %515 : vector<16x16xf32>
    %517 = vector.broadcast %513 : f32 to vector<16x16xf32>
    %518 = arith.mulf %517, %497 : vector<16x16xf32>
    %519 = arith.subf %516, %518 : vector<16x16xf32>
    %520 = vector.broadcast %512 : f32 to vector<16x16xf32>
    %521 = arith.mulf %520, %497 : vector<16x16xf32>
    %522 = arith.addf %493, %521 : vector<16x16xf32>
    %523 = vector.broadcast %513 : f32 to vector<16x16xf32>
    %524 = arith.mulf %523, %495 : vector<16x16xf32>
    %525 = arith.addf %522, %524 : vector<16x16xf32>
    %c1_165 = arith.constant 1 : index
    %c2_166 = arith.constant 2 : index
    %c0_167 = arith.constant 0 : index
    %526 = vector.load %arg10[%c1_165, %c2_166, %c0_167] : memref<2x18x18xf32, #tpu.memory_space<vmem>>, vector<1x16x16xf32>
    %527 = vector.shape_cast %526 : vector<1x16x16xf32> to vector<16x16xf32>
    %c1_168 = arith.constant 1 : index
    %c2_169 = arith.constant 2 : index
    %c0_170 = arith.constant 0 : index
    %528 = vector.load %arg11[%c1_168, %c2_169, %c0_170] : memref<2x18x18xf32, #tpu.memory_space<vmem>>, vector<1x16x16xf32>
    %529 = vector.shape_cast %528 : vector<1x16x16xf32> to vector<16x16xf32>
    %c15 = arith.constant 15 : index
    %530 = memref.load %arg3[%c15] : memref<36xf32, #tpu.memory_space<smem>>
    %c15_171 = arith.constant 15 : index
    %531 = memref.load %arg4[%c15_171] : memref<36xf32, #tpu.memory_space<smem>>
    %532 = vector.broadcast %530 : f32 to vector<16x16xf32>
    %533 = arith.mulf %532, %527 : vector<16x16xf32>
    %534 = arith.addf %505, %533 : vector<16x16xf32>
    %535 = vector.broadcast %531 : f32 to vector<16x16xf32>
    %536 = arith.mulf %535, %529 : vector<16x16xf32>
    %537 = arith.subf %534, %536 : vector<16x16xf32>
    %538 = vector.broadcast %530 : f32 to vector<16x16xf32>
    %539 = arith.mulf %538, %529 : vector<16x16xf32>
    %540 = arith.addf %511, %539 : vector<16x16xf32>
    %541 = vector.broadcast %531 : f32 to vector<16x16xf32>
    %542 = arith.mulf %541, %527 : vector<16x16xf32>
    %543 = arith.addf %540, %542 : vector<16x16xf32>
    %c33 = arith.constant 33 : index
    %544 = memref.load %arg3[%c33] : memref<36xf32, #tpu.memory_space<smem>>
    %c33_172 = arith.constant 33 : index
    %545 = memref.load %arg4[%c33_172] : memref<36xf32, #tpu.memory_space<smem>>
    %546 = vector.broadcast %544 : f32 to vector<16x16xf32>
    %547 = arith.mulf %546, %527 : vector<16x16xf32>
    %548 = arith.addf %519, %547 : vector<16x16xf32>
    %549 = vector.broadcast %545 : f32 to vector<16x16xf32>
    %550 = arith.mulf %549, %529 : vector<16x16xf32>
    %551 = arith.subf %548, %550 : vector<16x16xf32>
    %552 = vector.broadcast %544 : f32 to vector<16x16xf32>
    %553 = arith.mulf %552, %529 : vector<16x16xf32>
    %554 = arith.addf %525, %553 : vector<16x16xf32>
    %555 = vector.broadcast %545 : f32 to vector<16x16xf32>
    %556 = arith.mulf %555, %527 : vector<16x16xf32>
    %557 = arith.addf %554, %556 : vector<16x16xf32>
    %c1_173 = arith.constant 1 : index
    %c2_174 = arith.constant 2 : index
    %c1_175 = arith.constant 1 : index
    %558 = vector.load %arg10[%c1_173, %c2_174, %c1_175] : memref<2x18x18xf32, #tpu.memory_space<vmem>>, vector<1x16x16xf32>
    %559 = vector.shape_cast %558 : vector<1x16x16xf32> to vector<16x16xf32>
    %c1_176 = arith.constant 1 : index
    %c2_177 = arith.constant 2 : index
    %c1_178 = arith.constant 1 : index
    %560 = vector.load %arg11[%c1_176, %c2_177, %c1_178] : memref<2x18x18xf32, #tpu.memory_space<vmem>>, vector<1x16x16xf32>
    %561 = vector.shape_cast %560 : vector<1x16x16xf32> to vector<16x16xf32>
    %c16 = arith.constant 16 : index
    %562 = memref.load %arg3[%c16] : memref<36xf32, #tpu.memory_space<smem>>
    %c16_179 = arith.constant 16 : index
    %563 = memref.load %arg4[%c16_179] : memref<36xf32, #tpu.memory_space<smem>>
    %564 = vector.broadcast %562 : f32 to vector<16x16xf32>
    %565 = arith.mulf %564, %559 : vector<16x16xf32>
    %566 = arith.addf %537, %565 : vector<16x16xf32>
    %567 = vector.broadcast %563 : f32 to vector<16x16xf32>
    %568 = arith.mulf %567, %561 : vector<16x16xf32>
    %569 = arith.subf %566, %568 : vector<16x16xf32>
    %570 = vector.broadcast %562 : f32 to vector<16x16xf32>
    %571 = arith.mulf %570, %561 : vector<16x16xf32>
    %572 = arith.addf %543, %571 : vector<16x16xf32>
    %573 = vector.broadcast %563 : f32 to vector<16x16xf32>
    %574 = arith.mulf %573, %559 : vector<16x16xf32>
    %575 = arith.addf %572, %574 : vector<16x16xf32>
    %c34 = arith.constant 34 : index
    %576 = memref.load %arg3[%c34] : memref<36xf32, #tpu.memory_space<smem>>
    %c34_180 = arith.constant 34 : index
    %577 = memref.load %arg4[%c34_180] : memref<36xf32, #tpu.memory_space<smem>>
    %578 = vector.broadcast %576 : f32 to vector<16x16xf32>
    %579 = arith.mulf %578, %559 : vector<16x16xf32>
    %580 = arith.addf %551, %579 : vector<16x16xf32>
    %581 = vector.broadcast %577 : f32 to vector<16x16xf32>
    %582 = arith.mulf %581, %561 : vector<16x16xf32>
    %583 = arith.subf %580, %582 : vector<16x16xf32>
    %584 = vector.broadcast %576 : f32 to vector<16x16xf32>
    %585 = arith.mulf %584, %561 : vector<16x16xf32>
    %586 = arith.addf %557, %585 : vector<16x16xf32>
    %587 = vector.broadcast %577 : f32 to vector<16x16xf32>
    %588 = arith.mulf %587, %559 : vector<16x16xf32>
    %589 = arith.addf %586, %588 : vector<16x16xf32>
    %c1_181 = arith.constant 1 : index
    %c2_182 = arith.constant 2 : index
    %c2_183 = arith.constant 2 : index
    %590 = vector.load %arg10[%c1_181, %c2_182, %c2_183] : memref<2x18x18xf32, #tpu.memory_space<vmem>>, vector<1x16x16xf32>
    %591 = vector.shape_cast %590 : vector<1x16x16xf32> to vector<16x16xf32>
    %c1_184 = arith.constant 1 : index
    %c2_185 = arith.constant 2 : index
    %c2_186 = arith.constant 2 : index
    %592 = vector.load %arg11[%c1_184, %c2_185, %c2_186] : memref<2x18x18xf32, #tpu.memory_space<vmem>>, vector<1x16x16xf32>
    %593 = vector.shape_cast %592 : vector<1x16x16xf32> to vector<16x16xf32>
    %c17 = arith.constant 17 : index
    %594 = memref.load %arg3[%c17] : memref<36xf32, #tpu.memory_space<smem>>
    %c17_187 = arith.constant 17 : index
    %595 = memref.load %arg4[%c17_187] : memref<36xf32, #tpu.memory_space<smem>>
    %596 = vector.broadcast %594 : f32 to vector<16x16xf32>
    %597 = arith.mulf %596, %591 : vector<16x16xf32>
    %598 = arith.addf %569, %597 : vector<16x16xf32>
    %599 = vector.broadcast %595 : f32 to vector<16x16xf32>
    %600 = arith.mulf %599, %593 : vector<16x16xf32>
    %601 = arith.subf %598, %600 : vector<16x16xf32>
    %602 = vector.broadcast %594 : f32 to vector<16x16xf32>
    %603 = arith.mulf %602, %593 : vector<16x16xf32>
    %604 = arith.addf %575, %603 : vector<16x16xf32>
    %605 = vector.broadcast %595 : f32 to vector<16x16xf32>
    %606 = arith.mulf %605, %591 : vector<16x16xf32>
    %607 = arith.addf %604, %606 : vector<16x16xf32>
    %c35 = arith.constant 35 : index
    %608 = memref.load %arg3[%c35] : memref<36xf32, #tpu.memory_space<smem>>
    %c35_188 = arith.constant 35 : index
    %609 = memref.load %arg4[%c35_188] : memref<36xf32, #tpu.memory_space<smem>>
    %610 = vector.broadcast %608 : f32 to vector<16x16xf32>
    %611 = arith.mulf %610, %591 : vector<16x16xf32>
    %612 = arith.addf %583, %611 : vector<16x16xf32>
    %613 = vector.broadcast %609 : f32 to vector<16x16xf32>
    %614 = arith.mulf %613, %593 : vector<16x16xf32>
    %615 = arith.subf %612, %614 : vector<16x16xf32>
    %616 = vector.broadcast %608 : f32 to vector<16x16xf32>
    %617 = arith.mulf %616, %593 : vector<16x16xf32>
    %618 = arith.addf %589, %617 : vector<16x16xf32>
    %619 = vector.broadcast %609 : f32 to vector<16x16xf32>
    %620 = arith.mulf %619, %591 : vector<16x16xf32>
    %621 = arith.addf %618, %620 : vector<16x16xf32>
    %c0_189 = arith.constant 0 : index
    %c1_190 = arith.constant 1 : index
    %c1_191 = arith.constant 1 : index
    %622 = vector.load %arg10[%c0_189, %c1_190, %c1_191] : memref<2x18x18xf32, #tpu.memory_space<vmem>>, vector<1x16x16xf32>
    %623 = vector.shape_cast %622 : vector<1x16x16xf32> to vector<16x16xf32>
    %624 = vector.shape_cast %601 : vector<16x16xf32> to vector<1x16x16xf32>
    tpu.vector_store %arg10[%c0_189, %c1_190, %c1_191], %624 {strides = array<i32>} : memref<2x18x18xf32, #tpu.memory_space<vmem>>, vector<1x16x16xf32>,
    %c0_192 = arith.constant 0 : index
    %c1_193 = arith.constant 1 : index
    %c1_194 = arith.constant 1 : index
    %625 = vector.load %arg11[%c0_192, %c1_193, %c1_194] : memref<2x18x18xf32, #tpu.memory_space<vmem>>, vector<1x16x16xf32>
    %626 = vector.shape_cast %625 : vector<1x16x16xf32> to vector<16x16xf32>
    %627 = vector.shape_cast %607 : vector<16x16xf32> to vector<1x16x16xf32>
    tpu.vector_store %arg11[%c0_192, %c1_193, %c1_194], %627 {strides = array<i32>} : memref<2x18x18xf32, #tpu.memory_space<vmem>>, vector<1x16x16xf32>,
    %c1_195 = arith.constant 1 : index
    %c1_196 = arith.constant 1 : index
    %c1_197 = arith.constant 1 : index
    %628 = vector.load %arg10[%c1_195, %c1_196, %c1_197] : memref<2x18x18xf32, #tpu.memory_space<vmem>>, vector<1x16x16xf32>
    %629 = vector.shape_cast %628 : vector<1x16x16xf32> to vector<16x16xf32>
    %630 = vector.shape_cast %615 : vector<16x16xf32> to vector<1x16x16xf32>
    tpu.vector_store %arg10[%c1_195, %c1_196, %c1_197], %630 {strides = array<i32>} : memref<2x18x18xf32, #tpu.memory_space<vmem>>, vector<1x16x16xf32>,
    %c1_198 = arith.constant 1 : index
    %c1_199 = arith.constant 1 : index
    %c1_200 = arith.constant 1 : index
    %631 = vector.load %arg11[%c1_198, %c1_199, %c1_200] : memref<2x18x18xf32, #tpu.memory_space<vmem>>, vector<1x16x16xf32>
    %632 = vector.shape_cast %631 : vector<1x16x16xf32> to vector<16x16xf32>
    %633 = vector.shape_cast %621 : vector<16x16xf32> to vector<1x16x16xf32>
    tpu.vector_store %arg11[%c1_198, %c1_199, %c1_200], %633 {strides = array<i32>} : memref<2x18x18xf32, #tpu.memory_space<vmem>>, vector<1x16x16xf32>,
    %634 = vector.broadcast %6 : f32 to vector<16x16xf32>
    %635 = vector.broadcast %9 : f32 to vector<16x16xf32>
    %636 = vector.broadcast %12 : f32 to vector<16x16xf32>
    %637 = vector.broadcast %15 : f32 to vector<16x16xf32>
    %c0_201 = arith.constant 0 : index
    %c0_202 = arith.constant 0 : index
    %c0_203 = arith.constant 0 : index
    %638 = vector.load %arg10[%c0_201, %c0_202, %c0_203] : memref<2x18x18xf32, #tpu.memory_space<vmem>>, vector<1x16x16xf32>
    %639 = vector.shape_cast %638 : vector<1x16x16xf32> to vector<16x16xf32>
    %c0_204 = arith.constant 0 : index
    %c0_205 = arith.constant 0 : index
    %c0_206 = arith.constant 0 : index
    %640 = vector.load %arg11[%c0_204, %c0_205, %c0_206] : memref<2x18x18xf32, #tpu.memory_space<vmem>>, vector<1x16x16xf32>
    %641 = vector.shape_cast %640 : vector<1x16x16xf32> to vector<16x16xf32>
    %c0_207 = arith.constant 0 : index
    %642 = memref.load %arg3[%c0_207] : memref<36xf32, #tpu.memory_space<smem>>
    %c0_208 = arith.constant 0 : index
    %643 = memref.load %arg4[%c0_208] : memref<36xf32, #tpu.memory_space<smem>>
    %644 = vector.broadcast %642 : f32 to vector<16x16xf32>
    %645 = arith.mulf %644, %639 : vector<16x16xf32>
    %646 = arith.addf %634, %645 : vector<16x16xf32>
    %647 = vector.broadcast %643 : f32 to vector<16x16xf32>
    %648 = arith.mulf %647, %641 : vector<16x16xf32>
    %649 = arith.subf %646, %648 : vector<16x16xf32>
    %650 = vector.broadcast %642 : f32 to vector<16x16xf32>
    %651 = arith.mulf %650, %641 : vector<16x16xf32>
    %652 = arith.addf %636, %651 : vector<16x16xf32>
    %653 = vector.broadcast %643 : f32 to vector<16x16xf32>
    %654 = arith.mulf %653, %639 : vector<16x16xf32>
    %655 = arith.addf %652, %654 : vector<16x16xf32>
    %c18_209 = arith.constant 18 : index
    %656 = memref.load %arg3[%c18_209] : memref<36xf32, #tpu.memory_space<smem>>
    %c18_210 = arith.constant 18 : index
    %657 = memref.load %arg4[%c18_210] : memref<36xf32, #tpu.memory_space<smem>>
    %658 = vector.broadcast %656 : f32 to vector<16x16xf32>
    %659 = arith.mulf %658, %639 : vector<16x16xf32>
    %660 = arith.addf %635, %659 : vector<16x16xf32>
    %661 = vector.broadcast %657 : f32 to vector<16x16xf32>
    %662 = arith.mulf %661, %641 : vector<16x16xf32>
    %663 = arith.subf %660, %662 : vector<16x16xf32>
    %664 = vector.broadcast %656 : f32 to vector<16x16xf32>
    %665 = arith.mulf %664, %641 : vector<16x16xf32>
    %666 = arith.addf %637, %665 : vector<16x16xf32>
    %667 = vector.broadcast %657 : f32 to vector<16x16xf32>
    %668 = arith.mulf %667, %639 : vector<16x16xf32>
    %669 = arith.addf %666, %668 : vector<16x16xf32>
    %c0_211 = arith.constant 0 : index
    %c0_212 = arith.constant 0 : index
    %c1_213 = arith.constant 1 : index
    %670 = vector.load %arg10[%c0_211, %c0_212, %c1_213] : memref<2x18x18xf32, #tpu.memory_space<vmem>>, vector<1x16x16xf32>
    %671 = vector.shape_cast %670 : vector<1x16x16xf32> to vector<16x16xf32>
    %c0_214 = arith.constant 0 : index
    %c0_215 = arith.constant 0 : index
    %c1_216 = arith.constant 1 : index
    %672 = vector.load %arg11[%c0_214, %c0_215, %c1_216] : memref<2x18x18xf32, #tpu.memory_space<vmem>>, vector<1x16x16xf32>
    %673 = vector.shape_cast %672 : vector<1x16x16xf32> to vector<16x16xf32>
    %c1_217 = arith.constant 1 : index
    %674 = memref.load %arg3[%c1_217] : memref<36xf32, #tpu.memory_space<smem>>
    %c1_218 = arith.constant 1 : index
    %675 = memref.load %arg4[%c1_218] : memref<36xf32, #tpu.memory_space<smem>>
    %676 = vector.broadcast %674 : f32 to vector<16x16xf32>
    %677 = arith.mulf %676, %671 : vector<16x16xf32>
    %678 = arith.addf %649, %677 : vector<16x16xf32>
    %679 = vector.broadcast %675 : f32 to vector<16x16xf32>
    %680 = arith.mulf %679, %673 : vector<16x16xf32>
    %681 = arith.subf %678, %680 : vector<16x16xf32>
    %682 = vector.broadcast %674 : f32 to vector<16x16xf32>
    %683 = arith.mulf %682, %673 : vector<16x16xf32>
    %684 = arith.addf %655, %683 : vector<16x16xf32>
    %685 = vector.broadcast %675 : f32 to vector<16x16xf32>
    %686 = arith.mulf %685, %671 : vector<16x16xf32>
    %687 = arith.addf %684, %686 : vector<16x16xf32>
    %c19_219 = arith.constant 19 : index
    %688 = memref.load %arg3[%c19_219] : memref<36xf32, #tpu.memory_space<smem>>
    %c19_220 = arith.constant 19 : index
    %689 = memref.load %arg4[%c19_220] : memref<36xf32, #tpu.memory_space<smem>>
    %690 = vector.broadcast %688 : f32 to vector<16x16xf32>
    %691 = arith.mulf %690, %671 : vector<16x16xf32>
    %692 = arith.addf %663, %691 : vector<16x16xf32>
    %693 = vector.broadcast %689 : f32 to vector<16x16xf32>
    %694 = arith.mulf %693, %673 : vector<16x16xf32>
    %695 = arith.subf %692, %694 : vector<16x16xf32>
    %696 = vector.broadcast %688 : f32 to vector<16x16xf32>
    %697 = arith.mulf %696, %673 : vector<16x16xf32>
    %698 = arith.addf %669, %697 : vector<16x16xf32>
    %699 = vector.broadcast %689 : f32 to vector<16x16xf32>
    %700 = arith.mulf %699, %671 : vector<16x16xf32>
    %701 = arith.addf %698, %700 : vector<16x16xf32>
    %c0_221 = arith.constant 0 : index
    %c0_222 = arith.constant 0 : index
    %c2_223 = arith.constant 2 : index
    %702 = vector.load %arg10[%c0_221, %c0_222, %c2_223] : memref<2x18x18xf32, #tpu.memory_space<vmem>>, vector<1x16x16xf32>
    %703 = vector.shape_cast %702 : vector<1x16x16xf32> to vector<16x16xf32>
    %c0_224 = arith.constant 0 : index
    %c0_225 = arith.constant 0 : index
    %c2_226 = arith.constant 2 : index
    %704 = vector.load %arg11[%c0_224, %c0_225, %c2_226] : memref<2x18x18xf32, #tpu.memory_space<vmem>>, vector<1x16x16xf32>
    %705 = vector.shape_cast %704 : vector<1x16x16xf32> to vector<16x16xf32>
    %c2_227 = arith.constant 2 : index
    %706 = memref.load %arg3[%c2_227] : memref<36xf32, #tpu.memory_space<smem>>
    %c2_228 = arith.constant 2 : index
    %707 = memref.load %arg4[%c2_228] : memref<36xf32, #tpu.memory_space<smem>>
    %708 = vector.broadcast %706 : f32 to vector<16x16xf32>
    %709 = arith.mulf %708, %703 : vector<16x16xf32>
    %710 = arith.addf %681, %709 : vector<16x16xf32>
    %711 = vector.broadcast %707 : f32 to vector<16x16xf32>
    %712 = arith.mulf %711, %705 : vector<16x16xf32>
    %713 = arith.subf %710, %712 : vector<16x16xf32>
    %714 = vector.broadcast %706 : f32 to vector<16x16xf32>
    %715 = arith.mulf %714, %705 : vector<16x16xf32>
    %716 = arith.addf %687, %715 : vector<16x16xf32>
    %717 = vector.broadcast %707 : f32 to vector<16x16xf32>
    %718 = arith.mulf %717, %703 : vector<16x16xf32>
    %719 = arith.addf %716, %718 : vector<16x16xf32>
    %c20_229 = arith.constant 20 : index
    %720 = memref.load %arg3[%c20_229] : memref<36xf32, #tpu.memory_space<smem>>
    %c20_230 = arith.constant 20 : index
    %721 = memref.load %arg4[%c20_230] : memref<36xf32, #tpu.memory_space<smem>>
    %722 = vector.broadcast %720 : f32 to vector<16x16xf32>
    %723 = arith.mulf %722, %703 : vector<16x16xf32>
    %724 = arith.addf %695, %723 : vector<16x16xf32>
    %725 = vector.broadcast %721 : f32 to vector<16x16xf32>
    %726 = arith.mulf %725, %705 : vector<16x16xf32>
    %727 = arith.subf %724, %726 : vector<16x16xf32>
    %728 = vector.broadcast %720 : f32 to vector<16x16xf32>
    %729 = arith.mulf %728, %705 : vector<16x16xf32>
    %730 = arith.addf %701, %729 : vector<16x16xf32>
    %731 = vector.broadcast %721 : f32 to vector<16x16xf32>
    %732 = arith.mulf %731, %703 : vector<16x16xf32>
    %733 = arith.addf %730, %732 : vector<16x16xf32>
    %c0_231 = arith.constant 0 : index
    %c1_232 = arith.constant 1 : index
    %c0_233 = arith.constant 0 : index
    %734 = vector.load %arg10[%c0_231, %c1_232, %c0_233] : memref<2x18x18xf32, #tpu.memory_space<vmem>>, vector<1x16x16xf32>
    %735 = vector.shape_cast %734 : vector<1x16x16xf32> to vector<16x16xf32>
    %c0_234 = arith.constant 0 : index
    %c1_235 = arith.constant 1 : index
    %c0_236 = arith.constant 0 : index
    %736 = vector.load %arg11[%c0_234, %c1_235, %c0_236] : memref<2x18x18xf32, #tpu.memory_space<vmem>>, vector<1x16x16xf32>
    %737 = vector.shape_cast %736 : vector<1x16x16xf32> to vector<16x16xf32>
    %c3_237 = arith.constant 3 : index
    %738 = memref.load %arg3[%c3_237] : memref<36xf32, #tpu.memory_space<smem>>
    %c3_238 = arith.constant 3 : index
    %739 = memref.load %arg4[%c3_238] : memref<36xf32, #tpu.memory_space<smem>>
    %740 = vector.broadcast %738 : f32 to vector<16x16xf32>
    %741 = arith.mulf %740, %735 : vector<16x16xf32>
    %742 = arith.addf %713, %741 : vector<16x16xf32>
    %743 = vector.broadcast %739 : f32 to vector<16x16xf32>
    %744 = arith.mulf %743, %737 : vector<16x16xf32>
    %745 = arith.subf %742, %744 : vector<16x16xf32>
    %746 = vector.broadcast %738 : f32 to vector<16x16xf32>
    %747 = arith.mulf %746, %737 : vector<16x16xf32>
    %748 = arith.addf %719, %747 : vector<16x16xf32>
    %749 = vector.broadcast %739 : f32 to vector<16x16xf32>
    %750 = arith.mulf %749, %735 : vector<16x16xf32>
    %751 = arith.addf %748, %750 : vector<16x16xf32>
    %c21_239 = arith.constant 21 : index
    %752 = memref.load %arg3[%c21_239] : memref<36xf32, #tpu.memory_space<smem>>
    %c21_240 = arith.constant 21 : index
    %753 = memref.load %arg4[%c21_240] : memref<36xf32, #tpu.memory_space<smem>>
    %754 = vector.broadcast %752 : f32 to vector<16x16xf32>
    %755 = arith.mulf %754, %735 : vector<16x16xf32>
    %756 = arith.addf %727, %755 : vector<16x16xf32>
    %757 = vector.broadcast %753 : f32 to vector<16x16xf32>
    %758 = arith.mulf %757, %737 : vector<16x16xf32>
    %759 = arith.subf %756, %758 : vector<16x16xf32>
    %760 = vector.broadcast %752 : f32 to vector<16x16xf32>
    %761 = arith.mulf %760, %737 : vector<16x16xf32>
    %762 = arith.addf %733, %761 : vector<16x16xf32>
    %763 = vector.broadcast %753 : f32 to vector<16x16xf32>
    %764 = arith.mulf %763, %735 : vector<16x16xf32>
    %765 = arith.addf %762, %764 : vector<16x16xf32>
    %c0_241 = arith.constant 0 : index
    %c1_242 = arith.constant 1 : index
    %c1_243 = arith.constant 1 : index
    %766 = vector.load %arg10[%c0_241, %c1_242, %c1_243] : memref<2x18x18xf32, #tpu.memory_space<vmem>>, vector<1x16x16xf32>
    %767 = vector.shape_cast %766 : vector<1x16x16xf32> to vector<16x16xf32>
    %c0_244 = arith.constant 0 : index
    %c1_245 = arith.constant 1 : index
    %c1_246 = arith.constant 1 : index
    %768 = vector.load %arg11[%c0_244, %c1_245, %c1_246] : memref<2x18x18xf32, #tpu.memory_space<vmem>>, vector<1x16x16xf32>
    %769 = vector.shape_cast %768 : vector<1x16x16xf32> to vector<16x16xf32>
    %c4_247 = arith.constant 4 : index
    %770 = memref.load %arg3[%c4_247] : memref<36xf32, #tpu.memory_space<smem>>
    %c4_248 = arith.constant 4 : index
    %771 = memref.load %arg4[%c4_248] : memref<36xf32, #tpu.memory_space<smem>>
    %772 = vector.broadcast %770 : f32 to vector<16x16xf32>
    %773 = arith.mulf %772, %767 : vector<16x16xf32>
    %774 = arith.addf %745, %773 : vector<16x16xf32>
    %775 = vector.broadcast %771 : f32 to vector<16x16xf32>
    %776 = arith.mulf %775, %769 : vector<16x16xf32>
    %777 = arith.subf %774, %776 : vector<16x16xf32>
    %778 = vector.broadcast %770 : f32 to vector<16x16xf32>
    %779 = arith.mulf %778, %769 : vector<16x16xf32>
    %780 = arith.addf %751, %779 : vector<16x16xf32>
    %781 = vector.broadcast %771 : f32 to vector<16x16xf32>
    %782 = arith.mulf %781, %767 : vector<16x16xf32>
    %783 = arith.addf %780, %782 : vector<16x16xf32>
    %c22_249 = arith.constant 22 : index
    %784 = memref.load %arg3[%c22_249] : memref<36xf32, #tpu.memory_space<smem>>
    %c22_250 = arith.constant 22 : index
    %785 = memref.load %arg4[%c22_250] : memref<36xf32, #tpu.memory_space<smem>>
    %786 = vector.broadcast %784 : f32 to vector<16x16xf32>
    %787 = arith.mulf %786, %767 : vector<16x16xf32>
    %788 = arith.addf %759, %787 : vector<16x16xf32>
    %789 = vector.broadcast %785 : f32 to vector<16x16xf32>
    %790 = arith.mulf %789, %769 : vector<16x16xf32>
    %791 = arith.subf %788, %790 : vector<16x16xf32>
    %792 = vector.broadcast %784 : f32 to vector<16x16xf32>
    %793 = arith.mulf %792, %769 : vector<16x16xf32>
    %794 = arith.addf %765, %793 : vector<16x16xf32>
    %795 = vector.broadcast %785 : f32 to vector<16x16xf32>
    %796 = arith.mulf %795, %767 : vector<16x16xf32>
    %797 = arith.addf %794, %796 : vector<16x16xf32>
    %c0_251 = arith.constant 0 : index
    %c1_252 = arith.constant 1 : index
    %c2_253 = arith.constant 2 : index
    %798 = vector.load %arg10[%c0_251, %c1_252, %c2_253] : memref<2x18x18xf32, #tpu.memory_space<vmem>>, vector<1x16x16xf32>
    %799 = vector.shape_cast %798 : vector<1x16x16xf32> to vector<16x16xf32>
    %c0_254 = arith.constant 0 : index
    %c1_255 = arith.constant 1 : index
    %c2_256 = arith.constant 2 : index
    %800 = vector.load %arg11[%c0_254, %c1_255, %c2_256] : memref<2x18x18xf32, #tpu.memory_space<vmem>>, vector<1x16x16xf32>
    %801 = vector.shape_cast %800 : vector<1x16x16xf32> to vector<16x16xf32>
    %c5_257 = arith.constant 5 : index
    %802 = memref.load %arg3[%c5_257] : memref<36xf32, #tpu.memory_space<smem>>
    %c5_258 = arith.constant 5 : index
    %803 = memref.load %arg4[%c5_258] : memref<36xf32, #tpu.memory_space<smem>>
    %804 = vector.broadcast %802 : f32 to vector<16x16xf32>
    %805 = arith.mulf %804, %799 : vector<16x16xf32>
    %806 = arith.addf %777, %805 : vector<16x16xf32>
    %807 = vector.broadcast %803 : f32 to vector<16x16xf32>
    %808 = arith.mulf %807, %801 : vector<16x16xf32>
    %809 = arith.subf %806, %808 : vector<16x16xf32>
    %810 = vector.broadcast %802 : f32 to vector<16x16xf32>
    %811 = arith.mulf %810, %801 : vector<16x16xf32>
    %812 = arith.addf %783, %811 : vector<16x16xf32>
    %813 = vector.broadcast %803 : f32 to vector<16x16xf32>
    %814 = arith.mulf %813, %799 : vector<16x16xf32>
    %815 = arith.addf %812, %814 : vector<16x16xf32>
    %c23_259 = arith.constant 23 : index
    %816 = memref.load %arg3[%c23_259] : memref<36xf32, #tpu.memory_space<smem>>
    %c23_260 = arith.constant 23 : index
    %817 = memref.load %arg4[%c23_260] : memref<36xf32, #tpu.memory_space<smem>>
    %818 = vector.broadcast %816 : f32 to vector<16x16xf32>
    %819 = arith.mulf %818, %799 : vector<16x16xf32>
    %820 = arith.addf %791, %819 : vector<16x16xf32>
    %821 = vector.broadcast %817 : f32 to vector<16x16xf32>
    %822 = arith.mulf %821, %801 : vector<16x16xf32>
    %823 = arith.subf %820, %822 : vector<16x16xf32>
    %824 = vector.broadcast %816 : f32 to vector<16x16xf32>
    %825 = arith.mulf %824, %801 : vector<16x16xf32>
    %826 = arith.addf %797, %825 : vector<16x16xf32>
    %827 = vector.broadcast %817 : f32 to vector<16x16xf32>
    %828 = arith.mulf %827, %799 : vector<16x16xf32>
    %829 = arith.addf %826, %828 : vector<16x16xf32>
    %c0_261 = arith.constant 0 : index
    %c2_262 = arith.constant 2 : index
    %c0_263 = arith.constant 0 : index
    %830 = vector.load %arg10[%c0_261, %c2_262, %c0_263] : memref<2x18x18xf32, #tpu.memory_space<vmem>>, vector<1x16x16xf32>
    %831 = vector.shape_cast %830 : vector<1x16x16xf32> to vector<16x16xf32>
    %c0_264 = arith.constant 0 : index
    %c2_265 = arith.constant 2 : index
    %c0_266 = arith.constant 0 : index
    %832 = vector.load %arg11[%c0_264, %c2_265, %c0_266] : memref<2x18x18xf32, #tpu.memory_space<vmem>>, vector<1x16x16xf32>
    %833 = vector.shape_cast %832 : vector<1x16x16xf32> to vector<16x16xf32>
    %c6_267 = arith.constant 6 : index
    %834 = memref.load %arg3[%c6_267] : memref<36xf32, #tpu.memory_space<smem>>
    %c6_268 = arith.constant 6 : index
    %835 = memref.load %arg4[%c6_268] : memref<36xf32, #tpu.memory_space<smem>>
    %836 = vector.broadcast %834 : f32 to vector<16x16xf32>
    %837 = arith.mulf %836, %831 : vector<16x16xf32>
    %838 = arith.addf %809, %837 : vector<16x16xf32>
    %839 = vector.broadcast %835 : f32 to vector<16x16xf32>
    %840 = arith.mulf %839, %833 : vector<16x16xf32>
    %841 = arith.subf %838, %840 : vector<16x16xf32>
    %842 = vector.broadcast %834 : f32 to vector<16x16xf32>
    %843 = arith.mulf %842, %833 : vector<16x16xf32>
    %844 = arith.addf %815, %843 : vector<16x16xf32>
    %845 = vector.broadcast %835 : f32 to vector<16x16xf32>
    %846 = arith.mulf %845, %831 : vector<16x16xf32>
    %847 = arith.addf %844, %846 : vector<16x16xf32>
    %c24_269 = arith.constant 24 : index
    %848 = memref.load %arg3[%c24_269] : memref<36xf32, #tpu.memory_space<smem>>
    %c24_270 = arith.constant 24 : index
    %849 = memref.load %arg4[%c24_270] : memref<36xf32, #tpu.memory_space<smem>>
    %850 = vector.broadcast %848 : f32 to vector<16x16xf32>
    %851 = arith.mulf %850, %831 : vector<16x16xf32>
    %852 = arith.addf %823, %851 : vector<16x16xf32>
    %853 = vector.broadcast %849 : f32 to vector<16x16xf32>
    %854 = arith.mulf %853, %833 : vector<16x16xf32>
    %855 = arith.subf %852, %854 : vector<16x16xf32>
    %856 = vector.broadcast %848 : f32 to vector<16x16xf32>
    %857 = arith.mulf %856, %833 : vector<16x16xf32>
    %858 = arith.addf %829, %857 : vector<16x16xf32>
    %859 = vector.broadcast %849 : f32 to vector<16x16xf32>
    %860 = arith.mulf %859, %831 : vector<16x16xf32>
    %861 = arith.addf %858, %860 : vector<16x16xf32>
    %c0_271 = arith.constant 0 : index
    %c2_272 = arith.constant 2 : index
    %c1_273 = arith.constant 1 : index
    %862 = vector.load %arg10[%c0_271, %c2_272, %c1_273] : memref<2x18x18xf32, #tpu.memory_space<vmem>>, vector<1x16x16xf32>
    %863 = vector.shape_cast %862 : vector<1x16x16xf32> to vector<16x16xf32>
    %c0_274 = arith.constant 0 : index
    %c2_275 = arith.constant 2 : index
    %c1_276 = arith.constant 1 : index
    %864 = vector.load %arg11[%c0_274, %c2_275, %c1_276] : memref<2x18x18xf32, #tpu.memory_space<vmem>>, vector<1x16x16xf32>
    %865 = vector.shape_cast %864 : vector<1x16x16xf32> to vector<16x16xf32>
    %c7_277 = arith.constant 7 : index
    %866 = memref.load %arg3[%c7_277] : memref<36xf32, #tpu.memory_space<smem>>
    %c7_278 = arith.constant 7 : index
    %867 = memref.load %arg4[%c7_278] : memref<36xf32, #tpu.memory_space<smem>>
    %868 = vector.broadcast %866 : f32 to vector<16x16xf32>
    %869 = arith.mulf %868, %863 : vector<16x16xf32>
    %870 = arith.addf %841, %869 : vector<16x16xf32>
    %871 = vector.broadcast %867 : f32 to vector<16x16xf32>
    %872 = arith.mulf %871, %865 : vector<16x16xf32>
    %873 = arith.subf %870, %872 : vector<16x16xf32>
    %874 = vector.broadcast %866 : f32 to vector<16x16xf32>
    %875 = arith.mulf %874, %865 : vector<16x16xf32>
    %876 = arith.addf %847, %875 : vector<16x16xf32>
    %877 = vector.broadcast %867 : f32 to vector<16x16xf32>
    %878 = arith.mulf %877, %863 : vector<16x16xf32>
    %879 = arith.addf %876, %878 : vector<16x16xf32>
    %c25_279 = arith.constant 25 : index
    %880 = memref.load %arg3[%c25_279] : memref<36xf32, #tpu.memory_space<smem>>
    %c25_280 = arith.constant 25 : index
    %881 = memref.load %arg4[%c25_280] : memref<36xf32, #tpu.memory_space<smem>>
    %882 = vector.broadcast %880 : f32 to vector<16x16xf32>
    %883 = arith.mulf %882, %863 : vector<16x16xf32>
    %884 = arith.addf %855, %883 : vector<16x16xf32>
    %885 = vector.broadcast %881 : f32 to vector<16x16xf32>
    %886 = arith.mulf %885, %865 : vector<16x16xf32>
    %887 = arith.subf %884, %886 : vector<16x16xf32>
    %888 = vector.broadcast %880 : f32 to vector<16x16xf32>
    %889 = arith.mulf %888, %865 : vector<16x16xf32>
    %890 = arith.addf %861, %889 : vector<16x16xf32>
    %891 = vector.broadcast %881 : f32 to vector<16x16xf32>
    %892 = arith.mulf %891, %863 : vector<16x16xf32>
    %893 = arith.addf %890, %892 : vector<16x16xf32>
    %c0_281 = arith.constant 0 : index
    %c2_282 = arith.constant 2 : index
    %c2_283 = arith.constant 2 : index
    %894 = vector.load %arg10[%c0_281, %c2_282, %c2_283] : memref<2x18x18xf32, #tpu.memory_space<vmem>>, vector<1x16x16xf32>
    %895 = vector.shape_cast %894 : vector<1x16x16xf32> to vector<16x16xf32>
    %c0_284 = arith.constant 0 : index
    %c2_285 = arith.constant 2 : index
    %c2_286 = arith.constant 2 : index
    %896 = vector.load %arg11[%c0_284, %c2_285, %c2_286] : memref<2x18x18xf32, #tpu.memory_space<vmem>>, vector<1x16x16xf32>
    %897 = vector.shape_cast %896 : vector<1x16x16xf32> to vector<16x16xf32>
    %c8_287 = arith.constant 8 : index
    %898 = memref.load %arg3[%c8_287] : memref<36xf32, #tpu.memory_space<smem>>
    %c8_288 = arith.constant 8 : index
    %899 = memref.load %arg4[%c8_288] : memref<36xf32, #tpu.memory_space<smem>>
    %900 = vector.broadcast %898 : f32 to vector<16x16xf32>
    %901 = arith.mulf %900, %895 : vector<16x16xf32>
    %902 = arith.addf %873, %901 : vector<16x16xf32>
    %903 = vector.broadcast %899 : f32 to vector<16x16xf32>
    %904 = arith.mulf %903, %897 : vector<16x16xf32>
    %905 = arith.subf %902, %904 : vector<16x16xf32>
    %906 = vector.broadcast %898 : f32 to vector<16x16xf32>
    %907 = arith.mulf %906, %897 : vector<16x16xf32>
    %908 = arith.addf %879, %907 : vector<16x16xf32>
    %909 = vector.broadcast %899 : f32 to vector<16x16xf32>
    %910 = arith.mulf %909, %895 : vector<16x16xf32>
    %911 = arith.addf %908, %910 : vector<16x16xf32>
    %c26_289 = arith.constant 26 : index
    %912 = memref.load %arg3[%c26_289] : memref<36xf32, #tpu.memory_space<smem>>
    %c26_290 = arith.constant 26 : index
    %913 = memref.load %arg4[%c26_290] : memref<36xf32, #tpu.memory_space<smem>>
    %914 = vector.broadcast %912 : f32 to vector<16x16xf32>
    %915 = arith.mulf %914, %895 : vector<16x16xf32>
    %916 = arith.addf %887, %915 : vector<16x16xf32>
    %917 = vector.broadcast %913 : f32 to vector<16x16xf32>
    %918 = arith.mulf %917, %897 : vector<16x16xf32>
    %919 = arith.subf %916, %918 : vector<16x16xf32>
    %920 = vector.broadcast %912 : f32 to vector<16x16xf32>
    %921 = arith.mulf %920, %897 : vector<16x16xf32>
    %922 = arith.addf %893, %921 : vector<16x16xf32>
    %923 = vector.broadcast %913 : f32 to vector<16x16xf32>
    %924 = arith.mulf %923, %895 : vector<16x16xf32>
    %925 = arith.addf %922, %924 : vector<16x16xf32>
    %c1_291 = arith.constant 1 : index
    %c0_292 = arith.constant 0 : index
    %c0_293 = arith.constant 0 : index
    %926 = vector.load %arg10[%c1_291, %c0_292, %c0_293] : memref<2x18x18xf32, #tpu.memory_space<vmem>>, vector<1x16x16xf32>
    %927 = vector.shape_cast %926 : vector<1x16x16xf32> to vector<16x16xf32>
    %c1_294 = arith.constant 1 : index
    %c0_295 = arith.constant 0 : index
    %c0_296 = arith.constant 0 : index
    %928 = vector.load %arg11[%c1_294, %c0_295, %c0_296] : memref<2x18x18xf32, #tpu.memory_space<vmem>>, vector<1x16x16xf32>
    %929 = vector.shape_cast %928 : vector<1x16x16xf32> to vector<16x16xf32>
    %c9_297 = arith.constant 9 : index
    %930 = memref.load %arg3[%c9_297] : memref<36xf32, #tpu.memory_space<smem>>
    %c9_298 = arith.constant 9 : index
    %931 = memref.load %arg4[%c9_298] : memref<36xf32, #tpu.memory_space<smem>>
    %932 = vector.broadcast %930 : f32 to vector<16x16xf32>
    %933 = arith.mulf %932, %927 : vector<16x16xf32>
    %934 = arith.addf %905, %933 : vector<16x16xf32>
    %935 = vector.broadcast %931 : f32 to vector<16x16xf32>
    %936 = arith.mulf %935, %929 : vector<16x16xf32>
    %937 = arith.subf %934, %936 : vector<16x16xf32>
    %938 = vector.broadcast %930 : f32 to vector<16x16xf32>
    %939 = arith.mulf %938, %929 : vector<16x16xf32>
    %940 = arith.addf %911, %939 : vector<16x16xf32>
    %941 = vector.broadcast %931 : f32 to vector<16x16xf32>
    %942 = arith.mulf %941, %927 : vector<16x16xf32>
    %943 = arith.addf %940, %942 : vector<16x16xf32>
    %c27_299 = arith.constant 27 : index
    %944 = memref.load %arg3[%c27_299] : memref<36xf32, #tpu.memory_space<smem>>
    %c27_300 = arith.constant 27 : index
    %945 = memref.load %arg4[%c27_300] : memref<36xf32, #tpu.memory_space<smem>>
    %946 = vector.broadcast %944 : f32 to vector<16x16xf32>
    %947 = arith.mulf %946, %927 : vector<16x16xf32>
    %948 = arith.addf %919, %947 : vector<16x16xf32>
    %949 = vector.broadcast %945 : f32 to vector<16x16xf32>
    %950 = arith.mulf %949, %929 : vector<16x16xf32>
    %951 = arith.subf %948, %950 : vector<16x16xf32>
    %952 = vector.broadcast %944 : f32 to vector<16x16xf32>
    %953 = arith.mulf %952, %929 : vector<16x16xf32>
    %954 = arith.addf %925, %953 : vector<16x16xf32>
    %955 = vector.broadcast %945 : f32 to vector<16x16xf32>
    %956 = arith.mulf %955, %927 : vector<16x16xf32>
    %957 = arith.addf %954, %956 : vector<16x16xf32>
    %c1_301 = arith.constant 1 : index
    %c0_302 = arith.constant 0 : index
    %c1_303 = arith.constant 1 : index
    %958 = vector.load %arg10[%c1_301, %c0_302, %c1_303] : memref<2x18x18xf32, #tpu.memory_space<vmem>>, vector<1x16x16xf32>
    %959 = vector.shape_cast %958 : vector<1x16x16xf32> to vector<16x16xf32>
    %c1_304 = arith.constant 1 : index
    %c0_305 = arith.constant 0 : index
    %c1_306 = arith.constant 1 : index
    %960 = vector.load %arg11[%c1_304, %c0_305, %c1_306] : memref<2x18x18xf32, #tpu.memory_space<vmem>>, vector<1x16x16xf32>
    %961 = vector.shape_cast %960 : vector<1x16x16xf32> to vector<16x16xf32>
    %c10_307 = arith.constant 10 : index
    %962 = memref.load %arg3[%c10_307] : memref<36xf32, #tpu.memory_space<smem>>
    %c10_308 = arith.constant 10 : index
    %963 = memref.load %arg4[%c10_308] : memref<36xf32, #tpu.memory_space<smem>>
    %964 = vector.broadcast %962 : f32 to vector<16x16xf32>
    %965 = arith.mulf %964, %959 : vector<16x16xf32>
    %966 = arith.addf %937, %965 : vector<16x16xf32>
    %967 = vector.broadcast %963 : f32 to vector<16x16xf32>
    %968 = arith.mulf %967, %961 : vector<16x16xf32>
    %969 = arith.subf %966, %968 : vector<16x16xf32>
    %970 = vector.broadcast %962 : f32 to vector<16x16xf32>
    %971 = arith.mulf %970, %961 : vector<16x16xf32>
    %972 = arith.addf %943, %971 : vector<16x16xf32>
    %973 = vector.broadcast %963 : f32 to vector<16x16xf32>
    %974 = arith.mulf %973, %959 : vector<16x16xf32>
    %975 = arith.addf %972, %974 : vector<16x16xf32>
    %c28_309 = arith.constant 28 : index
    %976 = memref.load %arg3[%c28_309] : memref<36xf32, #tpu.memory_space<smem>>
    %c28_310 = arith.constant 28 : index
    %977 = memref.load %arg4[%c28_310] : memref<36xf32, #tpu.memory_space<smem>>
    %978 = vector.broadcast %976 : f32 to vector<16x16xf32>
    %979 = arith.mulf %978, %959 : vector<16x16xf32>
    %980 = arith.addf %951, %979 : vector<16x16xf32>
    %981 = vector.broadcast %977 : f32 to vector<16x16xf32>
    %982 = arith.mulf %981, %961 : vector<16x16xf32>
    %983 = arith.subf %980, %982 : vector<16x16xf32>
    %984 = vector.broadcast %976 : f32 to vector<16x16xf32>
    %985 = arith.mulf %984, %961 : vector<16x16xf32>
    %986 = arith.addf %957, %985 : vector<16x16xf32>
    %987 = vector.broadcast %977 : f32 to vector<16x16xf32>
    %988 = arith.mulf %987, %959 : vector<16x16xf32>
    %989 = arith.addf %986, %988 : vector<16x16xf32>
    %c1_311 = arith.constant 1 : index
    %c0_312 = arith.constant 0 : index
    %c2_313 = arith.constant 2 : index
    %990 = vector.load %arg10[%c1_311, %c0_312, %c2_313] : memref<2x18x18xf32, #tpu.memory_space<vmem>>, vector<1x16x16xf32>
    %991 = vector.shape_cast %990 : vector<1x16x16xf32> to vector<16x16xf32>
    %c1_314 = arith.constant 1 : index
    %c0_315 = arith.constant 0 : index
    %c2_316 = arith.constant 2 : index
    %992 = vector.load %arg11[%c1_314, %c0_315, %c2_316] : memref<2x18x18xf32, #tpu.memory_space<vmem>>, vector<1x16x16xf32>
    %993 = vector.shape_cast %992 : vector<1x16x16xf32> to vector<16x16xf32>
    %c11_317 = arith.constant 11 : index
    %994 = memref.load %arg3[%c11_317] : memref<36xf32, #tpu.memory_space<smem>>
    %c11_318 = arith.constant 11 : index
    %995 = memref.load %arg4[%c11_318] : memref<36xf32, #tpu.memory_space<smem>>
    %996 = vector.broadcast %994 : f32 to vector<16x16xf32>
    %997 = arith.mulf %996, %991 : vector<16x16xf32>
    %998 = arith.addf %969, %997 : vector<16x16xf32>
    %999 = vector.broadcast %995 : f32 to vector<16x16xf32>
    %1000 = arith.mulf %999, %993 : vector<16x16xf32>
    %1001 = arith.subf %998, %1000 : vector<16x16xf32>
    %1002 = vector.broadcast %994 : f32 to vector<16x16xf32>
    %1003 = arith.mulf %1002, %993 : vector<16x16xf32>
    %1004 = arith.addf %975, %1003 : vector<16x16xf32>
    %1005 = vector.broadcast %995 : f32 to vector<16x16xf32>
    %1006 = arith.mulf %1005, %991 : vector<16x16xf32>
    %1007 = arith.addf %1004, %1006 : vector<16x16xf32>
    %c29_319 = arith.constant 29 : index
    %1008 = memref.load %arg3[%c29_319] : memref<36xf32, #tpu.memory_space<smem>>
    %c29_320 = arith.constant 29 : index
    %1009 = memref.load %arg4[%c29_320] : memref<36xf32, #tpu.memory_space<smem>>
    %1010 = vector.broadcast %1008 : f32 to vector<16x16xf32>
    %1011 = arith.mulf %1010, %991 : vector<16x16xf32>
    %1012 = arith.addf %983, %1011 : vector<16x16xf32>
    %1013 = vector.broadcast %1009 : f32 to vector<16x16xf32>
    %1014 = arith.mulf %1013, %993 : vector<16x16xf32>
    %1015 = arith.subf %1012, %1014 : vector<16x16xf32>
    %1016 = vector.broadcast %1008 : f32 to vector<16x16xf32>
    %1017 = arith.mulf %1016, %993 : vector<16x16xf32>
    %1018 = arith.addf %989, %1017 : vector<16x16xf32>
    %1019 = vector.broadcast %1009 : f32 to vector<16x16xf32>
    %1020 = arith.mulf %1019, %991 : vector<16x16xf32>
    %1021 = arith.addf %1018, %1020 : vector<16x16xf32>
    %c1_321 = arith.constant 1 : index
    %c1_322 = arith.constant 1 : index
    %c0_323 = arith.constant 0 : index
    %1022 = vector.load %arg10[%c1_321, %c1_322, %c0_323] : memref<2x18x18xf32, #tpu.memory_space<vmem>>, vector<1x16x16xf32>
    %1023 = vector.shape_cast %1022 : vector<1x16x16xf32> to vector<16x16xf32>
    %c1_324 = arith.constant 1 : index
    %c1_325 = arith.constant 1 : index
    %c0_326 = arith.constant 0 : index
    %1024 = vector.load %arg11[%c1_324, %c1_325, %c0_326] : memref<2x18x18xf32, #tpu.memory_space<vmem>>, vector<1x16x16xf32>
    %1025 = vector.shape_cast %1024 : vector<1x16x16xf32> to vector<16x16xf32>
    %c12_327 = arith.constant 12 : index
    %1026 = memref.load %arg3[%c12_327] : memref<36xf32, #tpu.memory_space<smem>>
    %c12_328 = arith.constant 12 : index
    %1027 = memref.load %arg4[%c12_328] : memref<36xf32, #tpu.memory_space<smem>>
    %1028 = vector.broadcast %1026 : f32 to vector<16x16xf32>
    %1029 = arith.mulf %1028, %1023 : vector<16x16xf32>
    %1030 = arith.addf %1001, %1029 : vector<16x16xf32>
    %1031 = vector.broadcast %1027 : f32 to vector<16x16xf32>
    %1032 = arith.mulf %1031, %1025 : vector<16x16xf32>
    %1033 = arith.subf %1030, %1032 : vector<16x16xf32>
    %1034 = vector.broadcast %1026 : f32 to vector<16x16xf32>
    %1035 = arith.mulf %1034, %1025 : vector<16x16xf32>
    %1036 = arith.addf %1007, %1035 : vector<16x16xf32>
    %1037 = vector.broadcast %1027 : f32 to vector<16x16xf32>
    %1038 = arith.mulf %1037, %1023 : vector<16x16xf32>
    %1039 = arith.addf %1036, %1038 : vector<16x16xf32>
    %c30_329 = arith.constant 30 : index
    %1040 = memref.load %arg3[%c30_329] : memref<36xf32, #tpu.memory_space<smem>>
    %c30_330 = arith.constant 30 : index
    %1041 = memref.load %arg4[%c30_330] : memref<36xf32, #tpu.memory_space<smem>>
    %1042 = vector.broadcast %1040 : f32 to vector<16x16xf32>
    %1043 = arith.mulf %1042, %1023 : vector<16x16xf32>
    %1044 = arith.addf %1015, %1043 : vector<16x16xf32>
    %1045 = vector.broadcast %1041 : f32 to vector<16x16xf32>
    %1046 = arith.mulf %1045, %1025 : vector<16x16xf32>
    %1047 = arith.subf %1044, %1046 : vector<16x16xf32>
    %1048 = vector.broadcast %1040 : f32 to vector<16x16xf32>
    %1049 = arith.mulf %1048, %1025 : vector<16x16xf32>
    %1050 = arith.addf %1021, %1049 : vector<16x16xf32>
    %1051 = vector.broadcast %1041 : f32 to vector<16x16xf32>
    %1052 = arith.mulf %1051, %1023 : vector<16x16xf32>
    %1053 = arith.addf %1050, %1052 : vector<16x16xf32>
    %c1_331 = arith.constant 1 : index
    %c1_332 = arith.constant 1 : index
    %c1_333 = arith.constant 1 : index
    %1054 = vector.load %arg10[%c1_331, %c1_332, %c1_333] : memref<2x18x18xf32, #tpu.memory_space<vmem>>, vector<1x16x16xf32>
    %1055 = vector.shape_cast %1054 : vector<1x16x16xf32> to vector<16x16xf32>
    %c1_334 = arith.constant 1 : index
    %c1_335 = arith.constant 1 : index
    %c1_336 = arith.constant 1 : index
    %1056 = vector.load %arg11[%c1_334, %c1_335, %c1_336] : memref<2x18x18xf32, #tpu.memory_space<vmem>>, vector<1x16x16xf32>
    %1057 = vector.shape_cast %1056 : vector<1x16x16xf32> to vector<16x16xf32>
    %c13_337 = arith.constant 13 : index
    %1058 = memref.load %arg3[%c13_337] : memref<36xf32, #tpu.memory_space<smem>>
    %c13_338 = arith.constant 13 : index
    %1059 = memref.load %arg4[%c13_338] : memref<36xf32, #tpu.memory_space<smem>>
    %1060 = vector.broadcast %1058 : f32 to vector<16x16xf32>
    %1061 = arith.mulf %1060, %1055 : vector<16x16xf32>
    %1062 = arith.addf %1033, %1061 : vector<16x16xf32>
    %1063 = vector.broadcast %1059 : f32 to vector<16x16xf32>
    %1064 = arith.mulf %1063, %1057 : vector<16x16xf32>
    %1065 = arith.subf %1062, %1064 : vector<16x16xf32>
    %1066 = vector.broadcast %1058 : f32 to vector<16x16xf32>
    %1067 = arith.mulf %1066, %1057 : vector<16x16xf32>
    %1068 = arith.addf %1039, %1067 : vector<16x16xf32>
    %1069 = vector.broadcast %1059 : f32 to vector<16x16xf32>
    %1070 = arith.mulf %1069, %1055 : vector<16x16xf32>
    %1071 = arith.addf %1068, %1070 : vector<16x16xf32>
    %c31_339 = arith.constant 31 : index
    %1072 = memref.load %arg3[%c31_339] : memref<36xf32, #tpu.memory_space<smem>>
    %c31_340 = arith.constant 31 : index
    %1073 = memref.load %arg4[%c31_340] : memref<36xf32, #tpu.memory_space<smem>>
    %1074 = vector.broadcast %1072 : f32 to vector<16x16xf32>
    %1075 = arith.mulf %1074, %1055 : vector<16x16xf32>
    %1076 = arith.addf %1047, %1075 : vector<16x16xf32>
    %1077 = vector.broadcast %1073 : f32 to vector<16x16xf32>
    %1078 = arith.mulf %1077, %1057 : vector<16x16xf32>
    %1079 = arith.subf %1076, %1078 : vector<16x16xf32>
    %1080 = vector.broadcast %1072 : f32 to vector<16x16xf32>
    %1081 = arith.mulf %1080, %1057 : vector<16x16xf32>
    %1082 = arith.addf %1053, %1081 : vector<16x16xf32>
    %1083 = vector.broadcast %1073 : f32 to vector<16x16xf32>
    %1084 = arith.mulf %1083, %1055 : vector<16x16xf32>
    %1085 = arith.addf %1082, %1084 : vector<16x16xf32>
    %c1_341 = arith.constant 1 : index
    %c1_342 = arith.constant 1 : index
    %c2_343 = arith.constant 2 : index
    %1086 = vector.load %arg10[%c1_341, %c1_342, %c2_343] : memref<2x18x18xf32, #tpu.memory_space<vmem>>, vector<1x16x16xf32>
    %1087 = vector.shape_cast %1086 : vector<1x16x16xf32> to vector<16x16xf32>
    %c1_344 = arith.constant 1 : index
    %c1_345 = arith.constant 1 : index
    %c2_346 = arith.constant 2 : index
    %1088 = vector.load %arg11[%c1_344, %c1_345, %c2_346] : memref<2x18x18xf32, #tpu.memory_space<vmem>>, vector<1x16x16xf32>
    %1089 = vector.shape_cast %1088 : vector<1x16x16xf32> to vector<16x16xf32>
    %c14_347 = arith.constant 14 : index
    %1090 = memref.load %arg3[%c14_347] : memref<36xf32, #tpu.memory_space<smem>>
    %c14_348 = arith.constant 14 : index
    %1091 = memref.load %arg4[%c14_348] : memref<36xf32, #tpu.memory_space<smem>>
    %1092 = vector.broadcast %1090 : f32 to vector<16x16xf32>
    %1093 = arith.mulf %1092, %1087 : vector<16x16xf32>
    %1094 = arith.addf %1065, %1093 : vector<16x16xf32>
    %1095 = vector.broadcast %1091 : f32 to vector<16x16xf32>
    %1096 = arith.mulf %1095, %1089 : vector<16x16xf32>
    %1097 = arith.subf %1094, %1096 : vector<16x16xf32>
    %1098 = vector.broadcast %1090 : f32 to vector<16x16xf32>
    %1099 = arith.mulf %1098, %1089 : vector<16x16xf32>
    %1100 = arith.addf %1071, %1099 : vector<16x16xf32>
    %1101 = vector.broadcast %1091 : f32 to vector<16x16xf32>
    %1102 = arith.mulf %1101, %1087 : vector<16x16xf32>
    %1103 = arith.addf %1100, %1102 : vector<16x16xf32>
    %c32_349 = arith.constant 32 : index
    %1104 = memref.load %arg3[%c32_349] : memref<36xf32, #tpu.memory_space<smem>>
    %c32_350 = arith.constant 32 : index
    %1105 = memref.load %arg4[%c32_350] : memref<36xf32, #tpu.memory_space<smem>>
    %1106 = vector.broadcast %1104 : f32 to vector<16x16xf32>
    %1107 = arith.mulf %1106, %1087 : vector<16x16xf32>
    %1108 = arith.addf %1079, %1107 : vector<16x16xf32>
    %1109 = vector.broadcast %1105 : f32 to vector<16x16xf32>
    %1110 = arith.mulf %1109, %1089 : vector<16x16xf32>
    %1111 = arith.subf %1108, %1110 : vector<16x16xf32>
    %1112 = vector.broadcast %1104 : f32 to vector<16x16xf32>
    %1113 = arith.mulf %1112, %1089 : vector<16x16xf32>
    %1114 = arith.addf %1085, %1113 : vector<16x16xf32>
    %1115 = vector.broadcast %1105 : f32 to vector<16x16xf32>
    %1116 = arith.mulf %1115, %1087 : vector<16x16xf32>
    %1117 = arith.addf %1114, %1116 : vector<16x16xf32>
    %c1_351 = arith.constant 1 : index
    %c2_352 = arith.constant 2 : index
    %c0_353 = arith.constant 0 : index
    %1118 = vector.load %arg10[%c1_351, %c2_352, %c0_353] : memref<2x18x18xf32, #tpu.memory_space<vmem>>, vector<1x16x16xf32>
    %1119 = vector.shape_cast %1118 : vector<1x16x16xf32> to vector<16x16xf32>
    %c1_354 = arith.constant 1 : index
    %c2_355 = arith.constant 2 : index
    %c0_356 = arith.constant 0 : index
    %1120 = vector.load %arg11[%c1_354, %c2_355, %c0_356] : memref<2x18x18xf32, #tpu.memory_space<vmem>>, vector<1x16x16xf32>
    %1121 = vector.shape_cast %1120 : vector<1x16x16xf32> to vector<16x16xf32>
    %c15_357 = arith.constant 15 : index
    %1122 = memref.load %arg3[%c15_357] : memref<36xf32, #tpu.memory_space<smem>>
    %c15_358 = arith.constant 15 : index
    %1123 = memref.load %arg4[%c15_358] : memref<36xf32, #tpu.memory_space<smem>>
    %1124 = vector.broadcast %1122 : f32 to vector<16x16xf32>
    %1125 = arith.mulf %1124, %1119 : vector<16x16xf32>
    %1126 = arith.addf %1097, %1125 : vector<16x16xf32>
    %1127 = vector.broadcast %1123 : f32 to vector<16x16xf32>
    %1128 = arith.mulf %1127, %1121 : vector<16x16xf32>
    %1129 = arith.subf %1126, %1128 : vector<16x16xf32>
    %1130 = vector.broadcast %1122 : f32 to vector<16x16xf32>
    %1131 = arith.mulf %1130, %1121 : vector<16x16xf32>
    %1132 = arith.addf %1103, %1131 : vector<16x16xf32>
    %1133 = vector.broadcast %1123 : f32 to vector<16x16xf32>
    %1134 = arith.mulf %1133, %1119 : vector<16x16xf32>
    %1135 = arith.addf %1132, %1134 : vector<16x16xf32>
    %c33_359 = arith.constant 33 : index
    %1136 = memref.load %arg3[%c33_359] : memref<36xf32, #tpu.memory_space<smem>>
    %c33_360 = arith.constant 33 : index
    %1137 = memref.load %arg4[%c33_360] : memref<36xf32, #tpu.memory_space<smem>>
    %1138 = vector.broadcast %1136 : f32 to vector<16x16xf32>
    %1139 = arith.mulf %1138, %1119 : vector<16x16xf32>
    %1140 = arith.addf %1111, %1139 : vector<16x16xf32>
    %1141 = vector.broadcast %1137 : f32 to vector<16x16xf32>
    %1142 = arith.mulf %1141, %1121 : vector<16x16xf32>
    %1143 = arith.subf %1140, %1142 : vector<16x16xf32>
    %1144 = vector.broadcast %1136 : f32 to vector<16x16xf32>
    %1145 = arith.mulf %1144, %1121 : vector<16x16xf32>
    %1146 = arith.addf %1117, %1145 : vector<16x16xf32>
    %1147 = vector.broadcast %1137 : f32 to vector<16x16xf32>
    %1148 = arith.mulf %1147, %1119 : vector<16x16xf32>
    %1149 = arith.addf %1146, %1148 : vector<16x16xf32>
    %c1_361 = arith.constant 1 : index
    %c2_362 = arith.constant 2 : index
    %c1_363 = arith.constant 1 : index
    %1150 = vector.load %arg10[%c1_361, %c2_362, %c1_363] : memref<2x18x18xf32, #tpu.memory_space<vmem>>, vector<1x16x16xf32>
    %1151 = vector.shape_cast %1150 : vector<1x16x16xf32> to vector<16x16xf32>
    %c1_364 = arith.constant 1 : index
    %c2_365 = arith.constant 2 : index
    %c1_366 = arith.constant 1 : index
    %1152 = vector.load %arg11[%c1_364, %c2_365, %c1_366] : memref<2x18x18xf32, #tpu.memory_space<vmem>>, vector<1x16x16xf32>
    %1153 = vector.shape_cast %1152 : vector<1x16x16xf32> to vector<16x16xf32>
    %c16_367 = arith.constant 16 : index
    %1154 = memref.load %arg3[%c16_367] : memref<36xf32, #tpu.memory_space<smem>>
    %c16_368 = arith.constant 16 : index
    %1155 = memref.load %arg4[%c16_368] : memref<36xf32, #tpu.memory_space<smem>>
    %1156 = vector.broadcast %1154 : f32 to vector<16x16xf32>
    %1157 = arith.mulf %1156, %1151 : vector<16x16xf32>
    %1158 = arith.addf %1129, %1157 : vector<16x16xf32>
    %1159 = vector.broadcast %1155 : f32 to vector<16x16xf32>
    %1160 = arith.mulf %1159, %1153 : vector<16x16xf32>
    %1161 = arith.subf %1158, %1160 : vector<16x16xf32>
    %1162 = vector.broadcast %1154 : f32 to vector<16x16xf32>
    %1163 = arith.mulf %1162, %1153 : vector<16x16xf32>
    %1164 = arith.addf %1135, %1163 : vector<16x16xf32>
    %1165 = vector.broadcast %1155 : f32 to vector<16x16xf32>
    %1166 = arith.mulf %1165, %1151 : vector<16x16xf32>
    %1167 = arith.addf %1164, %1166 : vector<16x16xf32>
    %c34_369 = arith.constant 34 : index
    %1168 = memref.load %arg3[%c34_369] : memref<36xf32, #tpu.memory_space<smem>>
    %c34_370 = arith.constant 34 : index
    %1169 = memref.load %arg4[%c34_370] : memref<36xf32, #tpu.memory_space<smem>>
    %1170 = vector.broadcast %1168 : f32 to vector<16x16xf32>
    %1171 = arith.mulf %1170, %1151 : vector<16x16xf32>
    %1172 = arith.addf %1143, %1171 : vector<16x16xf32>
    %1173 = vector.broadcast %1169 : f32 to vector<16x16xf32>
    %1174 = arith.mulf %1173, %1153 : vector<16x16xf32>
    %1175 = arith.subf %1172, %1174 : vector<16x16xf32>
    %1176 = vector.broadcast %1168 : f32 to vector<16x16xf32>
    %1177 = arith.mulf %1176, %1153 : vector<16x16xf32>
    %1178 = arith.addf %1149, %1177 : vector<16x16xf32>
    %1179 = vector.broadcast %1169 : f32 to vector<16x16xf32>
    %1180 = arith.mulf %1179, %1151 : vector<16x16xf32>
    %1181 = arith.addf %1178, %1180 : vector<16x16xf32>
    %c1_371 = arith.constant 1 : index
    %c2_372 = arith.constant 2 : index
    %c2_373 = arith.constant 2 : index
    %1182 = vector.load %arg10[%c1_371, %c2_372, %c2_373] : memref<2x18x18xf32, #tpu.memory_space<vmem>>, vector<1x16x16xf32>
    %1183 = vector.shape_cast %1182 : vector<1x16x16xf32> to vector<16x16xf32>
    %c1_374 = arith.constant 1 : index
    %c2_375 = arith.constant 2 : index
    %c2_376 = arith.constant 2 : index
    %1184 = vector.load %arg11[%c1_374, %c2_375, %c2_376] : memref<2x18x18xf32, #tpu.memory_space<vmem>>, vector<1x16x16xf32>
    %1185 = vector.shape_cast %1184 : vector<1x16x16xf32> to vector<16x16xf32>
    %c17_377 = arith.constant 17 : index
    %1186 = memref.load %arg3[%c17_377] : memref<36xf32, #tpu.memory_space<smem>>
    %c17_378 = arith.constant 17 : index
    %1187 = memref.load %arg4[%c17_378] : memref<36xf32, #tpu.memory_space<smem>>
    %1188 = vector.broadcast %1186 : f32 to vector<16x16xf32>
    %1189 = arith.mulf %1188, %1183 : vector<16x16xf32>
    %1190 = arith.addf %1161, %1189 : vector<16x16xf32>
    %1191 = vector.broadcast %1187 : f32 to vector<16x16xf32>
    %1192 = arith.mulf %1191, %1185 : vector<16x16xf32>
    %1193 = arith.subf %1190, %1192 : vector<16x16xf32>
    %1194 = vector.broadcast %1186 : f32 to vector<16x16xf32>
    %1195 = arith.mulf %1194, %1185 : vector<16x16xf32>
    %1196 = arith.addf %1167, %1195 : vector<16x16xf32>
    %1197 = vector.broadcast %1187 : f32 to vector<16x16xf32>
    %1198 = arith.mulf %1197, %1183 : vector<16x16xf32>
    %1199 = arith.addf %1196, %1198 : vector<16x16xf32>
    %c35_379 = arith.constant 35 : index
    %1200 = memref.load %arg3[%c35_379] : memref<36xf32, #tpu.memory_space<smem>>
    %c35_380 = arith.constant 35 : index
    %1201 = memref.load %arg4[%c35_380] : memref<36xf32, #tpu.memory_space<smem>>
    %1202 = vector.broadcast %1200 : f32 to vector<16x16xf32>
    %1203 = arith.mulf %1202, %1183 : vector<16x16xf32>
    %1204 = arith.addf %1175, %1203 : vector<16x16xf32>
    %1205 = vector.broadcast %1201 : f32 to vector<16x16xf32>
    %1206 = arith.mulf %1205, %1185 : vector<16x16xf32>
    %1207 = arith.subf %1204, %1206 : vector<16x16xf32>
    %1208 = vector.broadcast %1200 : f32 to vector<16x16xf32>
    %1209 = arith.mulf %1208, %1185 : vector<16x16xf32>
    %1210 = arith.addf %1181, %1209 : vector<16x16xf32>
    %1211 = vector.broadcast %1201 : f32 to vector<16x16xf32>
    %1212 = arith.mulf %1211, %1183 : vector<16x16xf32>
    %1213 = arith.addf %1210, %1212 : vector<16x16xf32>
    %cst_381 = arith.constant 0.000000e+00 : f32
    %1214 = vector.broadcast %cst_381 : f32 to vector<16x16xf32>
    %1215 = arith.maximumf %1193, %1214 : vector<16x16xf32>
    %cst_382 = arith.constant 0.000000e+00 : f32
    %1216 = vector.broadcast %cst_382 : f32 to vector<16x16xf32>
    %1217 = arith.maximumf %1207, %1216 : vector<16x16xf32>
    %cst_383 = arith.constant 0.000000e+00 : f32
    %1218 = vector.broadcast %cst_383 : f32 to vector<16x16xf32>
    %1219 = arith.maximumf %1199, %1218 : vector<16x16xf32>
    %cst_384 = arith.constant 0.000000e+00 : f32
    %1220 = vector.broadcast %cst_384 : f32 to vector<16x16xf32>
    %1221 = arith.maximumf %1213, %1220 : vector<16x16xf32>
    %c0_385 = arith.constant 0 : index
    %c1_386 = arith.constant 1 : index
    %c1_387 = arith.constant 1 : index
    %1222 = vector.load %arg10[%c0_385, %c1_386, %c1_387] : memref<2x18x18xf32, #tpu.memory_space<vmem>>, vector<1x16x16xf32>
    %1223 = vector.shape_cast %1222 : vector<1x16x16xf32> to vector<16x16xf32>
    %1224 = vector.shape_cast %1215 : vector<16x16xf32> to vector<1x16x16xf32>
    tpu.vector_store %arg10[%c0_385, %c1_386, %c1_387], %1224 {strides = array<i32>} : memref<2x18x18xf32, #tpu.memory_space<vmem>>, vector<1x16x16xf32>,
    %c0_388 = arith.constant 0 : index
    %c1_389 = arith.constant 1 : index
    %c1_390 = arith.constant 1 : index
    %1225 = vector.load %arg11[%c0_388, %c1_389, %c1_390] : memref<2x18x18xf32, #tpu.memory_space<vmem>>, vector<1x16x16xf32>
    %1226 = vector.shape_cast %1225 : vector<1x16x16xf32> to vector<16x16xf32>
    %1227 = vector.shape_cast %1219 : vector<16x16xf32> to vector<1x16x16xf32>
    tpu.vector_store %arg11[%c0_388, %c1_389, %c1_390], %1227 {strides = array<i32>} : memref<2x18x18xf32, #tpu.memory_space<vmem>>, vector<1x16x16xf32>,
    %c1_391 = arith.constant 1 : index
    %c1_392 = arith.constant 1 : index
    %c1_393 = arith.constant 1 : index
    %1228 = vector.load %arg10[%c1_391, %c1_392, %c1_393] : memref<2x18x18xf32, #tpu.memory_space<vmem>>, vector<1x16x16xf32>
    %1229 = vector.shape_cast %1228 : vector<1x16x16xf32> to vector<16x16xf32>
    %1230 = vector.shape_cast %1217 : vector<16x16xf32> to vector<1x16x16xf32>
    tpu.vector_store %arg10[%c1_391, %c1_392, %c1_393], %1230 {strides = array<i32>} : memref<2x18x18xf32, #tpu.memory_space<vmem>>, vector<1x16x16xf32>,
    %c1_394 = arith.constant 1 : index
    %c1_395 = arith.constant 1 : index
    %c1_396 = arith.constant 1 : index
    %1231 = vector.load %arg11[%c1_394, %c1_395, %c1_396] : memref<2x18x18xf32, #tpu.memory_space<vmem>>, vector<1x16x16xf32>
    %1232 = vector.shape_cast %1231 : vector<1x16x16xf32> to vector<16x16xf32>
    %1233 = vector.shape_cast %1221 : vector<16x16xf32> to vector<1x16x16xf32>
    tpu.vector_store %arg11[%c1_394, %c1_395, %c1_396], %1233 {strides = array<i32>} : memref<2x18x18xf32, #tpu.memory_space<vmem>>, vector<1x16x16xf32>,
    %1234 = vector.broadcast %6 : f32 to vector<16x16xf32>
    %1235 = vector.broadcast %9 : f32 to vector<16x16xf32>
    %1236 = vector.broadcast %12 : f32 to vector<16x16xf32>
    %1237 = vector.broadcast %15 : f32 to vector<16x16xf32>
    %c0_397 = arith.constant 0 : index
    %c0_398 = arith.constant 0 : index
    %c0_399 = arith.constant 0 : index
    %1238 = vector.load %arg10[%c0_397, %c0_398, %c0_399] : memref<2x18x18xf32, #tpu.memory_space<vmem>>, vector<1x16x16xf32>
    %1239 = vector.shape_cast %1238 : vector<1x16x16xf32> to vector<16x16xf32>
    %c0_400 = arith.constant 0 : index
    %c0_401 = arith.constant 0 : index
    %c0_402 = arith.constant 0 : index
    %1240 = vector.load %arg11[%c0_400, %c0_401, %c0_402] : memref<2x18x18xf32, #tpu.memory_space<vmem>>, vector<1x16x16xf32>
    %1241 = vector.shape_cast %1240 : vector<1x16x16xf32> to vector<16x16xf32>
    %c0_403 = arith.constant 0 : index
    %1242 = memref.load %arg3[%c0_403] : memref<36xf32, #tpu.memory_space<smem>>
    %c0_404 = arith.constant 0 : index
    %1243 = memref.load %arg4[%c0_404] : memref<36xf32, #tpu.memory_space<smem>>
    %1244 = vector.broadcast %1242 : f32 to vector<16x16xf32>
    %1245 = arith.mulf %1244, %1239 : vector<16x16xf32>
    %1246 = arith.addf %1234, %1245 : vector<16x16xf32>
    %1247 = vector.broadcast %1243 : f32 to vector<16x16xf32>
    %1248 = arith.mulf %1247, %1241 : vector<16x16xf32>
    %1249 = arith.subf %1246, %1248 : vector<16x16xf32>
    %1250 = vector.broadcast %1242 : f32 to vector<16x16xf32>
    %1251 = arith.mulf %1250, %1241 : vector<16x16xf32>
    %1252 = arith.addf %1236, %1251 : vector<16x16xf32>
    %1253 = vector.broadcast %1243 : f32 to vector<16x16xf32>
    %1254 = arith.mulf %1253, %1239 : vector<16x16xf32>
    %1255 = arith.addf %1252, %1254 : vector<16x16xf32>
    %c18_405 = arith.constant 18 : index
    %1256 = memref.load %arg3[%c18_405] : memref<36xf32, #tpu.memory_space<smem>>
    %c18_406 = arith.constant 18 : index
    %1257 = memref.load %arg4[%c18_406] : memref<36xf32, #tpu.memory_space<smem>>
    %1258 = vector.broadcast %1256 : f32 to vector<16x16xf32>
    %1259 = arith.mulf %1258, %1239 : vector<16x16xf32>
    %1260 = arith.addf %1235, %1259 : vector<16x16xf32>
    %1261 = vector.broadcast %1257 : f32 to vector<16x16xf32>
    %1262 = arith.mulf %1261, %1241 : vector<16x16xf32>
    %1263 = arith.subf %1260, %1262 : vector<16x16xf32>
    %1264 = vector.broadcast %1256 : f32 to vector<16x16xf32>
    %1265 = arith.mulf %1264, %1241 : vector<16x16xf32>
    %1266 = arith.addf %1237, %1265 : vector<16x16xf32>
    %1267 = vector.broadcast %1257 : f32 to vector<16x16xf32>
    %1268 = arith.mulf %1267, %1239 : vector<16x16xf32>
    %1269 = arith.addf %1266, %1268 : vector<16x16xf32>
    %c0_407 = arith.constant 0 : index
    %c0_408 = arith.constant 0 : index
    %c1_409 = arith.constant 1 : index
    %1270 = vector.load %arg10[%c0_407, %c0_408, %c1_409] : memref<2x18x18xf32, #tpu.memory_space<vmem>>, vector<1x16x16xf32>
    %1271 = vector.shape_cast %1270 : vector<1x16x16xf32> to vector<16x16xf32>
    %c0_410 = arith.constant 0 : index
    %c0_411 = arith.constant 0 : index
    %c1_412 = arith.constant 1 : index
    %1272 = vector.load %arg11[%c0_410, %c0_411, %c1_412] : memref<2x18x18xf32, #tpu.memory_space<vmem>>, vector<1x16x16xf32>
    %1273 = vector.shape_cast %1272 : vector<1x16x16xf32> to vector<16x16xf32>
    %c1_413 = arith.constant 1 : index
    %1274 = memref.load %arg3[%c1_413] : memref<36xf32, #tpu.memory_space<smem>>
    %c1_414 = arith.constant 1 : index
    %1275 = memref.load %arg4[%c1_414] : memref<36xf32, #tpu.memory_space<smem>>
    %1276 = vector.broadcast %1274 : f32 to vector<16x16xf32>
    %1277 = arith.mulf %1276, %1271 : vector<16x16xf32>
    %1278 = arith.addf %1249, %1277 : vector<16x16xf32>
    %1279 = vector.broadcast %1275 : f32 to vector<16x16xf32>
    %1280 = arith.mulf %1279, %1273 : vector<16x16xf32>
    %1281 = arith.subf %1278, %1280 : vector<16x16xf32>
    %1282 = vector.broadcast %1274 : f32 to vector<16x16xf32>
    %1283 = arith.mulf %1282, %1273 : vector<16x16xf32>
    %1284 = arith.addf %1255, %1283 : vector<16x16xf32>
    %1285 = vector.broadcast %1275 : f32 to vector<16x16xf32>
    %1286 = arith.mulf %1285, %1271 : vector<16x16xf32>
    %1287 = arith.addf %1284, %1286 : vector<16x16xf32>
    %c19_415 = arith.constant 19 : index
    %1288 = memref.load %arg3[%c19_415] : memref<36xf32, #tpu.memory_space<smem>>
    %c19_416 = arith.constant 19 : index
    %1289 = memref.load %arg4[%c19_416] : memref<36xf32, #tpu.memory_space<smem>>
    %1290 = vector.broadcast %1288 : f32 to vector<16x16xf32>
    %1291 = arith.mulf %1290, %1271 : vector<16x16xf32>
    %1292 = arith.addf %1263, %1291 : vector<16x16xf32>
    %1293 = vector.broadcast %1289 : f32 to vector<16x16xf32>
    %1294 = arith.mulf %1293, %1273 : vector<16x16xf32>
    %1295 = arith.subf %1292, %1294 : vector<16x16xf32>
    %1296 = vector.broadcast %1288 : f32 to vector<16x16xf32>
    %1297 = arith.mulf %1296, %1273 : vector<16x16xf32>
    %1298 = arith.addf %1269, %1297 : vector<16x16xf32>
    %1299 = vector.broadcast %1289 : f32 to vector<16x16xf32>
    %1300 = arith.mulf %1299, %1271 : vector<16x16xf32>
    %1301 = arith.addf %1298, %1300 : vector<16x16xf32>
    %c0_417 = arith.constant 0 : index
    %c0_418 = arith.constant 0 : index
    %c2_419 = arith.constant 2 : index
    %1302 = vector.load %arg10[%c0_417, %c0_418, %c2_419] : memref<2x18x18xf32, #tpu.memory_space<vmem>>, vector<1x16x16xf32>
    %1303 = vector.shape_cast %1302 : vector<1x16x16xf32> to vector<16x16xf32>
    %c0_420 = arith.constant 0 : index
    %c0_421 = arith.constant 0 : index
    %c2_422 = arith.constant 2 : index
    %1304 = vector.load %arg11[%c0_420, %c0_421, %c2_422] : memref<2x18x18xf32, #tpu.memory_space<vmem>>, vector<1x16x16xf32>
    %1305 = vector.shape_cast %1304 : vector<1x16x16xf32> to vector<16x16xf32>
    %c2_423 = arith.constant 2 : index
    %1306 = memref.load %arg3[%c2_423] : memref<36xf32, #tpu.memory_space<smem>>
    %c2_424 = arith.constant 2 : index
    %1307 = memref.load %arg4[%c2_424] : memref<36xf32, #tpu.memory_space<smem>>
    %1308 = vector.broadcast %1306 : f32 to vector<16x16xf32>
    %1309 = arith.mulf %1308, %1303 : vector<16x16xf32>
    %1310 = arith.addf %1281, %1309 : vector<16x16xf32>
    %1311 = vector.broadcast %1307 : f32 to vector<16x16xf32>
    %1312 = arith.mulf %1311, %1305 : vector<16x16xf32>
    %1313 = arith.subf %1310, %1312 : vector<16x16xf32>
    %1314 = vector.broadcast %1306 : f32 to vector<16x16xf32>
    %1315 = arith.mulf %1314, %1305 : vector<16x16xf32>
    %1316 = arith.addf %1287, %1315 : vector<16x16xf32>
    %1317 = vector.broadcast %1307 : f32 to vector<16x16xf32>
    %1318 = arith.mulf %1317, %1303 : vector<16x16xf32>
    %1319 = arith.addf %1316, %1318 : vector<16x16xf32>
    %c20_425 = arith.constant 20 : index
    %1320 = memref.load %arg3[%c20_425] : memref<36xf32, #tpu.memory_space<smem>>
    %c20_426 = arith.constant 20 : index
    %1321 = memref.load %arg4[%c20_426] : memref<36xf32, #tpu.memory_space<smem>>
    %1322 = vector.broadcast %1320 : f32 to vector<16x16xf32>
    %1323 = arith.mulf %1322, %1303 : vector<16x16xf32>
    %1324 = arith.addf %1295, %1323 : vector<16x16xf32>
    %1325 = vector.broadcast %1321 : f32 to vector<16x16xf32>
    %1326 = arith.mulf %1325, %1305 : vector<16x16xf32>
    %1327 = arith.subf %1324, %1326 : vector<16x16xf32>
    %1328 = vector.broadcast %1320 : f32 to vector<16x16xf32>
    %1329 = arith.mulf %1328, %1305 : vector<16x16xf32>
    %1330 = arith.addf %1301, %1329 : vector<16x16xf32>
    %1331 = vector.broadcast %1321 : f32 to vector<16x16xf32>
    %1332 = arith.mulf %1331, %1303 : vector<16x16xf32>
    %1333 = arith.addf %1330, %1332 : vector<16x16xf32>
    %c0_427 = arith.constant 0 : index
    %c1_428 = arith.constant 1 : index
    %c0_429 = arith.constant 0 : index
    %1334 = vector.load %arg10[%c0_427, %c1_428, %c0_429] : memref<2x18x18xf32, #tpu.memory_space<vmem>>, vector<1x16x16xf32>
    %1335 = vector.shape_cast %1334 : vector<1x16x16xf32> to vector<16x16xf32>
    %c0_430 = arith.constant 0 : index
    %c1_431 = arith.constant 1 : index
    %c0_432 = arith.constant 0 : index
    %1336 = vector.load %arg11[%c0_430, %c1_431, %c0_432] : memref<2x18x18xf32, #tpu.memory_space<vmem>>, vector<1x16x16xf32>
    %1337 = vector.shape_cast %1336 : vector<1x16x16xf32> to vector<16x16xf32>
    %c3_433 = arith.constant 3 : index
    %1338 = memref.load %arg3[%c3_433] : memref<36xf32, #tpu.memory_space<smem>>
    %c3_434 = arith.constant 3 : index
    %1339 = memref.load %arg4[%c3_434] : memref<36xf32, #tpu.memory_space<smem>>
    %1340 = vector.broadcast %1338 : f32 to vector<16x16xf32>
    %1341 = arith.mulf %1340, %1335 : vector<16x16xf32>
    %1342 = arith.addf %1313, %1341 : vector<16x16xf32>
    %1343 = vector.broadcast %1339 : f32 to vector<16x16xf32>
    %1344 = arith.mulf %1343, %1337 : vector<16x16xf32>
    %1345 = arith.subf %1342, %1344 : vector<16x16xf32>
    %1346 = vector.broadcast %1338 : f32 to vector<16x16xf32>
    %1347 = arith.mulf %1346, %1337 : vector<16x16xf32>
    %1348 = arith.addf %1319, %1347 : vector<16x16xf32>
    %1349 = vector.broadcast %1339 : f32 to vector<16x16xf32>
    %1350 = arith.mulf %1349, %1335 : vector<16x16xf32>
    %1351 = arith.addf %1348, %1350 : vector<16x16xf32>
    %c21_435 = arith.constant 21 : index
    %1352 = memref.load %arg3[%c21_435] : memref<36xf32, #tpu.memory_space<smem>>
    %c21_436 = arith.constant 21 : index
    %1353 = memref.load %arg4[%c21_436] : memref<36xf32, #tpu.memory_space<smem>>
    %1354 = vector.broadcast %1352 : f32 to vector<16x16xf32>
    %1355 = arith.mulf %1354, %1335 : vector<16x16xf32>
    %1356 = arith.addf %1327, %1355 : vector<16x16xf32>
    %1357 = vector.broadcast %1353 : f32 to vector<16x16xf32>
    %1358 = arith.mulf %1357, %1337 : vector<16x16xf32>
    %1359 = arith.subf %1356, %1358 : vector<16x16xf32>
    %1360 = vector.broadcast %1352 : f32 to vector<16x16xf32>
    %1361 = arith.mulf %1360, %1337 : vector<16x16xf32>
    %1362 = arith.addf %1333, %1361 : vector<16x16xf32>
    %1363 = vector.broadcast %1353 : f32 to vector<16x16xf32>
    %1364 = arith.mulf %1363, %1335 : vector<16x16xf32>
    %1365 = arith.addf %1362, %1364 : vector<16x16xf32>
    %c0_437 = arith.constant 0 : index
    %c1_438 = arith.constant 1 : index
    %c1_439 = arith.constant 1 : index
    %1366 = vector.load %arg10[%c0_437, %c1_438, %c1_439] : memref<2x18x18xf32, #tpu.memory_space<vmem>>, vector<1x16x16xf32>
    %1367 = vector.shape_cast %1366 : vector<1x16x16xf32> to vector<16x16xf32>
    %c0_440 = arith.constant 0 : index
    %c1_441 = arith.constant 1 : index
    %c1_442 = arith.constant 1 : index
    %1368 = vector.load %arg11[%c0_440, %c1_441, %c1_442] : memref<2x18x18xf32, #tpu.memory_space<vmem>>, vector<1x16x16xf32>
    %1369 = vector.shape_cast %1368 : vector<1x16x16xf32> to vector<16x16xf32>
    %c4_443 = arith.constant 4 : index
    %1370 = memref.load %arg3[%c4_443] : memref<36xf32, #tpu.memory_space<smem>>
    %c4_444 = arith.constant 4 : index
    %1371 = memref.load %arg4[%c4_444] : memref<36xf32, #tpu.memory_space<smem>>
    %1372 = vector.broadcast %1370 : f32 to vector<16x16xf32>
    %1373 = arith.mulf %1372, %1367 : vector<16x16xf32>
    %1374 = arith.addf %1345, %1373 : vector<16x16xf32>
    %1375 = vector.broadcast %1371 : f32 to vector<16x16xf32>
    %1376 = arith.mulf %1375, %1369 : vector<16x16xf32>
    %1377 = arith.subf %1374, %1376 : vector<16x16xf32>
    %1378 = vector.broadcast %1370 : f32 to vector<16x16xf32>
    %1379 = arith.mulf %1378, %1369 : vector<16x16xf32>
    %1380 = arith.addf %1351, %1379 : vector<16x16xf32>
    %1381 = vector.broadcast %1371 : f32 to vector<16x16xf32>
    %1382 = arith.mulf %1381, %1367 : vector<16x16xf32>
    %1383 = arith.addf %1380, %1382 : vector<16x16xf32>
    %c22_445 = arith.constant 22 : index
    %1384 = memref.load %arg3[%c22_445] : memref<36xf32, #tpu.memory_space<smem>>
    %c22_446 = arith.constant 22 : index
    %1385 = memref.load %arg4[%c22_446] : memref<36xf32, #tpu.memory_space<smem>>
    %1386 = vector.broadcast %1384 : f32 to vector<16x16xf32>
    %1387 = arith.mulf %1386, %1367 : vector<16x16xf32>
    %1388 = arith.addf %1359, %1387 : vector<16x16xf32>
    %1389 = vector.broadcast %1385 : f32 to vector<16x16xf32>
    %1390 = arith.mulf %1389, %1369 : vector<16x16xf32>
    %1391 = arith.subf %1388, %1390 : vector<16x16xf32>
    %1392 = vector.broadcast %1384 : f32 to vector<16x16xf32>
    %1393 = arith.mulf %1392, %1369 : vector<16x16xf32>
    %1394 = arith.addf %1365, %1393 : vector<16x16xf32>
    %1395 = vector.broadcast %1385 : f32 to vector<16x16xf32>
    %1396 = arith.mulf %1395, %1367 : vector<16x16xf32>
    %1397 = arith.addf %1394, %1396 : vector<16x16xf32>
    %c0_447 = arith.constant 0 : index
    %c1_448 = arith.constant 1 : index
    %c2_449 = arith.constant 2 : index
    %1398 = vector.load %arg10[%c0_447, %c1_448, %c2_449] : memref<2x18x18xf32, #tpu.memory_space<vmem>>, vector<1x16x16xf32>
    %1399 = vector.shape_cast %1398 : vector<1x16x16xf32> to vector<16x16xf32>
    %c0_450 = arith.constant 0 : index
    %c1_451 = arith.constant 1 : index
    %c2_452 = arith.constant 2 : index
    %1400 = vector.load %arg11[%c0_450, %c1_451, %c2_452] : memref<2x18x18xf32, #tpu.memory_space<vmem>>, vector<1x16x16xf32>
    %1401 = vector.shape_cast %1400 : vector<1x16x16xf32> to vector<16x16xf32>
    %c5_453 = arith.constant 5 : index
    %1402 = memref.load %arg3[%c5_453] : memref<36xf32, #tpu.memory_space<smem>>
    %c5_454 = arith.constant 5 : index
    %1403 = memref.load %arg4[%c5_454] : memref<36xf32, #tpu.memory_space<smem>>
    %1404 = vector.broadcast %1402 : f32 to vector<16x16xf32>
    %1405 = arith.mulf %1404, %1399 : vector<16x16xf32>
    %1406 = arith.addf %1377, %1405 : vector<16x16xf32>
    %1407 = vector.broadcast %1403 : f32 to vector<16x16xf32>
    %1408 = arith.mulf %1407, %1401 : vector<16x16xf32>
    %1409 = arith.subf %1406, %1408 : vector<16x16xf32>
    %1410 = vector.broadcast %1402 : f32 to vector<16x16xf32>
    %1411 = arith.mulf %1410, %1401 : vector<16x16xf32>
    %1412 = arith.addf %1383, %1411 : vector<16x16xf32>
    %1413 = vector.broadcast %1403 : f32 to vector<16x16xf32>
    %1414 = arith.mulf %1413, %1399 : vector<16x16xf32>
    %1415 = arith.addf %1412, %1414 : vector<16x16xf32>
    %c23_455 = arith.constant 23 : index
    %1416 = memref.load %arg3[%c23_455] : memref<36xf32, #tpu.memory_space<smem>>
    %c23_456 = arith.constant 23 : index
    %1417 = memref.load %arg4[%c23_456] : memref<36xf32, #tpu.memory_space<smem>>
    %1418 = vector.broadcast %1416 : f32 to vector<16x16xf32>
    %1419 = arith.mulf %1418, %1399 : vector<16x16xf32>
    %1420 = arith.addf %1391, %1419 : vector<16x16xf32>
    %1421 = vector.broadcast %1417 : f32 to vector<16x16xf32>
    %1422 = arith.mulf %1421, %1401 : vector<16x16xf32>
    %1423 = arith.subf %1420, %1422 : vector<16x16xf32>
    %1424 = vector.broadcast %1416 : f32 to vector<16x16xf32>
    %1425 = arith.mulf %1424, %1401 : vector<16x16xf32>
    %1426 = arith.addf %1397, %1425 : vector<16x16xf32>
    %1427 = vector.broadcast %1417 : f32 to vector<16x16xf32>
    %1428 = arith.mulf %1427, %1399 : vector<16x16xf32>
    %1429 = arith.addf %1426, %1428 : vector<16x16xf32>
    %c0_457 = arith.constant 0 : index
    %c2_458 = arith.constant 2 : index
    %c0_459 = arith.constant 0 : index
    %1430 = vector.load %arg10[%c0_457, %c2_458, %c0_459] : memref<2x18x18xf32, #tpu.memory_space<vmem>>, vector<1x16x16xf32>
    %1431 = vector.shape_cast %1430 : vector<1x16x16xf32> to vector<16x16xf32>
    %c0_460 = arith.constant 0 : index
    %c2_461 = arith.constant 2 : index
    %c0_462 = arith.constant 0 : index
    %1432 = vector.load %arg11[%c0_460, %c2_461, %c0_462] : memref<2x18x18xf32, #tpu.memory_space<vmem>>, vector<1x16x16xf32>
    %1433 = vector.shape_cast %1432 : vector<1x16x16xf32> to vector<16x16xf32>
    %c6_463 = arith.constant 6 : index
    %1434 = memref.load %arg3[%c6_463] : memref<36xf32, #tpu.memory_space<smem>>
    %c6_464 = arith.constant 6 : index
    %1435 = memref.load %arg4[%c6_464] : memref<36xf32, #tpu.memory_space<smem>>
    %1436 = vector.broadcast %1434 : f32 to vector<16x16xf32>
    %1437 = arith.mulf %1436, %1431 : vector<16x16xf32>
    %1438 = arith.addf %1409, %1437 : vector<16x16xf32>
    %1439 = vector.broadcast %1435 : f32 to vector<16x16xf32>
    %1440 = arith.mulf %1439, %1433 : vector<16x16xf32>
    %1441 = arith.subf %1438, %1440 : vector<16x16xf32>
    %1442 = vector.broadcast %1434 : f32 to vector<16x16xf32>
    %1443 = arith.mulf %1442, %1433 : vector<16x16xf32>
    %1444 = arith.addf %1415, %1443 : vector<16x16xf32>
    %1445 = vector.broadcast %1435 : f32 to vector<16x16xf32>
    %1446 = arith.mulf %1445, %1431 : vector<16x16xf32>
    %1447 = arith.addf %1444, %1446 : vector<16x16xf32>
    %c24_465 = arith.constant 24 : index
    %1448 = memref.load %arg3[%c24_465] : memref<36xf32, #tpu.memory_space<smem>>
    %c24_466 = arith.constant 24 : index
    %1449 = memref.load %arg4[%c24_466] : memref<36xf32, #tpu.memory_space<smem>>
    %1450 = vector.broadcast %1448 : f32 to vector<16x16xf32>
    %1451 = arith.mulf %1450, %1431 : vector<16x16xf32>
    %1452 = arith.addf %1423, %1451 : vector<16x16xf32>
    %1453 = vector.broadcast %1449 : f32 to vector<16x16xf32>
    %1454 = arith.mulf %1453, %1433 : vector<16x16xf32>
    %1455 = arith.subf %1452, %1454 : vector<16x16xf32>
    %1456 = vector.broadcast %1448 : f32 to vector<16x16xf32>
    %1457 = arith.mulf %1456, %1433 : vector<16x16xf32>
    %1458 = arith.addf %1429, %1457 : vector<16x16xf32>
    %1459 = vector.broadcast %1449 : f32 to vector<16x16xf32>
    %1460 = arith.mulf %1459, %1431 : vector<16x16xf32>
    %1461 = arith.addf %1458, %1460 : vector<16x16xf32>
    %c0_467 = arith.constant 0 : index
    %c2_468 = arith.constant 2 : index
    %c1_469 = arith.constant 1 : index
    %1462 = vector.load %arg10[%c0_467, %c2_468, %c1_469] : memref<2x18x18xf32, #tpu.memory_space<vmem>>, vector<1x16x16xf32>
    %1463 = vector.shape_cast %1462 : vector<1x16x16xf32> to vector<16x16xf32>
    %c0_470 = arith.constant 0 : index
    %c2_471 = arith.constant 2 : index
    %c1_472 = arith.constant 1 : index
    %1464 = vector.load %arg11[%c0_470, %c2_471, %c1_472] : memref<2x18x18xf32, #tpu.memory_space<vmem>>, vector<1x16x16xf32>
    %1465 = vector.shape_cast %1464 : vector<1x16x16xf32> to vector<16x16xf32>
    %c7_473 = arith.constant 7 : index
    %1466 = memref.load %arg3[%c7_473] : memref<36xf32, #tpu.memory_space<smem>>
    %c7_474 = arith.constant 7 : index
    %1467 = memref.load %arg4[%c7_474] : memref<36xf32, #tpu.memory_space<smem>>
    %1468 = vector.broadcast %1466 : f32 to vector<16x16xf32>
    %1469 = arith.mulf %1468, %1463 : vector<16x16xf32>
    %1470 = arith.addf %1441, %1469 : vector<16x16xf32>
    %1471 = vector.broadcast %1467 : f32 to vector<16x16xf32>
    %1472 = arith.mulf %1471, %1465 : vector<16x16xf32>
    %1473 = arith.subf %1470, %1472 : vector<16x16xf32>
    %1474 = vector.broadcast %1466 : f32 to vector<16x16xf32>
    %1475 = arith.mulf %1474, %1465 : vector<16x16xf32>
    %1476 = arith.addf %1447, %1475 : vector<16x16xf32>
    %1477 = vector.broadcast %1467 : f32 to vector<16x16xf32>
    %1478 = arith.mulf %1477, %1463 : vector<16x16xf32>
    %1479 = arith.addf %1476, %1478 : vector<16x16xf32>
    %c25_475 = arith.constant 25 : index
    %1480 = memref.load %arg3[%c25_475] : memref<36xf32, #tpu.memory_space<smem>>
    %c25_476 = arith.constant 25 : index
    %1481 = memref.load %arg4[%c25_476] : memref<36xf32, #tpu.memory_space<smem>>
    %1482 = vector.broadcast %1480 : f32 to vector<16x16xf32>
    %1483 = arith.mulf %1482, %1463 : vector<16x16xf32>
    %1484 = arith.addf %1455, %1483 : vector<16x16xf32>
    %1485 = vector.broadcast %1481 : f32 to vector<16x16xf32>
    %1486 = arith.mulf %1485, %1465 : vector<16x16xf32>
    %1487 = arith.subf %1484, %1486 : vector<16x16xf32>
    %1488 = vector.broadcast %1480 : f32 to vector<16x16xf32>
    %1489 = arith.mulf %1488, %1465 : vector<16x16xf32>
    %1490 = arith.addf %1461, %1489 : vector<16x16xf32>
    %1491 = vector.broadcast %1481 : f32 to vector<16x16xf32>
    %1492 = arith.mulf %1491, %1463 : vector<16x16xf32>
    %1493 = arith.addf %1490, %1492 : vector<16x16xf32>
    %c0_477 = arith.constant 0 : index
    %c2_478 = arith.constant 2 : index
    %c2_479 = arith.constant 2 : index
    %1494 = vector.load %arg10[%c0_477, %c2_478, %c2_479] : memref<2x18x18xf32, #tpu.memory_space<vmem>>, vector<1x16x16xf32>
    %1495 = vector.shape_cast %1494 : vector<1x16x16xf32> to vector<16x16xf32>
    %c0_480 = arith.constant 0 : index
    %c2_481 = arith.constant 2 : index
    %c2_482 = arith.constant 2 : index
    %1496 = vector.load %arg11[%c0_480, %c2_481, %c2_482] : memref<2x18x18xf32, #tpu.memory_space<vmem>>, vector<1x16x16xf32>
    %1497 = vector.shape_cast %1496 : vector<1x16x16xf32> to vector<16x16xf32>
    %c8_483 = arith.constant 8 : index
    %1498 = memref.load %arg3[%c8_483] : memref<36xf32, #tpu.memory_space<smem>>
    %c8_484 = arith.constant 8 : index
    %1499 = memref.load %arg4[%c8_484] : memref<36xf32, #tpu.memory_space<smem>>
    %1500 = vector.broadcast %1498 : f32 to vector<16x16xf32>
    %1501 = arith.mulf %1500, %1495 : vector<16x16xf32>
    %1502 = arith.addf %1473, %1501 : vector<16x16xf32>
    %1503 = vector.broadcast %1499 : f32 to vector<16x16xf32>
    %1504 = arith.mulf %1503, %1497 : vector<16x16xf32>
    %1505 = arith.subf %1502, %1504 : vector<16x16xf32>
    %1506 = vector.broadcast %1498 : f32 to vector<16x16xf32>
    %1507 = arith.mulf %1506, %1497 : vector<16x16xf32>
    %1508 = arith.addf %1479, %1507 : vector<16x16xf32>
    %1509 = vector.broadcast %1499 : f32 to vector<16x16xf32>
    %1510 = arith.mulf %1509, %1495 : vector<16x16xf32>
    %1511 = arith.addf %1508, %1510 : vector<16x16xf32>
    %c26_485 = arith.constant 26 : index
    %1512 = memref.load %arg3[%c26_485] : memref<36xf32, #tpu.memory_space<smem>>
    %c26_486 = arith.constant 26 : index
    %1513 = memref.load %arg4[%c26_486] : memref<36xf32, #tpu.memory_space<smem>>
    %1514 = vector.broadcast %1512 : f32 to vector<16x16xf32>
    %1515 = arith.mulf %1514, %1495 : vector<16x16xf32>
    %1516 = arith.addf %1487, %1515 : vector<16x16xf32>
    %1517 = vector.broadcast %1513 : f32 to vector<16x16xf32>
    %1518 = arith.mulf %1517, %1497 : vector<16x16xf32>
    %1519 = arith.subf %1516, %1518 : vector<16x16xf32>
    %1520 = vector.broadcast %1512 : f32 to vector<16x16xf32>
    %1521 = arith.mulf %1520, %1497 : vector<16x16xf32>
    %1522 = arith.addf %1493, %1521 : vector<16x16xf32>
    %1523 = vector.broadcast %1513 : f32 to vector<16x16xf32>
    %1524 = arith.mulf %1523, %1495 : vector<16x16xf32>
    %1525 = arith.addf %1522, %1524 : vector<16x16xf32>
    %c1_487 = arith.constant 1 : index
    %c0_488 = arith.constant 0 : index
    %c0_489 = arith.constant 0 : index
    %1526 = vector.load %arg10[%c1_487, %c0_488, %c0_489] : memref<2x18x18xf32, #tpu.memory_space<vmem>>, vector<1x16x16xf32>
    %1527 = vector.shape_cast %1526 : vector<1x16x16xf32> to vector<16x16xf32>
    %c1_490 = arith.constant 1 : index
    %c0_491 = arith.constant 0 : index
    %c0_492 = arith.constant 0 : index
    %1528 = vector.load %arg11[%c1_490, %c0_491, %c0_492] : memref<2x18x18xf32, #tpu.memory_space<vmem>>, vector<1x16x16xf32>
    %1529 = vector.shape_cast %1528 : vector<1x16x16xf32> to vector<16x16xf32>
    %c9_493 = arith.constant 9 : index
    %1530 = memref.load %arg3[%c9_493] : memref<36xf32, #tpu.memory_space<smem>>
    %c9_494 = arith.constant 9 : index
    %1531 = memref.load %arg4[%c9_494] : memref<36xf32, #tpu.memory_space<smem>>
    %1532 = vector.broadcast %1530 : f32 to vector<16x16xf32>
    %1533 = arith.mulf %1532, %1527 : vector<16x16xf32>
    %1534 = arith.addf %1505, %1533 : vector<16x16xf32>
    %1535 = vector.broadcast %1531 : f32 to vector<16x16xf32>
    %1536 = arith.mulf %1535, %1529 : vector<16x16xf32>
    %1537 = arith.subf %1534, %1536 : vector<16x16xf32>
    %1538 = vector.broadcast %1530 : f32 to vector<16x16xf32>
    %1539 = arith.mulf %1538, %1529 : vector<16x16xf32>
    %1540 = arith.addf %1511, %1539 : vector<16x16xf32>
    %1541 = vector.broadcast %1531 : f32 to vector<16x16xf32>
    %1542 = arith.mulf %1541, %1527 : vector<16x16xf32>
    %1543 = arith.addf %1540, %1542 : vector<16x16xf32>
    %c27_495 = arith.constant 27 : index
    %1544 = memref.load %arg3[%c27_495] : memref<36xf32, #tpu.memory_space<smem>>
    %c27_496 = arith.constant 27 : index
    %1545 = memref.load %arg4[%c27_496] : memref<36xf32, #tpu.memory_space<smem>>
    %1546 = vector.broadcast %1544 : f32 to vector<16x16xf32>
    %1547 = arith.mulf %1546, %1527 : vector<16x16xf32>
    %1548 = arith.addf %1519, %1547 : vector<16x16xf32>
    %1549 = vector.broadcast %1545 : f32 to vector<16x16xf32>
    %1550 = arith.mulf %1549, %1529 : vector<16x16xf32>
    %1551 = arith.subf %1548, %1550 : vector<16x16xf32>
    %1552 = vector.broadcast %1544 : f32 to vector<16x16xf32>
    %1553 = arith.mulf %1552, %1529 : vector<16x16xf32>
    %1554 = arith.addf %1525, %1553 : vector<16x16xf32>
    %1555 = vector.broadcast %1545 : f32 to vector<16x16xf32>
    %1556 = arith.mulf %1555, %1527 : vector<16x16xf32>
    %1557 = arith.addf %1554, %1556 : vector<16x16xf32>
    %c1_497 = arith.constant 1 : index
    %c0_498 = arith.constant 0 : index
    %c1_499 = arith.constant 1 : index
    %1558 = vector.load %arg10[%c1_497, %c0_498, %c1_499] : memref<2x18x18xf32, #tpu.memory_space<vmem>>, vector<1x16x16xf32>
    %1559 = vector.shape_cast %1558 : vector<1x16x16xf32> to vector<16x16xf32>
    %c1_500 = arith.constant 1 : index
    %c0_501 = arith.constant 0 : index
    %c1_502 = arith.constant 1 : index
    %1560 = vector.load %arg11[%c1_500, %c0_501, %c1_502] : memref<2x18x18xf32, #tpu.memory_space<vmem>>, vector<1x16x16xf32>
    %1561 = vector.shape_cast %1560 : vector<1x16x16xf32> to vector<16x16xf32>
    %c10_503 = arith.constant 10 : index
    %1562 = memref.load %arg3[%c10_503] : memref<36xf32, #tpu.memory_space<smem>>
    %c10_504 = arith.constant 10 : index
    %1563 = memref.load %arg4[%c10_504] : memref<36xf32, #tpu.memory_space<smem>>
    %1564 = vector.broadcast %1562 : f32 to vector<16x16xf32>
    %1565 = arith.mulf %1564, %1559 : vector<16x16xf32>
    %1566 = arith.addf %1537, %1565 : vector<16x16xf32>
    %1567 = vector.broadcast %1563 : f32 to vector<16x16xf32>
    %1568 = arith.mulf %1567, %1561 : vector<16x16xf32>
    %1569 = arith.subf %1566, %1568 : vector<16x16xf32>
    %1570 = vector.broadcast %1562 : f32 to vector<16x16xf32>
    %1571 = arith.mulf %1570, %1561 : vector<16x16xf32>
    %1572 = arith.addf %1543, %1571 : vector<16x16xf32>
    %1573 = vector.broadcast %1563 : f32 to vector<16x16xf32>
    %1574 = arith.mulf %1573, %1559 : vector<16x16xf32>
    %1575 = arith.addf %1572, %1574 : vector<16x16xf32>
    %c28_505 = arith.constant 28 : index
    %1576 = memref.load %arg3[%c28_505] : memref<36xf32, #tpu.memory_space<smem>>
    %c28_506 = arith.constant 28 : index
    %1577 = memref.load %arg4[%c28_506] : memref<36xf32, #tpu.memory_space<smem>>
    %1578 = vector.broadcast %1576 : f32 to vector<16x16xf32>
    %1579 = arith.mulf %1578, %1559 : vector<16x16xf32>
    %1580 = arith.addf %1551, %1579 : vector<16x16xf32>
    %1581 = vector.broadcast %1577 : f32 to vector<16x16xf32>
    %1582 = arith.mulf %1581, %1561 : vector<16x16xf32>
    %1583 = arith.subf %1580, %1582 : vector<16x16xf32>
    %1584 = vector.broadcast %1576 : f32 to vector<16x16xf32>
    %1585 = arith.mulf %1584, %1561 : vector<16x16xf32>
    %1586 = arith.addf %1557, %1585 : vector<16x16xf32>
    %1587 = vector.broadcast %1577 : f32 to vector<16x16xf32>
    %1588 = arith.mulf %1587, %1559 : vector<16x16xf32>
    %1589 = arith.addf %1586, %1588 : vector<16x16xf32>
    %c1_507 = arith.constant 1 : index
    %c0_508 = arith.constant 0 : index
    %c2_509 = arith.constant 2 : index
    %1590 = vector.load %arg10[%c1_507, %c0_508, %c2_509] : memref<2x18x18xf32, #tpu.memory_space<vmem>>, vector<1x16x16xf32>
    %1591 = vector.shape_cast %1590 : vector<1x16x16xf32> to vector<16x16xf32>
    %c1_510 = arith.constant 1 : index
    %c0_511 = arith.constant 0 : index
    %c2_512 = arith.constant 2 : index
    %1592 = vector.load %arg11[%c1_510, %c0_511, %c2_512] : memref<2x18x18xf32, #tpu.memory_space<vmem>>, vector<1x16x16xf32>
    %1593 = vector.shape_cast %1592 : vector<1x16x16xf32> to vector<16x16xf32>
    %c11_513 = arith.constant 11 : index
    %1594 = memref.load %arg3[%c11_513] : memref<36xf32, #tpu.memory_space<smem>>
    %c11_514 = arith.constant 11 : index
    %1595 = memref.load %arg4[%c11_514] : memref<36xf32, #tpu.memory_space<smem>>
    %1596 = vector.broadcast %1594 : f32 to vector<16x16xf32>
    %1597 = arith.mulf %1596, %1591 : vector<16x16xf32>
    %1598 = arith.addf %1569, %1597 : vector<16x16xf32>
    %1599 = vector.broadcast %1595 : f32 to vector<16x16xf32>
    %1600 = arith.mulf %1599, %1593 : vector<16x16xf32>
    %1601 = arith.subf %1598, %1600 : vector<16x16xf32>
    %1602 = vector.broadcast %1594 : f32 to vector<16x16xf32>
    %1603 = arith.mulf %1602, %1593 : vector<16x16xf32>
    %1604 = arith.addf %1575, %1603 : vector<16x16xf32>
    %1605 = vector.broadcast %1595 : f32 to vector<16x16xf32>
    %1606 = arith.mulf %1605, %1591 : vector<16x16xf32>
    %1607 = arith.addf %1604, %1606 : vector<16x16xf32>
    %c29_515 = arith.constant 29 : index
    %1608 = memref.load %arg3[%c29_515] : memref<36xf32, #tpu.memory_space<smem>>
    %c29_516 = arith.constant 29 : index
    %1609 = memref.load %arg4[%c29_516] : memref<36xf32, #tpu.memory_space<smem>>
    %1610 = vector.broadcast %1608 : f32 to vector<16x16xf32>
    %1611 = arith.mulf %1610, %1591 : vector<16x16xf32>
    %1612 = arith.addf %1583, %1611 : vector<16x16xf32>
    %1613 = vector.broadcast %1609 : f32 to vector<16x16xf32>
    %1614 = arith.mulf %1613, %1593 : vector<16x16xf32>
    %1615 = arith.subf %1612, %1614 : vector<16x16xf32>
    %1616 = vector.broadcast %1608 : f32 to vector<16x16xf32>
    %1617 = arith.mulf %1616, %1593 : vector<16x16xf32>
    %1618 = arith.addf %1589, %1617 : vector<16x16xf32>
    %1619 = vector.broadcast %1609 : f32 to vector<16x16xf32>
    %1620 = arith.mulf %1619, %1591 : vector<16x16xf32>
    %1621 = arith.addf %1618, %1620 : vector<16x16xf32>
    %c1_517 = arith.constant 1 : index
    %c1_518 = arith.constant 1 : index
    %c0_519 = arith.constant 0 : index
    %1622 = vector.load %arg10[%c1_517, %c1_518, %c0_519] : memref<2x18x18xf32, #tpu.memory_space<vmem>>, vector<1x16x16xf32>
    %1623 = vector.shape_cast %1622 : vector<1x16x16xf32> to vector<16x16xf32>
    %c1_520 = arith.constant 1 : index
    %c1_521 = arith.constant 1 : index
    %c0_522 = arith.constant 0 : index
    %1624 = vector.load %arg11[%c1_520, %c1_521, %c0_522] : memref<2x18x18xf32, #tpu.memory_space<vmem>>, vector<1x16x16xf32>
    %1625 = vector.shape_cast %1624 : vector<1x16x16xf32> to vector<16x16xf32>
    %c12_523 = arith.constant 12 : index
    %1626 = memref.load %arg3[%c12_523] : memref<36xf32, #tpu.memory_space<smem>>
    %c12_524 = arith.constant 12 : index
    %1627 = memref.load %arg4[%c12_524] : memref<36xf32, #tpu.memory_space<smem>>
    %1628 = vector.broadcast %1626 : f32 to vector<16x16xf32>
    %1629 = arith.mulf %1628, %1623 : vector<16x16xf32>
    %1630 = arith.addf %1601, %1629 : vector<16x16xf32>
    %1631 = vector.broadcast %1627 : f32 to vector<16x16xf32>
    %1632 = arith.mulf %1631, %1625 : vector<16x16xf32>
    %1633 = arith.subf %1630, %1632 : vector<16x16xf32>
    %1634 = vector.broadcast %1626 : f32 to vector<16x16xf32>
    %1635 = arith.mulf %1634, %1625 : vector<16x16xf32>
    %1636 = arith.addf %1607, %1635 : vector<16x16xf32>
    %1637 = vector.broadcast %1627 : f32 to vector<16x16xf32>
    %1638 = arith.mulf %1637, %1623 : vector<16x16xf32>
    %1639 = arith.addf %1636, %1638 : vector<16x16xf32>
    %c30_525 = arith.constant 30 : index
    %1640 = memref.load %arg3[%c30_525] : memref<36xf32, #tpu.memory_space<smem>>
    %c30_526 = arith.constant 30 : index
    %1641 = memref.load %arg4[%c30_526] : memref<36xf32, #tpu.memory_space<smem>>
    %1642 = vector.broadcast %1640 : f32 to vector<16x16xf32>
    %1643 = arith.mulf %1642, %1623 : vector<16x16xf32>
    %1644 = arith.addf %1615, %1643 : vector<16x16xf32>
    %1645 = vector.broadcast %1641 : f32 to vector<16x16xf32>
    %1646 = arith.mulf %1645, %1625 : vector<16x16xf32>
    %1647 = arith.subf %1644, %1646 : vector<16x16xf32>
    %1648 = vector.broadcast %1640 : f32 to vector<16x16xf32>
    %1649 = arith.mulf %1648, %1625 : vector<16x16xf32>
    %1650 = arith.addf %1621, %1649 : vector<16x16xf32>
    %1651 = vector.broadcast %1641 : f32 to vector<16x16xf32>
    %1652 = arith.mulf %1651, %1623 : vector<16x16xf32>
    %1653 = arith.addf %1650, %1652 : vector<16x16xf32>
    %c1_527 = arith.constant 1 : index
    %c1_528 = arith.constant 1 : index
    %c1_529 = arith.constant 1 : index
    %1654 = vector.load %arg10[%c1_527, %c1_528, %c1_529] : memref<2x18x18xf32, #tpu.memory_space<vmem>>, vector<1x16x16xf32>
    %1655 = vector.shape_cast %1654 : vector<1x16x16xf32> to vector<16x16xf32>
    %c1_530 = arith.constant 1 : index
    %c1_531 = arith.constant 1 : index
    %c1_532 = arith.constant 1 : index
    %1656 = vector.load %arg11[%c1_530, %c1_531, %c1_532] : memref<2x18x18xf32, #tpu.memory_space<vmem>>, vector<1x16x16xf32>
    %1657 = vector.shape_cast %1656 : vector<1x16x16xf32> to vector<16x16xf32>
    %c13_533 = arith.constant 13 : index
    %1658 = memref.load %arg3[%c13_533] : memref<36xf32, #tpu.memory_space<smem>>
    %c13_534 = arith.constant 13 : index
    %1659 = memref.load %arg4[%c13_534] : memref<36xf32, #tpu.memory_space<smem>>
    %1660 = vector.broadcast %1658 : f32 to vector<16x16xf32>
    %1661 = arith.mulf %1660, %1655 : vector<16x16xf32>
    %1662 = arith.addf %1633, %1661 : vector<16x16xf32>
    %1663 = vector.broadcast %1659 : f32 to vector<16x16xf32>
    %1664 = arith.mulf %1663, %1657 : vector<16x16xf32>
    %1665 = arith.subf %1662, %1664 : vector<16x16xf32>
    %1666 = vector.broadcast %1658 : f32 to vector<16x16xf32>
    %1667 = arith.mulf %1666, %1657 : vector<16x16xf32>
    %1668 = arith.addf %1639, %1667 : vector<16x16xf32>
    %1669 = vector.broadcast %1659 : f32 to vector<16x16xf32>
    %1670 = arith.mulf %1669, %1655 : vector<16x16xf32>
    %1671 = arith.addf %1668, %1670 : vector<16x16xf32>
    %c31_535 = arith.constant 31 : index
    %1672 = memref.load %arg3[%c31_535] : memref<36xf32, #tpu.memory_space<smem>>
    %c31_536 = arith.constant 31 : index
    %1673 = memref.load %arg4[%c31_536] : memref<36xf32, #tpu.memory_space<smem>>
    %1674 = vector.broadcast %1672 : f32 to vector<16x16xf32>
    %1675 = arith.mulf %1674, %1655 : vector<16x16xf32>
    %1676 = arith.addf %1647, %1675 : vector<16x16xf32>
    %1677 = vector.broadcast %1673 : f32 to vector<16x16xf32>
    %1678 = arith.mulf %1677, %1657 : vector<16x16xf32>
    %1679 = arith.subf %1676, %1678 : vector<16x16xf32>
    %1680 = vector.broadcast %1672 : f32 to vector<16x16xf32>
    %1681 = arith.mulf %1680, %1657 : vector<16x16xf32>
    %1682 = arith.addf %1653, %1681 : vector<16x16xf32>
    %1683 = vector.broadcast %1673 : f32 to vector<16x16xf32>
    %1684 = arith.mulf %1683, %1655 : vector<16x16xf32>
    %1685 = arith.addf %1682, %1684 : vector<16x16xf32>
    %c1_537 = arith.constant 1 : index
    %c1_538 = arith.constant 1 : index
    %c2_539 = arith.constant 2 : index
    %1686 = vector.load %arg10[%c1_537, %c1_538, %c2_539] : memref<2x18x18xf32, #tpu.memory_space<vmem>>, vector<1x16x16xf32>
    %1687 = vector.shape_cast %1686 : vector<1x16x16xf32> to vector<16x16xf32>
    %c1_540 = arith.constant 1 : index
    %c1_541 = arith.constant 1 : index
    %c2_542 = arith.constant 2 : index
    %1688 = vector.load %arg11[%c1_540, %c1_541, %c2_542] : memref<2x18x18xf32, #tpu.memory_space<vmem>>, vector<1x16x16xf32>
    %1689 = vector.shape_cast %1688 : vector<1x16x16xf32> to vector<16x16xf32>
    %c14_543 = arith.constant 14 : index
    %1690 = memref.load %arg3[%c14_543] : memref<36xf32, #tpu.memory_space<smem>>
    %c14_544 = arith.constant 14 : index
    %1691 = memref.load %arg4[%c14_544] : memref<36xf32, #tpu.memory_space<smem>>
    %1692 = vector.broadcast %1690 : f32 to vector<16x16xf32>
    %1693 = arith.mulf %1692, %1687 : vector<16x16xf32>
    %1694 = arith.addf %1665, %1693 : vector<16x16xf32>
    %1695 = vector.broadcast %1691 : f32 to vector<16x16xf32>
    %1696 = arith.mulf %1695, %1689 : vector<16x16xf32>
    %1697 = arith.subf %1694, %1696 : vector<16x16xf32>
    %1698 = vector.broadcast %1690 : f32 to vector<16x16xf32>
    %1699 = arith.mulf %1698, %1689 : vector<16x16xf32>
    %1700 = arith.addf %1671, %1699 : vector<16x16xf32>
    %1701 = vector.broadcast %1691 : f32 to vector<16x16xf32>
    %1702 = arith.mulf %1701, %1687 : vector<16x16xf32>
    %1703 = arith.addf %1700, %1702 : vector<16x16xf32>
    %c32_545 = arith.constant 32 : index
    %1704 = memref.load %arg3[%c32_545] : memref<36xf32, #tpu.memory_space<smem>>
    %c32_546 = arith.constant 32 : index
    %1705 = memref.load %arg4[%c32_546] : memref<36xf32, #tpu.memory_space<smem>>
    %1706 = vector.broadcast %1704 : f32 to vector<16x16xf32>
    %1707 = arith.mulf %1706, %1687 : vector<16x16xf32>
    %1708 = arith.addf %1679, %1707 : vector<16x16xf32>
    %1709 = vector.broadcast %1705 : f32 to vector<16x16xf32>
    %1710 = arith.mulf %1709, %1689 : vector<16x16xf32>
    %1711 = arith.subf %1708, %1710 : vector<16x16xf32>
    %1712 = vector.broadcast %1704 : f32 to vector<16x16xf32>
    %1713 = arith.mulf %1712, %1689 : vector<16x16xf32>
    %1714 = arith.addf %1685, %1713 : vector<16x16xf32>
    %1715 = vector.broadcast %1705 : f32 to vector<16x16xf32>
    %1716 = arith.mulf %1715, %1687 : vector<16x16xf32>
    %1717 = arith.addf %1714, %1716 : vector<16x16xf32>
    %c1_547 = arith.constant 1 : index
    %c2_548 = arith.constant 2 : index
    %c0_549 = arith.constant 0 : index
    %1718 = vector.load %arg10[%c1_547, %c2_548, %c0_549] : memref<2x18x18xf32, #tpu.memory_space<vmem>>, vector<1x16x16xf32>
    %1719 = vector.shape_cast %1718 : vector<1x16x16xf32> to vector<16x16xf32>
    %c1_550 = arith.constant 1 : index
    %c2_551 = arith.constant 2 : index
    %c0_552 = arith.constant 0 : index
    %1720 = vector.load %arg11[%c1_550, %c2_551, %c0_552] : memref<2x18x18xf32, #tpu.memory_space<vmem>>, vector<1x16x16xf32>
    %1721 = vector.shape_cast %1720 : vector<1x16x16xf32> to vector<16x16xf32>
    %c15_553 = arith.constant 15 : index
    %1722 = memref.load %arg3[%c15_553] : memref<36xf32, #tpu.memory_space<smem>>
    %c15_554 = arith.constant 15 : index
    %1723 = memref.load %arg4[%c15_554] : memref<36xf32, #tpu.memory_space<smem>>
    %1724 = vector.broadcast %1722 : f32 to vector<16x16xf32>
    %1725 = arith.mulf %1724, %1719 : vector<16x16xf32>
    %1726 = arith.addf %1697, %1725 : vector<16x16xf32>
    %1727 = vector.broadcast %1723 : f32 to vector<16x16xf32>
    %1728 = arith.mulf %1727, %1721 : vector<16x16xf32>
    %1729 = arith.subf %1726, %1728 : vector<16x16xf32>
    %1730 = vector.broadcast %1722 : f32 to vector<16x16xf32>
    %1731 = arith.mulf %1730, %1721 : vector<16x16xf32>
    %1732 = arith.addf %1703, %1731 : vector<16x16xf32>
    %1733 = vector.broadcast %1723 : f32 to vector<16x16xf32>
    %1734 = arith.mulf %1733, %1719 : vector<16x16xf32>
    %1735 = arith.addf %1732, %1734 : vector<16x16xf32>
    %c33_555 = arith.constant 33 : index
    %1736 = memref.load %arg3[%c33_555] : memref<36xf32, #tpu.memory_space<smem>>
    %c33_556 = arith.constant 33 : index
    %1737 = memref.load %arg4[%c33_556] : memref<36xf32, #tpu.memory_space<smem>>
    %1738 = vector.broadcast %1736 : f32 to vector<16x16xf32>
    %1739 = arith.mulf %1738, %1719 : vector<16x16xf32>
    %1740 = arith.addf %1711, %1739 : vector<16x16xf32>
    %1741 = vector.broadcast %1737 : f32 to vector<16x16xf32>
    %1742 = arith.mulf %1741, %1721 : vector<16x16xf32>
    %1743 = arith.subf %1740, %1742 : vector<16x16xf32>
    %1744 = vector.broadcast %1736 : f32 to vector<16x16xf32>
    %1745 = arith.mulf %1744, %1721 : vector<16x16xf32>
    %1746 = arith.addf %1717, %1745 : vector<16x16xf32>
    %1747 = vector.broadcast %1737 : f32 to vector<16x16xf32>
    %1748 = arith.mulf %1747, %1719 : vector<16x16xf32>
    %1749 = arith.addf %1746, %1748 : vector<16x16xf32>
    %c1_557 = arith.constant 1 : index
    %c2_558 = arith.constant 2 : index
    %c1_559 = arith.constant 1 : index
    %1750 = vector.load %arg10[%c1_557, %c2_558, %c1_559] : memref<2x18x18xf32, #tpu.memory_space<vmem>>, vector<1x16x16xf32>
    %1751 = vector.shape_cast %1750 : vector<1x16x16xf32> to vector<16x16xf32>
    %c1_560 = arith.constant 1 : index
    %c2_561 = arith.constant 2 : index
    %c1_562 = arith.constant 1 : index
    %1752 = vector.load %arg11[%c1_560, %c2_561, %c1_562] : memref<2x18x18xf32, #tpu.memory_space<vmem>>, vector<1x16x16xf32>
    %1753 = vector.shape_cast %1752 : vector<1x16x16xf32> to vector<16x16xf32>
    %c16_563 = arith.constant 16 : index
    %1754 = memref.load %arg3[%c16_563] : memref<36xf32, #tpu.memory_space<smem>>
    %c16_564 = arith.constant 16 : index
    %1755 = memref.load %arg4[%c16_564] : memref<36xf32, #tpu.memory_space<smem>>
    %1756 = vector.broadcast %1754 : f32 to vector<16x16xf32>
    %1757 = arith.mulf %1756, %1751 : vector<16x16xf32>
    %1758 = arith.addf %1729, %1757 : vector<16x16xf32>
    %1759 = vector.broadcast %1755 : f32 to vector<16x16xf32>
    %1760 = arith.mulf %1759, %1753 : vector<16x16xf32>
    %1761 = arith.subf %1758, %1760 : vector<16x16xf32>
    %1762 = vector.broadcast %1754 : f32 to vector<16x16xf32>
    %1763 = arith.mulf %1762, %1753 : vector<16x16xf32>
    %1764 = arith.addf %1735, %1763 : vector<16x16xf32>
    %1765 = vector.broadcast %1755 : f32 to vector<16x16xf32>
    %1766 = arith.mulf %1765, %1751 : vector<16x16xf32>
    %1767 = arith.addf %1764, %1766 : vector<16x16xf32>
    %c34_565 = arith.constant 34 : index
    %1768 = memref.load %arg3[%c34_565] : memref<36xf32, #tpu.memory_space<smem>>
    %c34_566 = arith.constant 34 : index
    %1769 = memref.load %arg4[%c34_566] : memref<36xf32, #tpu.memory_space<smem>>
    %1770 = vector.broadcast %1768 : f32 to vector<16x16xf32>
    %1771 = arith.mulf %1770, %1751 : vector<16x16xf32>
    %1772 = arith.addf %1743, %1771 : vector<16x16xf32>
    %1773 = vector.broadcast %1769 : f32 to vector<16x16xf32>
    %1774 = arith.mulf %1773, %1753 : vector<16x16xf32>
    %1775 = arith.subf %1772, %1774 : vector<16x16xf32>
    %1776 = vector.broadcast %1768 : f32 to vector<16x16xf32>
    %1777 = arith.mulf %1776, %1753 : vector<16x16xf32>
    %1778 = arith.addf %1749, %1777 : vector<16x16xf32>
    %1779 = vector.broadcast %1769 : f32 to vector<16x16xf32>
    %1780 = arith.mulf %1779, %1751 : vector<16x16xf32>
    %1781 = arith.addf %1778, %1780 : vector<16x16xf32>
    %c1_567 = arith.constant 1 : index
    %c2_568 = arith.constant 2 : index
    %c2_569 = arith.constant 2 : index
    %1782 = vector.load %arg10[%c1_567, %c2_568, %c2_569] : memref<2x18x18xf32, #tpu.memory_space<vmem>>, vector<1x16x16xf32>
    %1783 = vector.shape_cast %1782 : vector<1x16x16xf32> to vector<16x16xf32>
    %c1_570 = arith.constant 1 : index
    %c2_571 = arith.constant 2 : index
    %c2_572 = arith.constant 2 : index
    %1784 = vector.load %arg11[%c1_570, %c2_571, %c2_572] : memref<2x18x18xf32, #tpu.memory_space<vmem>>, vector<1x16x16xf32>
    %1785 = vector.shape_cast %1784 : vector<1x16x16xf32> to vector<16x16xf32>
    %c17_573 = arith.constant 17 : index
    %1786 = memref.load %arg3[%c17_573] : memref<36xf32, #tpu.memory_space<smem>>
    %c17_574 = arith.constant 17 : index
    %1787 = memref.load %arg4[%c17_574] : memref<36xf32, #tpu.memory_space<smem>>
    %1788 = vector.broadcast %1786 : f32 to vector<16x16xf32>
    %1789 = arith.mulf %1788, %1783 : vector<16x16xf32>
    %1790 = arith.addf %1761, %1789 : vector<16x16xf32>
    %1791 = vector.broadcast %1787 : f32 to vector<16x16xf32>
    %1792 = arith.mulf %1791, %1785 : vector<16x16xf32>
    %1793 = arith.subf %1790, %1792 : vector<16x16xf32>
    %1794 = vector.broadcast %1786 : f32 to vector<16x16xf32>
    %1795 = arith.mulf %1794, %1785 : vector<16x16xf32>
    %1796 = arith.addf %1767, %1795 : vector<16x16xf32>
    %1797 = vector.broadcast %1787 : f32 to vector<16x16xf32>
    %1798 = arith.mulf %1797, %1783 : vector<16x16xf32>
    %1799 = arith.addf %1796, %1798 : vector<16x16xf32>
    %c35_575 = arith.constant 35 : index
    %1800 = memref.load %arg3[%c35_575] : memref<36xf32, #tpu.memory_space<smem>>
    %c35_576 = arith.constant 35 : index
    %1801 = memref.load %arg4[%c35_576] : memref<36xf32, #tpu.memory_space<smem>>
    %1802 = vector.broadcast %1800 : f32 to vector<16x16xf32>
    %1803 = arith.mulf %1802, %1783 : vector<16x16xf32>
    %1804 = arith.addf %1775, %1803 : vector<16x16xf32>
    %1805 = vector.broadcast %1801 : f32 to vector<16x16xf32>
    %1806 = arith.mulf %1805, %1785 : vector<16x16xf32>
    %1807 = arith.subf %1804, %1806 : vector<16x16xf32>
    %1808 = vector.broadcast %1800 : f32 to vector<16x16xf32>
    %1809 = arith.mulf %1808, %1785 : vector<16x16xf32>
    %1810 = arith.addf %1781, %1809 : vector<16x16xf32>
    %1811 = vector.broadcast %1801 : f32 to vector<16x16xf32>
    %1812 = arith.mulf %1811, %1783 : vector<16x16xf32>
    %1813 = arith.addf %1810, %1812 : vector<16x16xf32>
    %1814 = arith.addf %1793, %601 : vector<16x16xf32>
    %1815 = arith.addf %1807, %615 : vector<16x16xf32>
    %1816 = arith.addf %1799, %607 : vector<16x16xf32>
    %1817 = arith.addf %1813, %621 : vector<16x16xf32>
    %cst_577 = arith.constant dense<0.000000e+00> : vector<16xf32>
    %1818 = vector.multi_reduction <add>, %1814, %cst_577 [1] : vector<16x16xf32> to vector<16xf32>
    %1819 = vector.shape_cast %1818 : vector<16xf32> to vector<16x1xf32>
    %cst_578 = arith.constant 1.600000e+01 : f32
    %1820 = vector.broadcast %cst_578 : f32 to vector<16x1xf32>
    %1821 = arith.divf %1819, %1820 : vector<16x1xf32>
    %cst_579 = arith.constant dense<0.000000e+00> : vector<16xf32>
    %1822 = vector.multi_reduction <add>, %1816, %cst_579 [1] : vector<16x16xf32> to vector<16xf32>
    %1823 = vector.shape_cast %1822 : vector<16xf32> to vector<16x1xf32>
    %cst_580 = arith.constant 1.600000e+01 : f32
    %1824 = vector.broadcast %cst_580 : f32 to vector<16x1xf32>
    %1825 = arith.divf %1823, %1824 : vector<16x1xf32>
    %1826 = vector.broadcast %1821 : vector<16x1xf32> to vector<16x16xf32>
    %1827 = arith.subf %1814, %1826 : vector<16x16xf32>
    %1828 = vector.broadcast %1825 : vector<16x1xf32> to vector<16x16xf32>
    %1829 = arith.subf %1816, %1828 : vector<16x16xf32>
    %1830 = arith.mulf %1827, %1827 : vector<16x16xf32>
    %cst_581 = arith.constant dense<0.000000e+00> : vector<16xf32>
    %1831 = vector.multi_reduction <add>, %1830, %cst_581 [1] : vector<16x16xf32> to vector<16xf32>
    %1832 = vector.shape_cast %1831 : vector<16xf32> to vector<16x1xf32>
    %cst_582 = arith.constant 0.0666666701 : f32
    %1833 = vector.broadcast %cst_582 : f32 to vector<16x1xf32>
    %1834 = arith.mulf %1832, %1833 : vector<16x1xf32>
    %1835 = arith.mulf %1829, %1829 : vector<16x16xf32>
    %cst_583 = arith.constant dense<0.000000e+00> : vector<16xf32>
    %1836 = vector.multi_reduction <add>, %1835, %cst_583 [1] : vector<16x16xf32> to vector<16xf32>
    %1837 = vector.shape_cast %1836 : vector<16xf32> to vector<16x1xf32>
    %cst_584 = arith.constant 0.0666666701 : f32
    %1838 = vector.broadcast %cst_584 : f32 to vector<16x1xf32>
    %1839 = arith.mulf %1837, %1838 : vector<16x1xf32>
    %1840 = arith.mulf %1827, %1829 : vector<16x16xf32>
    %cst_585 = arith.constant dense<0.000000e+00> : vector<16xf32>
    %1841 = vector.multi_reduction <add>, %1840, %cst_585 [1] : vector<16x16xf32> to vector<16xf32>
    %1842 = vector.shape_cast %1841 : vector<16xf32> to vector<16x1xf32>
    %cst_586 = arith.constant 1.600000e+01 : f32
    %1843 = vector.broadcast %cst_586 : f32 to vector<16x1xf32>
    %1844 = arith.divf %1842, %1843 : vector<16x1xf32>
    %1845 = arith.mulf %1834, %1839 : vector<16x1xf32>
    %1846 = arith.mulf %1844, %1844 : vector<16x1xf32>
    %1847 = arith.subf %1845, %1846 : vector<16x1xf32>
    %cst_587 = arith.constant 0.000000e+00 : f32
    %1848 = vector.broadcast %cst_587 : f32 to vector<16x1xf32>
    %1849 = arith.maximumf %1847, %1848 : vector<16x1xf32>
    %1850 = math.sqrt %1849 : vector<16x1xf32>
    %1851 = arith.addf %1834, %1839 : vector<16x1xf32>
    %cst_588 = arith.constant 2.000000e+00 : f32
    %1852 = vector.broadcast %cst_588 : f32 to vector<16x1xf32>
    %1853 = arith.mulf %1852, %1850 : vector<16x1xf32>
    %1854 = arith.addf %1851, %1853 : vector<16x1xf32>
    %1855 = math.sqrt %1854 : vector<16x1xf32>
    %1856 = arith.addf %1834, %1850 : vector<16x1xf32>
    %1857 = arith.divf %1856, %1855 : vector<16x1xf32>
    %1858 = arith.divf %1844, %1855 : vector<16x1xf32>
    %1859 = arith.addf %1839, %1850 : vector<16x1xf32>
    %1860 = arith.divf %1859, %1855 : vector<16x1xf32>
    %1861 = arith.mulf %1857, %1860 : vector<16x1xf32>
    %1862 = arith.mulf %1858, %1858 : vector<16x1xf32>
    %1863 = arith.subf %1861, %1862 : vector<16x1xf32>
    %1864 = arith.divf %1860, %1863 : vector<16x1xf32>
    %cst_589 = arith.constant 0.000000e+00 : f32
    %1865 = vector.broadcast %cst_589 : f32 to vector<16x1xf32>
    %1866 = arith.subf %1865, %1858 : vector<16x1xf32>
    %1867 = arith.divf %1866, %1863 : vector<16x1xf32>
    %1868 = arith.divf %1857, %1863 : vector<16x1xf32>
    %1869 = vector.broadcast %17 : vector<1x16xf32> to vector<16x16xf32>
    %1870 = vector.broadcast %1864 : vector<16x1xf32> to vector<16x16xf32>
    %1871 = arith.mulf %1869, %1870 : vector<16x16xf32>
    %1872 = vector.broadcast %18 : vector<1x16xf32> to vector<16x16xf32>
    %1873 = vector.broadcast %1867 : vector<16x1xf32> to vector<16x16xf32>
    %1874 = arith.mulf %1872, %1873 : vector<16x16xf32>
    %1875 = arith.addf %1871, %1874 : vector<16x16xf32>
    %1876 = vector.broadcast %17 : vector<1x16xf32> to vector<16x16xf32>
    %1877 = vector.broadcast %1867 : vector<16x1xf32> to vector<16x16xf32>
    %1878 = arith.mulf %1876, %1877 : vector<16x16xf32>
    %1879 = vector.broadcast %18 : vector<1x16xf32> to vector<16x16xf32>
    %1880 = vector.broadcast %1868 : vector<16x1xf32> to vector<16x16xf32>
    %1881 = arith.mulf %1879, %1880 : vector<16x16xf32>
    %1882 = arith.addf %1878, %1881 : vector<16x16xf32>
    %1883 = vector.broadcast %18 : vector<1x16xf32> to vector<16x16xf32>
    %1884 = vector.broadcast %1864 : vector<16x1xf32> to vector<16x16xf32>
    %1885 = arith.mulf %1883, %1884 : vector<16x16xf32>
    %1886 = vector.broadcast %19 : vector<1x16xf32> to vector<16x16xf32>
    %1887 = vector.broadcast %1867 : vector<16x1xf32> to vector<16x16xf32>
    %1888 = arith.mulf %1886, %1887 : vector<16x16xf32>
    %1889 = arith.addf %1885, %1888 : vector<16x16xf32>
    %1890 = vector.broadcast %18 : vector<1x16xf32> to vector<16x16xf32>
    %1891 = vector.broadcast %1867 : vector<16x1xf32> to vector<16x16xf32>
    %1892 = arith.mulf %1890, %1891 : vector<16x16xf32>
    %1893 = vector.broadcast %19 : vector<1x16xf32> to vector<16x16xf32>
    %1894 = vector.broadcast %1868 : vector<16x1xf32> to vector<16x16xf32>
    %1895 = arith.mulf %1893, %1894 : vector<16x16xf32>
    %1896 = arith.addf %1892, %1895 : vector<16x16xf32>
    %1897 = arith.mulf %1875, %1827 : vector<16x16xf32>
    %1898 = arith.mulf %1882, %1829 : vector<16x16xf32>
    %1899 = arith.addf %1897, %1898 : vector<16x16xf32>
    %1900 = vector.broadcast %20 : vector<1x16xf32> to vector<16x16xf32>
    %1901 = arith.addf %1899, %1900 : vector<16x16xf32>
    %c0_590 = arith.constant 0 : index
    %c0_591 = arith.constant 0 : index
    %c0_592 = arith.constant 0 : index
    %c0_593 = arith.constant 0 : index
    %1902 = vector.load %arg8[%c0_590, %c0_591, %c0_592, %c0_593] : memref<1x2x16x16xf32, #tpu.memory_space<vmem>>, vector<1x1x16x16xf32>
    %1903 = vector.shape_cast %1902 : vector<1x1x16x16xf32> to vector<16x16xf32>
    %1904 = vector.shape_cast %1901 : vector<16x16xf32> to vector<1x1x16x16xf32>
    tpu.vector_store %arg8[%c0_590, %c0_591, %c0_592, %c0_593], %1904 {strides = array<i32>} : memref<1x2x16x16xf32, #tpu.memory_space<vmem>>, vector<1x1x16x16xf32>,
    %1905 = arith.mulf %1889, %1827 : vector<16x16xf32>
    %1906 = arith.mulf %1896, %1829 : vector<16x16xf32>
    %1907 = arith.addf %1905, %1906 : vector<16x16xf32>
    %1908 = vector.broadcast %21 : vector<1x16xf32> to vector<16x16xf32>
    %1909 = arith.addf %1907, %1908 : vector<16x16xf32>
    %c0_594 = arith.constant 0 : index
    %c0_595 = arith.constant 0 : index
    %c0_596 = arith.constant 0 : index
    %c0_597 = arith.constant 0 : index
    %1910 = vector.load %arg9[%c0_594, %c0_595, %c0_596, %c0_597] : memref<1x2x16x16xf32, #tpu.memory_space<vmem>>, vector<1x1x16x16xf32>
    %1911 = vector.shape_cast %1910 : vector<1x1x16x16xf32> to vector<16x16xf32>
    %1912 = vector.shape_cast %1909 : vector<16x16xf32> to vector<1x1x16x16xf32>
    tpu.vector_store %arg9[%c0_594, %c0_595, %c0_596, %c0_597], %1912 {strides = array<i32>} : memref<1x2x16x16xf32, #tpu.memory_space<vmem>>, vector<1x1x16x16xf32>,
    %cst_598 = arith.constant dense<0.000000e+00> : vector<16xf32>
    %1913 = vector.multi_reduction <add>, %1815, %cst_598 [1] : vector<16x16xf32> to vector<16xf32>
    %1914 = vector.shape_cast %1913 : vector<16xf32> to vector<16x1xf32>
    %cst_599 = arith.constant 1.600000e+01 : f32
    %1915 = vector.broadcast %cst_599 : f32 to vector<16x1xf32>
    %1916 = arith.divf %1914, %1915 : vector<16x1xf32>
    %cst_600 = arith.constant dense<0.000000e+00> : vector<16xf32>
    %1917 = vector.multi_reduction <add>, %1817, %cst_600 [1] : vector<16x16xf32> to vector<16xf32>
    %1918 = vector.shape_cast %1917 : vector<16xf32> to vector<16x1xf32>
    %cst_601 = arith.constant 1.600000e+01 : f32
    %1919 = vector.broadcast %cst_601 : f32 to vector<16x1xf32>
    %1920 = arith.divf %1918, %1919 : vector<16x1xf32>
    %1921 = vector.broadcast %1916 : vector<16x1xf32> to vector<16x16xf32>
    %1922 = arith.subf %1815, %1921 : vector<16x16xf32>
    %1923 = vector.broadcast %1920 : vector<16x1xf32> to vector<16x16xf32>
    %1924 = arith.subf %1817, %1923 : vector<16x16xf32>
    %1925 = arith.mulf %1922, %1922 : vector<16x16xf32>
    %cst_602 = arith.constant dense<0.000000e+00> : vector<16xf32>
    %1926 = vector.multi_reduction <add>, %1925, %cst_602 [1] : vector<16x16xf32> to vector<16xf32>
    %1927 = vector.shape_cast %1926 : vector<16xf32> to vector<16x1xf32>
    %cst_603 = arith.constant 0.0666666701 : f32
    %1928 = vector.broadcast %cst_603 : f32 to vector<16x1xf32>
    %1929 = arith.mulf %1927, %1928 : vector<16x1xf32>
    %1930 = arith.mulf %1924, %1924 : vector<16x16xf32>
    %cst_604 = arith.constant dense<0.000000e+00> : vector<16xf32>
    %1931 = vector.multi_reduction <add>, %1930, %cst_604 [1] : vector<16x16xf32> to vector<16xf32>
    %1932 = vector.shape_cast %1931 : vector<16xf32> to vector<16x1xf32>
    %cst_605 = arith.constant 0.0666666701 : f32
    %1933 = vector.broadcast %cst_605 : f32 to vector<16x1xf32>
    %1934 = arith.mulf %1932, %1933 : vector<16x1xf32>
    %1935 = arith.mulf %1922, %1924 : vector<16x16xf32>
    %cst_606 = arith.constant dense<0.000000e+00> : vector<16xf32>
    %1936 = vector.multi_reduction <add>, %1935, %cst_606 [1] : vector<16x16xf32> to vector<16xf32>
    %1937 = vector.shape_cast %1936 : vector<16xf32> to vector<16x1xf32>
    %cst_607 = arith.constant 1.600000e+01 : f32
    %1938 = vector.broadcast %cst_607 : f32 to vector<16x1xf32>
    %1939 = arith.divf %1937, %1938 : vector<16x1xf32>
    %1940 = arith.mulf %1929, %1934 : vector<16x1xf32>
    %1941 = arith.mulf %1939, %1939 : vector<16x1xf32>
    %1942 = arith.subf %1940, %1941 : vector<16x1xf32>
    %cst_608 = arith.constant 0.000000e+00 : f32
    %1943 = vector.broadcast %cst_608 : f32 to vector<16x1xf32>
    %1944 = arith.maximumf %1942, %1943 : vector<16x1xf32>
    %1945 = math.sqrt %1944 : vector<16x1xf32>
    %1946 = arith.addf %1929, %1934 : vector<16x1xf32>
    %cst_609 = arith.constant 2.000000e+00 : f32
    %1947 = vector.broadcast %cst_609 : f32 to vector<16x1xf32>
    %1948 = arith.mulf %1947, %1945 : vector<16x1xf32>
    %1949 = arith.addf %1946, %1948 : vector<16x1xf32>
    %1950 = math.sqrt %1949 : vector<16x1xf32>
    %1951 = arith.addf %1929, %1945 : vector<16x1xf32>
    %1952 = arith.divf %1951, %1950 : vector<16x1xf32>
    %1953 = arith.divf %1939, %1950 : vector<16x1xf32>
    %1954 = arith.addf %1934, %1945 : vector<16x1xf32>
    %1955 = arith.divf %1954, %1950 : vector<16x1xf32>
    %1956 = arith.mulf %1952, %1955 : vector<16x1xf32>
    %1957 = arith.mulf %1953, %1953 : vector<16x1xf32>
    %1958 = arith.subf %1956, %1957 : vector<16x1xf32>
    %1959 = arith.divf %1955, %1958 : vector<16x1xf32>
    %cst_610 = arith.constant 0.000000e+00 : f32
    %1960 = vector.broadcast %cst_610 : f32 to vector<16x1xf32>
    %1961 = arith.subf %1960, %1953 : vector<16x1xf32>
    %1962 = arith.divf %1961, %1958 : vector<16x1xf32>
    %1963 = arith.divf %1952, %1958 : vector<16x1xf32>
    %1964 = vector.broadcast %17 : vector<1x16xf32> to vector<16x16xf32>
    %1965 = vector.broadcast %1959 : vector<16x1xf32> to vector<16x16xf32>
    %1966 = arith.mulf %1964, %1965 : vector<16x16xf32>
    %1967 = vector.broadcast %18 : vector<1x16xf32> to vector<16x16xf32>
    %1968 = vector.broadcast %1962 : vector<16x1xf32> to vector<16x16xf32>
    %1969 = arith.mulf %1967, %1968 : vector<16x16xf32>
    %1970 = arith.addf %1966, %1969 : vector<16x16xf32>
    %1971 = vector.broadcast %17 : vector<1x16xf32> to vector<16x16xf32>
    %1972 = vector.broadcast %1962 : vector<16x1xf32> to vector<16x16xf32>
    %1973 = arith.mulf %1971, %1972 : vector<16x16xf32>
    %1974 = vector.broadcast %18 : vector<1x16xf32> to vector<16x16xf32>
    %1975 = vector.broadcast %1963 : vector<16x1xf32> to vector<16x16xf32>
    %1976 = arith.mulf %1974, %1975 : vector<16x16xf32>
    %1977 = arith.addf %1973, %1976 : vector<16x16xf32>
    %1978 = vector.broadcast %18 : vector<1x16xf32> to vector<16x16xf32>
    %1979 = vector.broadcast %1959 : vector<16x1xf32> to vector<16x16xf32>
    %1980 = arith.mulf %1978, %1979 : vector<16x16xf32>
    %1981 = vector.broadcast %19 : vector<1x16xf32> to vector<16x16xf32>
    %1982 = vector.broadcast %1962 : vector<16x1xf32> to vector<16x16xf32>
    %1983 = arith.mulf %1981, %1982 : vector<16x16xf32>
    %1984 = arith.addf %1980, %1983 : vector<16x16xf32>
    %1985 = vector.broadcast %18 : vector<1x16xf32> to vector<16x16xf32>
    %1986 = vector.broadcast %1962 : vector<16x1xf32> to vector<16x16xf32>
    %1987 = arith.mulf %1985, %1986 : vector<16x16xf32>
    %1988 = vector.broadcast %19 : vector<1x16xf32> to vector<16x16xf32>
    %1989 = vector.broadcast %1963 : vector<16x1xf32> to vector<16x16xf32>
    %1990 = arith.mulf %1988, %1989 : vector<16x16xf32>
    %1991 = arith.addf %1987, %1990 : vector<16x16xf32>
    %1992 = arith.mulf %1970, %1922 : vector<16x16xf32>
    %1993 = arith.mulf %1977, %1924 : vector<16x16xf32>
    %1994 = arith.addf %1992, %1993 : vector<16x16xf32>
    %1995 = vector.broadcast %20 : vector<1x16xf32> to vector<16x16xf32>
    %1996 = arith.addf %1994, %1995 : vector<16x16xf32>
    %c0_611 = arith.constant 0 : index
    %c1_612 = arith.constant 1 : index
    %c0_613 = arith.constant 0 : index
    %c0_614 = arith.constant 0 : index
    %1997 = vector.load %arg8[%c0_611, %c1_612, %c0_613, %c0_614] : memref<1x2x16x16xf32, #tpu.memory_space<vmem>>, vector<1x1x16x16xf32>
    %1998 = vector.shape_cast %1997 : vector<1x1x16x16xf32> to vector<16x16xf32>
    %1999 = vector.shape_cast %1996 : vector<16x16xf32> to vector<1x1x16x16xf32>
    tpu.vector_store %arg8[%c0_611, %c1_612, %c0_613, %c0_614], %1999 {strides = array<i32>} : memref<1x2x16x16xf32, #tpu.memory_space<vmem>>, vector<1x1x16x16xf32>,
    %2000 = arith.mulf %1984, %1922 : vector<16x16xf32>
    %2001 = arith.mulf %1991, %1924 : vector<16x16xf32>
    %2002 = arith.addf %2000, %2001 : vector<16x16xf32>
    %2003 = vector.broadcast %21 : vector<1x16xf32> to vector<16x16xf32>
    %2004 = arith.addf %2002, %2003 : vector<16x16xf32>
    %c0_615 = arith.constant 0 : index
    %c1_616 = arith.constant 1 : index
    %c0_617 = arith.constant 0 : index
    %c0_618 = arith.constant 0 : index
    %2005 = vector.load %arg9[%c0_615, %c1_616, %c0_617, %c0_618] : memref<1x2x16x16xf32, #tpu.memory_space<vmem>>, vector<1x1x16x16xf32>
    %2006 = vector.shape_cast %2005 : vector<1x1x16x16xf32> to vector<16x16xf32>
    %2007 = vector.shape_cast %2004 : vector<16x16xf32> to vector<1x1x16x16xf32>
    tpu.vector_store %arg9[%c0_615, %c1_616, %c0_617, %c0_618], %2007 {strides = array<i32>} : memref<1x2x16x16xf32, #tpu.memory_space<vmem>>, vector<1x1x16x16xf32>,
    return
  }
  func.func @transform_0(%arg0: i32) -> (i32, i32, i32, i32) {
    %c0_i32 = arith.constant 0 : i32
    %c0_i32_0 = arith.constant 0 : i32
    %c0_i32_1 = arith.constant 0 : i32
    %c0_i32_2 = arith.constant 0 : i32
    return %arg0, %c0_i32, %c0_i32_0, %c0_i32_1 : i32, i32, i32, i32
  }
  func.func @transform_1(%arg0: i32) -> (i32, i32, i32, i32) {
    %c0_i32 = arith.constant 0 : i32
    %c0_i32_0 = arith.constant 0 : i32
    %c0_i32_1 = arith.constant 0 : i32
    %c0_i32_2 = arith.constant 0 : i32
    return %arg0, %c0_i32, %c0_i32_0, %c0_i32_1 : i32, i32, i32, i32
  }
  func.func @transform_2(%arg0: i32) -> i32 {
    %c0_i32 = arith.constant 0 : i32
    %c0_i32_0 = arith.constant 0 : i32
    return %c0_i32 : i32
  }
  func.func @transform_3(%arg0: i32) -> i32 {
    %c0_i32 = arith.constant 0 : i32
    %c0_i32_0 = arith.constant 0 : i32
    return %c0_i32 : i32
  }
  func.func @transform_4(%arg0: i32) -> i32 {
    %c0_i32 = arith.constant 0 : i32
    %c0_i32_0 = arith.constant 0 : i32
    return %c0_i32 : i32
  }
  func.func @transform_5(%arg0: i32) -> i32 {
    %c0_i32 = arith.constant 0 : i32
    %c0_i32_0 = arith.constant 0 : i32
    return %c0_i32 : i32
  }
  func.func @transform_6(%arg0: i32) -> (i32, i32) {
    %c0_i32 = arith.constant 0 : i32
    %c0_i32_0 = arith.constant 0 : i32
    %c0_i32_1 = arith.constant 0 : i32
    return %c0_i32, %c0_i32_0 : i32, i32
  }
  func.func @transform_7(%arg0: i32) -> (i32, i32, i32, i32) {
    %c0_i32 = arith.constant 0 : i32
    %c0_i32_0 = arith.constant 0 : i32
    %c0_i32_1 = arith.constant 0 : i32
    %c0_i32_2 = arith.constant 0 : i32
    return %arg0, %c0_i32, %c0_i32_0, %c0_i32_1 : i32, i32, i32, i32
  }
  func.func @transform_8(%arg0: i32) -> (i32, i32, i32, i32) {
    %c0_i32 = arith.constant 0 : i32
    %c0_i32_0 = arith.constant 0 : i32
    %c0_i32_1 = arith.constant 0 : i32
    %c0_i32_2 = arith.constant 0 : i32
    return %arg0, %c0_i32, %c0_i32_0, %c0_i32_1 : i32, i32, i32, i32
  }
}

</mosaic_0001>

<llo_original>
// kernel: tpu_custom_call.1
$region0: #{tpu_custom_call.1}
  #allocation0 [shape = 'u32[]', space=smem, size = 0x4, offset = 0x4, fixed_abs, tag = 'smem constant byte address 0x4 - core index']
  #allocation1 [shape = 'u32[144,128]{1,0:T(1,128)}', space=vmem, size = 0x12000, scoped, tag = 'internal scratch']
  #allocation2 [shape = 'f32[2,18,18]{2,1,0:T(8,128)}', space=vmem, size = 0x6000, scoped, tag = 'scratch operand']
  #allocation3 [shape = 'f32[2,18,18]{2,1,0:T(8,128)}', space=vmem, size = 0x6000, scoped, tag = 'scratch operand']
  %s0 = inlined_call_operand.hbm [shape: f32[2,2,16,16], index: 0, kind: input, shape index: {}]
  %s1 = inlined_call_operand.hbm [shape: f32[2,2,16,16], index: 1, kind: input, shape index: {}]
  %s2 = inlined_call_operand.vmem [shape: f32[36], index: 2, kind: input, shape index: {}]
  %s3 = inlined_call_operand.vmem [shape: f32[36], index: 3, kind: input, shape index: {}]
  %s4 = inlined_call_operand.vmem [shape: f32[2], index: 4, kind: input, shape index: {}]
  %s5 = inlined_call_operand.vmem [shape: f32[2], index: 5, kind: input, shape index: {}]
  %s6 = inlined_call_operand.vmem [shape: f32[5,16], index: 6, kind: input, shape index: {}]
  %s7 = inlined_call_operand.hbm [shape: f32[2,2,16,16], index: 7, kind: output, shape index: {0}]
  %s8 = inlined_call_operand.hbm [shape: f32[2,2,16,16], index: 8, kind: output, shape index: {1}]
  %9 = xla_tuple %s7, %s8
  %s10 = sld [smem:[#allocation0]]
  $region93: #{tpu_custom_call.1} parent=0
    _
  %s12 = ssub.s32 1, %s10
  %s13 = scalar_select 0, %s12, %s10
  $region1: #{tpu_custom_call.1} parent=0
    #allocation4 [shape = 'u8[32768]{0}', space=vmem, size = 0x8000, scoped, tag = 'input window, operand 0']
    #allocation5 [shape = 's32[2]{0}', space=sflag, size = 0x8, scoped, tag = 'scoped memory for tpu_custom_call.1']
    #allocation6 [shape = 's32[2]{0}', space=sflag, size = 0x8, scoped, tag = 'scoped memory for tpu_custom_call.1']
    #allocation7 [shape = 's32[2]{0}', space=sflag, size = 0x8, scoped, tag = 'scoped memory for tpu_custom_call.1']
    #allocation8 [shape = 'u8[32768]{0}', space=vmem, size = 0x8000, scoped, tag = 'input window, operand 1']
    #allocation9 [shape = 's32[2]{0}', space=sflag, size = 0x8, scoped, tag = 'scoped memory for tpu_custom_call.1']
    #allocation10 [shape = 'u8[512]{0}', space=smem, size = 0x200, scoped, tag = 'input window, operand 2, single buffered']
    #allocation11 [shape = 'u8[512]{0}', space=smem, size = 0x200, scoped, tag = 'input window, operand 3, single buffered']
    #allocation12 [shape = 's32[1]{0}', space=sflag, size = 0x4, scoped, tag = 'scoped memory for tpu_custom_call.1']
    #allocation13 [shape = 'u8[512]{0}', space=smem, size = 0x200, scoped, tag = 'input window, operand 4, single buffered']
    #allocation14 [shape = 'u8[512]{0}', space=smem, size = 0x200, scoped, tag = 'input window, operand 5, single buffered']
    #allocation15 [shape = 's32[1]{0}', space=sflag, size = 0x4, scoped, tag = 'scoped memory for tpu_custom_call.1']
    #allocation16 [shape = 'u8[32768]{0}', space=vmem, size = 0x8000, scoped, tag = 'output window, operand 0']
    #allocation17 [shape = 'u8[32768]{0}', space=vmem, size = 0x8000, scoped, tag = 'output window, operand 1']
    #allocation18 [shape = 's32[2]{0}', space=sflag, size = 0x8, scoped, tag = 'scoped memory for tpu_custom_call.1']
    %14 = vsyncpa [#allocation5], 0
    %s15 = scalar_lea.sflag [#allocation5], 1
    %16 = vsyncpa %s15, 0
    %17 = vsyncpa [#allocation9], 0
    %s18 = scalar_lea.sflag [#allocation9], 1
    %19 = vsyncpa %s18, 0
    %20 = vsyncpa [#allocation7], 0
    %21 = vsyncpa [#allocation12], 0
    %22 = vsyncpa [#allocation15], 0
    %23 = vsyncpa [#allocation6], 0
    %s24 = scalar_lea.sflag [#allocation6], 1
    %25 = vsyncpa %s24, 0
    %26 = vsyncpa [#allocation18], 0
    %s27 = scalar_lea.sflag [#allocation18], 1
    %28 = vsyncpa %s27, 0
    loop: start=0, step=1, limit=4
    $region2: #{tpu_custom_call.1} parent=1 // loop_pre_header
      _
    $region3: #{tpu_custom_call.1} parent=1 // loop_header
      %s30 = sphi 0, %s34
      %p31 = scmp.ge.s32.totalorder %s30, 4
      %s40 = sphi 0, %s42
      %s43 = sphi 0, %s40
      %s44 = sphi 0, %s43
      %s60 = sphi 0, %s44
      %s66 = sphi 0, %s68
      %s69 = sphi 0, %s66
      %s70 = sphi 0, %s69
      %s86 = sphi 0, %s70
      %s90 = sphi 0, %s90
      %s92 = sphi 0, %s90
      %s93 = sphi 0, %s92
      %s107 = sphi 0, %s93
      %s111 = sphi 0, %s111
      %s113 = sphi 0, %s111
      %s114 = sphi 0, %s113
      %s128 = sphi 0, %s114
      %s132 = sphi 0, %s132
      %s134 = sphi 0, %s132
      %s135 = sphi 0, %s134
      %s149 = sphi 0, %s135
      %s153 = sphi 0, %s153
      %s155 = sphi 0, %s153
      %s156 = sphi 0, %s155
      %s170 = sphi 0, %s156
      %s174 = sphi 0, %s174
      %s176 = sphi 0, %s174
      %s177 = sphi 0, %s176
      %s191 = sphi 0, %s177
      %s197 = sphi 0, %s199
      %s200 = sphi 0, %s197
      %s201 = sphi 0, %s200
      %s217 = sphi 0, %s201
      %s223 = sphi 0, %s225
      %s226 = sphi 0, %s223
      %s227 = sphi 0, %s226
      %s243 = sphi 0, %s227
    $region4: #{tpu_custom_call.1} parent=1 // loop_header_branch
      %33 = sbr.rel (%p31) target = $region8
    $region5: #{tpu_custom_call.1} parent=1 // loop_body
      %s35 = ssub.s32 %s30, 1
      %s36 = ssub.s32 %s30, 2
      %s37 = sadd.s32 %s30, 1
      %s38 = ssub.s32 %s30, %s37
      %p39 = scmp.eq.s32.totalorder %s38, 0
      %s41 = sadd.s32 %s40, 1
      %s42 = scalar_select %p39, %s40, %s41
      %p45 = pneg %p39
      %p46 = scmp.eq.s32.totalorder %s30, 1
      %p47 = por %p45, %p46
      %p48 = scmp.ne.s32.totalorder %s40, %s43
      %p49 = scmp.eq.s32.totalorder %s30, 0
      %p50 = por %p48, %p49
      %p51 = scmp.ne.s32.totalorder %s40, %s43
      %p52 = scmp.eq.s32.totalorder %s35, 1
      %p53 = por %p51, %p52
      %p54 = scmp.ne.s32.totalorder %s43, %s44
      %p55 = scmp.eq.s32.totalorder %s35, 0
      %p56 = por %p54, %p55
      %p57 = scmp.ne.s32.totalorder %s43, %s44
      %p58 = scmp.eq.s32.totalorder %s36, 1
      %p59 = por %p57, %p58
      %p61 = scmp.ne.s32.totalorder %s44, %s60
      %p62 = scmp.eq.s32.totalorder %s36, 0
      %p63 = por %p61, %p62
      %s64 = ssub.s32 %s30, %s37
      %p65 = scmp.eq.s32.totalorder %s64, 0
      %s67 = sadd.s32 %s66, 1
      %s68 = scalar_select %p65, %s66, %s67
      %p71 = pneg %p65
      %p72 = scmp.eq.s32.totalorder %s30, 1
      %p73 = por %p71, %p72
      %p74 = scmp.ne.s32.totalorder %s66, %s69
      %p75 = scmp.eq.s32.totalorder %s30, 0
      %p76 = por %p74, %p75
      %p77 = scmp.ne.s32.totalorder %s66, %s69
      %p78 = scmp.eq.s32.totalorder %s35, 1
      %p79 = por %p77, %p78
      %p80 = scmp.ne.s32.totalorder %s69, %s70
      %p81 = scmp.eq.s32.totalorder %s35, 0
      %p82 = por %p80, %p81
      %p83 = scmp.ne.s32.totalorder %s69, %s70
      %p84 = scmp.eq.s32.totalorder %s36, 1
      %p85 = por %p83, %p84
      %p87 = scmp.ne.s32.totalorder %s70, %s86
      %p88 = scmp.eq.s32.totalorder %s36, 0
      %p89 = por %p87, %p88
      %s91 = sadd.s32 %s90, 1
      %p94 = scmp.eq.s32.totalorder %s30, 1
      %p95 = scmp.ne.s32.totalorder %s90, %s92
      %p96 = scmp.eq.s32.totalorder %s30, 0
      %p97 = por %p95, %p96
      %p98 = scmp.ne.s32.totalorder %s90, %s92
      %p99 = scmp.eq.s32.totalorder %s35, 1
      %p100 = por %p98, %p99
      %p101 = scmp.ne.s32.totalorder %s92, %s93
      %p102 = scmp.eq.s32.totalorder %s35, 0
      %p103 = por %p101, %p102
      %p104 = scmp.ne.s32.totalorder %s92, %s93
      %p105 = scmp.eq.s32.totalorder %s36, 1
      %p106 = por %p104, %p105
      %p108 = scmp.ne.s32.totalorder %s93, %s107
      %p109 = scmp.eq.s32.totalorder %s36, 0
      %p110 = por %p108, %p109
      %s112 = sadd.s32 %s111, 1
      %p115 = scmp.eq.s32.totalorder %s30, 1
      %p116 = scmp.ne.s32.totalorder %s111, %s113
      %p117 = scmp.eq.s32.totalorder %s30, 0
      %p118 = por %p116, %p117
      %p119 = scmp.ne.s32.totalorder %s111, %s113
      %p120 = scmp.eq.s32.totalorder %s35, 1
      %p121 = por %p119, %p120
      %p122 = scmp.ne.s32.totalorder %s113, %s114
      %p123 = scmp.eq.s32.totalorder %s35, 0
      %p124 = por %p122, %p123
      %p125 = scmp.ne.s32.totalorder %s113, %s114
      %p126 = scmp.eq.s32.totalorder %s36, 1
      %p127 = por %p125, %p126
      %p129 = scmp.ne.s32.totalorder %s114, %s128
      %p130 = scmp.eq.s32.totalorder %s36, 0
      %p131 = por %p129, %p130
      %s133 = sadd.s32 %s132, 1
      %p136 = scmp.eq.s32.totalorder %s30, 1
      %p137 = scmp.ne.s32.totalorder %s132, %s134
      %p138 = scmp.eq.s32.totalorder %s30, 0
      %p139 = por %p137, %p138
      %p140 = scmp.ne.s32.totalorder %s132, %s134
      %p141 = scmp.eq.s32.totalorder %s35, 1
      %p142 = por %p140, %p141
      %p143 = scmp.ne.s32.totalorder %s134, %s135
      %p144 = scmp.eq.s32.totalorder %s35, 0
      %p145 = por %p143, %p144
      %p146 = scmp.ne.s32.totalorder %s134, %s135
      %p147 = scmp.eq.s32.totalorder %s36, 1
      %p148 = por %p146, %p147
      %p150 = scmp.ne.s32.totalorder %s135, %s149
      %p151 = scmp.eq.s32.totalorder %s36, 0
      %p152 = por %p150, %p151
      %s154 = sadd.s32 %s153, 1
      %p157 = scmp.eq.s32.totalorder %s30, 1
      %p158 = scmp.ne.s32.totalorder %s153, %s155
      %p159 = scmp.eq.s32.totalorder %s30, 0
      %p160 = por %p158, %p159
      %p161 = scmp.ne.s32.totalorder %s153, %s155
      %p162 = scmp.eq.s32.totalorder %s35, 1
      %p163 = por %p161, %p162
      %p164 = scmp.ne.s32.totalorder %s155, %s156
      %p165 = scmp.eq.s32.totalorder %s35, 0
      %p166 = por %p164, %p165
      %p167 = scmp.ne.s32.totalorder %s155, %s156
      %p168 = scmp.eq.s32.totalorder %s36, 1
      %p169 = por %p167, %p168
      %p171 = scmp.ne.s32.totalorder %s156, %s170
      %p172 = scmp.eq.s32.totalorder %s36, 0
      %p173 = por %p171, %p172
      %s175 = sadd.s32 %s174, 1
      %p178 = scmp.eq.s32.totalorder %s30, 1
      %p179 = scmp.ne.s32.totalorder %s174, %s176
      %p180 = scmp.eq.s32.totalorder %s30, 0
      %p181 = por %p179, %p180
      %p182 = scmp.ne.s32.totalorder %s174, %s176
      %p183 = scmp.eq.s32.totalorder %s35, 1
      %p184 = por %p182, %p183
      %p185 = scmp.ne.s32.totalorder %s176, %s177
      %p186 = scmp.eq.s32.totalorder %s35, 0
      %p187 = por %p185, %p186
      %p188 = scmp.ne.s32.totalorder %s176, %s177
      %p189 = scmp.eq.s32.totalorder %s36, 1
      %p190 = por %p188, %p189
      %p192 = scmp.ne.s32.totalorder %s177, %s191
      %p193 = scmp.eq.s32.totalorder %s36, 0
      %p194 = por %p192, %p193
      %s195 = ssub.s32 %s30, %s37
      %p196 = scmp.eq.s32.totalorder %s195, 0
      %s198 = sadd.s32 %s197, 1
      %s199 = scalar_select %p196, %s197, %s198
      %p202 = pneg %p196
      %p203 = scmp.eq.s32.totalorder %s30, 1
      %p204 = por %p202, %p203
      %p205 = scmp.ne.s32.totalorder %s197, %s200
      %p206 = scmp.eq.s32.totalorder %s30, 0
      %p207 = por %p205, %p206
      %p208 = scmp.ne.s32.totalorder %s197, %s200
      %p209 = scmp.eq.s32.totalorder %s35, 1
      %p210 = por %p208, %p209
      %p211 = scmp.ne.s32.totalorder %s200, %s201
      %p212 = scmp.eq.s32.totalorder %s35, 0
      %p213 = por %p211, %p212
      %p214 = scmp.ne.s32.totalorder %s200, %s201
      %p215 = scmp.eq.s32.totalorder %s36, 1
      %p216 = por %p214, %p215
      %p218 = scmp.ne.s32.totalorder %s201, %s217
      %p219 = scmp.eq.s32.totalorder %s36, 0
      %p220 = por %p218, %p219
      %s221 = ssub.s32 %s30, %s37
      %p222 = scmp.eq.s32.totalorder %s221, 0
      %s224 = sadd.s32 %s223, 1
      %s225 = scalar_select %p222, %s223, %s224
      %p228 = pneg %p222
      %p229 = scmp.eq.s32.totalorder %s30, 1
      %p230 = por %p228, %p229
      %p231 = scmp.ne.s32.totalorder %s223, %s226
      %p232 = scmp.eq.s32.totalorder %s30, 0
      %p233 = por %p231, %p232
      %p234 = scmp.ne.s32.totalorder %s223, %s226
      %p235 = scmp.eq.s32.totalorder %s35, 1
      %p236 = por %p234, %p235
      %p237 = scmp.ne.s32.totalorder %s226, %s227
      %p238 = scmp.eq.s32.totalorder %s35, 0
      %p239 = por %p237, %p238
      %p240 = scmp.ne.s32.totalorder %s226, %s227
      %p241 = scmp.eq.s32.totalorder %s36, 1
      %p242 = por %p240, %p241
      %p244 = scmp.ne.s32.totalorder %s227, %s243
      %p245 = scmp.eq.s32.totalorder %s36, 0
      %p246 = por %p244, %p245
      %p247 = scmp.le.s32.totalorder 1, %s30
      %p248 = scmp.lt.s32.totalorder %s30, 3
      %p249 = pnand %p247, %p248
      %p250 = pneg %p249
      // Predicated region
      $region9: #{tpu_custom_call.1} parent=5 // pred_check
        _
      $region10: #{tpu_custom_call.1} parent=5 // pred_check_branch
        %252 = sbr.rel (%p249) target = $region12
      $region11: #{tpu_custom_call.1} parent=5 // pred_region
        %s253 = ssub.s32 %s30, 1
        // Predicated region
        $region13: #{tpu_custom_call.1} parent=11 // pred_check
          %p254 = pneg %p103
        $region14: #{tpu_custom_call.1} parent=11 // pred_check_branch
          %256 = sbr.rel (%p254) target = $region16
        $region15: #{tpu_custom_call.1} parent=11 // pred_region
          %s258 = ssub.s32 16, 16
          %259 = vsyncadd [#allocation7], %s258
          %s261 = sshll.u32 %s2, 4
          %s262 = int_to_ptr.vmem [resolvable:$true] %s261
          %264 = dma.vmem_to_smem %s262, 16, [#allocation10], [#allocation7]
        $region16: #{tpu_custom_call.1} parent=11 // pred_fallthru
          _
        // Predicated region
        $region17: #{tpu_custom_call.1} parent=11 // pred_check
          %p265 = pneg %p124
        $region18: #{tpu_custom_call.1} parent=11 // pred_check_branch
          %267 = sbr.rel (%p265) target = $region20
        $region19: #{tpu_custom_call.1} parent=11 // pred_region
          %s269 = ssub.s32 16, 16
          %270 = vsyncadd [#allocation12], %s269
          %s272 = sshll.u32 %s3, 4
          %s273 = int_to_ptr.vmem [resolvable:$true] %s272
          %275 = dma.vmem_to_smem %s273, 16, [#allocation11], [#allocation12]
        $region20: #{tpu_custom_call.1} parent=11 // pred_fallthru
          _
        // Predicated region
        $region21: #{tpu_custom_call.1} parent=11 // pred_check
          %p276 = pneg %p145
        $region22: #{tpu_custom_call.1} parent=11 // pred_check_branch
          %278 = sbr.rel (%p276) target = $region24
        $region23: #{tpu_custom_call.1} parent=11 // pred_region
          %s280 = ssub.s32 16, 16
          %281 = vsyncadd [#allocation12], %s280
          %s283 = sshll.u32 %s4, 4
          %s284 = int_to_ptr.vmem [resolvable:$true] %s283
          %286 = dma.vmem_to_smem %s284, 16, [#allocation13], [#allocation12]
        $region24: #{tpu_custom_call.1} parent=11 // pred_fallthru
          _
        // Predicated region
        $region25: #{tpu_custom_call.1} parent=11 // pred_check
          %p287 = pneg %p166
        $region26: #{tpu_custom_call.1} parent=11 // pred_check_branch
          %289 = sbr.rel (%p287) target = $region28
        $region27: #{tpu_custom_call.1} parent=11 // pred_region
          %s291 = ssub.s32 16, 16
          %292 = vsyncadd [#allocation15], %s291
          %s294 = sshll.u32 %s5, 4
          %s295 = int_to_ptr.vmem [resolvable:$true] %s294
          %297 = dma.vmem_to_smem %s295, 16, [#allocation14], [#allocation15]
        $region28: #{tpu_custom_call.1} parent=11 // pred_fallthru
          _
        // Predicated region
        $region29: #{tpu_custom_call.1} parent=11 // pred_check
          %p298 = pneg %p187
        $region30: #{tpu_custom_call.1} parent=11 // pred_check_branch
          %300 = sbr.rel (%p298) target = $region32
        $region31: #{tpu_custom_call.1} parent=11 // pred_region
          _
        $region32: #{tpu_custom_call.1} parent=11 // pred_fallthru
          _
      $region12: #{tpu_custom_call.1} parent=5 // pred_fallthru
        _
      %p301 = scmp.lt.s32.totalorder %s30, 2
      // Predicated region
      $region33: #{tpu_custom_call.1} parent=5 // pred_check
        %p302 = pneg %p301
      $region34: #{tpu_custom_call.1} parent=5 // pred_check_branch
        %304 = sbr.rel (%p302) target = $region36
      $region35: #{tpu_custom_call.1} parent=5 // pred_region
        // Predicated region
        $region37: #{tpu_custom_call.1} parent=35 // pred_check
          %p305 = pneg %p50
        $region38: #{tpu_custom_call.1} parent=35 // pred_check_branch
          %307 = sbr.rel (%p305) target = $region40
        $region39: #{tpu_custom_call.1} parent=35 // pred_region
          %s308 = sand.u32 %s40, 1
          %s309 = scalar_lea.sflag [#allocation5], %s308
          %s310 = sand.u32 %s40, 1
          %s311 = smul.addr %s310, 32
          %s312 = scalar_lea.vmem [#allocation4], %s311
          %s314 = ssub.s32 512, 512
          %315 = vsyncadd %s309, %s314
          %s316 = smul.addr %s30, 4
          %s317 = smul.addr %s316, 128
          %s318 = scalar_lea.hbm %s0, %s317
          %s319 = sshll.u32 %s312, 4
          %s320 = int_to_ptr.vmem [resolvable:$true] %s319
          %325 = dma.hbm_to_vmem [thread:$0]  %s318, 512, %s320, %s309, 128, 128, 8
        $region40: #{tpu_custom_call.1} parent=35 // pred_fallthru
          _
        // Predicated region
        $region41: #{tpu_custom_call.1} parent=35 // pred_check
          %p326 = pneg %p76
        $region42: #{tpu_custom_call.1} parent=35 // pred_check_branch
          %328 = sbr.rel (%p326) target = $region44
        $region43: #{tpu_custom_call.1} parent=35 // pred_region
          %s329 = sand.u32 %s66, 1
          %s330 = scalar_lea.sflag [#allocation9], %s329
          %s331 = sand.u32 %s66, 1
          %s332 = smul.addr %s331, 32
          %s333 = scalar_lea.vmem [#allocation8], %s332
          %s335 = ssub.s32 512, 512
          %336 = vsyncadd %s330, %s335
          %s337 = smul.addr %s30, 4
          %s338 = smul.addr %s337, 128
          %s339 = scalar_lea.hbm %s1, %s338
          %s340 = sshll.u32 %s333, 4
          %s341 = int_to_ptr.vmem [resolvable:$true] %s340
          %346 = dma.hbm_to_vmem [thread:$0]  %s339, 512, %s341, %s330, 128, 128, 8
        $region44: #{tpu_custom_call.1} parent=35 // pred_fallthru
          _
      $region36: #{tpu_custom_call.1} parent=5 // pred_fallthru
        _
      %p347 = scmp.le.s32.totalorder 1, %s30
      %p348 = scmp.lt.s32.totalorder %s30, 3
      %p349 = pnand %p347, %p348
      %p350 = pneg %p349
      // Predicated region
      $region45: #{tpu_custom_call.1} parent=5 // pred_check
        _
      $region46: #{tpu_custom_call.1} parent=5 // pred_check_branch
        %352 = sbr.rel (%p349) target = $region48
      $region47: #{tpu_custom_call.1} parent=5 // pred_region
        %s353 = ssub.s32 %s30, 1
        %s354 = sand.u32 %s43, 1
        %s355 = scalar_lea.sflag [#allocation5], %s354
        %s356 = sand.u32 %s43, 1
        %s357 = smul.addr %s356, 32
        %s358 = scalar_lea.vmem [#allocation4], %s357
        // Predicated region
        $region49: #{tpu_custom_call.1} parent=47 // pred_check
          %p359 = pneg %p56
        $region50: #{tpu_custom_call.1} parent=47 // pred_check_branch
          %361 = sbr.rel (%p359) target = $region52
        $region51: #{tpu_custom_call.1} parent=47 // pred_region
          %362 = dma.done %s355, 512
        $region52: #{tpu_custom_call.1} parent=47 // pred_fallthru
          _
        %s363 = sand.u32 %s69, 1
        %s364 = scalar_lea.sflag [#allocation9], %s363
        %s365 = sand.u32 %s69, 1
        %s366 = smul.addr %s365, 32
        %s367 = scalar_lea.vmem [#allocation8], %s366
        // Predicated region
        $region53: #{tpu_custom_call.1} parent=47 // pred_check
          %p368 = pneg %p82
        $region54: #{tpu_custom_call.1} parent=47 // pred_check_branch
          %370 = sbr.rel (%p368) target = $region56
        $region55: #{tpu_custom_call.1} parent=47 // pred_region
          %371 = dma.done %s364, 512
        $region56: #{tpu_custom_call.1} parent=47 // pred_fallthru
          _
        // Predicated region
        $region57: #{tpu_custom_call.1} parent=47 // pred_check
          %p372 = pneg %p103
        $region58: #{tpu_custom_call.1} parent=47 // pred_check_branch
          %374 = sbr.rel (%p372) target = $region60
        $region59: #{tpu_custom_call.1} parent=47 // pred_region
          %375 = dma.done [#allocation7], 16
        $region60: #{tpu_custom_call.1} parent=47 // pred_fallthru
          _
        // Predicated region
        $region61: #{tpu_custom_call.1} parent=47 // pred_check
          %p376 = pneg %p124
        $region62: #{tpu_custom_call.1} parent=47 // pred_check_branch
          %378 = sbr.rel (%p376) target = $region64
        $region63: #{tpu_custom_call.1} parent=47 // pred_region
          %379 = dma.done [#allocation12], 16
        $region64: #{tpu_custom_call.1} parent=47 // pred_fallthru
          _
        // Predicated region
        $region65: #{tpu_custom_call.1} parent=47 // pred_check
          %p380 = pneg %p145
        $region66: #{tpu_custom_call.1} parent=47 // pred_check_branch
          %382 = sbr.rel (%p380) target = $region68
        $region67: #{tpu_custom_call.1} parent=47 // pred_region
          %383 = dma.done [#allocation12], 16
        $region68: #{tpu_custom_call.1} parent=47 // pred_fallthru
          _
        // Predicated region
        $region69: #{tpu_custom_call.1} parent=47 // pred_check
          %p384 = pneg %p166
        $region70: #{tpu_custom_call.1} parent=47 // pred_check_branch
          %386 = sbr.rel (%p384) target = $region72
        $region71: #{tpu_custom_call.1} parent=47 // pred_region
          %387 = dma.done [#allocation15], 16
        $region72: #{tpu_custom_call.1} parent=47 // pred_fallthru
          _
        %388 = sfence
        %s389 = sand.u32 %s43, 1
        %s390 = scalar_lea.sflag [#allocation5], %s389
        %s391 = sand.u32 %s43, 1
        %s392 = smul.addr %s391, 32
        %s393 = scalar_lea.vmem [#allocation4], %s392
        %p394 = pneg %p56
        %p395 = pneg %p53
        %s396 = sand.u32 %s69, 1
        %s397 = scalar_lea.sflag [#allocation9], %s396
        %s398 = sand.u32 %s69, 1
        %s399 = smul.addr %s398, 32
        %s400 = scalar_lea.vmem [#allocation8], %s399
        %p401 = pneg %p82
        %p402 = pneg %p79
        %p403 = pneg %p103
        %p404 = pneg %p100
        %p405 = pneg %p124
        %p406 = pneg %p121
        %p407 = pneg %p145
        %p408 = pneg %p142
        %p409 = pneg %p166
        %p410 = pneg %p163
        %p411 = pneg %p187
        %p412 = pneg %p184
        %p413 = pneg %p213
        %p414 = pneg %p210
        %s415 = sand.u32 %s200, 1
        %s416 = scalar_lea.sflag [#allocation6], %s415
        %s417 = sand.u32 %s200, 1
        %s418 = smul.addr %s417, 32
        %s419 = scalar_lea.vmem [#allocation16], %s418
        %p420 = pneg %p239
        %p421 = pneg %p236
        %s422 = sand.u32 %s226, 1
        %s423 = scalar_lea.sflag [#allocation18], %s422
        %s424 = sand.u32 %s226, 1
        %s425 = smul.addr %s424, 32
        %s426 = scalar_lea.vmem [#allocation17], %s425
        %vm427 = vcmask 146432
        %428 = vst.msk [vmem:[#allocation2] sm:$0xff] %vm427, 0.0
        %429 = vst.msk [vmem:[#allocation2 + $0x8] sm:$0xff] %vm427, 0.0
        %vm430 = vcmask 140288
        %431 = vst.msk [vmem:[#allocation2 + $0x10] sm:$0x3] %vm430, 0.0
        %432 = vst.msk [vmem:[#allocation2 + $0x18] sm:$0xff] %vm427, 0.0
        %433 = vst.msk [vmem:[#allocation2 + $0x20] sm:$0xff] %vm427, 0.0
        %434 = vst.msk [vmem:[#allocation2 + $0x28] sm:$0x3] %vm430, 0.0
        %435 = vst.msk [vmem:[#allocation3] sm:$0xff] %vm427, 0.0
        %436 = vst.msk [vmem:[#allocation3 + $0x8] sm:$0xff] %vm427, 0.0
        %437 = vst.msk [vmem:[#allocation3 + $0x10] sm:$0x3] %vm430, 0.0
        %438 = vst.msk [vmem:[#allocation3 + $0x18] sm:$0xff] %vm427, 0.0
        %439 = vst.msk [vmem:[#allocation3 + $0x20] sm:$0xff] %vm427, 0.0
        %440 = vst.msk [vmem:[#allocation3 + $0x28] sm:$0x3] %vm430, 0.0
        %s441 = sld [smem:[#allocation13]]
        %s442 = sld [smem:[#allocation14]]
        %s443 = ssub.f32 %s441, %s442
        %s444 = sld [smem:[#allocation13 + $0x1]]
        %s445 = sld [smem:[#allocation14 + $0x1]]
        %s446 = ssub.f32 %s444, %s445
        %s447 = sadd.f32 %s441, %s442
        %s448 = sadd.f32 %s444, %s445
        %v449 = vld [vmem:[%s6] sm:$0x1f]
        %v450 = vld [vmem:[%s358] sm:$0xff]
        %v451 = vld [vmem:[%s358 + $0x8] sm:$0xff]
        %s452 = scalar_lea.vmem %s358, 16 [#allocation4]
        %v453 = vld [vmem:[%s452] sm:$0xff]
        %v454 = vld [vmem:[%s452 + $0x8] sm:$0xff]
        %v455 = vld [vmem:[%s367] sm:$0xff]
        %v456 = vld [vmem:[%s367 + $0x8] sm:$0xff]
        %s457 = scalar_lea.vmem %s367, 16 [#allocation8]
        %v458 = vld [vmem:[%s457] sm:$0xff]
        %v459 = vld [vmem:[%s457 + $0x8] sm:$0xff]
        %462 = vrot.lane.b32.xlu0 %v450, 1
        %v463 = vpop.permute.xlu0 %462
        %464 = vrot.lane.b32.xlu0 %v451, 1
        %v465 = vpop.permute.xlu0 %464
        %vm468 = vcmask 138248
        %469 = vst.msk [vmem:[#allocation2 + $0x1] sm:$0xff] %vm468, %v463
        %470 = vst.msk [vmem:[#allocation2 + $0x9] sm:$0xff] %vm468, %v465
        %473 = vrot.lane.b32.xlu0 %v455, 1
        %v474 = vpop.permute.xlu0 %473
        %475 = vrot.lane.b32.xlu0 %v456, 1
        %v476 = vpop.permute.xlu0 %475
        %479 = vst.msk [vmem:[#allocation3 + $0x1] sm:$0xff] %vm468, %v474
        %480 = vst.msk [vmem:[#allocation3 + $0x9] sm:$0xff] %vm468, %v476
        %483 = vrot.lane.b32.xlu0 %v453, 1
        %v484 = vpop.permute.xlu0 %483
        %485 = vrot.lane.b32.xlu0 %v454, 1
        %v486 = vpop.permute.xlu0 %485
        %s489 = scalar_lea.vmem [#allocation2], 24
        %490 = vst.msk [vmem:[%s489 + $0x1] sm:$0xff] %vm468, %v484
        %491 = vst.msk [vmem:[%s489 + $0x9] sm:$0xff] %vm468, %v486
        %494 = vrot.lane.b32.xlu0 %v458, 1
        %v495 = vpop.permute.xlu0 %494
        %496 = vrot.lane.b32.xlu0 %v459, 1
        %v497 = vpop.permute.xlu0 %496
        %s500 = scalar_lea.vmem [#allocation3], 24
        %501 = vst.msk [vmem:[%s500 + $0x1] sm:$0xff] %vm468, %v495
        %502 = vst.msk [vmem:[%s500 + $0x9] sm:$0xff] %vm468, %v497
        %v503 = vstv %s443
        %v504 = vstv %s446
        %v505 = vstv %s447
        %v506 = vstv %s448
        %v507 = vld [vmem:[#allocation2] sm:$0xff]
        %v508 = vld [vmem:[#allocation2 + $0x8] sm:$0xff]
        %v509 = vld [vmem:[#allocation3] sm:$0xff]
        %v510 = vld [vmem:[#allocation3 + $0x8] sm:$0xff]
        %s511 = sld [smem:[#allocation10]]
        %s512 = sld [smem:[#allocation11]]
        %v513 = vstv %s511
        %v514 = vmul.f32 %v513, %v507
        %v515 = vmul.f32 %v513, %v508
        %v516 = vadd.f32 %v503, %v514
        %v517 = vadd.f32 %v503, %v515
        %v518 = vstv %s512
        %v519 = vmul.f32 %v518, %v509
        %v520 = vmul.f32 %v518, %v510
        %v521 = vsub.f32 %v516, %v519
        %v522 = vsub.f32 %v517, %v520
        %v523 = vmul.f32 %v513, %v509
        %v524 = vmul.f32 %v513, %v510
        %v525 = vadd.f32 %v505, %v523
        %v526 = vadd.f32 %v505, %v524
        %v527 = vmul.f32 %v518, %v507
        %v528 = vmul.f32 %v518, %v508
        %v529 = vadd.f32 %v525, %v527
        %v530 = vadd.f32 %v526, %v528
        %s531 = sld [smem:[#allocation10 + $0x12]]
        %s532 = sld [smem:[#allocation11 + $0x12]]
        %v533 = vstv %s531
        %v534 = vmul.f32 %v533, %v507
        %v535 = vmul.f32 %v533, %v508
        %v536 = vadd.f32 %v504, %v534
        %v537 = vadd.f32 %v504, %v535
        %v538 = vstv %s532
        %v539 = vmul.f32 %v538, %v509
        %v540 = vmul.f32 %v538, %v510
        %v541 = vsub.f32 %v536, %v539
        %v542 = vsub.f32 %v537, %v540
        %v543 = vmul.f32 %v533, %v509
        %v544 = vmul.f32 %v533, %v510
        %v545 = vadd.f32 %v506, %v543
        %v546 = vadd.f32 %v506, %v544
        %v547 = vmul.f32 %v538, %v507
        %v548 = vmul.f32 %v538, %v508
        %v549 = vadd.f32 %v545, %v547
        %v550 = vadd.f32 %v546, %v548
        %s551 = sld [smem:[#allocation10 + $0x1]]
        %s552 = sld [smem:[#allocation11 + $0x1]]
        %v553 = vstv %s551
        %v554 = vmul.f32 %v553, %v507
        %v555 = vmul.f32 %v553, %v508
        %558 = vrot.lane.b32.xlu0 %v554, 127
        %v559 = vpop.permute.xlu0 %558
        %560 = vrot.lane.b32.xlu0 %v555, 127
        %v561 = vpop.permute.xlu0 %560
        %v564 = vadd.f32 %v521, %v559
        %v565 = vadd.f32 %v522, %v561
        %v566 = vstv %s552
        %v567 = vmul.f32 %v566, %v509
        %v568 = vmul.f32 %v566, %v510
        %571 = vrot.lane.b32.xlu0 %v567, 127
        %v572 = vpop.permute.xlu0 %571
        %573 = vrot.lane.b32.xlu0 %v568, 127
        %v574 = vpop.permute.xlu0 %573
        %v577 = vsub.f32 %v564, %v572
        %v578 = vsub.f32 %v565, %v574
        %v579 = vmul.f32 %v553, %v509
        %v580 = vmul.f32 %v553, %v510
        %583 = vrot.lane.b32.xlu0 %v579, 127
        %v584 = vpop.permute.xlu0 %583
        %585 = vrot.lane.b32.xlu0 %v580, 127
        %v586 = vpop.permute.xlu0 %585
        %v589 = vadd.f32 %v529, %v584
        %v590 = vadd.f32 %v530, %v586
        %v591 = vmul.f32 %v566, %v507
        %v592 = vmul.f32 %v566, %v508
        %595 = vrot.lane.b32.xlu0 %v591, 127
        %v596 = vpop.permute.xlu0 %595
        %597 = vrot.lane.b32.xlu0 %v592, 127
        %v598 = vpop.permute.xlu0 %597
        %v601 = vadd.f32 %v589, %v596
        %v602 = vadd.f32 %v590, %v598
        %s603 = sld [smem:[#allocation10 + $0x13]]
        %s604 = sld [smem:[#allocation11 + $0x13]]
        %v605 = vstv %s603
        %v606 = vmul.f32 %v605, %v507
        %v607 = vmul.f32 %v605, %v508
        %610 = vrot.lane.b32.xlu0 %v606, 127
        %v611 = vpop.permute.xlu0 %610
        %612 = vrot.lane.b32.xlu0 %v607, 127
        %v613 = vpop.permute.xlu0 %612
        %v616 = vadd.f32 %v541, %v611
        %v617 = vadd.f32 %v542, %v613
        %v618 = vstv %s604
        %v619 = vmul.f32 %v618, %v509
        %v620 = vmul.f32 %v618, %v510
        %623 = vrot.lane.b32.xlu0 %v619, 127
        %v624 = vpop.permute.xlu0 %623
        %625 = vrot.lane.b32.xlu0 %v620, 127
        %v626 = vpop.permute.xlu0 %625
        %v629 = vsub.f32 %v616, %v624
        %v630 = vsub.f32 %v617, %v626
        %v631 = vmul.f32 %v605, %v509
        %v632 = vmul.f32 %v605, %v510
        %635 = vrot.lane.b32.xlu0 %v631, 127
        %v636 = vpop.permute.xlu0 %635
        %637 = vrot.lane.b32.xlu0 %v632, 127
        %v638 = vpop.permute.xlu0 %637
        %v641 = vadd.f32 %v549, %v636
        %v642 = vadd.f32 %v550, %v638
        %v643 = vmul.f32 %v618, %v507
        %v644 = vmul.f32 %v618, %v508
        %647 = vrot.lane.b32.xlu0 %v643, 127
        %v648 = vpop.permute.xlu0 %647
        %649 = vrot.lane.b32.xlu0 %v644, 127
        %v650 = vpop.permute.xlu0 %649
        %v653 = vadd.f32 %v641, %v648
        %v654 = vadd.f32 %v642, %v650
        %s655 = sld [smem:[#allocation10 + $0x2]]
        %s656 = sld [smem:[#allocation11 + $0x2]]
        %v657 = vstv %s655
        %v658 = vmul.f32 %v657, %v507
        %v659 = vmul.f32 %v657, %v508
        %662 = vrot.lane.b32.xlu0 %v658, 126
        %v663 = vpop.permute.xlu0 %662
        %664 = vrot.lane.b32.xlu0 %v659, 126
        %v665 = vpop.permute.xlu0 %664
        %v668 = vadd.f32 %v577, %v663
        %v669 = vadd.f32 %v578, %v665
        %v670 = vstv %s656
        %v671 = vmul.f32 %v670, %v509
        %v672 = vmul.f32 %v670, %v510
        %675 = vrot.lane.b32.xlu0 %v671, 126
        %v676 = vpop.permute.xlu0 %675
        %677 = vrot.lane.b32.xlu0 %v672, 126
        %v678 = vpop.permute.xlu0 %677
        %v681 = vsub.f32 %v668, %v676
        %v682 = vsub.f32 %v669, %v678
        %v683 = vmul.f32 %v657, %v509
        %v684 = vmul.f32 %v657, %v510
        %687 = vrot.lane.b32.xlu0 %v683, 126
        %v688 = vpop.permute.xlu0 %687
        %689 = vrot.lane.b32.xlu0 %v684, 126
        %v690 = vpop.permute.xlu0 %689
        %v693 = vadd.f32 %v601, %v688
        %v694 = vadd.f32 %v602, %v690
        %v695 = vmul.f32 %v670, %v507
        %v696 = vmul.f32 %v670, %v508
        %699 = vrot.lane.b32.xlu0 %v695, 126
        %v700 = vpop.permute.xlu0 %699
        %701 = vrot.lane.b32.xlu0 %v696, 126
        %v702 = vpop.permute.xlu0 %701
        %v705 = vadd.f32 %v693, %v700
        %v706 = vadd.f32 %v694, %v702
        %s707 = sld [smem:[#allocation10 + $0x14]]
        %s708 = sld [smem:[#allocation11 + $0x14]]
        %v709 = vstv %s707
        %v710 = vmul.f32 %v709, %v507
        %v711 = vmul.f32 %v709, %v508
        %714 = vrot.lane.b32.xlu0 %v710, 126
        %v715 = vpop.permute.xlu0 %714
        %716 = vrot.lane.b32.xlu0 %v711, 126
        %v717 = vpop.permute.xlu0 %716
        %v720 = vadd.f32 %v629, %v715
        %v721 = vadd.f32 %v630, %v717
        %v722 = vstv %s708
        %v723 = vmul.f32 %v722, %v509
        %v724 = vmul.f32 %v722, %v510
        %727 = vrot.lane.b32.xlu0 %v723, 126
        %v728 = vpop.permute.xlu0 %727
        %729 = vrot.lane.b32.xlu0 %v724, 126
        %v730 = vpop.permute.xlu0 %729
        %v733 = vsub.f32 %v720, %v728
        %v734 = vsub.f32 %v721, %v730
        %v735 = vmul.f32 %v709, %v509
        %v736 = vmul.f32 %v709, %v510
        %739 = vrot.lane.b32.xlu0 %v735, 126
        %v740 = vpop.permute.xlu0 %739
        %741 = vrot.lane.b32.xlu0 %v736, 126
        %v742 = vpop.permute.xlu0 %741
        %v745 = vadd.f32 %v653, %v740
        %v746 = vadd.f32 %v654, %v742
        %v747 = vmul.f32 %v722, %v507
        %v748 = vmul.f32 %v722, %v508
        %751 = vrot.lane.b32.xlu0 %v747, 126
        %v752 = vpop.permute.xlu0 %751
        %753 = vrot.lane.b32.xlu0 %v748, 126
        %v754 = vpop.permute.xlu0 %753
        %v757 = vadd.f32 %v745, %v752
        %v758 = vadd.f32 %v746, %v754
        %v759 = vld [vmem:[#allocation2 + $0x1] sm:$0xff]
        %v760 = vld [vmem:[#allocation2 + $0x9] sm:$0xff]
        %v761 = vld [vmem:[#allocation3 + $0x1] sm:$0xff]
        %v762 = vld [vmem:[#allocation3 + $0x9] sm:$0xff]
        %s763 = sld [smem:[#allocation10 + $0x3]]
        %s764 = sld [smem:[#allocation11 + $0x3]]
        %v765 = vstv %s763
        %v766 = vmul.f32 %v765, %v759
        %v767 = vmul.f32 %v765, %v760
        %v768 = vadd.f32 %v681, %v766
        %v769 = vadd.f32 %v682, %v767
        %v770 = vstv %s764
        %v771 = vmul.f32 %v770, %v761
        %v772 = vmul.f32 %v770, %v762
        %v773 = vsub.f32 %v768, %v771
        %v774 = vsub.f32 %v769, %v772
        %v775 = vmul.f32 %v765, %v761
        %v776 = vmul.f32 %v765, %v762
        %v777 = vadd.f32 %v705, %v775
        %v778 = vadd.f32 %v706, %v776
        %v779 = vmul.f32 %v770, %v759
        %v780 = vmul.f32 %v770, %v760
        %v781 = vadd.f32 %v777, %v779
        %v782 = vadd.f32 %v778, %v780
        %s783 = sld [smem:[#allocation10 + $0x15]]
        %s784 = sld [smem:[#allocation11 + $0x15]]
        %v785 = vstv %s783
        %v786 = vmul.f32 %v785, %v759
        %v787 = vmul.f32 %v785, %v760
        %v788 = vadd.f32 %v733, %v786
        %v789 = vadd.f32 %v734, %v787
        %v790 = vstv %s784
        %v791 = vmul.f32 %v790, %v761
        %v792 = vmul.f32 %v790, %v762
        %v793 = vsub.f32 %v788, %v791
        %v794 = vsub.f32 %v789, %v792
        %v795 = vmul.f32 %v785, %v761
        %v796 = vmul.f32 %v785, %v762
        %v797 = vadd.f32 %v757, %v795
        %v798 = vadd.f32 %v758, %v796
        %v799 = vmul.f32 %v790, %v759
        %v800 = vmul.f32 %v790, %v760
        %v801 = vadd.f32 %v797, %v799
        %v802 = vadd.f32 %v798, %v800
        %s803 = sld [smem:[#allocation10 + $0x4]]
        %s804 = sld [smem:[#allocation11 + $0x4]]
        %v805 = vstv %s803
        %v806 = vmul.f32 %v805, %v759
        %v807 = vmul.f32 %v805, %v760
        %810 = vrot.lane.b32.xlu0 %v806, 127
        %v811 = vpop.permute.xlu0 %810
        %812 = vrot.lane.b32.xlu0 %v807, 127
        %v813 = vpop.permute.xlu0 %812
        %v816 = vadd.f32 %v773, %v811
        %v817 = vadd.f32 %v774, %v813
        %v818 = vstv %s804
        %v819 = vmul.f32 %v818, %v761
        %v820 = vmul.f32 %v818, %v762
        %823 = vrot.lane.b32.xlu0 %v819, 127
        %v824 = vpop.permute.xlu0 %823
        %825 = vrot.lane.b32.xlu0 %v820, 127
        %v826 = vpop.permute.xlu0 %825
        %v829 = vsub.f32 %v816, %v824
        %v830 = vsub.f32 %v817, %v826
        %v831 = vmul.f32 %v805, %v761
        %v832 = vmul.f32 %v805, %v762
        %835 = vrot.lane.b32.xlu0 %v831, 127
        %v836 = vpop.permute.xlu0 %835
        %837 = vrot.lane.b32.xlu0 %v832, 127
        %v838 = vpop.permute.xlu0 %837
        %v841 = vadd.f32 %v781, %v836
        %v842 = vadd.f32 %v782, %v838
        %v843 = vmul.f32 %v818, %v759
        %v844 = vmul.f32 %v818, %v760
        %847 = vrot.lane.b32.xlu0 %v843, 127
        %v848 = vpop.permute.xlu0 %847
        %849 = vrot.lane.b32.xlu0 %v844, 127
        %v850 = vpop.permute.xlu0 %849
        %v853 = vadd.f32 %v841, %v848
        %v854 = vadd.f32 %v842, %v850
        %s855 = sld [smem:[#allocation10 + $0x16]]
        %s856 = sld [smem:[#allocation11 + $0x16]]
        %v857 = vstv %s855
        %v858 = vmul.f32 %v857, %v759
        %v859 = vmul.f32 %v857, %v760
        %862 = vrot.lane.b32.xlu0 %v858, 127
        %v863 = vpop.permute.xlu0 %862
        %864 = vrot.lane.b32.xlu0 %v859, 127
        %v865 = vpop.permute.xlu0 %864
        %v868 = vadd.f32 %v793, %v863
        %v869 = vadd.f32 %v794, %v865
        %v870 = vstv %s856
        %v871 = vmul.f32 %v870, %v761
        %v872 = vmul.f32 %v870, %v762
        %875 = vrot.lane.b32.xlu0 %v871, 127
        %v876 = vpop.permute.xlu0 %875
        %877 = vrot.lane.b32.xlu0 %v872, 127
        %v878 = vpop.permute.xlu0 %877
        %v881 = vsub.f32 %v868, %v876
        %v882 = vsub.f32 %v869, %v878
        %v883 = vmul.f32 %v857, %v761
        %v884 = vmul.f32 %v857, %v762
        %887 = vrot.lane.b32.xlu0 %v883, 127
        %v888 = vpop.permute.xlu0 %887
        %889 = vrot.lane.b32.xlu0 %v884, 127
        %v890 = vpop.permute.xlu0 %889
        %v893 = vadd.f32 %v801, %v888
        %v894 = vadd.f32 %v802, %v890
        %v895 = vmul.f32 %v870, %v759
        %v896 = vmul.f32 %v870, %v760
        %899 = vrot.lane.b32.xlu0 %v895, 127
        %v900 = vpop.permute.xlu0 %899
        %901 = vrot.lane.b32.xlu0 %v896, 127
        %v902 = vpop.permute.xlu0 %901
        %v905 = vadd.f32 %v893, %v900
        %v906 = vadd.f32 %v894, %v902
        %s907 = sld [smem:[#allocation10 + $0x5]]
        %s908 = sld [smem:[#allocation11 + $0x5]]
        %v909 = vstv %s907
        %v910 = vmul.f32 %v909, %v759
        %v911 = vmul.f32 %v909, %v760
        %914 = vrot.lane.b32.xlu0 %v910, 126
        %v915 = vpop.permute.xlu0 %914
        %916 = vrot.lane.b32.xlu0 %v911, 126
        %v917 = vpop.permute.xlu0 %916
        %v920 = vadd.f32 %v829, %v915
        %v921 = vadd.f32 %v830, %v917
        %v922 = vstv %s908
        %v923 = vmul.f32 %v922, %v761
        %v924 = vmul.f32 %v922, %v762
        %927 = vrot.lane.b32.xlu0 %v923, 126
        %v928 = vpop.permute.xlu0 %927
        %929 = vrot.lane.b32.xlu0 %v924, 126
        %v930 = vpop.permute.xlu0 %929
        %v933 = vsub.f32 %v920, %v928
        %v934 = vsub.f32 %v921, %v930
        %v935 = vmul.f32 %v909, %v761
        %v936 = vmul.f32 %v909, %v762
        %939 = vrot.lane.b32.xlu0 %v935, 126
        %v940 = vpop.permute.xlu0 %939
        %941 = vrot.lane.b32.xlu0 %v936, 126
        %v942 = vpop.permute.xlu0 %941
        %v945 = vadd.f32 %v853, %v940
        %v946 = vadd.f32 %v854, %v942
        %v947 = vmul.f32 %v922, %v759
        %v948 = vmul.f32 %v922, %v760
        %951 = vrot.lane.b32.xlu0 %v947, 126
        %v952 = vpop.permute.xlu0 %951
        %953 = vrot.lane.b32.xlu0 %v948, 126
        %v954 = vpop.permute.xlu0 %953
        %v957 = vadd.f32 %v945, %v952
        %v958 = vadd.f32 %v946, %v954
        %s959 = sld [smem:[#allocation10 + $0x17]]
        %s960 = sld [smem:[#allocation11 + $0x17]]
        %v961 = vstv %s959
        %v962 = vmul.f32 %v961, %v759
        %v963 = vmul.f32 %v961, %v760
        %966 = vrot.lane.b32.xlu0 %v962, 126
        %v967 = vpop.permute.xlu0 %966
        %968 = vrot.lane.b32.xlu0 %v963, 126
        %v969 = vpop.permute.xlu0 %968
        %v972 = vadd.f32 %v881, %v967
        %v973 = vadd.f32 %v882, %v969
        %v974 = vstv %s960
        %v975 = vmul.f32 %v974, %v761
        %v976 = vmul.f32 %v974, %v762
        %979 = vrot.lane.b32.xlu0 %v975, 126
        %v980 = vpop.permute.xlu0 %979
        %981 = vrot.lane.b32.xlu0 %v976, 126
        %v982 = vpop.permute.xlu0 %981
        %v985 = vsub.f32 %v972, %v980
        %v986 = vsub.f32 %v973, %v982
        %v987 = vmul.f32 %v961, %v761
        %v988 = vmul.f32 %v961, %v762
        %991 = vrot.lane.b32.xlu0 %v987, 126
        %v992 = vpop.permute.xlu0 %991
        %993 = vrot.lane.b32.xlu0 %v988, 126
        %v994 = vpop.permute.xlu0 %993
        %v997 = vadd.f32 %v905, %v992
        %v998 = vadd.f32 %v906, %v994
        %v999 = vmul.f32 %v974, %v759
        %v1000 = vmul.f32 %v974, %v760
        %1003 = vrot.lane.b32.xlu0 %v999, 126
        %v1004 = vpop.permute.xlu0 %1003
        %1005 = vrot.lane.b32.xlu0 %v1000, 126
        %v1006 = vpop.permute.xlu0 %1005
        %v1009 = vadd.f32 %v997, %v1004
        %v1010 = vadd.f32 %v998, %v1006
        %v1011 = vld [vmem:[#allocation2 + $0x2] sm:$0xff]
        %v1012 = vld [vmem:[#allocation2 + $0xa] sm:$0xff]
        %v1013 = vld [vmem:[#allocation3 + $0x2] sm:$0xff]
        %v1014 = vld [vmem:[#allocation3 + $0xa] sm:$0xff]
        %s1015 = sld [smem:[#allocation10 + $0x6]]
        %s1016 = sld [smem:[#allocation11 + $0x6]]
        %v1017 = vstv %s1015
        %v1018 = vmul.f32 %v1017, %v1011
        %v1019 = vmul.f32 %v1017, %v1012
        %v1020 = vadd.f32 %v933, %v1018
        %v1021 = vadd.f32 %v934, %v1019
        %v1022 = vstv %s1016
        %v1023 = vmul.f32 %v1022, %v1013
        %v1024 = vmul.f32 %v1022, %v1014
        %v1025 = vsub.f32 %v1020, %v1023
        %v1026 = vsub.f32 %v1021, %v1024
        %v1027 = vmul.f32 %v1017, %v1013
        %v1028 = vmul.f32 %v1017, %v1014
        %v1029 = vadd.f32 %v957, %v1027
        %v1030 = vadd.f32 %v958, %v1028
        %v1031 = vmul.f32 %v1022, %v1011
        %v1032 = vmul.f32 %v1022, %v1012
        %v1033 = vadd.f32 %v1029, %v1031
        %v1034 = vadd.f32 %v1030, %v1032
        %s1035 = sld [smem:[#allocation10 + $0x18]]
        %s1036 = sld [smem:[#allocation11 + $0x18]]
        %v1037 = vstv %s1035
        %v1038 = vmul.f32 %v1037, %v1011
        %v1039 = vmul.f32 %v1037, %v1012
        %v1040 = vadd.f32 %v985, %v1038
        %v1041 = vadd.f32 %v986, %v1039
        %v1042 = vstv %s1036
        %v1043 = vmul.f32 %v1042, %v1013
        %v1044 = vmul.f32 %v1042, %v1014
        %v1045 = vsub.f32 %v1040, %v1043
        %v1046 = vsub.f32 %v1041, %v1044
        %v1047 = vmul.f32 %v1037, %v1013
        %v1048 = vmul.f32 %v1037, %v1014
        %v1049 = vadd.f32 %v1009, %v1047
        %v1050 = vadd.f32 %v1010, %v1048
        %v1051 = vmul.f32 %v1042, %v1011
        %v1052 = vmul.f32 %v1042, %v1012
        %v1053 = vadd.f32 %v1049, %v1051
        %v1054 = vadd.f32 %v1050, %v1052
        %s1055 = sld [smem:[#allocation10 + $0x7]]
        %s1056 = sld [smem:[#allocation11 + $0x7]]
        %v1057 = vstv %s1055
        %v1058 = vmul.f32 %v1057, %v1011
        %v1059 = vmul.f32 %v1057, %v1012
        %1062 = vrot.lane.b32.xlu0 %v1058, 127
        %v1063 = vpop.permute.xlu0 %1062
        %1064 = vrot.lane.b32.xlu0 %v1059, 127
        %v1065 = vpop.permute.xlu0 %1064
        %v1068 = vadd.f32 %v1025, %v1063
        %v1069 = vadd.f32 %v1026, %v1065
        %v1070 = vstv %s1056
        %v1071 = vmul.f32 %v1070, %v1013
        %v1072 = vmul.f32 %v1070, %v1014
        %1075 = vrot.lane.b32.xlu0 %v1071, 127
        %v1076 = vpop.permute.xlu0 %1075
        %1077 = vrot.lane.b32.xlu0 %v1072, 127
        %v1078 = vpop.permute.xlu0 %1077
        %v1081 = vsub.f32 %v1068, %v1076
        %v1082 = vsub.f32 %v1069, %v1078
        %v1083 = vmul.f32 %v1057, %v1013
        %v1084 = vmul.f32 %v1057, %v1014
        %1087 = vrot.lane.b32.xlu0 %v1083, 127
        %v1088 = vpop.permute.xlu0 %1087
        %1089 = vrot.lane.b32.xlu0 %v1084, 127
        %v1090 = vpop.permute.xlu0 %1089
        %v1093 = vadd.f32 %v1033, %v1088
        %v1094 = vadd.f32 %v1034, %v1090
        %v1095 = vmul.f32 %v1070, %v1011
        %v1096 = vmul.f32 %v1070, %v1012
        %1099 = vrot.lane.b32.xlu0 %v1095, 127
        %v1100 = vpop.permute.xlu0 %1099
        %1101 = vrot.lane.b32.xlu0 %v1096, 127
        %v1102 = vpop.permute.xlu0 %1101
        %v1105 = vadd.f32 %v1093, %v1100
        %v1106 = vadd.f32 %v1094, %v1102
        %s1107 = sld [smem:[#allocation10 + $0x19]]
        %s1108 = sld [smem:[#allocation11 + $0x19]]
        %v1109 = vstv %s1107
        %v1110 = vmul.f32 %v1109, %v1011
        %v1111 = vmul.f32 %v1109, %v1012
        %1114 = vrot.lane.b32.xlu0 %v1110, 127
        %v1115 = vpop.permute.xlu0 %1114
        %1116 = vrot.lane.b32.xlu0 %v1111, 127
        %v1117 = vpop.permute.xlu0 %1116
        %v1120 = vadd.f32 %v1045, %v1115
        %v1121 = vadd.f32 %v1046, %v1117
        %v1122 = vstv %s1108
        %v1123 = vmul.f32 %v1122, %v1013
        %v1124 = vmul.f32 %v1122, %v1014
        %1127 = vrot.lane.b32.xlu0 %v1123, 127
        %v1128 = vpop.permute.xlu0 %1127
        %1129 = vrot.lane.b32.xlu0 %v1124, 127
        %v1130 = vpop.permute.xlu0 %1129
        %v1133 = vsub.f32 %v1120, %v1128
        %v1134 = vsub.f32 %v1121, %v1130
        %v1135 = vmul.f32 %v1109, %v1013
        %v1136 = vmul.f32 %v1109, %v1014
        %1139 = vrot.lane.b32.xlu0 %v1135, 127
        %v1140 = vpop.permute.xlu0 %1139
        %1141 = vrot.lane.b32.xlu0 %v1136, 127
        %v1142 = vpop.permute.xlu0 %1141
        %v1145 = vadd.f32 %v1053, %v1140
        %v1146 = vadd.f32 %v1054, %v1142
        %v1147 = vmul.f32 %v1122, %v1011
        %v1148 = vmul.f32 %v1122, %v1012
        %1151 = vrot.lane.b32.xlu0 %v1147, 127
        %v1152 = vpop.permute.xlu0 %1151
        %1153 = vrot.lane.b32.xlu0 %v1148, 127
        %v1154 = vpop.permute.xlu0 %1153
        %v1157 = vadd.f32 %v1145, %v1152
        %v1158 = vadd.f32 %v1146, %v1154
        %s1159 = sld [smem:[#allocation10 + $0x8]]
        %s1160 = sld [smem:[#allocation11 + $0x8]]
        %v1161 = vstv %s1159
        %v1162 = vmul.f32 %v1161, %v1011
        %v1163 = vmul.f32 %v1161, %v1012
        %1166 = vrot.lane.b32.xlu0 %v1162, 126
        %v1167 = vpop.permute.xlu0 %1166
        %1168 = vrot.lane.b32.xlu0 %v1163, 126
        %v1169 = vpop.permute.xlu0 %1168
        %v1172 = vadd.f32 %v1081, %v1167
        %v1173 = vadd.f32 %v1082, %v1169
        %v1174 = vstv %s1160
        %v1175 = vmul.f32 %v1174, %v1013
        %v1176 = vmul.f32 %v1174, %v1014
        %1179 = vrot.lane.b32.xlu0 %v1175, 126
        %v1180 = vpop.permute.xlu0 %1179
        %1181 = vrot.lane.b32.xlu0 %v1176, 126
        %v1182 = vpop.permute.xlu0 %1181
        %v1185 = vsub.f32 %v1172, %v1180
        %v1186 = vsub.f32 %v1173, %v1182
        %v1187 = vmul.f32 %v1161, %v1013
        %v1188 = vmul.f32 %v1161, %v1014
        %1191 = vrot.lane.b32.xlu0 %v1187, 126
        %v1192 = vpop.permute.xlu0 %1191
        %1193 = vrot.lane.b32.xlu0 %v1188, 126
        %v1194 = vpop.permute.xlu0 %1193
        %v1197 = vadd.f32 %v1105, %v1192
        %v1198 = vadd.f32 %v1106, %v1194
        %v1199 = vmul.f32 %v1174, %v1011
        %v1200 = vmul.f32 %v1174, %v1012
        %1203 = vrot.lane.b32.xlu0 %v1199, 126
        %v1204 = vpop.permute.xlu0 %1203
        %1205 = vrot.lane.b32.xlu0 %v1200, 126
        %v1206 = vpop.permute.xlu0 %1205
        %v1209 = vadd.f32 %v1197, %v1204
        %v1210 = vadd.f32 %v1198, %v1206
        %s1211 = sld [smem:[#allocation10 + $0x1a]]
        %s1212 = sld [smem:[#allocation11 + $0x1a]]
        %v1213 = vstv %s1211
        %v1214 = vmul.f32 %v1213, %v1011
        %v1215 = vmul.f32 %v1213, %v1012
        %1218 = vrot.lane.b32.xlu0 %v1214, 126
        %v1219 = vpop.permute.xlu0 %1218
        %1220 = vrot.lane.b32.xlu0 %v1215, 126
        %v1221 = vpop.permute.xlu0 %1220
        %v1224 = vadd.f32 %v1133, %v1219
        %v1225 = vadd.f32 %v1134, %v1221
        %v1226 = vstv %s1212
        %v1227 = vmul.f32 %v1226, %v1013
        %v1228 = vmul.f32 %v1226, %v1014
        %1231 = vrot.lane.b32.xlu0 %v1227, 126
        %v1232 = vpop.permute.xlu0 %1231
        %1233 = vrot.lane.b32.xlu0 %v1228, 126
        %v1234 = vpop.permute.xlu0 %1233
        %v1237 = vsub.f32 %v1224, %v1232
        %v1238 = vsub.f32 %v1225, %v1234
        %v1239 = vmul.f32 %v1213, %v1013
        %v1240 = vmul.f32 %v1213, %v1014
        %1243 = vrot.lane.b32.xlu0 %v1239, 126
        %v1244 = vpop.permute.xlu0 %1243
        %1245 = vrot.lane.b32.xlu0 %v1240, 126
        %v1246 = vpop.permute.xlu0 %1245
        %v1249 = vadd.f32 %v1157, %v1244
        %v1250 = vadd.f32 %v1158, %v1246
        %v1251 = vmul.f32 %v1226, %v1011
        %v1252 = vmul.f32 %v1226, %v1012
        %1255 = vrot.lane.b32.xlu0 %v1251, 126
        %v1256 = vpop.permute.xlu0 %1255
        %1257 = vrot.lane.b32.xlu0 %v1252, 126
        %v1258 = vpop.permute.xlu0 %1257
        %v1261 = vadd.f32 %v1249, %v1256
        %v1262 = vadd.f32 %v1250, %v1258
        %v1263 = vld [vmem:[%s489] sm:$0xff]
        %v1264 = vld [vmem:[%s489 + $0x8] sm:$0xff]
        %v1265 = vld [vmem:[%s500] sm:$0xff]
        %v1266 = vld [vmem:[%s500 + $0x8] sm:$0xff]
        %s1267 = sld [smem:[#allocation10 + $0x9]]
        %s1268 = sld [smem:[#allocation11 + $0x9]]
        %v1269 = vstv %s1267
        %v1270 = vmul.f32 %v1269, %v1263
        %v1271 = vmul.f32 %v1269, %v1264
        %v1272 = vadd.f32 %v1185, %v1270
        %v1273 = vadd.f32 %v1186, %v1271
        %v1274 = vstv %s1268
        %v1275 = vmul.f32 %v1274, %v1265
        %v1276 = vmul.f32 %v1274, %v1266
        %v1277 = vsub.f32 %v1272, %v1275
        %v1278 = vsub.f32 %v1273, %v1276
        %v1279 = vmul.f32 %v1269, %v1265
        %v1280 = vmul.f32 %v1269, %v1266
        %v1281 = vadd.f32 %v1209, %v1279
        %v1282 = vadd.f32 %v1210, %v1280
        %v1283 = vmul.f32 %v1274, %v1263
        %v1284 = vmul.f32 %v1274, %v1264
        %v1285 = vadd.f32 %v1281, %v1283
        %v1286 = vadd.f32 %v1282, %v1284
        %s1287 = sld [smem:[#allocation10 + $0x1b]]
        %s1288 = sld [smem:[#allocation11 + $0x1b]]
        %v1289 = vstv %s1287
        %v1290 = vmul.f32 %v1289, %v1263
        %v1291 = vmul.f32 %v1289, %v1264
        %v1292 = vadd.f32 %v1237, %v1290
        %v1293 = vadd.f32 %v1238, %v1291
        %v1294 = vstv %s1288
        %v1295 = vmul.f32 %v1294, %v1265
        %v1296 = vmul.f32 %v1294, %v1266
        %v1297 = vsub.f32 %v1292, %v1295
        %v1298 = vsub.f32 %v1293, %v1296
        %v1299 = vmul.f32 %v1289, %v1265
        %v1300 = vmul.f32 %v1289, %v1266
        %v1301 = vadd.f32 %v1261, %v1299
        %v1302 = vadd.f32 %v1262, %v1300
        %v1303 = vmul.f32 %v1294, %v1263
        %v1304 = vmul.f32 %v1294, %v1264
        %v1305 = vadd.f32 %v1301, %v1303
        %v1306 = vadd.f32 %v1302, %v1304
        %s1307 = sld [smem:[#allocation10 + $0xa]]
        %s1308 = sld [smem:[#allocation11 + $0xa]]
        %v1309 = vstv %s1307
        %v1310 = vmul.f32 %v1309, %v1263
        %v1311 = vmul.f32 %v1309, %v1264
        %1314 = vrot.lane.b32.xlu0 %v1310, 127
        %v1315 = vpop.permute.xlu0 %1314
        %1316 = vrot.lane.b32.xlu0 %v1311, 127
        %v1317 = vpop.permute.xlu0 %1316
        %v1320 = vadd.f32 %v1277, %v1315
        %v1321 = vadd.f32 %v1278, %v1317
        %v1322 = vstv %s1308
        %v1323 = vmul.f32 %v1322, %v1265
        %v1324 = vmul.f32 %v1322, %v1266
        %1327 = vrot.lane.b32.xlu0 %v1323, 127
        %v1328 = vpop.permute.xlu0 %1327
        %1329 = vrot.lane.b32.xlu0 %v1324, 127
        %v1330 = vpop.permute.xlu0 %1329
        %v1333 = vsub.f32 %v1320, %v1328
        %v1334 = vsub.f32 %v1321, %v1330
        %v1335 = vmul.f32 %v1309, %v1265
        %v1336 = vmul.f32 %v1309, %v1266
        %1339 = vrot.lane.b32.xlu0 %v1335, 127
        %v1340 = vpop.permute.xlu0 %1339
        %1341 = vrot.lane.b32.xlu0 %v1336, 127
        %v1342 = vpop.permute.xlu0 %1341
        %v1345 = vadd.f32 %v1285, %v1340
        %v1346 = vadd.f32 %v1286, %v1342
        %v1347 = vmul.f32 %v1322, %v1263
        %v1348 = vmul.f32 %v1322, %v1264
        %1351 = vrot.lane.b32.xlu0 %v1347, 127
        %v1352 = vpop.permute.xlu0 %1351
        %1353 = vrot.lane.b32.xlu0 %v1348, 127
        %v1354 = vpop.permute.xlu0 %1353
        %v1357 = vadd.f32 %v1345, %v1352
        %v1358 = vadd.f32 %v1346, %v1354
        %s1359 = sld [smem:[#allocation10 + $0x1c]]
        %s1360 = sld [smem:[#allocation11 + $0x1c]]
        %v1361 = vstv %s1359
        %v1362 = vmul.f32 %v1361, %v1263
        %v1363 = vmul.f32 %v1361, %v1264
        %1366 = vrot.lane.b32.xlu0 %v1362, 127
        %v1367 = vpop.permute.xlu0 %1366
        %1368 = vrot.lane.b32.xlu0 %v1363, 127
        %v1369 = vpop.permute.xlu0 %1368
        %v1372 = vadd.f32 %v1297, %v1367
        %v1373 = vadd.f32 %v1298, %v1369
        %v1374 = vstv %s1360
        %v1375 = vmul.f32 %v1374, %v1265
        %v1376 = vmul.f32 %v1374, %v1266
        %1379 = vrot.lane.b32.xlu0 %v1375, 127
        %v1380 = vpop.permute.xlu0 %1379
        %1381 = vrot.lane.b32.xlu0 %v1376, 127
        %v1382 = vpop.permute.xlu0 %1381
        %v1385 = vsub.f32 %v1372, %v1380
        %v1386 = vsub.f32 %v1373, %v1382
        %v1387 = vmul.f32 %v1361, %v1265
        %v1388 = vmul.f32 %v1361, %v1266
        %1391 = vrot.lane.b32.xlu0 %v1387, 127
        %v1392 = vpop.permute.xlu0 %1391
        %1393 = vrot.lane.b32.xlu0 %v1388, 127
        %v1394 = vpop.permute.xlu0 %1393
        %v1397 = vadd.f32 %v1305, %v1392
        %v1398 = vadd.f32 %v1306, %v1394
        %v1399 = vmul.f32 %v1374, %v1263
        %v1400 = vmul.f32 %v1374, %v1264
        %1403 = vrot.lane.b32.xlu0 %v1399, 127
        %v1404 = vpop.permute.xlu0 %1403
        %1405 = vrot.lane.b32.xlu0 %v1400, 127
        %v1406 = vpop.permute.xlu0 %1405
        %v1409 = vadd.f32 %v1397, %v1404
        %v1410 = vadd.f32 %v1398, %v1406
        %s1411 = sld [smem:[#allocation10 + $0xb]]
        %s1412 = sld [smem:[#allocation11 + $0xb]]
        %v1413 = vstv %s1411
        %v1414 = vmul.f32 %v1413, %v1263
        %v1415 = vmul.f32 %v1413, %v1264
        %1418 = vrot.lane.b32.xlu0 %v1414, 126
        %v1419 = vpop.permute.xlu0 %1418
        %1420 = vrot.lane.b32.xlu0 %v1415, 126
        %v1421 = vpop.permute.xlu0 %1420
        %v1424 = vadd.f32 %v1333, %v1419
        %v1425 = vadd.f32 %v1334, %v1421
        %v1426 = vstv %s1412
        %v1427 = vmul.f32 %v1426, %v1265
        %v1428 = vmul.f32 %v1426, %v1266
        %1431 = vrot.lane.b32.xlu0 %v1427, 126
        %v1432 = vpop.permute.xlu0 %1431
        %1433 = vrot.lane.b32.xlu0 %v1428, 126
        %v1434 = vpop.permute.xlu0 %1433
        %v1437 = vsub.f32 %v1424, %v1432
        %v1438 = vsub.f32 %v1425, %v1434
        %v1439 = vmul.f32 %v1413, %v1265
        %v1440 = vmul.f32 %v1413, %v1266
        %1443 = vrot.lane.b32.xlu0 %v1439, 126
        %v1444 = vpop.permute.xlu0 %1443
        %1445 = vrot.lane.b32.xlu0 %v1440, 126
        %v1446 = vpop.permute.xlu0 %1445
        %v1449 = vadd.f32 %v1357, %v1444
        %v1450 = vadd.f32 %v1358, %v1446
        %v1451 = vmul.f32 %v1426, %v1263
        %v1452 = vmul.f32 %v1426, %v1264
        %1455 = vrot.lane.b32.xlu0 %v1451, 126
        %v1456 = vpop.permute.xlu0 %1455
        %1457 = vrot.lane.b32.xlu0 %v1452, 126
        %v1458 = vpop.permute.xlu0 %1457
        %v1461 = vadd.f32 %v1449, %v1456
        %v1462 = vadd.f32 %v1450, %v1458
        %s1463 = sld [smem:[#allocation10 + $0x1d]]
        %s1464 = sld [smem:[#allocation11 + $0x1d]]
        %v1465 = vstv %s1463
        %v1466 = vmul.f32 %v1465, %v1263
        %v1467 = vmul.f32 %v1465, %v1264
        %1470 = vrot.lane.b32.xlu0 %v1466, 126
        %v1471 = vpop.permute.xlu0 %1470
        %1472 = vrot.lane.b32.xlu0 %v1467, 126
        %v1473 = vpop.permute.xlu0 %1472
        %v1476 = vadd.f32 %v1385, %v1471
        %v1477 = vadd.f32 %v1386, %v1473
        %v1478 = vstv %s1464
        %v1479 = vmul.f32 %v1478, %v1265
        %v1480 = vmul.f32 %v1478, %v1266
        %1483 = vrot.lane.b32.xlu0 %v1479, 126
        %v1484 = vpop.permute.xlu0 %1483
        %1485 = vrot.lane.b32.xlu0 %v1480, 126
        %v1486 = vpop.permute.xlu0 %1485
        %v1489 = vsub.f32 %v1476, %v1484
        %v1490 = vsub.f32 %v1477, %v1486
        %v1491 = vmul.f32 %v1465, %v1265
        %v1492 = vmul.f32 %v1465, %v1266
        %1495 = vrot.lane.b32.xlu0 %v1491, 126
        %v1496 = vpop.permute.xlu0 %1495
        %1497 = vrot.lane.b32.xlu0 %v1492, 126
        %v1498 = vpop.permute.xlu0 %1497
        %v1501 = vadd.f32 %v1409, %v1496
        %v1502 = vadd.f32 %v1410, %v1498
        %v1503 = vmul.f32 %v1478, %v1263
        %v1504 = vmul.f32 %v1478, %v1264
        %1507 = vrot.lane.b32.xlu0 %v1503, 126
        %v1508 = vpop.permute.xlu0 %1507
        %1509 = vrot.lane.b32.xlu0 %v1504, 126
        %v1510 = vpop.permute.xlu0 %1509
        %v1513 = vadd.f32 %v1501, %v1508
        %v1514 = vadd.f32 %v1502, %v1510
        %v1515 = vld [vmem:[%s489 + $0x1] sm:$0xff]
        %v1516 = vld [vmem:[%s489 + $0x9] sm:$0xff]
        %v1517 = vld [vmem:[%s500 + $0x1] sm:$0xff]
        %v1518 = vld [vmem:[%s500 + $0x9] sm:$0xff]
        %s1519 = sld [smem:[#allocation10 + $0xc]]
        %s1520 = sld [smem:[#allocation11 + $0xc]]
        %v1521 = vstv %s1519
        %v1522 = vmul.f32 %v1521, %v1515
        %v1523 = vmul.f32 %v1521, %v1516
        %v1524 = vadd.f32 %v1437, %v1522
        %v1525 = vadd.f32 %v1438, %v1523
        %v1526 = vstv %s1520
        %v1527 = vmul.f32 %v1526, %v1517
        %v1528 = vmul.f32 %v1526, %v1518
        %v1529 = vsub.f32 %v1524, %v1527
        %v1530 = vsub.f32 %v1525, %v1528
        %v1531 = vmul.f32 %v1521, %v1517
        %v1532 = vmul.f32 %v1521, %v1518
        %v1533 = vadd.f32 %v1461, %v1531
        %v1534 = vadd.f32 %v1462, %v1532
        %v1535 = vmul.f32 %v1526, %v1515
        %v1536 = vmul.f32 %v1526, %v1516
        %v1537 = vadd.f32 %v1533, %v1535
        %v1538 = vadd.f32 %v1534, %v1536
        %s1539 = sld [smem:[#allocation10 + $0x1e]]
        %s1540 = sld [smem:[#allocation11 + $0x1e]]
        %v1541 = vstv %s1539
        %v1542 = vmul.f32 %v1541, %v1515
        %v1543 = vmul.f32 %v1541, %v1516
        %v1544 = vadd.f32 %v1489, %v1542
        %v1545 = vadd.f32 %v1490, %v1543
        %v1546 = vstv %s1540
        %v1547 = vmul.f32 %v1546, %v1517
        %v1548 = vmul.f32 %v1546, %v1518
        %v1549 = vsub.f32 %v1544, %v1547
        %v1550 = vsub.f32 %v1545, %v1548
        %v1551 = vmul.f32 %v1541, %v1517
        %v1552 = vmul.f32 %v1541, %v1518
        %v1553 = vadd.f32 %v1513, %v1551
        %v1554 = vadd.f32 %v1514, %v1552
        %v1555 = vmul.f32 %v1546, %v1515
        %v1556 = vmul.f32 %v1546, %v1516
        %v1557 = vadd.f32 %v1553, %v1555
        %v1558 = vadd.f32 %v1554, %v1556
        %s1559 = sld [smem:[#allocation10 + $0xd]]
        %s1560 = sld [smem:[#allocation11 + $0xd]]
        %v1561 = vstv %s1559
        %v1562 = vmul.f32 %v1561, %v1515
        %v1563 = vmul.f32 %v1561, %v1516
        %1566 = vrot.lane.b32.xlu0 %v1562, 127
        %v1567 = vpop.permute.xlu0 %1566
        %1568 = vrot.lane.b32.xlu0 %v1563, 127
        %v1569 = vpop.permute.xlu0 %1568
        %v1572 = vadd.f32 %v1529, %v1567
        %v1573 = vadd.f32 %v1530, %v1569
        %v1574 = vstv %s1560
        %v1575 = vmul.f32 %v1574, %v1517
        %v1576 = vmul.f32 %v1574, %v1518
        %1579 = vrot.lane.b32.xlu0 %v1575, 127
        %v1580 = vpop.permute.xlu0 %1579
        %1581 = vrot.lane.b32.xlu0 %v1576, 127
        %v1582 = vpop.permute.xlu0 %1581
        %v1585 = vsub.f32 %v1572, %v1580
        %v1586 = vsub.f32 %v1573, %v1582
        %v1587 = vmul.f32 %v1561, %v1517
        %v1588 = vmul.f32 %v1561, %v1518
        %1591 = vrot.lane.b32.xlu0 %v1587, 127
        %v1592 = vpop.permute.xlu0 %1591
        %1593 = vrot.lane.b32.xlu0 %v1588, 127
        %v1594 = vpop.permute.xlu0 %1593
        %v1597 = vadd.f32 %v1537, %v1592
        %v1598 = vadd.f32 %v1538, %v1594
        %v1599 = vmul.f32 %v1574, %v1515
        %v1600 = vmul.f32 %v1574, %v1516
        %1603 = vrot.lane.b32.xlu0 %v1599, 127
        %v1604 = vpop.permute.xlu0 %1603
        %1605 = vrot.lane.b32.xlu0 %v1600, 127
        %v1606 = vpop.permute.xlu0 %1605
        %v1609 = vadd.f32 %v1597, %v1604
        %v1610 = vadd.f32 %v1598, %v1606
        %s1611 = sld [smem:[#allocation10 + $0x1f]]
        %s1612 = sld [smem:[#allocation11 + $0x1f]]
        %v1613 = vstv %s1611
        %v1614 = vmul.f32 %v1613, %v1515
        %v1615 = vmul.f32 %v1613, %v1516
        %1618 = vrot.lane.b32.xlu0 %v1614, 127
        %v1619 = vpop.permute.xlu0 %1618
        %1620 = vrot.lane.b32.xlu0 %v1615, 127
        %v1621 = vpop.permute.xlu0 %1620
        %v1624 = vadd.f32 %v1549, %v1619
        %v1625 = vadd.f32 %v1550, %v1621
        %v1626 = vstv %s1612
        %v1627 = vmul.f32 %v1626, %v1517
        %v1628 = vmul.f32 %v1626, %v1518
        %1631 = vrot.lane.b32.xlu0 %v1627, 127
        %v1632 = vpop.permute.xlu0 %1631
        %1633 = vrot.lane.b32.xlu0 %v1628, 127
        %v1634 = vpop.permute.xlu0 %1633
        %v1637 = vsub.f32 %v1624, %v1632
        %v1638 = vsub.f32 %v1625, %v1634
        %v1639 = vmul.f32 %v1613, %v1517
        %v1640 = vmul.f32 %v1613, %v1518
        %1643 = vrot.lane.b32.xlu0 %v1639, 127
        %v1644 = vpop.permute.xlu0 %1643
        %1645 = vrot.lane.b32.xlu0 %v1640, 127
        %v1646 = vpop.permute.xlu0 %1645
        %v1649 = vadd.f32 %v1557, %v1644
        %v1650 = vadd.f32 %v1558, %v1646
        %v1651 = vmul.f32 %v1626, %v1515
        %v1652 = vmul.f32 %v1626, %v1516
        %1655 = vrot.lane.b32.xlu0 %v1651, 127
        %v1656 = vpop.permute.xlu0 %1655
        %1657 = vrot.lane.b32.xlu0 %v1652, 127
        %v1658 = vpop.permute.xlu0 %1657
        %v1661 = vadd.f32 %v1649, %v1656
        %v1662 = vadd.f32 %v1650, %v1658
        %s1663 = sld [smem:[#allocation10 + $0xe]]
        %s1664 = sld [smem:[#allocation11 + $0xe]]
        %v1665 = vstv %s1663
        %v1666 = vmul.f32 %v1665, %v1515
        %v1667 = vmul.f32 %v1665, %v1516
        %1670 = vrot.lane.b32.xlu0 %v1666, 126
        %v1671 = vpop.permute.xlu0 %1670
        %1672 = vrot.lane.b32.xlu0 %v1667, 126
        %v1673 = vpop.permute.xlu0 %1672
        %v1676 = vadd.f32 %v1585, %v1671
        %v1677 = vadd.f32 %v1586, %v1673
        %v1678 = vstv %s1664
        %v1679 = vmul.f32 %v1678, %v1517
        %v1680 = vmul.f32 %v1678, %v1518
        %1683 = vrot.lane.b32.xlu0 %v1679, 126
        %v1684 = vpop.permute.xlu0 %1683
        %1685 = vrot.lane.b32.xlu0 %v1680, 126
        %v1686 = vpop.permute.xlu0 %1685
        %v1689 = vsub.f32 %v1676, %v1684
        %v1690 = vsub.f32 %v1677, %v1686
        %v1691 = vmul.f32 %v1665, %v1517
        %v1692 = vmul.f32 %v1665, %v1518
        %1695 = vrot.lane.b32.xlu0 %v1691, 126
        %v1696 = vpop.permute.xlu0 %1695
        %1697 = vrot.lane.b32.xlu0 %v1692, 126
        %v1698 = vpop.permute.xlu0 %1697
        %v1701 = vadd.f32 %v1609, %v1696
        %v1702 = vadd.f32 %v1610, %v1698
        %v1703 = vmul.f32 %v1678, %v1515
        %v1704 = vmul.f32 %v1678, %v1516
        %1707 = vrot.lane.b32.xlu0 %v1703, 126
        %v1708 = vpop.permute.xlu0 %1707
        %1709 = vrot.lane.b32.xlu0 %v1704, 126
        %v1710 = vpop.permute.xlu0 %1709
        %v1713 = vadd.f32 %v1701, %v1708
        %v1714 = vadd.f32 %v1702, %v1710
        %s1715 = sld [smem:[#allocation10 + $0x20]]
        %s1716 = sld [smem:[#allocation11 + $0x20]]
        %v1717 = vstv %s1715
        %v1718 = vmul.f32 %v1717, %v1515
        %v1719 = vmul.f32 %v1717, %v1516
        %1722 = vrot.lane.b32.xlu0 %v1718, 126
        %v1723 = vpop.permute.xlu0 %1722
        %1724 = vrot.lane.b32.xlu0 %v1719, 126
        %v1725 = vpop.permute.xlu0 %1724
        %v1728 = vadd.f32 %v1637, %v1723
        %v1729 = vadd.f32 %v1638, %v1725
        %v1730 = vstv %s1716
        %v1731 = vmul.f32 %v1730, %v1517
        %v1732 = vmul.f32 %v1730, %v1518
        %1735 = vrot.lane.b32.xlu0 %v1731, 126
        %v1736 = vpop.permute.xlu0 %1735
        %1737 = vrot.lane.b32.xlu0 %v1732, 126
        %v1738 = vpop.permute.xlu0 %1737
        %v1741 = vsub.f32 %v1728, %v1736
        %v1742 = vsub.f32 %v1729, %v1738
        %v1743 = vmul.f32 %v1717, %v1517
        %v1744 = vmul.f32 %v1717, %v1518
        %1747 = vrot.lane.b32.xlu0 %v1743, 126
        %v1748 = vpop.permute.xlu0 %1747
        %1749 = vrot.lane.b32.xlu0 %v1744, 126
        %v1750 = vpop.permute.xlu0 %1749
        %v1753 = vadd.f32 %v1661, %v1748
        %v1754 = vadd.f32 %v1662, %v1750
        %v1755 = vmul.f32 %v1730, %v1515
        %v1756 = vmul.f32 %v1730, %v1516
        %1759 = vrot.lane.b32.xlu0 %v1755, 126
        %v1760 = vpop.permute.xlu0 %1759
        %1761 = vrot.lane.b32.xlu0 %v1756, 126
        %v1762 = vpop.permute.xlu0 %1761
        %v1765 = vadd.f32 %v1753, %v1760
        %v1766 = vadd.f32 %v1754, %v1762
        %v1767 = vld [vmem:[%s489 + $0x2] sm:$0xff]
        %v1768 = vld [vmem:[%s489 + $0xa] sm:$0xff]
        %v1769 = vld [vmem:[%s500 + $0x2] sm:$0xff]
        %v1770 = vld [vmem:[%s500 + $0xa] sm:$0xff]
        %s1771 = sld [smem:[#allocation10 + $0xf]]
        %s1772 = sld [smem:[#allocation11 + $0xf]]
        %v1773 = vstv %s1771
        %v1774 = vmul.f32 %v1773, %v1767
        %v1775 = vmul.f32 %v1773, %v1768
        %v1776 = vadd.f32 %v1689, %v1774
        %v1777 = vadd.f32 %v1690, %v1775
        %v1778 = vstv %s1772
        %v1779 = vmul.f32 %v1778, %v1769
        %v1780 = vmul.f32 %v1778, %v1770
        %v1781 = vsub.f32 %v1776, %v1779
        %v1782 = vsub.f32 %v1777, %v1780
        %v1783 = vmul.f32 %v1773, %v1769
        %v1784 = vmul.f32 %v1773, %v1770
        %v1785 = vadd.f32 %v1713, %v1783
        %v1786 = vadd.f32 %v1714, %v1784
        %v1787 = vmul.f32 %v1778, %v1767
        %v1788 = vmul.f32 %v1778, %v1768
        %v1789 = vadd.f32 %v1785, %v1787
        %v1790 = vadd.f32 %v1786, %v1788
        %s1791 = sld [smem:[#allocation10 + $0x21]]
        %s1792 = sld [smem:[#allocation11 + $0x21]]
        %v1793 = vstv %s1791
        %v1794 = vmul.f32 %v1793, %v1767
        %v1795 = vmul.f32 %v1793, %v1768
        %v1796 = vadd.f32 %v1741, %v1794
        %v1797 = vadd.f32 %v1742, %v1795
        %v1798 = vstv %s1792
        %v1799 = vmul.f32 %v1798, %v1769
        %v1800 = vmul.f32 %v1798, %v1770
        %v1801 = vsub.f32 %v1796, %v1799
        %v1802 = vsub.f32 %v1797, %v1800
        %v1803 = vmul.f32 %v1793, %v1769
        %v1804 = vmul.f32 %v1793, %v1770
        %v1805 = vadd.f32 %v1765, %v1803
        %v1806 = vadd.f32 %v1766, %v1804
        %v1807 = vmul.f32 %v1798, %v1767
        %v1808 = vmul.f32 %v1798, %v1768
        %v1809 = vadd.f32 %v1805, %v1807
        %v1810 = vadd.f32 %v1806, %v1808
        %s1811 = sld [smem:[#allocation10 + $0x10]]
        %s1812 = sld [smem:[#allocation11 + $0x10]]
        %v1813 = vstv %s1811
        %v1814 = vmul.f32 %v1813, %v1767
        %v1815 = vmul.f32 %v1813, %v1768
        %1818 = vrot.lane.b32.xlu0 %v1814, 127
        %v1819 = vpop.permute.xlu0 %1818
        %1820 = vrot.lane.b32.xlu0 %v1815, 127
        %v1821 = vpop.permute.xlu0 %1820
        %v1824 = vadd.f32 %v1781, %v1819
        %v1825 = vadd.f32 %v1782, %v1821
        %v1826 = vstv %s1812
        %v1827 = vmul.f32 %v1826, %v1769
        %v1828 = vmul.f32 %v1826, %v1770
        %1831 = vrot.lane.b32.xlu0 %v1827, 127
        %v1832 = vpop.permute.xlu0 %1831
        %1833 = vrot.lane.b32.xlu0 %v1828, 127
        %v1834 = vpop.permute.xlu0 %1833
        %v1837 = vsub.f32 %v1824, %v1832
        %v1838 = vsub.f32 %v1825, %v1834
        %v1839 = vmul.f32 %v1813, %v1769
        %v1840 = vmul.f32 %v1813, %v1770
        %1843 = vrot.lane.b32.xlu0 %v1839, 127
        %v1844 = vpop.permute.xlu0 %1843
        %1845 = vrot.lane.b32.xlu0 %v1840, 127
        %v1846 = vpop.permute.xlu0 %1845
        %v1849 = vadd.f32 %v1789, %v1844
        %v1850 = vadd.f32 %v1790, %v1846
        %v1851 = vmul.f32 %v1826, %v1767
        %v1852 = vmul.f32 %v1826, %v1768
        %1855 = vrot.lane.b32.xlu0 %v1851, 127
        %v1856 = vpop.permute.xlu0 %1855
        %1857 = vrot.lane.b32.xlu0 %v1852, 127
        %v1858 = vpop.permute.xlu0 %1857
        %v1861 = vadd.f32 %v1849, %v1856
        %v1862 = vadd.f32 %v1850, %v1858
        %s1863 = sld [smem:[#allocation10 + $0x22]]
        %s1864 = sld [smem:[#allocation11 + $0x22]]
        %v1865 = vstv %s1863
        %v1866 = vmul.f32 %v1865, %v1767
        %v1867 = vmul.f32 %v1865, %v1768
        %1870 = vrot.lane.b32.xlu0 %v1866, 127
        %v1871 = vpop.permute.xlu0 %1870
        %1872 = vrot.lane.b32.xlu0 %v1867, 127
        %v1873 = vpop.permute.xlu0 %1872
        %v1876 = vadd.f32 %v1801, %v1871
        %v1877 = vadd.f32 %v1802, %v1873
        %v1878 = vstv %s1864
        %v1879 = vmul.f32 %v1878, %v1769
        %v1880 = vmul.f32 %v1878, %v1770
        %1883 = vrot.lane.b32.xlu0 %v1879, 127
        %v1884 = vpop.permute.xlu0 %1883
        %1885 = vrot.lane.b32.xlu0 %v1880, 127
        %v1886 = vpop.permute.xlu0 %1885
        %v1889 = vsub.f32 %v1876, %v1884
        %v1890 = vsub.f32 %v1877, %v1886
        %v1891 = vmul.f32 %v1865, %v1769
        %v1892 = vmul.f32 %v1865, %v1770
        %1895 = vrot.lane.b32.xlu0 %v1891, 127
        %v1896 = vpop.permute.xlu0 %1895
        %1897 = vrot.lane.b32.xlu0 %v1892, 127
        %v1898 = vpop.permute.xlu0 %1897
        %v1901 = vadd.f32 %v1809, %v1896
        %v1902 = vadd.f32 %v1810, %v1898
        %v1903 = vmul.f32 %v1878, %v1767
        %v1904 = vmul.f32 %v1878, %v1768
        %1907 = vrot.lane.b32.xlu0 %v1903, 127
        %v1908 = vpop.permute.xlu0 %1907
        %1909 = vrot.lane.b32.xlu0 %v1904, 127
        %v1910 = vpop.permute.xlu0 %1909
        %v1913 = vadd.f32 %v1901, %v1908
        %v1914 = vadd.f32 %v1902, %v1910
        %s1915 = sld [smem:[#allocation10 + $0x11]]
        %s1916 = sld [smem:[#allocation11 + $0x11]]
        %v1917 = vstv %s1915
        %v1918 = vmul.f32 %v1917, %v1767
        %v1919 = vmul.f32 %v1917, %v1768
        %1922 = vrot.lane.b32.xlu0 %v1918, 126
        %v1923 = vpop.permute.xlu0 %1922
        %1924 = vrot.lane.b32.xlu0 %v1919, 126
        %v1925 = vpop.permute.xlu0 %1924
        %v1928 = vadd.f32 %v1837, %v1923
        %v1929 = vadd.f32 %v1838, %v1925
        %v1930 = vstv %s1916
        %v1931 = vmul.f32 %v1930, %v1769
        %v1932 = vmul.f32 %v1930, %v1770
        %1935 = vrot.lane.b32.xlu0 %v1931, 126
        %v1936 = vpop.permute.xlu0 %1935
        %1937 = vrot.lane.b32.xlu0 %v1932, 126
        %v1938 = vpop.permute.xlu0 %1937
        %v1941 = vsub.f32 %v1928, %v1936
        %v1942 = vsub.f32 %v1929, %v1938
        %v1943 = vmul.f32 %v1917, %v1769
        %v1944 = vmul.f32 %v1917, %v1770
        %1947 = vrot.lane.b32.xlu0 %v1943, 126
        %v1948 = vpop.permute.xlu0 %1947
        %1949 = vrot.lane.b32.xlu0 %v1944, 126
        %v1950 = vpop.permute.xlu0 %1949
        %v1953 = vadd.f32 %v1861, %v1948
        %v1954 = vadd.f32 %v1862, %v1950
        %v1955 = vmul.f32 %v1930, %v1767
        %v1956 = vmul.f32 %v1930, %v1768
        %1959 = vrot.lane.b32.xlu0 %v1955, 126
        %v1960 = vpop.permute.xlu0 %1959
        %1961 = vrot.lane.b32.xlu0 %v1956, 126
        %v1962 = vpop.permute.xlu0 %1961
        %v1965 = vadd.f32 %v1953, %v1960
        %v1966 = vadd.f32 %v1954, %v1962
        %s1967 = sld [smem:[#allocation10 + $0x23]]
        %s1968 = sld [smem:[#allocation11 + $0x23]]
        %v1969 = vstv %s1967
        %v1970 = vmul.f32 %v1969, %v1767
        %v1971 = vmul.f32 %v1969, %v1768
        %1974 = vrot.lane.b32.xlu0 %v1970, 126
        %v1975 = vpop.permute.xlu0 %1974
        %1976 = vrot.lane.b32.xlu0 %v1971, 126
        %v1977 = vpop.permute.xlu0 %1976
        %v1980 = vadd.f32 %v1889, %v1975
        %v1981 = vadd.f32 %v1890, %v1977
        %v1982 = vstv %s1968
        %v1983 = vmul.f32 %v1982, %v1769
        %v1984 = vmul.f32 %v1982, %v1770
        %1987 = vrot.lane.b32.xlu0 %v1983, 126
        %v1988 = vpop.permute.xlu0 %1987
        %1989 = vrot.lane.b32.xlu0 %v1984, 126
        %v1990 = vpop.permute.xlu0 %1989
        %v1993 = vsub.f32 %v1980, %v1988
        %v1994 = vsub.f32 %v1981, %v1990
        %v1995 = vmul.f32 %v1969, %v1769
        %v1996 = vmul.f32 %v1969, %v1770
        %1999 = vrot.lane.b32.xlu0 %v1995, 126
        %v2000 = vpop.permute.xlu0 %1999
        %2001 = vrot.lane.b32.xlu0 %v1996, 126
        %v2002 = vpop.permute.xlu0 %2001
        %v2005 = vadd.f32 %v1913, %v2000
        %v2006 = vadd.f32 %v1914, %v2002
        %v2007 = vmul.f32 %v1982, %v1767
        %v2008 = vmul.f32 %v1982, %v1768
        %2011 = vrot.lane.b32.xlu0 %v2007, 126
        %v2012 = vpop.permute.xlu0 %2011
        %2013 = vrot.lane.b32.xlu0 %v2008, 126
        %v2014 = vpop.permute.xlu0 %2013
        %v2017 = vadd.f32 %v2005, %v2012
        %v2018 = vadd.f32 %v2006, %v2014
        %2021 = vrot.lane.b32.xlu0 %v1941, 1
        %v2022 = vpop.permute.xlu0 %2021
        %2023 = vrot.lane.b32.xlu0 %v1942, 1
        %v2024 = vpop.permute.xlu0 %2023
        %2027 = vst.msk [vmem:[#allocation2 + $0x1] sm:$0xff] %vm468, %v2022
        %2028 = vst.msk [vmem:[#allocation2 + $0x9] sm:$0xff] %vm468, %v2024
        %2031 = vrot.lane.b32.xlu0 %v1965, 1
        %v2032 = vpop.permute.xlu0 %2031
        %2033 = vrot.lane.b32.xlu0 %v1966, 1
        %v2034 = vpop.permute.xlu0 %2033
        %2037 = vst.msk [vmem:[#allocation3 + $0x1] sm:$0xff] %vm468, %v2032
        %2038 = vst.msk [vmem:[#allocation3 + $0x9] sm:$0xff] %vm468, %v2034
        %2041 = vrot.lane.b32.xlu0 %v1993, 1
        %v2042 = vpop.permute.xlu0 %2041
        %2043 = vrot.lane.b32.xlu0 %v1994, 1
        %v2044 = vpop.permute.xlu0 %2043
        %2047 = vst.msk [vmem:[%s489 + $0x1] sm:$0xff] %vm468, %v2042
        %2048 = vst.msk [vmem:[%s489 + $0x9] sm:$0xff] %vm468, %v2044
        %2051 = vrot.lane.b32.xlu0 %v2017, 1
        %v2052 = vpop.permute.xlu0 %2051
        %2053 = vrot.lane.b32.xlu0 %v2018, 1
        %v2054 = vpop.permute.xlu0 %2053
        %2057 = vst.msk [vmem:[%s500 + $0x1] sm:$0xff] %vm468, %v2052
        %2058 = vst.msk [vmem:[%s500 + $0x9] sm:$0xff] %vm468, %v2054
        %v2059 = vld [vmem:[#allocation2] sm:$0xff]
        %v2060 = vld [vmem:[#allocation2 + $0x8] sm:$0xff]
        %v2061 = vld [vmem:[#allocation3] sm:$0xff]
        %v2062 = vld [vmem:[#allocation3 + $0x8] sm:$0xff]
        %s2063 = sld [smem:[#allocation10]]
        %s2064 = sld [smem:[#allocation11]]
        %v2065 = vstv %s2063
        %v2066 = vmul.f32 %v2065, %v2059
        %v2067 = vmul.f32 %v2065, %v2060
        %v2068 = vadd.f32 %v503, %v2066
        %v2069 = vadd.f32 %v503, %v2067
        %v2070 = vstv %s2064
        %v2071 = vmul.f32 %v2070, %v2061
        %v2072 = vmul.f32 %v2070, %v2062
        %v2073 = vsub.f32 %v2068, %v2071
        %v2074 = vsub.f32 %v2069, %v2072
        %v2075 = vmul.f32 %v2065, %v2061
        %v2076 = vmul.f32 %v2065, %v2062
        %v2077 = vadd.f32 %v505, %v2075
        %v2078 = vadd.f32 %v505, %v2076
        %v2079 = vmul.f32 %v2070, %v2059
        %v2080 = vmul.f32 %v2070, %v2060
        %v2081 = vadd.f32 %v2077, %v2079
        %v2082 = vadd.f32 %v2078, %v2080
        %s2083 = sld [smem:[#allocation10 + $0x12]]
        %s2084 = sld [smem:[#allocation11 + $0x12]]
        %v2085 = vstv %s2083
        %v2086 = vmul.f32 %v2085, %v2059
        %v2087 = vmul.f32 %v2085, %v2060
        %v2088 = vadd.f32 %v504, %v2086
        %v2089 = vadd.f32 %v504, %v2087
        %v2090 = vstv %s2084
        %v2091 = vmul.f32 %v2090, %v2061
        %v2092 = vmul.f32 %v2090, %v2062
        %v2093 = vsub.f32 %v2088, %v2091
        %v2094 = vsub.f32 %v2089, %v2092
        %v2095 = vmul.f32 %v2085, %v2061
        %v2096 = vmul.f32 %v2085, %v2062
        %v2097 = vadd.f32 %v506, %v2095
        %v2098 = vadd.f32 %v506, %v2096
        %v2099 = vmul.f32 %v2090, %v2059
        %v2100 = vmul.f32 %v2090, %v2060
        %v2101 = vadd.f32 %v2097, %v2099
        %v2102 = vadd.f32 %v2098, %v2100
        %s2103 = sld [smem:[#allocation10 + $0x1]]
        %s2104 = sld [smem:[#allocation11 + $0x1]]
        %v2105 = vstv %s2103
        %v2106 = vmul.f32 %v2105, %v2059
        %v2107 = vmul.f32 %v2105, %v2060
        %2110 = vrot.lane.b32.xlu0 %v2106, 127
        %v2111 = vpop.permute.xlu0 %2110
        %2112 = vrot.lane.b32.xlu0 %v2107, 127
        %v2113 = vpop.permute.xlu0 %2112
        %v2116 = vadd.f32 %v2073, %v2111
        %v2117 = vadd.f32 %v2074, %v2113
        %v2118 = vstv %s2104
        %v2119 = vmul.f32 %v2118, %v2061
        %v2120 = vmul.f32 %v2118, %v2062
        %2123 = vrot.lane.b32.xlu0 %v2119, 127
        %v2124 = vpop.permute.xlu0 %2123
        %2125 = vrot.lane.b32.xlu0 %v2120, 127
        %v2126 = vpop.permute.xlu0 %2125
        %v2129 = vsub.f32 %v2116, %v2124
        %v2130 = vsub.f32 %v2117, %v2126
        %v2131 = vmul.f32 %v2105, %v2061
        %v2132 = vmul.f32 %v2105, %v2062
        %2135 = vrot.lane.b32.xlu0 %v2131, 127
        %v2136 = vpop.permute.xlu0 %2135
        %2137 = vrot.lane.b32.xlu0 %v2132, 127
        %v2138 = vpop.permute.xlu0 %2137
        %v2141 = vadd.f32 %v2081, %v2136
        %v2142 = vadd.f32 %v2082, %v2138
        %v2143 = vmul.f32 %v2118, %v2059
        %v2144 = vmul.f32 %v2118, %v2060
        %2147 = vrot.lane.b32.xlu0 %v2143, 127
        %v2148 = vpop.permute.xlu0 %2147
        %2149 = vrot.lane.b32.xlu0 %v2144, 127
        %v2150 = vpop.permute.xlu0 %2149
        %v2153 = vadd.f32 %v2141, %v2148
        %v2154 = vadd.f32 %v2142, %v2150
        %s2155 = sld [smem:[#allocation10 + $0x13]]
        %s2156 = sld [smem:[#allocation11 + $0x13]]
        %v2157 = vstv %s2155
        %v2158 = vmul.f32 %v2157, %v2059
        %v2159 = vmul.f32 %v2157, %v2060
        %2162 = vrot.lane.b32.xlu0 %v2158, 127
        %v2163 = vpop.permute.xlu0 %2162
        %2164 = vrot.lane.b32.xlu0 %v2159, 127
        %v2165 = vpop.permute.xlu0 %2164
        %v2168 = vadd.f32 %v2093, %v2163
        %v2169 = vadd.f32 %v2094, %v2165
        %v2170 = vstv %s2156
        %v2171 = vmul.f32 %v2170, %v2061
        %v2172 = vmul.f32 %v2170, %v2062
        %2175 = vrot.lane.b32.xlu0 %v2171, 127
        %v2176 = vpop.permute.xlu0 %2175
        %2177 = vrot.lane.b32.xlu0 %v2172, 127
        %v2178 = vpop.permute.xlu0 %2177
        %v2181 = vsub.f32 %v2168, %v2176
        %v2182 = vsub.f32 %v2169, %v2178
        %v2183 = vmul.f32 %v2157, %v2061
        %v2184 = vmul.f32 %v2157, %v2062
        %2187 = vrot.lane.b32.xlu0 %v2183, 127
        %v2188 = vpop.permute.xlu0 %2187
        %2189 = vrot.lane.b32.xlu0 %v2184, 127
        %v2190 = vpop.permute.xlu0 %2189
        %v2193 = vadd.f32 %v2101, %v2188
        %v2194 = vadd.f32 %v2102, %v2190
        %v2195 = vmul.f32 %v2170, %v2059
        %v2196 = vmul.f32 %v2170, %v2060
        %2199 = vrot.lane.b32.xlu0 %v2195, 127
        %v2200 = vpop.permute.xlu0 %2199
        %2201 = vrot.lane.b32.xlu0 %v2196, 127
        %v2202 = vpop.permute.xlu0 %2201
        %v2205 = vadd.f32 %v2193, %v2200
        %v2206 = vadd.f32 %v2194, %v2202
        %s2207 = sld [smem:[#allocation10 + $0x2]]
        %s2208 = sld [smem:[#allocation11 + $0x2]]
        %v2209 = vstv %s2207
        %v2210 = vmul.f32 %v2209, %v2059
        %v2211 = vmul.f32 %v2209, %v2060
        %2214 = vrot.lane.b32.xlu0 %v2210, 126
        %v2215 = vpop.permute.xlu0 %2214
        %2216 = vrot.lane.b32.xlu0 %v2211, 126
        %v2217 = vpop.permute.xlu0 %2216
        %v2220 = vadd.f32 %v2129, %v2215
        %v2221 = vadd.f32 %v2130, %v2217
        %v2222 = vstv %s2208
        %v2223 = vmul.f32 %v2222, %v2061
        %v2224 = vmul.f32 %v2222, %v2062
        %2227 = vrot.lane.b32.xlu0 %v2223, 126
        %v2228 = vpop.permute.xlu0 %2227
        %2229 = vrot.lane.b32.xlu0 %v2224, 126
        %v2230 = vpop.permute.xlu0 %2229
        %v2233 = vsub.f32 %v2220, %v2228
        %v2234 = vsub.f32 %v2221, %v2230
        %v2235 = vmul.f32 %v2209, %v2061
        %v2236 = vmul.f32 %v2209, %v2062
        %2239 = vrot.lane.b32.xlu0 %v2235, 126
        %v2240 = vpop.permute.xlu0 %2239
        %2241 = vrot.lane.b32.xlu0 %v2236, 126
        %v2242 = vpop.permute.xlu0 %2241
        %v2245 = vadd.f32 %v2153, %v2240
        %v2246 = vadd.f32 %v2154, %v2242
        %v2247 = vmul.f32 %v2222, %v2059
        %v2248 = vmul.f32 %v2222, %v2060
        %2251 = vrot.lane.b32.xlu0 %v2247, 126
        %v2252 = vpop.permute.xlu0 %2251
        %2253 = vrot.lane.b32.xlu0 %v2248, 126
        %v2254 = vpop.permute.xlu0 %2253
        %v2257 = vadd.f32 %v2245, %v2252
        %v2258 = vadd.f32 %v2246, %v2254
        %s2259 = sld [smem:[#allocation10 + $0x14]]
        %s2260 = sld [smem:[#allocation11 + $0x14]]
        %v2261 = vstv %s2259
        %v2262 = vmul.f32 %v2261, %v2059
        %v2263 = vmul.f32 %v2261, %v2060
        %2266 = vrot.lane.b32.xlu0 %v2262, 126
        %v2267 = vpop.permute.xlu0 %2266
        %2268 = vrot.lane.b32.xlu0 %v2263, 126
        %v2269 = vpop.permute.xlu0 %2268
        %v2272 = vadd.f32 %v2181, %v2267
        %v2273 = vadd.f32 %v2182, %v2269
        %v2274 = vstv %s2260
        %v2275 = vmul.f32 %v2274, %v2061
        %v2276 = vmul.f32 %v2274, %v2062
        %2279 = vrot.lane.b32.xlu0 %v2275, 126
        %v2280 = vpop.permute.xlu0 %2279
        %2281 = vrot.lane.b32.xlu0 %v2276, 126
        %v2282 = vpop.permute.xlu0 %2281
        %v2285 = vsub.f32 %v2272, %v2280
        %v2286 = vsub.f32 %v2273, %v2282
        %v2287 = vmul.f32 %v2261, %v2061
        %v2288 = vmul.f32 %v2261, %v2062
        %2291 = vrot.lane.b32.xlu0 %v2287, 126
        %v2292 = vpop.permute.xlu0 %2291
        %2293 = vrot.lane.b32.xlu0 %v2288, 126
        %v2294 = vpop.permute.xlu0 %2293
        %v2297 = vadd.f32 %v2205, %v2292
        %v2298 = vadd.f32 %v2206, %v2294
        %v2299 = vmul.f32 %v2274, %v2059
        %v2300 = vmul.f32 %v2274, %v2060
        %2303 = vrot.lane.b32.xlu0 %v2299, 126
        %v2304 = vpop.permute.xlu0 %2303
        %2305 = vrot.lane.b32.xlu0 %v2300, 126
        %v2306 = vpop.permute.xlu0 %2305
        %v2309 = vadd.f32 %v2297, %v2304
        %v2310 = vadd.f32 %v2298, %v2306
        %v2311 = vld [vmem:[#allocation2 + $0x1] sm:$0xff]
        %v2312 = vld [vmem:[#allocation2 + $0x9] sm:$0xff]
        %v2313 = vld [vmem:[#allocation3 + $0x1] sm:$0xff]
        %v2314 = vld [vmem:[#allocation3 + $0x9] sm:$0xff]
        %s2315 = sld [smem:[#allocation10 + $0x3]]
        %s2316 = sld [smem:[#allocation11 + $0x3]]
        %v2317 = vstv %s2315
        %v2318 = vmul.f32 %v2317, %v2311
        %v2319 = vmul.f32 %v2317, %v2312
        %v2320 = vadd.f32 %v2233, %v2318
        %v2321 = vadd.f32 %v2234, %v2319
        %v2322 = vstv %s2316
        %v2323 = vmul.f32 %v2322, %v2313
        %v2324 = vmul.f32 %v2322, %v2314
        %v2325 = vsub.f32 %v2320, %v2323
        %v2326 = vsub.f32 %v2321, %v2324
        %v2327 = vmul.f32 %v2317, %v2313
        %v2328 = vmul.f32 %v2317, %v2314
        %v2329 = vadd.f32 %v2257, %v2327
        %v2330 = vadd.f32 %v2258, %v2328
        %v2331 = vmul.f32 %v2322, %v2311
        %v2332 = vmul.f32 %v2322, %v2312
        %v2333 = vadd.f32 %v2329, %v2331
        %v2334 = vadd.f32 %v2330, %v2332
        %s2335 = sld [smem:[#allocation10 + $0x15]]
        %s2336 = sld [smem:[#allocation11 + $0x15]]
        %v2337 = vstv %s2335
        %v2338 = vmul.f32 %v2337, %v2311
        %v2339 = vmul.f32 %v2337, %v2312
        %v2340 = vadd.f32 %v2285, %v2338
        %v2341 = vadd.f32 %v2286, %v2339
        %v2342 = vstv %s2336
        %v2343 = vmul.f32 %v2342, %v2313
        %v2344 = vmul.f32 %v2342, %v2314
        %v2345 = vsub.f32 %v2340, %v2343
        %v2346 = vsub.f32 %v2341, %v2344
        %v2347 = vmul.f32 %v2337, %v2313
        %v2348 = vmul.f32 %v2337, %v2314
        %v2349 = vadd.f32 %v2309, %v2347
        %v2350 = vadd.f32 %v2310, %v2348
        %v2351 = vmul.f32 %v2342, %v2311
        %v2352 = vmul.f32 %v2342, %v2312
        %v2353 = vadd.f32 %v2349, %v2351
        %v2354 = vadd.f32 %v2350, %v2352
        %s2355 = sld [smem:[#allocation10 + $0x4]]
        %s2356 = sld [smem:[#allocation11 + $0x4]]
        %v2357 = vstv %s2355
        %v2358 = vmul.f32 %v2357, %v2311
        %v2359 = vmul.f32 %v2357, %v2312
        %2362 = vrot.lane.b32.xlu0 %v2358, 127
        %v2363 = vpop.permute.xlu0 %2362
        %2364 = vrot.lane.b32.xlu0 %v2359, 127
        %v2365 = vpop.permute.xlu0 %2364
        %v2368 = vadd.f32 %v2325, %v2363
        %v2369 = vadd.f32 %v2326, %v2365
        %v2370 = vstv %s2356
        %v2371 = vmul.f32 %v2370, %v2313
        %v2372 = vmul.f32 %v2370, %v2314
        %2375 = vrot.lane.b32.xlu0 %v2371, 127
        %v2376 = vpop.permute.xlu0 %2375
        %2377 = vrot.lane.b32.xlu0 %v2372, 127
        %v2378 = vpop.permute.xlu0 %2377
        %v2381 = vsub.f32 %v2368, %v2376
        %v2382 = vsub.f32 %v2369, %v2378
        %v2383 = vmul.f32 %v2357, %v2313
        %v2384 = vmul.f32 %v2357, %v2314
        %2387 = vrot.lane.b32.xlu0 %v2383, 127
        %v2388 = vpop.permute.xlu0 %2387
        %2389 = vrot.lane.b32.xlu0 %v2384, 127
        %v2390 = vpop.permute.xlu0 %2389
        %v2393 = vadd.f32 %v2333, %v2388
        %v2394 = vadd.f32 %v2334, %v2390
        %v2395 = vmul.f32 %v2370, %v2311
        %v2396 = vmul.f32 %v2370, %v2312
        %2399 = vrot.lane.b32.xlu0 %v2395, 127
        %v2400 = vpop.permute.xlu0 %2399
        %2401 = vrot.lane.b32.xlu0 %v2396, 127
        %v2402 = vpop.permute.xlu0 %2401
        %v2405 = vadd.f32 %v2393, %v2400
        %v2406 = vadd.f32 %v2394, %v2402
        %s2407 = sld [smem:[#allocation10 + $0x16]]
        %s2408 = sld [smem:[#allocation11 + $0x16]]
        %v2409 = vstv %s2407
        %v2410 = vmul.f32 %v2409, %v2311
        %v2411 = vmul.f32 %v2409, %v2312
        %2414 = vrot.lane.b32.xlu0 %v2410, 127
        %v2415 = vpop.permute.xlu0 %2414
        %2416 = vrot.lane.b32.xlu0 %v2411, 127
        %v2417 = vpop.permute.xlu0 %2416
        %v2420 = vadd.f32 %v2345, %v2415
        %v2421 = vadd.f32 %v2346, %v2417
        %v2422 = vstv %s2408
        %v2423 = vmul.f32 %v2422, %v2313
        %v2424 = vmul.f32 %v2422, %v2314
        %2427 = vrot.lane.b32.xlu0 %v2423, 127
        %v2428 = vpop.permute.xlu0 %2427
        %2429 = vrot.lane.b32.xlu0 %v2424, 127
        %v2430 = vpop.permute.xlu0 %2429
        %v2433 = vsub.f32 %v2420, %v2428
        %v2434 = vsub.f32 %v2421, %v2430
        %v2435 = vmul.f32 %v2409, %v2313
        %v2436 = vmul.f32 %v2409, %v2314
        %2439 = vrot.lane.b32.xlu0 %v2435, 127
        %v2440 = vpop.permute.xlu0 %2439
        %2441 = vrot.lane.b32.xlu0 %v2436, 127
        %v2442 = vpop.permute.xlu0 %2441
        %v2445 = vadd.f32 %v2353, %v2440
        %v2446 = vadd.f32 %v2354, %v2442
        %v2447 = vmul.f32 %v2422, %v2311
        %v2448 = vmul.f32 %v2422, %v2312
        %2451 = vrot.lane.b32.xlu0 %v2447, 127
        %v2452 = vpop.permute.xlu0 %2451
        %2453 = vrot.lane.b32.xlu0 %v2448, 127
        %v2454 = vpop.permute.xlu0 %2453
        %v2457 = vadd.f32 %v2445, %v2452
        %v2458 = vadd.f32 %v2446, %v2454
        %s2459 = sld [smem:[#allocation10 + $0x5]]
        %s2460 = sld [smem:[#allocation11 + $0x5]]
        %v2461 = vstv %s2459
        %v2462 = vmul.f32 %v2461, %v2311
        %v2463 = vmul.f32 %v2461, %v2312
        %2466 = vrot.lane.b32.xlu0 %v2462, 126
        %v2467 = vpop.permute.xlu0 %2466
        %2468 = vrot.lane.b32.xlu0 %v2463, 126
        %v2469 = vpop.permute.xlu0 %2468
        %v2472 = vadd.f32 %v2381, %v2467
        %v2473 = vadd.f32 %v2382, %v2469
        %v2474 = vstv %s2460
        %v2475 = vmul.f32 %v2474, %v2313
        %v2476 = vmul.f32 %v2474, %v2314
        %2479 = vrot.lane.b32.xlu0 %v2475, 126
        %v2480 = vpop.permute.xlu0 %2479
        %2481 = vrot.lane.b32.xlu0 %v2476, 126
        %v2482 = vpop.permute.xlu0 %2481
        %v2485 = vsub.f32 %v2472, %v2480
        %v2486 = vsub.f32 %v2473, %v2482
        %v2487 = vmul.f32 %v2461, %v2313
        %v2488 = vmul.f32 %v2461, %v2314
        %2491 = vrot.lane.b32.xlu0 %v2487, 126
        %v2492 = vpop.permute.xlu0 %2491
        %2493 = vrot.lane.b32.xlu0 %v2488, 126
        %v2494 = vpop.permute.xlu0 %2493
        %v2497 = vadd.f32 %v2405, %v2492
        %v2498 = vadd.f32 %v2406, %v2494
        %v2499 = vmul.f32 %v2474, %v2311
        %v2500 = vmul.f32 %v2474, %v2312
        %2503 = vrot.lane.b32.xlu0 %v2499, 126
        %v2504 = vpop.permute.xlu0 %2503
        %2505 = vrot.lane.b32.xlu0 %v2500, 126
        %v2506 = vpop.permute.xlu0 %2505
        %v2509 = vadd.f32 %v2497, %v2504
        %v2510 = vadd.f32 %v2498, %v2506
        %s2511 = sld [smem:[#allocation10 + $0x17]]
        %s2512 = sld [smem:[#allocation11 + $0x17]]
        %v2513 = vstv %s2511
        %v2514 = vmul.f32 %v2513, %v2311
        %v2515 = vmul.f32 %v2513, %v2312
        %2518 = vrot.lane.b32.xlu0 %v2514, 126
        %v2519 = vpop.permute.xlu0 %2518
        %2520 = vrot.lane.b32.xlu0 %v2515, 126
        %v2521 = vpop.permute.xlu0 %2520
        %v2524 = vadd.f32 %v2433, %v2519
        %v2525 = vadd.f32 %v2434, %v2521
        %v2526 = vstv %s2512
        %v2527 = vmul.f32 %v2526, %v2313
        %v2528 = vmul.f32 %v2526, %v2314
        %2531 = vrot.lane.b32.xlu0 %v2527, 126
        %v2532 = vpop.permute.xlu0 %2531
        %2533 = vrot.lane.b32.xlu0 %v2528, 126
        %v2534 = vpop.permute.xlu0 %2533
        %v2537 = vsub.f32 %v2524, %v2532
        %v2538 = vsub.f32 %v2525, %v2534
        %v2539 = vmul.f32 %v2513, %v2313
        %v2540 = vmul.f32 %v2513, %v2314
        %2543 = vrot.lane.b32.xlu0 %v2539, 126
        %v2544 = vpop.permute.xlu0 %2543
        %2545 = vrot.lane.b32.xlu0 %v2540, 126
        %v2546 = vpop.permute.xlu0 %2545
        %v2549 = vadd.f32 %v2457, %v2544
        %v2550 = vadd.f32 %v2458, %v2546
        %v2551 = vmul.f32 %v2526, %v2311
        %v2552 = vmul.f32 %v2526, %v2312
        %2555 = vrot.lane.b32.xlu0 %v2551, 126
        %v2556 = vpop.permute.xlu0 %2555
        %2557 = vrot.lane.b32.xlu0 %v2552, 126
        %v2558 = vpop.permute.xlu0 %2557
        %v2561 = vadd.f32 %v2549, %v2556
        %v2562 = vadd.f32 %v2550, %v2558
        %v2563 = vld [vmem:[#allocation2 + $0x2] sm:$0xff]
        %v2564 = vld [vmem:[#allocation2 + $0xa] sm:$0xff]
        %v2565 = vld [vmem:[#allocation3 + $0x2] sm:$0xff]
        %v2566 = vld [vmem:[#allocation3 + $0xa] sm:$0xff]
        %s2567 = sld [smem:[#allocation10 + $0x6]]
        %s2568 = sld [smem:[#allocation11 + $0x6]]
        %v2569 = vstv %s2567
        %v2570 = vmul.f32 %v2569, %v2563
        %v2571 = vmul.f32 %v2569, %v2564
        %v2572 = vadd.f32 %v2485, %v2570
        %v2573 = vadd.f32 %v2486, %v2571
        %v2574 = vstv %s2568
        %v2575 = vmul.f32 %v2574, %v2565
        %v2576 = vmul.f32 %v2574, %v2566
        %v2577 = vsub.f32 %v2572, %v2575
        %v2578 = vsub.f32 %v2573, %v2576
        %v2579 = vmul.f32 %v2569, %v2565
        %v2580 = vmul.f32 %v2569, %v2566
        %v2581 = vadd.f32 %v2509, %v2579
        %v2582 = vadd.f32 %v2510, %v2580
        %v2583 = vmul.f32 %v2574, %v2563
        %v2584 = vmul.f32 %v2574, %v2564
        %v2585 = vadd.f32 %v2581, %v2583
        %v2586 = vadd.f32 %v2582, %v2584
        %s2587 = sld [smem:[#allocation10 + $0x18]]
        %s2588 = sld [smem:[#allocation11 + $0x18]]
        %v2589 = vstv %s2587
        %v2590 = vmul.f32 %v2589, %v2563
        %v2591 = vmul.f32 %v2589, %v2564
        %v2592 = vadd.f32 %v2537, %v2590
        %v2593 = vadd.f32 %v2538, %v2591
        %v2594 = vstv %s2588
        %v2595 = vmul.f32 %v2594, %v2565
        %v2596 = vmul.f32 %v2594, %v2566
        %v2597 = vsub.f32 %v2592, %v2595
        %v2598 = vsub.f32 %v2593, %v2596
        %v2599 = vmul.f32 %v2589, %v2565
        %v2600 = vmul.f32 %v2589, %v2566
        %v2601 = vadd.f32 %v2561, %v2599
        %v2602 = vadd.f32 %v2562, %v2600
        %v2603 = vmul.f32 %v2594, %v2563
        %v2604 = vmul.f32 %v2594, %v2564
        %v2605 = vadd.f32 %v2601, %v2603
        %v2606 = vadd.f32 %v2602, %v2604
        %s2607 = sld [smem:[#allocation10 + $0x7]]
        %s2608 = sld [smem:[#allocation11 + $0x7]]
        %v2609 = vstv %s2607
        %v2610 = vmul.f32 %v2609, %v2563
        %v2611 = vmul.f32 %v2609, %v2564
        %2614 = vrot.lane.b32.xlu0 %v2610, 127
        %v2615 = vpop.permute.xlu0 %2614
        %2616 = vrot.lane.b32.xlu0 %v2611, 127
        %v2617 = vpop.permute.xlu0 %2616
        %v2620 = vadd.f32 %v2577, %v2615
        %v2621 = vadd.f32 %v2578, %v2617
        %v2622 = vstv %s2608
        %v2623 = vmul.f32 %v2622, %v2565
        %v2624 = vmul.f32 %v2622, %v2566
        %2627 = vrot.lane.b32.xlu0 %v2623, 127
        %v2628 = vpop.permute.xlu0 %2627
        %2629 = vrot.lane.b32.xlu0 %v2624, 127
        %v2630 = vpop.permute.xlu0 %2629
        %v2633 = vsub.f32 %v2620, %v2628
        %v2634 = vsub.f32 %v2621, %v2630
        %v2635 = vmul.f32 %v2609, %v2565
        %v2636 = vmul.f32 %v2609, %v2566
        %2639 = vrot.lane.b32.xlu0 %v2635, 127
        %v2640 = vpop.permute.xlu0 %2639
        %2641 = vrot.lane.b32.xlu0 %v2636, 127
        %v2642 = vpop.permute.xlu0 %2641
        %v2645 = vadd.f32 %v2585, %v2640
        %v2646 = vadd.f32 %v2586, %v2642
        %v2647 = vmul.f32 %v2622, %v2563
        %v2648 = vmul.f32 %v2622, %v2564
        %2651 = vrot.lane.b32.xlu0 %v2647, 127
        %v2652 = vpop.permute.xlu0 %2651
        %2653 = vrot.lane.b32.xlu0 %v2648, 127
        %v2654 = vpop.permute.xlu0 %2653
        %v2657 = vadd.f32 %v2645, %v2652
        %v2658 = vadd.f32 %v2646, %v2654
        %s2659 = sld [smem:[#allocation10 + $0x19]]
        %s2660 = sld [smem:[#allocation11 + $0x19]]
        %v2661 = vstv %s2659
        %v2662 = vmul.f32 %v2661, %v2563
        %v2663 = vmul.f32 %v2661, %v2564
        %2666 = vrot.lane.b32.xlu0 %v2662, 127
        %v2667 = vpop.permute.xlu0 %2666
        %2668 = vrot.lane.b32.xlu0 %v2663, 127
        %v2669 = vpop.permute.xlu0 %2668
        %v2672 = vadd.f32 %v2597, %v2667
        %v2673 = vadd.f32 %v2598, %v2669
        %v2674 = vstv %s2660
        %v2675 = vmul.f32 %v2674, %v2565
        %v2676 = vmul.f32 %v2674, %v2566
        %2679 = vrot.lane.b32.xlu0 %v2675, 127
        %v2680 = vpop.permute.xlu0 %2679
        %2681 = vrot.lane.b32.xlu0 %v2676, 127
        %v2682 = vpop.permute.xlu0 %2681
        %v2685 = vsub.f32 %v2672, %v2680
        %v2686 = vsub.f32 %v2673, %v2682
        %v2687 = vmul.f32 %v2661, %v2565
        %v2688 = vmul.f32 %v2661, %v2566
        %2691 = vrot.lane.b32.xlu0 %v2687, 127
        %v2692 = vpop.permute.xlu0 %2691
        %2693 = vrot.lane.b32.xlu0 %v2688, 127
        %v2694 = vpop.permute.xlu0 %2693
        %v2697 = vadd.f32 %v2605, %v2692
        %v2698 = vadd.f32 %v2606, %v2694
        %v2699 = vmul.f32 %v2674, %v2563
        %v2700 = vmul.f32 %v2674, %v2564
        %2703 = vrot.lane.b32.xlu0 %v2699, 127
        %v2704 = vpop.permute.xlu0 %2703
        %2705 = vrot.lane.b32.xlu0 %v2700, 127
        %v2706 = vpop.permute.xlu0 %2705
        %v2709 = vadd.f32 %v2697, %v2704
        %v2710 = vadd.f32 %v2698, %v2706
        %s2711 = sld [smem:[#allocation10 + $0x8]]
        %s2712 = sld [smem:[#allocation11 + $0x8]]
        %v2713 = vstv %s2711
        %v2714 = vmul.f32 %v2713, %v2563
        %v2715 = vmul.f32 %v2713, %v2564
        %2718 = vrot.lane.b32.xlu0 %v2714, 126
        %v2719 = vpop.permute.xlu0 %2718
        %2720 = vrot.lane.b32.xlu0 %v2715, 126
        %v2721 = vpop.permute.xlu0 %2720
        %v2724 = vadd.f32 %v2633, %v2719
        %v2725 = vadd.f32 %v2634, %v2721
        %v2726 = vstv %s2712
        %v2727 = vmul.f32 %v2726, %v2565
        %v2728 = vmul.f32 %v2726, %v2566
        %2731 = vrot.lane.b32.xlu0 %v2727, 126
        %v2732 = vpop.permute.xlu0 %2731
        %2733 = vrot.lane.b32.xlu0 %v2728, 126
        %v2734 = vpop.permute.xlu0 %2733
        %v2737 = vsub.f32 %v2724, %v2732
        %v2738 = vsub.f32 %v2725, %v2734
        %v2739 = vmul.f32 %v2713, %v2565
        %v2740 = vmul.f32 %v2713, %v2566
        %2743 = vrot.lane.b32.xlu0 %v2739, 126
        %v2744 = vpop.permute.xlu0 %2743
        %2745 = vrot.lane.b32.xlu0 %v2740, 126
        %v2746 = vpop.permute.xlu0 %2745
        %v2749 = vadd.f32 %v2657, %v2744
        %v2750 = vadd.f32 %v2658, %v2746
        %v2751 = vmul.f32 %v2726, %v2563
        %v2752 = vmul.f32 %v2726, %v2564
        %2755 = vrot.lane.b32.xlu0 %v2751, 126
        %v2756 = vpop.permute.xlu0 %2755
        %2757 = vrot.lane.b32.xlu0 %v2752, 126
        %v2758 = vpop.permute.xlu0 %2757
        %v2761 = vadd.f32 %v2749, %v2756
        %v2762 = vadd.f32 %v2750, %v2758
        %s2763 = sld [smem:[#allocation10 + $0x1a]]
        %s2764 = sld [smem:[#allocation11 + $0x1a]]
        %v2765 = vstv %s2763
        %v2766 = vmul.f32 %v2765, %v2563
        %v2767 = vmul.f32 %v2765, %v2564
        %2770 = vrot.lane.b32.xlu0 %v2766, 126
        %v2771 = vpop.permute.xlu0 %2770
        %2772 = vrot.lane.b32.xlu0 %v2767, 126
        %v2773 = vpop.permute.xlu0 %2772
        %v2776 = vadd.f32 %v2685, %v2771
        %v2777 = vadd.f32 %v2686, %v2773
        %v2778 = vstv %s2764
        %v2779 = vmul.f32 %v2778, %v2565
        %v2780 = vmul.f32 %v2778, %v2566
        %2783 = vrot.lane.b32.xlu0 %v2779, 126
        %v2784 = vpop.permute.xlu0 %2783
        %2785 = vrot.lane.b32.xlu0 %v2780, 126
        %v2786 = vpop.permute.xlu0 %2785
        %v2789 = vsub.f32 %v2776, %v2784
        %v2790 = vsub.f32 %v2777, %v2786
        %v2791 = vmul.f32 %v2765, %v2565
        %v2792 = vmul.f32 %v2765, %v2566
        %2795 = vrot.lane.b32.xlu0 %v2791, 126
        %v2796 = vpop.permute.xlu0 %2795
        %2797 = vrot.lane.b32.xlu0 %v2792, 126
        %v2798 = vpop.permute.xlu0 %2797
        %v2801 = vadd.f32 %v2709, %v2796
        %v2802 = vadd.f32 %v2710, %v2798
        %v2803 = vmul.f32 %v2778, %v2563
        %v2804 = vmul.f32 %v2778, %v2564
        %2807 = vrot.lane.b32.xlu0 %v2803, 126
        %v2808 = vpop.permute.xlu0 %2807
        %2809 = vrot.lane.b32.xlu0 %v2804, 126
        %v2810 = vpop.permute.xlu0 %2809
        %v2813 = vadd.f32 %v2801, %v2808
        %v2814 = vadd.f32 %v2802, %v2810
        %v2815 = vld [vmem:[%s489] sm:$0xff]
        %v2816 = vld [vmem:[%s489 + $0x8] sm:$0xff]
        %v2817 = vld [vmem:[%s500] sm:$0xff]
        %v2818 = vld [vmem:[%s500 + $0x8] sm:$0xff]
        %s2819 = sld [smem:[#allocation10 + $0x9]]
        %s2820 = sld [smem:[#allocation11 + $0x9]]
        %v2821 = vstv %s2819
        %v2822 = vmul.f32 %v2821, %v2815
        %v2823 = vmul.f32 %v2821, %v2816
        %v2824 = vadd.f32 %v2737, %v2822
        %v2825 = vadd.f32 %v2738, %v2823
        %v2826 = vstv %s2820
        %v2827 = vmul.f32 %v2826, %v2817
        %v2828 = vmul.f32 %v2826, %v2818
        %v2829 = vsub.f32 %v2824, %v2827
        %v2830 = vsub.f32 %v2825, %v2828
        %v2831 = vmul.f32 %v2821, %v2817
        %v2832 = vmul.f32 %v2821, %v2818
        %v2833 = vadd.f32 %v2761, %v2831
        %v2834 = vadd.f32 %v2762, %v2832
        %v2835 = vmul.f32 %v2826, %v2815
        %v2836 = vmul.f32 %v2826, %v2816
        %v2837 = vadd.f32 %v2833, %v2835
        %v2838 = vadd.f32 %v2834, %v2836
        %s2839 = sld [smem:[#allocation10 + $0x1b]]
        %s2840 = sld [smem:[#allocation11 + $0x1b]]
        %v2841 = vstv %s2839
        %v2842 = vmul.f32 %v2841, %v2815
        %v2843 = vmul.f32 %v2841, %v2816
        %v2844 = vadd.f32 %v2789, %v2842
        %v2845 = vadd.f32 %v2790, %v2843
        %v2846 = vstv %s2840
        %v2847 = vmul.f32 %v2846, %v2817
        %v2848 = vmul.f32 %v2846, %v2818
        %v2849 = vsub.f32 %v2844, %v2847
        %v2850 = vsub.f32 %v2845, %v2848
        %v2851 = vmul.f32 %v2841, %v2817
        %v2852 = vmul.f32 %v2841, %v2818
        %v2853 = vadd.f32 %v2813, %v2851
        %v2854 = vadd.f32 %v2814, %v2852
        %v2855 = vmul.f32 %v2846, %v2815
        %v2856 = vmul.f32 %v2846, %v2816
        %v2857 = vadd.f32 %v2853, %v2855
        %v2858 = vadd.f32 %v2854, %v2856
        %s2859 = sld [smem:[#allocation10 + $0xa]]
        %s2860 = sld [smem:[#allocation11 + $0xa]]
        %v2861 = vstv %s2859
        %v2862 = vmul.f32 %v2861, %v2815
        %v2863 = vmul.f32 %v2861, %v2816
        %2866 = vrot.lane.b32.xlu0 %v2862, 127
        %v2867 = vpop.permute.xlu0 %2866
        %2868 = vrot.lane.b32.xlu0 %v2863, 127
        %v2869 = vpop.permute.xlu0 %2868
        %v2872 = vadd.f32 %v2829, %v2867
        %v2873 = vadd.f32 %v2830, %v2869
        %v2874 = vstv %s2860
        %v2875 = vmul.f32 %v2874, %v2817
        %v2876 = vmul.f32 %v2874, %v2818
        %2879 = vrot.lane.b32.xlu0 %v2875, 127
        %v2880 = vpop.permute.xlu0 %2879
        %2881 = vrot.lane.b32.xlu0 %v2876, 127
        %v2882 = vpop.permute.xlu0 %2881
        %v2885 = vsub.f32 %v2872, %v2880
        %v2886 = vsub.f32 %v2873, %v2882
        %v2887 = vmul.f32 %v2861, %v2817
        %v2888 = vmul.f32 %v2861, %v2818
        %2891 = vrot.lane.b32.xlu0 %v2887, 127
        %v2892 = vpop.permute.xlu0 %2891
        %2893 = vrot.lane.b32.xlu0 %v2888, 127
        %v2894 = vpop.permute.xlu0 %2893
        %v2897 = vadd.f32 %v2837, %v2892
        %v2898 = vadd.f32 %v2838, %v2894
        %v2899 = vmul.f32 %v2874, %v2815
        %v2900 = vmul.f32 %v2874, %v2816
        %2903 = vrot.lane.b32.xlu0 %v2899, 127
        %v2904 = vpop.permute.xlu0 %2903
        %2905 = vrot.lane.b32.xlu0 %v2900, 127
        %v2906 = vpop.permute.xlu0 %2905
        %v2909 = vadd.f32 %v2897, %v2904
        %v2910 = vadd.f32 %v2898, %v2906
        %s2911 = sld [smem:[#allocation10 + $0x1c]]
        %s2912 = sld [smem:[#allocation11 + $0x1c]]
        %v2913 = vstv %s2911
        %v2914 = vmul.f32 %v2913, %v2815
        %v2915 = vmul.f32 %v2913, %v2816
        %2918 = vrot.lane.b32.xlu0 %v2914, 127
        %v2919 = vpop.permute.xlu0 %2918
        %2920 = vrot.lane.b32.xlu0 %v2915, 127
        %v2921 = vpop.permute.xlu0 %2920
        %v2924 = vadd.f32 %v2849, %v2919
        %v2925 = vadd.f32 %v2850, %v2921
        %v2926 = vstv %s2912
        %v2927 = vmul.f32 %v2926, %v2817
        %v2928 = vmul.f32 %v2926, %v2818
        %2931 = vrot.lane.b32.xlu0 %v2927, 127
        %v2932 = vpop.permute.xlu0 %2931
        %2933 = vrot.lane.b32.xlu0 %v2928, 127
        %v2934 = vpop.permute.xlu0 %2933
        %v2937 = vsub.f32 %v2924, %v2932
        %v2938 = vsub.f32 %v2925, %v2934
        %v2939 = vmul.f32 %v2913, %v2817
        %v2940 = vmul.f32 %v2913, %v2818
        %2943 = vrot.lane.b32.xlu0 %v2939, 127
        %v2944 = vpop.permute.xlu0 %2943
        %2945 = vrot.lane.b32.xlu0 %v2940, 127
        %v2946 = vpop.permute.xlu0 %2945
        %v2949 = vadd.f32 %v2857, %v2944
        %v2950 = vadd.f32 %v2858, %v2946
        %v2951 = vmul.f32 %v2926, %v2815
        %v2952 = vmul.f32 %v2926, %v2816
        %2955 = vrot.lane.b32.xlu0 %v2951, 127
        %v2956 = vpop.permute.xlu0 %2955
        %2957 = vrot.lane.b32.xlu0 %v2952, 127
        %v2958 = vpop.permute.xlu0 %2957
        %v2961 = vadd.f32 %v2949, %v2956
        %v2962 = vadd.f32 %v2950, %v2958
        %s2963 = sld [smem:[#allocation10 + $0xb]]
        %s2964 = sld [smem:[#allocation11 + $0xb]]
        %v2965 = vstv %s2963
        %v2966 = vmul.f32 %v2965, %v2815
        %v2967 = vmul.f32 %v2965, %v2816
        %2970 = vrot.lane.b32.xlu0 %v2966, 126
        %v2971 = vpop.permute.xlu0 %2970
        %2972 = vrot.lane.b32.xlu0 %v2967, 126
        %v2973 = vpop.permute.xlu0 %2972
        %v2976 = vadd.f32 %v2885, %v2971
        %v2977 = vadd.f32 %v2886, %v2973
        %v2978 = vstv %s2964
        %v2979 = vmul.f32 %v2978, %v2817
        %v2980 = vmul.f32 %v2978, %v2818
        %2983 = vrot.lane.b32.xlu0 %v2979, 126
        %v2984 = vpop.permute.xlu0 %2983
        %2985 = vrot.lane.b32.xlu0 %v2980, 126
        %v2986 = vpop.permute.xlu0 %2985
        %v2989 = vsub.f32 %v2976, %v2984
        %v2990 = vsub.f32 %v2977, %v2986
        %v2991 = vmul.f32 %v2965, %v2817
        %v2992 = vmul.f32 %v2965, %v2818
        %2995 = vrot.lane.b32.xlu0 %v2991, 126
        %v2996 = vpop.permute.xlu0 %2995
        %2997 = vrot.lane.b32.xlu0 %v2992, 126
        %v2998 = vpop.permute.xlu0 %2997
        %v3001 = vadd.f32 %v2909, %v2996
        %v3002 = vadd.f32 %v2910, %v2998
        %v3003 = vmul.f32 %v2978, %v2815
        %v3004 = vmul.f32 %v2978, %v2816
        %3007 = vrot.lane.b32.xlu0 %v3003, 126
        %v3008 = vpop.permute.xlu0 %3007
        %3009 = vrot.lane.b32.xlu0 %v3004, 126
        %v3010 = vpop.permute.xlu0 %3009
        %v3013 = vadd.f32 %v3001, %v3008
        %v3014 = vadd.f32 %v3002, %v3010
        %s3015 = sld [smem:[#allocation10 + $0x1d]]
        %s3016 = sld [smem:[#allocation11 + $0x1d]]
        %v3017 = vstv %s3015
        %v3018 = vmul.f32 %v3017, %v2815
        %v3019 = vmul.f32 %v3017, %v2816
        %3022 = vrot.lane.b32.xlu0 %v3018, 126
        %v3023 = vpop.permute.xlu0 %3022
        %3024 = vrot.lane.b32.xlu0 %v3019, 126
        %v3025 = vpop.permute.xlu0 %3024
        %v3028 = vadd.f32 %v2937, %v3023
        %v3029 = vadd.f32 %v2938, %v3025
        %v3030 = vstv %s3016
        %v3031 = vmul.f32 %v3030, %v2817
        %v3032 = vmul.f32 %v3030, %v2818
        %3035 = vrot.lane.b32.xlu0 %v3031, 126
        %v3036 = vpop.permute.xlu0 %3035
        %3037 = vrot.lane.b32.xlu0 %v3032, 126
        %v3038 = vpop.permute.xlu0 %3037
        %v3041 = vsub.f32 %v3028, %v3036
        %v3042 = vsub.f32 %v3029, %v3038
        %v3043 = vmul.f32 %v3017, %v2817
        %v3044 = vmul.f32 %v3017, %v2818
        %3047 = vrot.lane.b32.xlu0 %v3043, 126
        %v3048 = vpop.permute.xlu0 %3047
        %3049 = vrot.lane.b32.xlu0 %v3044, 126
        %v3050 = vpop.permute.xlu0 %3049
        %v3053 = vadd.f32 %v2961, %v3048
        %v3054 = vadd.f32 %v2962, %v3050
        %v3055 = vmul.f32 %v3030, %v2815
        %v3056 = vmul.f32 %v3030, %v2816
        %3059 = vrot.lane.b32.xlu0 %v3055, 126
        %v3060 = vpop.permute.xlu0 %3059
        %3061 = vrot.lane.b32.xlu0 %v3056, 126
        %v3062 = vpop.permute.xlu0 %3061
        %v3065 = vadd.f32 %v3053, %v3060
        %v3066 = vadd.f32 %v3054, %v3062
        %v3067 = vld [vmem:[%s489 + $0x1] sm:$0xff]
        %v3068 = vld [vmem:[%s489 + $0x9] sm:$0xff]
        %v3069 = vld [vmem:[%s500 + $0x1] sm:$0xff]
        %v3070 = vld [vmem:[%s500 + $0x9] sm:$0xff]
        %s3071 = sld [smem:[#allocation10 + $0xc]]
        %s3072 = sld [smem:[#allocation11 + $0xc]]
        %v3073 = vstv %s3071
        %v3074 = vmul.f32 %v3073, %v3067
        %v3075 = vmul.f32 %v3073, %v3068
        %v3076 = vadd.f32 %v2989, %v3074
        %v3077 = vadd.f32 %v2990, %v3075
        %v3078 = vstv %s3072
        %v3079 = vmul.f32 %v3078, %v3069
        %v3080 = vmul.f32 %v3078, %v3070
        %v3081 = vsub.f32 %v3076, %v3079
        %v3082 = vsub.f32 %v3077, %v3080
        %v3083 = vmul.f32 %v3073, %v3069
        %v3084 = vmul.f32 %v3073, %v3070
        %v3085 = vadd.f32 %v3013, %v3083
        %v3086 = vadd.f32 %v3014, %v3084
        %v3087 = vmul.f32 %v3078, %v3067
        %v3088 = vmul.f32 %v3078, %v3068
        %v3089 = vadd.f32 %v3085, %v3087
        %v3090 = vadd.f32 %v3086, %v3088
        %s3091 = sld [smem:[#allocation10 + $0x1e]]
        %s3092 = sld [smem:[#allocation11 + $0x1e]]
        %v3093 = vstv %s3091
        %v3094 = vmul.f32 %v3093, %v3067
        %v3095 = vmul.f32 %v3093, %v3068
        %v3096 = vadd.f32 %v3041, %v3094
        %v3097 = vadd.f32 %v3042, %v3095
        %v3098 = vstv %s3092
        %v3099 = vmul.f32 %v3098, %v3069
        %v3100 = vmul.f32 %v3098, %v3070
        %v3101 = vsub.f32 %v3096, %v3099
        %v3102 = vsub.f32 %v3097, %v3100
        %v3103 = vmul.f32 %v3093, %v3069
        %v3104 = vmul.f32 %v3093, %v3070
        %v3105 = vadd.f32 %v3065, %v3103
        %v3106 = vadd.f32 %v3066, %v3104
        %v3107 = vmul.f32 %v3098, %v3067
        %v3108 = vmul.f32 %v3098, %v3068
        %v3109 = vadd.f32 %v3105, %v3107
        %v3110 = vadd.f32 %v3106, %v3108
        %s3111 = sld [smem:[#allocation10 + $0xd]]
        %s3112 = sld [smem:[#allocation11 + $0xd]]
        %v3113 = vstv %s3111
        %v3114 = vmul.f32 %v3113, %v3067
        %v3115 = vmul.f32 %v3113, %v3068
        %3118 = vrot.lane.b32.xlu0 %v3114, 127
        %v3119 = vpop.permute.xlu0 %3118
        %3120 = vrot.lane.b32.xlu0 %v3115, 127
        %v3121 = vpop.permute.xlu0 %3120
        %v3124 = vadd.f32 %v3081, %v3119
        %v3125 = vadd.f32 %v3082, %v3121
        %v3126 = vstv %s3112
        %v3127 = vmul.f32 %v3126, %v3069
        %v3128 = vmul.f32 %v3126, %v3070
        %3131 = vrot.lane.b32.xlu0 %v3127, 127
        %v3132 = vpop.permute.xlu0 %3131
        %3133 = vrot.lane.b32.xlu0 %v3128, 127
        %v3134 = vpop.permute.xlu0 %3133
        %v3137 = vsub.f32 %v3124, %v3132
        %v3138 = vsub.f32 %v3125, %v3134
        %v3139 = vmul.f32 %v3113, %v3069
        %v3140 = vmul.f32 %v3113, %v3070
        %3143 = vrot.lane.b32.xlu0 %v3139, 127
        %v3144 = vpop.permute.xlu0 %3143
        %3145 = vrot.lane.b32.xlu0 %v3140, 127
        %v3146 = vpop.permute.xlu0 %3145
        %v3149 = vadd.f32 %v3089, %v3144
        %v3150 = vadd.f32 %v3090, %v3146
        %v3151 = vmul.f32 %v3126, %v3067
        %v3152 = vmul.f32 %v3126, %v3068
        %3155 = vrot.lane.b32.xlu0 %v3151, 127
        %v3156 = vpop.permute.xlu0 %3155
        %3157 = vrot.lane.b32.xlu0 %v3152, 127
        %v3158 = vpop.permute.xlu0 %3157
        %v3161 = vadd.f32 %v3149, %v3156
        %v3162 = vadd.f32 %v3150, %v3158
        %s3163 = sld [smem:[#allocation10 + $0x1f]]
        %s3164 = sld [smem:[#allocation11 + $0x1f]]
        %v3165 = vstv %s3163
        %v3166 = vmul.f32 %v3165, %v3067
        %v3167 = vmul.f32 %v3165, %v3068
        %3170 = vrot.lane.b32.xlu0 %v3166, 127
        %v3171 = vpop.permute.xlu0 %3170
        %3172 = vrot.lane.b32.xlu0 %v3167, 127
        %v3173 = vpop.permute.xlu0 %3172
        %v3176 = vadd.f32 %v3101, %v3171
        %v3177 = vadd.f32 %v3102, %v3173
        %v3178 = vstv %s3164
        %v3179 = vmul.f32 %v3178, %v3069
        %v3180 = vmul.f32 %v3178, %v3070
        %3183 = vrot.lane.b32.xlu0 %v3179, 127
        %v3184 = vpop.permute.xlu0 %3183
        %3185 = vrot.lane.b32.xlu0 %v3180, 127
        %v3186 = vpop.permute.xlu0 %3185
        %v3189 = vsub.f32 %v3176, %v3184
        %v3190 = vsub.f32 %v3177, %v3186
        %v3191 = vmul.f32 %v3165, %v3069
        %v3192 = vmul.f32 %v3165, %v3070
        %3195 = vrot.lane.b32.xlu0 %v3191, 127
        %v3196 = vpop.permute.xlu0 %3195
        %3197 = vrot.lane.b32.xlu0 %v3192, 127
        %v3198 = vpop.permute.xlu0 %3197
        %v3201 = vadd.f32 %v3109, %v3196
        %v3202 = vadd.f32 %v3110, %v3198
        %v3203 = vmul.f32 %v3178, %v3067
        %v3204 = vmul.f32 %v3178, %v3068
        %3207 = vrot.lane.b32.xlu0 %v3203, 127
        %v3208 = vpop.permute.xlu0 %3207
        %3209 = vrot.lane.b32.xlu0 %v3204, 127
        %v3210 = vpop.permute.xlu0 %3209
        %v3213 = vadd.f32 %v3201, %v3208
        %v3214 = vadd.f32 %v3202, %v3210
        %s3215 = sld [smem:[#allocation10 + $0xe]]
        %s3216 = sld [smem:[#allocation11 + $0xe]]
        %v3217 = vstv %s3215
        %v3218 = vmul.f32 %v3217, %v3067
        %v3219 = vmul.f32 %v3217, %v3068
        %3222 = vrot.lane.b32.xlu0 %v3218, 126
        %v3223 = vpop.permute.xlu0 %3222
        %3224 = vrot.lane.b32.xlu0 %v3219, 126
        %v3225 = vpop.permute.xlu0 %3224
        %v3228 = vadd.f32 %v3137, %v3223
        %v3229 = vadd.f32 %v3138, %v3225
        %v3230 = vstv %s3216
        %v3231 = vmul.f32 %v3230, %v3069
        %v3232 = vmul.f32 %v3230, %v3070
        %3235 = vrot.lane.b32.xlu0 %v3231, 126
        %v3236 = vpop.permute.xlu0 %3235
        %3237 = vrot.lane.b32.xlu0 %v3232, 126
        %v3238 = vpop.permute.xlu0 %3237
        %v3241 = vsub.f32 %v3228, %v3236
        %v3242 = vsub.f32 %v3229, %v3238
        %v3243 = vmul.f32 %v3217, %v3069
        %v3244 = vmul.f32 %v3217, %v3070
        %3247 = vrot.lane.b32.xlu0 %v3243, 126
        %v3248 = vpop.permute.xlu0 %3247
        %3249 = vrot.lane.b32.xlu0 %v3244, 126
        %v3250 = vpop.permute.xlu0 %3249
        %v3253 = vadd.f32 %v3161, %v3248
        %v3254 = vadd.f32 %v3162, %v3250
        %v3255 = vmul.f32 %v3230, %v3067
        %v3256 = vmul.f32 %v3230, %v3068
        %3259 = vrot.lane.b32.xlu0 %v3255, 126
        %v3260 = vpop.permute.xlu0 %3259
        %3261 = vrot.lane.b32.xlu0 %v3256, 126
        %v3262 = vpop.permute.xlu0 %3261
        %v3265 = vadd.f32 %v3253, %v3260
        %v3266 = vadd.f32 %v3254, %v3262
        %s3267 = sld [smem:[#allocation10 + $0x20]]
        %s3268 = sld [smem:[#allocation11 + $0x20]]
        %v3269 = vstv %s3267
        %v3270 = vmul.f32 %v3269, %v3067
        %v3271 = vmul.f32 %v3269, %v3068
        %3274 = vrot.lane.b32.xlu0 %v3270, 126
        %v3275 = vpop.permute.xlu0 %3274
        %3276 = vrot.lane.b32.xlu0 %v3271, 126
        %v3277 = vpop.permute.xlu0 %3276
        %v3280 = vadd.f32 %v3189, %v3275
        %v3281 = vadd.f32 %v3190, %v3277
        %v3282 = vstv %s3268
        %v3283 = vmul.f32 %v3282, %v3069
        %v3284 = vmul.f32 %v3282, %v3070
        %3287 = vrot.lane.b32.xlu0 %v3283, 126
        %v3288 = vpop.permute.xlu0 %3287
        %3289 = vrot.lane.b32.xlu0 %v3284, 126
        %v3290 = vpop.permute.xlu0 %3289
        %v3293 = vsub.f32 %v3280, %v3288
        %v3294 = vsub.f32 %v3281, %v3290
        %v3295 = vmul.f32 %v3269, %v3069
        %v3296 = vmul.f32 %v3269, %v3070
        %3299 = vrot.lane.b32.xlu0 %v3295, 126
        %v3300 = vpop.permute.xlu0 %3299
        %3301 = vrot.lane.b32.xlu0 %v3296, 126
        %v3302 = vpop.permute.xlu0 %3301
        %v3305 = vadd.f32 %v3213, %v3300
        %v3306 = vadd.f32 %v3214, %v3302
        %v3307 = vmul.f32 %v3282, %v3067
        %v3308 = vmul.f32 %v3282, %v3068
        %3311 = vrot.lane.b32.xlu0 %v3307, 126
        %v3312 = vpop.permute.xlu0 %3311
        %3313 = vrot.lane.b32.xlu0 %v3308, 126
        %v3314 = vpop.permute.xlu0 %3313
        %v3317 = vadd.f32 %v3305, %v3312
        %v3318 = vadd.f32 %v3306, %v3314
        %v3319 = vld [vmem:[%s489 + $0x2] sm:$0xff]
        %v3320 = vld [vmem:[%s489 + $0xa] sm:$0xff]
        %v3321 = vld [vmem:[%s500 + $0x2] sm:$0xff]
        %v3322 = vld [vmem:[%s500 + $0xa] sm:$0xff]
        %s3323 = sld [smem:[#allocation10 + $0xf]]
        %s3324 = sld [smem:[#allocation11 + $0xf]]
        %v3325 = vstv %s3323
        %v3326 = vmul.f32 %v3325, %v3319
        %v3327 = vmul.f32 %v3325, %v3320
        %v3328 = vadd.f32 %v3241, %v3326
        %v3329 = vadd.f32 %v3242, %v3327
        %v3330 = vstv %s3324
        %v3331 = vmul.f32 %v3330, %v3321
        %v3332 = vmul.f32 %v3330, %v3322
        %v3333 = vsub.f32 %v3328, %v3331
        %v3334 = vsub.f32 %v3329, %v3332
        %v3335 = vmul.f32 %v3325, %v3321
        %v3336 = vmul.f32 %v3325, %v3322
        %v3337 = vadd.f32 %v3265, %v3335
        %v3338 = vadd.f32 %v3266, %v3336
        %v3339 = vmul.f32 %v3330, %v3319
        %v3340 = vmul.f32 %v3330, %v3320
        %v3341 = vadd.f32 %v3337, %v3339
        %v3342 = vadd.f32 %v3338, %v3340
        %s3343 = sld [smem:[#allocation10 + $0x21]]
        %s3344 = sld [smem:[#allocation11 + $0x21]]
        %v3345 = vstv %s3343
        %v3346 = vmul.f32 %v3345, %v3319
        %v3347 = vmul.f32 %v3345, %v3320
        %v3348 = vadd.f32 %v3293, %v3346
        %v3349 = vadd.f32 %v3294, %v3347
        %v3350 = vstv %s3344
        %v3351 = vmul.f32 %v3350, %v3321
        %v3352 = vmul.f32 %v3350, %v3322
        %v3353 = vsub.f32 %v3348, %v3351
        %v3354 = vsub.f32 %v3349, %v3352
        %v3355 = vmul.f32 %v3345, %v3321
        %v3356 = vmul.f32 %v3345, %v3322
        %v3357 = vadd.f32 %v3317, %v3355
        %v3358 = vadd.f32 %v3318, %v3356
        %v3359 = vmul.f32 %v3350, %v3319
        %v3360 = vmul.f32 %v3350, %v3320
        %v3361 = vadd.f32 %v3357, %v3359
        %v3362 = vadd.f32 %v3358, %v3360
        %s3363 = sld [smem:[#allocation10 + $0x10]]
        %s3364 = sld [smem:[#allocation11 + $0x10]]
        %v3365 = vstv %s3363
        %v3366 = vmul.f32 %v3365, %v3319
        %v3367 = vmul.f32 %v3365, %v3320
        %3370 = vrot.lane.b32.xlu0 %v3366, 127
        %v3371 = vpop.permute.xlu0 %3370
        %3372 = vrot.lane.b32.xlu0 %v3367, 127
        %v3373 = vpop.permute.xlu0 %3372
        %v3376 = vadd.f32 %v3333, %v3371
        %v3377 = vadd.f32 %v3334, %v3373
        %v3378 = vstv %s3364
        %v3379 = vmul.f32 %v3378, %v3321
        %v3380 = vmul.f32 %v3378, %v3322
        %3383 = vrot.lane.b32.xlu0 %v3379, 127
        %v3384 = vpop.permute.xlu0 %3383
        %3385 = vrot.lane.b32.xlu0 %v3380, 127
        %v3386 = vpop.permute.xlu0 %3385
        %v3389 = vsub.f32 %v3376, %v3384
        %v3390 = vsub.f32 %v3377, %v3386
        %v3391 = vmul.f32 %v3365, %v3321
        %v3392 = vmul.f32 %v3365, %v3322
        %3395 = vrot.lane.b32.xlu0 %v3391, 127
        %v3396 = vpop.permute.xlu0 %3395
        %3397 = vrot.lane.b32.xlu0 %v3392, 127
        %v3398 = vpop.permute.xlu0 %3397
        %v3401 = vadd.f32 %v3341, %v3396
        %v3402 = vadd.f32 %v3342, %v3398
        %v3403 = vmul.f32 %v3378, %v3319
        %v3404 = vmul.f32 %v3378, %v3320
        %3407 = vrot.lane.b32.xlu0 %v3403, 127
        %v3408 = vpop.permute.xlu0 %3407
        %3409 = vrot.lane.b32.xlu0 %v3404, 127
        %v3410 = vpop.permute.xlu0 %3409
        %v3413 = vadd.f32 %v3401, %v3408
        %v3414 = vadd.f32 %v3402, %v3410
        %s3415 = sld [smem:[#allocation10 + $0x22]]
        %s3416 = sld [smem:[#allocation11 + $0x22]]
        %v3417 = vstv %s3415
        %v3418 = vmul.f32 %v3417, %v3319
        %v3419 = vmul.f32 %v3417, %v3320
        %3422 = vrot.lane.b32.xlu0 %v3418, 127
        %v3423 = vpop.permute.xlu0 %3422
        %3424 = vrot.lane.b32.xlu0 %v3419, 127
        %v3425 = vpop.permute.xlu0 %3424
        %v3428 = vadd.f32 %v3353, %v3423
        %v3429 = vadd.f32 %v3354, %v3425
        %v3430 = vstv %s3416
        %v3431 = vmul.f32 %v3430, %v3321
        %v3432 = vmul.f32 %v3430, %v3322
        %3435 = vrot.lane.b32.xlu0 %v3431, 127
        %v3436 = vpop.permute.xlu0 %3435
        %3437 = vrot.lane.b32.xlu0 %v3432, 127
        %v3438 = vpop.permute.xlu0 %3437
        %v3441 = vsub.f32 %v3428, %v3436
        %v3442 = vsub.f32 %v3429, %v3438
        %v3443 = vmul.f32 %v3417, %v3321
        %v3444 = vmul.f32 %v3417, %v3322
        %3447 = vrot.lane.b32.xlu0 %v3443, 127
        %v3448 = vpop.permute.xlu0 %3447
        %3449 = vrot.lane.b32.xlu0 %v3444, 127
        %v3450 = vpop.permute.xlu0 %3449
        %v3453 = vadd.f32 %v3361, %v3448
        %v3454 = vadd.f32 %v3362, %v3450
        %v3455 = vmul.f32 %v3430, %v3319
        %v3456 = vmul.f32 %v3430, %v3320
        %3459 = vrot.lane.b32.xlu0 %v3455, 127
        %v3460 = vpop.permute.xlu0 %3459
        %3461 = vrot.lane.b32.xlu0 %v3456, 127
        %v3462 = vpop.permute.xlu0 %3461
        %v3465 = vadd.f32 %v3453, %v3460
        %v3466 = vadd.f32 %v3454, %v3462
        %s3467 = sld [smem:[#allocation10 + $0x11]]
        %s3468 = sld [smem:[#allocation11 + $0x11]]
        %v3469 = vstv %s3467
        %v3470 = vmul.f32 %v3469, %v3319
        %v3471 = vmul.f32 %v3469, %v3320
        %3474 = vrot.lane.b32.xlu0 %v3470, 126
        %v3475 = vpop.permute.xlu0 %3474
        %3476 = vrot.lane.b32.xlu0 %v3471, 126
        %v3477 = vpop.permute.xlu0 %3476
        %v3480 = vadd.f32 %v3389, %v3475
        %v3481 = vadd.f32 %v3390, %v3477
        %v3482 = vstv %s3468
        %v3483 = vmul.f32 %v3482, %v3321
        %v3484 = vmul.f32 %v3482, %v3322
        %3487 = vrot.lane.b32.xlu0 %v3483, 126
        %v3488 = vpop.permute.xlu0 %3487
        %3489 = vrot.lane.b32.xlu0 %v3484, 126
        %v3490 = vpop.permute.xlu0 %3489
        %v3493 = vsub.f32 %v3480, %v3488
        %v3494 = vsub.f32 %v3481, %v3490
        %v3495 = vmul.f32 %v3469, %v3321
        %v3496 = vmul.f32 %v3469, %v3322
        %3499 = vrot.lane.b32.xlu0 %v3495, 126
        %v3500 = vpop.permute.xlu0 %3499
        %3501 = vrot.lane.b32.xlu0 %v3496, 126
        %v3502 = vpop.permute.xlu0 %3501
        %v3505 = vadd.f32 %v3413, %v3500
        %v3506 = vadd.f32 %v3414, %v3502
        %v3507 = vmul.f32 %v3482, %v3319
        %v3508 = vmul.f32 %v3482, %v3320
        %3511 = vrot.lane.b32.xlu0 %v3507, 126
        %v3512 = vpop.permute.xlu0 %3511
        %3513 = vrot.lane.b32.xlu0 %v3508, 126
        %v3514 = vpop.permute.xlu0 %3513
        %v3517 = vadd.f32 %v3505, %v3512
        %v3518 = vadd.f32 %v3506, %v3514
        %s3519 = sld [smem:[#allocation10 + $0x23]]
        %s3520 = sld [smem:[#allocation11 + $0x23]]
        %v3521 = vstv %s3519
        %v3522 = vmul.f32 %v3521, %v3319
        %v3523 = vmul.f32 %v3521, %v3320
        %3526 = vrot.lane.b32.xlu0 %v3522, 126
        %v3527 = vpop.permute.xlu0 %3526
        %3528 = vrot.lane.b32.xlu0 %v3523, 126
        %v3529 = vpop.permute.xlu0 %3528
        %v3532 = vadd.f32 %v3441, %v3527
        %v3533 = vadd.f32 %v3442, %v3529
        %v3534 = vstv %s3520
        %v3535 = vmul.f32 %v3534, %v3321
        %v3536 = vmul.f32 %v3534, %v3322
        %3539 = vrot.lane.b32.xlu0 %v3535, 126
        %v3540 = vpop.permute.xlu0 %3539
        %3541 = vrot.lane.b32.xlu0 %v3536, 126
        %v3542 = vpop.permute.xlu0 %3541
        %v3545 = vsub.f32 %v3532, %v3540
        %v3546 = vsub.f32 %v3533, %v3542
        %v3547 = vmul.f32 %v3521, %v3321
        %v3548 = vmul.f32 %v3521, %v3322
        %3551 = vrot.lane.b32.xlu0 %v3547, 126
        %v3552 = vpop.permute.xlu0 %3551
        %3553 = vrot.lane.b32.xlu0 %v3548, 126
        %v3554 = vpop.permute.xlu0 %3553
        %v3557 = vadd.f32 %v3465, %v3552
        %v3558 = vadd.f32 %v3466, %v3554
        %v3559 = vmul.f32 %v3534, %v3319
        %v3560 = vmul.f32 %v3534, %v3320
        %3563 = vrot.lane.b32.xlu0 %v3559, 126
        %v3564 = vpop.permute.xlu0 %3563
        %3565 = vrot.lane.b32.xlu0 %v3560, 126
        %v3566 = vpop.permute.xlu0 %3565
        %v3569 = vadd.f32 %v3557, %v3564
        %v3570 = vadd.f32 %v3558, %v3566
        %v3571 = vmax.f32 %v3493, 0.0
        %v3572 = vmax.f32 %v3494, 0.0
        %v3573 = vmax.f32 %v3545, 0.0
        %v3574 = vmax.f32 %v3546, 0.0
        %v3575 = vmax.f32 %v3517, 0.0
        %v3576 = vmax.f32 %v3518, 0.0
        %v3577 = vmax.f32 %v3569, 0.0
        %v3578 = vmax.f32 %v3570, 0.0
        %3581 = vrot.lane.b32.xlu0 %v3571, 1
        %v3582 = vpop.permute.xlu0 %3581
        %3583 = vrot.lane.b32.xlu0 %v3572, 1
        %v3584 = vpop.permute.xlu0 %3583
        %3587 = vst.msk [vmem:[#allocation2 + $0x1] sm:$0xff] %vm468, %v3582
        %3588 = vst.msk [vmem:[#allocation2 + $0x9] sm:$0xff] %vm468, %v3584
        %3591 = vrot.lane.b32.xlu0 %v3575, 1
        %v3592 = vpop.permute.xlu0 %3591
        %3593 = vrot.lane.b32.xlu0 %v3576, 1
        %v3594 = vpop.permute.xlu0 %3593
        %3597 = vst.msk [vmem:[#allocation3 + $0x1] sm:$0xff] %vm468, %v3592
        %3598 = vst.msk [vmem:[#allocation3 + $0x9] sm:$0xff] %vm468, %v3594
        %3601 = vrot.lane.b32.xlu0 %v3573, 1
        %v3602 = vpop.permute.xlu0 %3601
        %3603 = vrot.lane.b32.xlu0 %v3574, 1
        %v3604 = vpop.permute.xlu0 %3603
        %3607 = vst.msk [vmem:[%s489 + $0x1] sm:$0xff] %vm468, %v3602
        %3608 = vst.msk [vmem:[%s489 + $0x9] sm:$0xff] %vm468, %v3604
        %3611 = vrot.lane.b32.xlu0 %v3577, 1
        %v3612 = vpop.permute.xlu0 %3611
        %3613 = vrot.lane.b32.xlu0 %v3578, 1
        %v3614 = vpop.permute.xlu0 %3613
        %3617 = vst.msk [vmem:[%s500 + $0x1] sm:$0xff] %vm468, %v3612
        %3618 = vst.msk [vmem:[%s500 + $0x9] sm:$0xff] %vm468, %v3614
        %v3619 = vld [vmem:[#allocation2] sm:$0xff]
        %v3620 = vld [vmem:[#allocation2 + $0x8] sm:$0xff]
        %v3621 = vld [vmem:[#allocation3] sm:$0xff]
        %v3622 = vld [vmem:[#allocation3 + $0x8] sm:$0xff]
        %s3623 = sld [smem:[#allocation10]]
        %s3624 = sld [smem:[#allocation11]]
        %v3625 = vstv %s3623
        %v3626 = vmul.f32 %v3625, %v3619
        %v3627 = vmul.f32 %v3625, %v3620
        %v3628 = vadd.f32 %v503, %v3626
        %v3629 = vadd.f32 %v503, %v3627
        %v3630 = vstv %s3624
        %v3631 = vmul.f32 %v3630, %v3621
        %v3632 = vmul.f32 %v3630, %v3622
        %v3633 = vsub.f32 %v3628, %v3631
        %v3634 = vsub.f32 %v3629, %v3632
        %v3635 = vmul.f32 %v3625, %v3621
        %v3636 = vmul.f32 %v3625, %v3622
        %v3637 = vadd.f32 %v505, %v3635
        %v3638 = vadd.f32 %v505, %v3636
        %v3639 = vmul.f32 %v3630, %v3619
        %v3640 = vmul.f32 %v3630, %v3620
        %v3641 = vadd.f32 %v3637, %v3639
        %v3642 = vadd.f32 %v3638, %v3640
        %s3643 = sld [smem:[#allocation10 + $0x12]]
        %s3644 = sld [smem:[#allocation11 + $0x12]]
        %v3645 = vstv %s3643
        %v3646 = vmul.f32 %v3645, %v3619
        %v3647 = vmul.f32 %v3645, %v3620
        %v3648 = vadd.f32 %v504, %v3646
        %v3649 = vadd.f32 %v504, %v3647
        %v3650 = vstv %s3644
        %v3651 = vmul.f32 %v3650, %v3621
        %v3652 = vmul.f32 %v3650, %v3622
        %v3653 = vsub.f32 %v3648, %v3651
        %v3654 = vsub.f32 %v3649, %v3652
        %v3655 = vmul.f32 %v3645, %v3621
        %v3656 = vmul.f32 %v3645, %v3622
        %v3657 = vadd.f32 %v506, %v3655
        %v3658 = vadd.f32 %v506, %v3656
        %v3659 = vmul.f32 %v3650, %v3619
        %v3660 = vmul.f32 %v3650, %v3620
        %v3661 = vadd.f32 %v3657, %v3659
        %v3662 = vadd.f32 %v3658, %v3660
        %s3663 = sld [smem:[#allocation10 + $0x1]]
        %s3664 = sld [smem:[#allocation11 + $0x1]]
        %v3665 = vstv %s3663
        %v3666 = vmul.f32 %v3665, %v3619
        %v3667 = vmul.f32 %v3665, %v3620
        %3670 = vrot.lane.b32.xlu0 %v3666, 127
        %v3671 = vpop.permute.xlu0 %3670
        %3672 = vrot.lane.b32.xlu0 %v3667, 127
        %v3673 = vpop.permute.xlu0 %3672
        %v3676 = vadd.f32 %v3633, %v3671
        %v3677 = vadd.f32 %v3634, %v3673
        %v3678 = vstv %s3664
        %v3679 = vmul.f32 %v3678, %v3621
        %v3680 = vmul.f32 %v3678, %v3622
        %3683 = vrot.lane.b32.xlu0 %v3679, 127
        %v3684 = vpop.permute.xlu0 %3683
        %3685 = vrot.lane.b32.xlu0 %v3680, 127
        %v3686 = vpop.permute.xlu0 %3685
        %v3689 = vsub.f32 %v3676, %v3684
        %v3690 = vsub.f32 %v3677, %v3686
        %v3691 = vmul.f32 %v3665, %v3621
        %v3692 = vmul.f32 %v3665, %v3622
        %3695 = vrot.lane.b32.xlu0 %v3691, 127
        %v3696 = vpop.permute.xlu0 %3695
        %3697 = vrot.lane.b32.xlu0 %v3692, 127
        %v3698 = vpop.permute.xlu0 %3697
        %v3701 = vadd.f32 %v3641, %v3696
        %v3702 = vadd.f32 %v3642, %v3698
        %v3703 = vmul.f32 %v3678, %v3619
        %v3704 = vmul.f32 %v3678, %v3620
        %3707 = vrot.lane.b32.xlu0 %v3703, 127
        %v3708 = vpop.permute.xlu0 %3707
        %3709 = vrot.lane.b32.xlu0 %v3704, 127
        %v3710 = vpop.permute.xlu0 %3709
        %v3713 = vadd.f32 %v3701, %v3708
        %v3714 = vadd.f32 %v3702, %v3710
        %s3715 = sld [smem:[#allocation10 + $0x13]]
        %s3716 = sld [smem:[#allocation11 + $0x13]]
        %v3717 = vstv %s3715
        %v3718 = vmul.f32 %v3717, %v3619
        %v3719 = vmul.f32 %v3717, %v3620
        %3722 = vrot.lane.b32.xlu0 %v3718, 127
        %v3723 = vpop.permute.xlu0 %3722
        %3724 = vrot.lane.b32.xlu0 %v3719, 127
        %v3725 = vpop.permute.xlu0 %3724
        %v3728 = vadd.f32 %v3653, %v3723
        %v3729 = vadd.f32 %v3654, %v3725
        %v3730 = vstv %s3716
        %v3731 = vmul.f32 %v3730, %v3621
        %v3732 = vmul.f32 %v3730, %v3622
        %3735 = vrot.lane.b32.xlu0 %v3731, 127
        %v3736 = vpop.permute.xlu0 %3735
        %3737 = vrot.lane.b32.xlu0 %v3732, 127
        %v3738 = vpop.permute.xlu0 %3737
        %v3741 = vsub.f32 %v3728, %v3736
        %v3742 = vsub.f32 %v3729, %v3738
        %v3743 = vmul.f32 %v3717, %v3621
        %v3744 = vmul.f32 %v3717, %v3622
        %3747 = vrot.lane.b32.xlu0 %v3743, 127
        %v3748 = vpop.permute.xlu0 %3747
        %3749 = vrot.lane.b32.xlu0 %v3744, 127
        %v3750 = vpop.permute.xlu0 %3749
        %v3753 = vadd.f32 %v3661, %v3748
        %v3754 = vadd.f32 %v3662, %v3750
        %v3755 = vmul.f32 %v3730, %v3619
        %v3756 = vmul.f32 %v3730, %v3620
        %3759 = vrot.lane.b32.xlu0 %v3755, 127
        %v3760 = vpop.permute.xlu0 %3759
        %3761 = vrot.lane.b32.xlu0 %v3756, 127
        %v3762 = vpop.permute.xlu0 %3761
        %v3765 = vadd.f32 %v3753, %v3760
        %v3766 = vadd.f32 %v3754, %v3762
        %s3767 = sld [smem:[#allocation10 + $0x2]]
        %s3768 = sld [smem:[#allocation11 + $0x2]]
        %v3769 = vstv %s3767
        %v3770 = vmul.f32 %v3769, %v3619
        %v3771 = vmul.f32 %v3769, %v3620
        %3774 = vrot.lane.b32.xlu0 %v3770, 126
        %v3775 = vpop.permute.xlu0 %3774
        %3776 = vrot.lane.b32.xlu0 %v3771, 126
        %v3777 = vpop.permute.xlu0 %3776
        %v3780 = vadd.f32 %v3689, %v3775
        %v3781 = vadd.f32 %v3690, %v3777
        %v3782 = vstv %s3768
        %v3783 = vmul.f32 %v3782, %v3621
        %v3784 = vmul.f32 %v3782, %v3622
        %3787 = vrot.lane.b32.xlu0 %v3783, 126
        %v3788 = vpop.permute.xlu0 %3787
        %3789 = vrot.lane.b32.xlu0 %v3784, 126
        %v3790 = vpop.permute.xlu0 %3789
        %v3793 = vsub.f32 %v3780, %v3788
        %v3794 = vsub.f32 %v3781, %v3790
        %v3795 = vmul.f32 %v3769, %v3621
        %v3796 = vmul.f32 %v3769, %v3622
        %3799 = vrot.lane.b32.xlu0 %v3795, 126
        %v3800 = vpop.permute.xlu0 %3799
        %3801 = vrot.lane.b32.xlu0 %v3796, 126
        %v3802 = vpop.permute.xlu0 %3801
        %v3805 = vadd.f32 %v3713, %v3800
        %v3806 = vadd.f32 %v3714, %v3802
        %v3807 = vmul.f32 %v3782, %v3619
        %v3808 = vmul.f32 %v3782, %v3620
        %3811 = vrot.lane.b32.xlu0 %v3807, 126
        %v3812 = vpop.permute.xlu0 %3811
        %3813 = vrot.lane.b32.xlu0 %v3808, 126
        %v3814 = vpop.permute.xlu0 %3813
        %v3817 = vadd.f32 %v3805, %v3812
        %v3818 = vadd.f32 %v3806, %v3814
        %s3819 = sld [smem:[#allocation10 + $0x14]]
        %s3820 = sld [smem:[#allocation11 + $0x14]]
        %v3821 = vstv %s3819
        %v3822 = vmul.f32 %v3821, %v3619
        %v3823 = vmul.f32 %v3821, %v3620
        %3826 = vrot.lane.b32.xlu0 %v3822, 126
        %v3827 = vpop.permute.xlu0 %3826
        %3828 = vrot.lane.b32.xlu0 %v3823, 126
        %v3829 = vpop.permute.xlu0 %3828
        %v3832 = vadd.f32 %v3741, %v3827
        %v3833 = vadd.f32 %v3742, %v3829
        %v3834 = vstv %s3820
        %v3835 = vmul.f32 %v3834, %v3621
        %v3836 = vmul.f32 %v3834, %v3622
        %3839 = vrot.lane.b32.xlu0 %v3835, 126
        %v3840 = vpop.permute.xlu0 %3839
        %3841 = vrot.lane.b32.xlu0 %v3836, 126
        %v3842 = vpop.permute.xlu0 %3841
        %v3845 = vsub.f32 %v3832, %v3840
        %v3846 = vsub.f32 %v3833, %v3842
        %v3847 = vmul.f32 %v3821, %v3621
        %v3848 = vmul.f32 %v3821, %v3622
        %3851 = vrot.lane.b32.xlu0 %v3847, 126
        %v3852 = vpop.permute.xlu0 %3851
        %3853 = vrot.lane.b32.xlu0 %v3848, 126
        %v3854 = vpop.permute.xlu0 %3853
        %v3857 = vadd.f32 %v3765, %v3852
        %v3858 = vadd.f32 %v3766, %v3854
        %v3859 = vmul.f32 %v3834, %v3619
        %v3860 = vmul.f32 %v3834, %v3620
        %3863 = vrot.lane.b32.xlu0 %v3859, 126
        %v3864 = vpop.permute.xlu0 %3863
        %3865 = vrot.lane.b32.xlu0 %v3860, 126
        %v3866 = vpop.permute.xlu0 %3865
        %v3869 = vadd.f32 %v3857, %v3864
        %v3870 = vadd.f32 %v3858, %v3866
        %v3871 = vld [vmem:[#allocation2 + $0x1] sm:$0xff]
        %v3872 = vld [vmem:[#allocation2 + $0x9] sm:$0xff]
        %v3873 = vld [vmem:[#allocation3 + $0x1] sm:$0xff]
        %v3874 = vld [vmem:[#allocation3 + $0x9] sm:$0xff]
        %s3875 = sld [smem:[#allocation10 + $0x3]]
        %s3876 = sld [smem:[#allocation11 + $0x3]]
        %v3877 = vstv %s3875
        %v3878 = vmul.f32 %v3877, %v3871
        %v3879 = vmul.f32 %v3877, %v3872
        %v3880 = vadd.f32 %v3793, %v3878
        %v3881 = vadd.f32 %v3794, %v3879
        %v3882 = vstv %s3876
        %v3883 = vmul.f32 %v3882, %v3873
        %v3884 = vmul.f32 %v3882, %v3874
        %v3885 = vsub.f32 %v3880, %v3883
        %v3886 = vsub.f32 %v3881, %v3884
        %v3887 = vmul.f32 %v3877, %v3873
        %v3888 = vmul.f32 %v3877, %v3874
        %v3889 = vadd.f32 %v3817, %v3887
        %v3890 = vadd.f32 %v3818, %v3888
        %v3891 = vmul.f32 %v3882, %v3871
        %v3892 = vmul.f32 %v3882, %v3872
        %v3893 = vadd.f32 %v3889, %v3891
        %v3894 = vadd.f32 %v3890, %v3892
        %s3895 = sld [smem:[#allocation10 + $0x15]]
        %s3896 = sld [smem:[#allocation11 + $0x15]]
        %v3897 = vstv %s3895
        %v3898 = vmul.f32 %v3897, %v3871
        %v3899 = vmul.f32 %v3897, %v3872
        %v3900 = vadd.f32 %v3845, %v3898
        %v3901 = vadd.f32 %v3846, %v3899
        %v3902 = vstv %s3896
        %v3903 = vmul.f32 %v3902, %v3873
        %v3904 = vmul.f32 %v3902, %v3874
        %v3905 = vsub.f32 %v3900, %v3903
        %v3906 = vsub.f32 %v3901, %v3904
        %v3907 = vmul.f32 %v3897, %v3873
        %v3908 = vmul.f32 %v3897, %v3874
        %v3909 = vadd.f32 %v3869, %v3907
        %v3910 = vadd.f32 %v3870, %v3908
        %v3911 = vmul.f32 %v3902, %v3871
        %v3912 = vmul.f32 %v3902, %v3872
        %v3913 = vadd.f32 %v3909, %v3911
        %v3914 = vadd.f32 %v3910, %v3912
        %s3915 = sld [smem:[#allocation10 + $0x4]]
        %s3916 = sld [smem:[#allocation11 + $0x4]]
        %v3917 = vstv %s3915
        %v3918 = vmul.f32 %v3917, %v3871
        %v3919 = vmul.f32 %v3917, %v3872
        %3922 = vrot.lane.b32.xlu0 %v3918, 127
        %v3923 = vpop.permute.xlu0 %3922
        %3924 = vrot.lane.b32.xlu0 %v3919, 127
        %v3925 = vpop.permute.xlu0 %3924
        %v3928 = vadd.f32 %v3885, %v3923
        %v3929 = vadd.f32 %v3886, %v3925
        %v3930 = vstv %s3916
        %v3931 = vmul.f32 %v3930, %v3873
        %v3932 = vmul.f32 %v3930, %v3874
        %3935 = vrot.lane.b32.xlu0 %v3931, 127
        %v3936 = vpop.permute.xlu0 %3935
        %3937 = vrot.lane.b32.xlu0 %v3932, 127
        %v3938 = vpop.permute.xlu0 %3937
        %v3941 = vsub.f32 %v3928, %v3936
        %v3942 = vsub.f32 %v3929, %v3938
        %v3943 = vmul.f32 %v3917, %v3873
        %v3944 = vmul.f32 %v3917, %v3874
        %3947 = vrot.lane.b32.xlu0 %v3943, 127
        %v3948 = vpop.permute.xlu0 %3947
        %3949 = vrot.lane.b32.xlu0 %v3944, 127
        %v3950 = vpop.permute.xlu0 %3949
        %v3953 = vadd.f32 %v3893, %v3948
        %v3954 = vadd.f32 %v3894, %v3950
        %v3955 = vmul.f32 %v3930, %v3871
        %v3956 = vmul.f32 %v3930, %v3872
        %3959 = vrot.lane.b32.xlu0 %v3955, 127
        %v3960 = vpop.permute.xlu0 %3959
        %3961 = vrot.lane.b32.xlu0 %v3956, 127
        %v3962 = vpop.permute.xlu0 %3961
        %v3965 = vadd.f32 %v3953, %v3960
        %v3966 = vadd.f32 %v3954, %v3962
        %s3967 = sld [smem:[#allocation10 + $0x16]]
        %s3968 = sld [smem:[#allocation11 + $0x16]]
        %v3969 = vstv %s3967
        %v3970 = vmul.f32 %v3969, %v3871
        %v3971 = vmul.f32 %v3969, %v3872
        %3974 = vrot.lane.b32.xlu0 %v3970, 127
        %v3975 = vpop.permute.xlu0 %3974
        %3976 = vrot.lane.b32.xlu0 %v3971, 127
        %v3977 = vpop.permute.xlu0 %3976
        %v3980 = vadd.f32 %v3905, %v3975
        %v3981 = vadd.f32 %v3906, %v3977
        %v3982 = vstv %s3968
        %v3983 = vmul.f32 %v3982, %v3873
        %v3984 = vmul.f32 %v3982, %v3874
        %3987 = vrot.lane.b32.xlu0 %v3983, 127
        %v3988 = vpop.permute.xlu0 %3987
        %3989 = vrot.lane.b32.xlu0 %v3984, 127
        %v3990 = vpop.permute.xlu0 %3989
        %v3993 = vsub.f32 %v3980, %v3988
        %v3994 = vsub.f32 %v3981, %v3990
        %v3995 = vmul.f32 %v3969, %v3873
        %v3996 = vmul.f32 %v3969, %v3874
        %3999 = vrot.lane.b32.xlu0 %v3995, 127
        %v4000 = vpop.permute.xlu0 %3999
        %4001 = vrot.lane.b32.xlu0 %v3996, 127
        %v4002 = vpop.permute.xlu0 %4001
        %v4005 = vadd.f32 %v3913, %v4000
        %v4006 = vadd.f32 %v3914, %v4002
        %v4007 = vmul.f32 %v3982, %v3871
        %v4008 = vmul.f32 %v3982, %v3872
        %4011 = vrot.lane.b32.xlu0 %v4007, 127
        %v4012 = vpop.permute.xlu0 %4011
        %4013 = vrot.lane.b32.xlu0 %v4008, 127
        %v4014 = vpop.permute.xlu0 %4013
        %v4017 = vadd.f32 %v4005, %v4012
        %v4018 = vadd.f32 %v4006, %v4014
        %s4019 = sld [smem:[#allocation10 + $0x5]]
        %s4020 = sld [smem:[#allocation11 + $0x5]]
        %v4021 = vstv %s4019
        %v4022 = vmul.f32 %v4021, %v3871
        %v4023 = vmul.f32 %v4021, %v3872
        %4026 = vrot.lane.b32.xlu0 %v4022, 126
        %v4027 = vpop.permute.xlu0 %4026
        %4028 = vrot.lane.b32.xlu0 %v4023, 126
        %v4029 = vpop.permute.xlu0 %4028
        %v4032 = vadd.f32 %v3941, %v4027
        %v4033 = vadd.f32 %v3942, %v4029
        %v4034 = vstv %s4020
        %v4035 = vmul.f32 %v4034, %v3873
        %v4036 = vmul.f32 %v4034, %v3874
        %4039 = vrot.lane.b32.xlu0 %v4035, 126
        %v4040 = vpop.permute.xlu0 %4039
        %4041 = vrot.lane.b32.xlu0 %v4036, 126
        %v4042 = vpop.permute.xlu0 %4041
        %v4045 = vsub.f32 %v4032, %v4040
        %v4046 = vsub.f32 %v4033, %v4042
        %v4047 = vmul.f32 %v4021, %v3873
        %v4048 = vmul.f32 %v4021, %v3874
        %4051 = vrot.lane.b32.xlu0 %v4047, 126
        %v4052 = vpop.permute.xlu0 %4051
        %4053 = vrot.lane.b32.xlu0 %v4048, 126
        %v4054 = vpop.permute.xlu0 %4053
        %v4057 = vadd.f32 %v3965, %v4052
        %v4058 = vadd.f32 %v3966, %v4054
        %v4059 = vmul.f32 %v4034, %v3871
        %v4060 = vmul.f32 %v4034, %v3872
        %4063 = vrot.lane.b32.xlu0 %v4059, 126
        %v4064 = vpop.permute.xlu0 %4063
        %4065 = vrot.lane.b32.xlu0 %v4060, 126
        %v4066 = vpop.permute.xlu0 %4065
        %v4069 = vadd.f32 %v4057, %v4064
        %v4070 = vadd.f32 %v4058, %v4066
        %s4071 = sld [smem:[#allocation10 + $0x17]]
        %s4072 = sld [smem:[#allocation11 + $0x17]]
        %v4073 = vstv %s4071
        %v4074 = vmul.f32 %v4073, %v3871
        %v4075 = vmul.f32 %v4073, %v3872
        %4078 = vrot.lane.b32.xlu0 %v4074, 126
        %v4079 = vpop.permute.xlu0 %4078
        %4080 = vrot.lane.b32.xlu0 %v4075, 126
        %v4081 = vpop.permute.xlu0 %4080
        %v4084 = vadd.f32 %v3993, %v4079
        %v4085 = vadd.f32 %v3994, %v4081
        %v4086 = vstv %s4072
        %v4087 = vmul.f32 %v4086, %v3873
        %v4088 = vmul.f32 %v4086, %v3874
        %4091 = vrot.lane.b32.xlu0 %v4087, 126
        %v4092 = vpop.permute.xlu0 %4091
        %4093 = vrot.lane.b32.xlu0 %v4088, 126
        %v4094 = vpop.permute.xlu0 %4093
        %v4097 = vsub.f32 %v4084, %v4092
        %v4098 = vsub.f32 %v4085, %v4094
        %v4099 = vmul.f32 %v4073, %v3873
        %v4100 = vmul.f32 %v4073, %v3874
        %4103 = vrot.lane.b32.xlu0 %v4099, 126
        %v4104 = vpop.permute.xlu0 %4103
        %4105 = vrot.lane.b32.xlu0 %v4100, 126
        %v4106 = vpop.permute.xlu0 %4105
        %v4109 = vadd.f32 %v4017, %v4104
        %v4110 = vadd.f32 %v4018, %v4106
        %v4111 = vmul.f32 %v4086, %v3871
        %v4112 = vmul.f32 %v4086, %v3872
        %4115 = vrot.lane.b32.xlu0 %v4111, 126
        %v4116 = vpop.permute.xlu0 %4115
        %4117 = vrot.lane.b32.xlu0 %v4112, 126
        %v4118 = vpop.permute.xlu0 %4117
        %v4121 = vadd.f32 %v4109, %v4116
        %v4122 = vadd.f32 %v4110, %v4118
        %v4123 = vld [vmem:[#allocation2 + $0x2] sm:$0xff]
        %v4124 = vld [vmem:[#allocation2 + $0xa] sm:$0xff]
        %v4125 = vld [vmem:[#allocation3 + $0x2] sm:$0xff]
        %v4126 = vld [vmem:[#allocation3 + $0xa] sm:$0xff]
        %s4127 = sld [smem:[#allocation10 + $0x6]]
        %s4128 = sld [smem:[#allocation11 + $0x6]]
        %v4129 = vstv %s4127
        %v4130 = vmul.f32 %v4129, %v4123
        %v4131 = vmul.f32 %v4129, %v4124
        %v4132 = vadd.f32 %v4045, %v4130
        %v4133 = vadd.f32 %v4046, %v4131
        %v4134 = vstv %s4128
        %v4135 = vmul.f32 %v4134, %v4125
        %v4136 = vmul.f32 %v4134, %v4126
        %v4137 = vsub.f32 %v4132, %v4135
        %v4138 = vsub.f32 %v4133, %v4136
        %v4139 = vmul.f32 %v4129, %v4125
        %v4140 = vmul.f32 %v4129, %v4126
        %v4141 = vadd.f32 %v4069, %v4139
        %v4142 = vadd.f32 %v4070, %v4140
        %v4143 = vmul.f32 %v4134, %v4123
        %v4144 = vmul.f32 %v4134, %v4124
        %v4145 = vadd.f32 %v4141, %v4143
        %v4146 = vadd.f32 %v4142, %v4144
        %s4147 = sld [smem:[#allocation10 + $0x18]]
        %s4148 = sld [smem:[#allocation11 + $0x18]]
        %v4149 = vstv %s4147
        %v4150 = vmul.f32 %v4149, %v4123
        %v4151 = vmul.f32 %v4149, %v4124
        %v4152 = vadd.f32 %v4097, %v4150
        %v4153 = vadd.f32 %v4098, %v4151
        %v4154 = vstv %s4148
        %v4155 = vmul.f32 %v4154, %v4125
        %v4156 = vmul.f32 %v4154, %v4126
        %v4157 = vsub.f32 %v4152, %v4155
        %v4158 = vsub.f32 %v4153, %v4156
        %v4159 = vmul.f32 %v4149, %v4125
        %v4160 = vmul.f32 %v4149, %v4126
        %v4161 = vadd.f32 %v4121, %v4159
        %v4162 = vadd.f32 %v4122, %v4160
        %v4163 = vmul.f32 %v4154, %v4123
        %v4164 = vmul.f32 %v4154, %v4124
        %v4165 = vadd.f32 %v4161, %v4163
        %v4166 = vadd.f32 %v4162, %v4164
        %s4167 = sld [smem:[#allocation10 + $0x7]]
        %s4168 = sld [smem:[#allocation11 + $0x7]]
        %v4169 = vstv %s4167
        %v4170 = vmul.f32 %v4169, %v4123
        %v4171 = vmul.f32 %v4169, %v4124
        %4174 = vrot.lane.b32.xlu0 %v4170, 127
        %v4175 = vpop.permute.xlu0 %4174
        %4176 = vrot.lane.b32.xlu0 %v4171, 127
        %v4177 = vpop.permute.xlu0 %4176
        %v4180 = vadd.f32 %v4137, %v4175
        %v4181 = vadd.f32 %v4138, %v4177
        %v4182 = vstv %s4168
        %v4183 = vmul.f32 %v4182, %v4125
        %v4184 = vmul.f32 %v4182, %v4126
        %4187 = vrot.lane.b32.xlu0 %v4183, 127
        %v4188 = vpop.permute.xlu0 %4187
        %4189 = vrot.lane.b32.xlu0 %v4184, 127
        %v4190 = vpop.permute.xlu0 %4189
        %v4193 = vsub.f32 %v4180, %v4188
        %v4194 = vsub.f32 %v4181, %v4190
        %v4195 = vmul.f32 %v4169, %v4125
        %v4196 = vmul.f32 %v4169, %v4126
        %4199 = vrot.lane.b32.xlu0 %v4195, 127
        %v4200 = vpop.permute.xlu0 %4199
        %4201 = vrot.lane.b32.xlu0 %v4196, 127
        %v4202 = vpop.permute.xlu0 %4201
        %v4205 = vadd.f32 %v4145, %v4200
        %v4206 = vadd.f32 %v4146, %v4202
        %v4207 = vmul.f32 %v4182, %v4123
        %v4208 = vmul.f32 %v4182, %v4124
        %4211 = vrot.lane.b32.xlu0 %v4207, 127
        %v4212 = vpop.permute.xlu0 %4211
        %4213 = vrot.lane.b32.xlu0 %v4208, 127
        %v4214 = vpop.permute.xlu0 %4213
        %v4217 = vadd.f32 %v4205, %v4212
        %v4218 = vadd.f32 %v4206, %v4214
        %s4219 = sld [smem:[#allocation10 + $0x19]]
        %s4220 = sld [smem:[#allocation11 + $0x19]]
        %v4221 = vstv %s4219
        %v4222 = vmul.f32 %v4221, %v4123
        %v4223 = vmul.f32 %v4221, %v4124
        %4226 = vrot.lane.b32.xlu0 %v4222, 127
        %v4227 = vpop.permute.xlu0 %4226
        %4228 = vrot.lane.b32.xlu0 %v4223, 127
        %v4229 = vpop.permute.xlu0 %4228
        %v4232 = vadd.f32 %v4157, %v4227
        %v4233 = vadd.f32 %v4158, %v4229
        %v4234 = vstv %s4220
        %v4235 = vmul.f32 %v4234, %v4125
        %v4236 = vmul.f32 %v4234, %v4126
        %4239 = vrot.lane.b32.xlu0 %v4235, 127
        %v4240 = vpop.permute.xlu0 %4239
        %4241 = vrot.lane.b32.xlu0 %v4236, 127
        %v4242 = vpop.permute.xlu0 %4241
        %v4245 = vsub.f32 %v4232, %v4240
        %v4246 = vsub.f32 %v4233, %v4242
        %v4247 = vmul.f32 %v4221, %v4125
        %v4248 = vmul.f32 %v4221, %v4126
        %4251 = vrot.lane.b32.xlu0 %v4247, 127
        %v4252 = vpop.permute.xlu0 %4251
        %4253 = vrot.lane.b32.xlu0 %v4248, 127
        %v4254 = vpop.permute.xlu0 %4253
        %v4257 = vadd.f32 %v4165, %v4252
        %v4258 = vadd.f32 %v4166, %v4254
        %v4259 = vmul.f32 %v4234, %v4123
        %v4260 = vmul.f32 %v4234, %v4124
        %4263 = vrot.lane.b32.xlu0 %v4259, 127
        %v4264 = vpop.permute.xlu0 %4263
        %4265 = vrot.lane.b32.xlu0 %v4260, 127
        %v4266 = vpop.permute.xlu0 %4265
        %v4269 = vadd.f32 %v4257, %v4264
        %v4270 = vadd.f32 %v4258, %v4266
        %s4271 = sld [smem:[#allocation10 + $0x8]]
        %s4272 = sld [smem:[#allocation11 + $0x8]]
        %v4273 = vstv %s4271
        %v4274 = vmul.f32 %v4273, %v4123
        %v4275 = vmul.f32 %v4273, %v4124
        %4278 = vrot.lane.b32.xlu0 %v4274, 126
        %v4279 = vpop.permute.xlu0 %4278
        %4280 = vrot.lane.b32.xlu0 %v4275, 126
        %v4281 = vpop.permute.xlu0 %4280
        %v4284 = vadd.f32 %v4193, %v4279
        %v4285 = vadd.f32 %v4194, %v4281
        %v4286 = vstv %s4272
        %v4287 = vmul.f32 %v4286, %v4125
        %v4288 = vmul.f32 %v4286, %v4126
        %4291 = vrot.lane.b32.xlu0 %v4287, 126
        %v4292 = vpop.permute.xlu0 %4291
        %4293 = vrot.lane.b32.xlu0 %v4288, 126
        %v4294 = vpop.permute.xlu0 %4293
        %v4297 = vsub.f32 %v4284, %v4292
        %v4298 = vsub.f32 %v4285, %v4294
        %v4299 = vmul.f32 %v4273, %v4125
        %v4300 = vmul.f32 %v4273, %v4126
        %4303 = vrot.lane.b32.xlu0 %v4299, 126
        %v4304 = vpop.permute.xlu0 %4303
        %4305 = vrot.lane.b32.xlu0 %v4300, 126
        %v4306 = vpop.permute.xlu0 %4305
        %v4309 = vadd.f32 %v4217, %v4304
        %v4310 = vadd.f32 %v4218, %v4306
        %v4311 = vmul.f32 %v4286, %v4123
        %v4312 = vmul.f32 %v4286, %v4124
        %4315 = vrot.lane.b32.xlu0 %v4311, 126
        %v4316 = vpop.permute.xlu0 %4315
        %4317 = vrot.lane.b32.xlu0 %v4312, 126
        %v4318 = vpop.permute.xlu0 %4317
        %v4321 = vadd.f32 %v4309, %v4316
        %v4322 = vadd.f32 %v4310, %v4318
        %s4323 = sld [smem:[#allocation10 + $0x1a]]
        %s4324 = sld [smem:[#allocation11 + $0x1a]]
        %v4325 = vstv %s4323
        %v4326 = vmul.f32 %v4325, %v4123
        %v4327 = vmul.f32 %v4325, %v4124
        %4330 = vrot.lane.b32.xlu0 %v4326, 126
        %v4331 = vpop.permute.xlu0 %4330
        %4332 = vrot.lane.b32.xlu0 %v4327, 126
        %v4333 = vpop.permute.xlu0 %4332
        %v4336 = vadd.f32 %v4245, %v4331
        %v4337 = vadd.f32 %v4246, %v4333
        %v4338 = vstv %s4324
        %v4339 = vmul.f32 %v4338, %v4125
        %v4340 = vmul.f32 %v4338, %v4126
        %4343 = vrot.lane.b32.xlu0 %v4339, 126
        %v4344 = vpop.permute.xlu0 %4343
        %4345 = vrot.lane.b32.xlu0 %v4340, 126
        %v4346 = vpop.permute.xlu0 %4345
        %v4349 = vsub.f32 %v4336, %v4344
        %v4350 = vsub.f32 %v4337, %v4346
        %v4351 = vmul.f32 %v4325, %v4125
        %v4352 = vmul.f32 %v4325, %v4126
        %4355 = vrot.lane.b32.xlu0 %v4351, 126
        %v4356 = vpop.permute.xlu0 %4355
        %4357 = vrot.lane.b32.xlu0 %v4352, 126
        %v4358 = vpop.permute.xlu0 %4357
        %v4361 = vadd.f32 %v4269, %v4356
        %v4362 = vadd.f32 %v4270, %v4358
        %v4363 = vmul.f32 %v4338, %v4123
        %v4364 = vmul.f32 %v4338, %v4124
        %4367 = vrot.lane.b32.xlu0 %v4363, 126
        %v4368 = vpop.permute.xlu0 %4367
        %4369 = vrot.lane.b32.xlu0 %v4364, 126
        %v4370 = vpop.permute.xlu0 %4369
        %v4373 = vadd.f32 %v4361, %v4368
        %v4374 = vadd.f32 %v4362, %v4370
        %v4375 = vld [vmem:[%s489] sm:$0xff]
        %v4376 = vld [vmem:[%s489 + $0x8] sm:$0xff]
        %v4377 = vld [vmem:[%s500] sm:$0xff]
        %v4378 = vld [vmem:[%s500 + $0x8] sm:$0xff]
        %s4379 = sld [smem:[#allocation10 + $0x9]]
        %s4380 = sld [smem:[#allocation11 + $0x9]]
        %v4381 = vstv %s4379
        %v4382 = vmul.f32 %v4381, %v4375
        %v4383 = vmul.f32 %v4381, %v4376
        %v4384 = vadd.f32 %v4297, %v4382
        %v4385 = vadd.f32 %v4298, %v4383
        %v4386 = vstv %s4380
        %v4387 = vmul.f32 %v4386, %v4377
        %v4388 = vmul.f32 %v4386, %v4378
        %v4389 = vsub.f32 %v4384, %v4387
        %v4390 = vsub.f32 %v4385, %v4388
        %v4391 = vmul.f32 %v4381, %v4377
        %v4392 = vmul.f32 %v4381, %v4378
        %v4393 = vadd.f32 %v4321, %v4391
        %v4394 = vadd.f32 %v4322, %v4392
        %v4395 = vmul.f32 %v4386, %v4375
        %v4396 = vmul.f32 %v4386, %v4376
        %v4397 = vadd.f32 %v4393, %v4395
        %v4398 = vadd.f32 %v4394, %v4396
        %s4399 = sld [smem:[#allocation10 + $0x1b]]
        %s4400 = sld [smem:[#allocation11 + $0x1b]]
        %v4401 = vstv %s4399
        %v4402 = vmul.f32 %v4401, %v4375
        %v4403 = vmul.f32 %v4401, %v4376
        %v4404 = vadd.f32 %v4349, %v4402
        %v4405 = vadd.f32 %v4350, %v4403
        %v4406 = vstv %s4400
        %v4407 = vmul.f32 %v4406, %v4377
        %v4408 = vmul.f32 %v4406, %v4378
        %v4409 = vsub.f32 %v4404, %v4407
        %v4410 = vsub.f32 %v4405, %v4408
        %v4411 = vmul.f32 %v4401, %v4377
        %v4412 = vmul.f32 %v4401, %v4378
        %v4413 = vadd.f32 %v4373, %v4411
        %v4414 = vadd.f32 %v4374, %v4412
        %v4415 = vmul.f32 %v4406, %v4375
        %v4416 = vmul.f32 %v4406, %v4376
        %v4417 = vadd.f32 %v4413, %v4415
        %v4418 = vadd.f32 %v4414, %v4416
        %s4419 = sld [smem:[#allocation10 + $0xa]]
        %s4420 = sld [smem:[#allocation11 + $0xa]]
        %v4421 = vstv %s4419
        %v4422 = vmul.f32 %v4421, %v4375
        %v4423 = vmul.f32 %v4421, %v4376
        %4426 = vrot.lane.b32.xlu0 %v4422, 127
        %v4427 = vpop.permute.xlu0 %4426
        %4428 = vrot.lane.b32.xlu0 %v4423, 127
        %v4429 = vpop.permute.xlu0 %4428
        %v4432 = vadd.f32 %v4389, %v4427
        %v4433 = vadd.f32 %v4390, %v4429
        %v4434 = vstv %s4420
        %v4435 = vmul.f32 %v4434, %v4377
        %v4436 = vmul.f32 %v4434, %v4378
        %4439 = vrot.lane.b32.xlu0 %v4435, 127
        %v4440 = vpop.permute.xlu0 %4439
        %4441 = vrot.lane.b32.xlu0 %v4436, 127
        %v4442 = vpop.permute.xlu0 %4441
        %v4445 = vsub.f32 %v4432, %v4440
        %v4446 = vsub.f32 %v4433, %v4442
        %v4447 = vmul.f32 %v4421, %v4377
        %v4448 = vmul.f32 %v4421, %v4378
        %4451 = vrot.lane.b32.xlu0 %v4447, 127
        %v4452 = vpop.permute.xlu0 %4451
        %4453 = vrot.lane.b32.xlu0 %v4448, 127
        %v4454 = vpop.permute.xlu0 %4453
        %v4457 = vadd.f32 %v4397, %v4452
        %v4458 = vadd.f32 %v4398, %v4454
        %v4459 = vmul.f32 %v4434, %v4375
        %v4460 = vmul.f32 %v4434, %v4376
        %4463 = vrot.lane.b32.xlu0 %v4459, 127
        %v4464 = vpop.permute.xlu0 %4463
        %4465 = vrot.lane.b32.xlu0 %v4460, 127
        %v4466 = vpop.permute.xlu0 %4465
        %v4469 = vadd.f32 %v4457, %v4464
        %v4470 = vadd.f32 %v4458, %v4466
        %s4471 = sld [smem:[#allocation10 + $0x1c]]
        %s4472 = sld [smem:[#allocation11 + $0x1c]]
        %v4473 = vstv %s4471
        %v4474 = vmul.f32 %v4473, %v4375
        %v4475 = vmul.f32 %v4473, %v4376
        %4478 = vrot.lane.b32.xlu0 %v4474, 127
        %v4479 = vpop.permute.xlu0 %4478
        %4480 = vrot.lane.b32.xlu0 %v4475, 127
        %v4481 = vpop.permute.xlu0 %4480
        %v4484 = vadd.f32 %v4409, %v4479
        %v4485 = vadd.f32 %v4410, %v4481
        %v4486 = vstv %s4472
        %v4487 = vmul.f32 %v4486, %v4377
        %v4488 = vmul.f32 %v4486, %v4378
        %4491 = vrot.lane.b32.xlu0 %v4487, 127
        %v4492 = vpop.permute.xlu0 %4491
        %4493 = vrot.lane.b32.xlu0 %v4488, 127
        %v4494 = vpop.permute.xlu0 %4493
        %v4497 = vsub.f32 %v4484, %v4492
        %v4498 = vsub.f32 %v4485, %v4494
        %v4499 = vmul.f32 %v4473, %v4377
        %v4500 = vmul.f32 %v4473, %v4378
        %4503 = vrot.lane.b32.xlu0 %v4499, 127
        %v4504 = vpop.permute.xlu0 %4503
        %4505 = vrot.lane.b32.xlu0 %v4500, 127
        %v4506 = vpop.permute.xlu0 %4505
        %v4509 = vadd.f32 %v4417, %v4504
        %v4510 = vadd.f32 %v4418, %v4506
        %v4511 = vmul.f32 %v4486, %v4375
        %v4512 = vmul.f32 %v4486, %v4376
        %4515 = vrot.lane.b32.xlu0 %v4511, 127
        %v4516 = vpop.permute.xlu0 %4515
        %4517 = vrot.lane.b32.xlu0 %v4512, 127
        %v4518 = vpop.permute.xlu0 %4517
        %v4521 = vadd.f32 %v4509, %v4516
        %v4522 = vadd.f32 %v4510, %v4518
        %s4523 = sld [smem:[#allocation10 + $0xb]]
        %s4524 = sld [smem:[#allocation11 + $0xb]]
        %v4525 = vstv %s4523
        %v4526 = vmul.f32 %v4525, %v4375
        %v4527 = vmul.f32 %v4525, %v4376
        %4530 = vrot.lane.b32.xlu0 %v4526, 126
        %v4531 = vpop.permute.xlu0 %4530
        %4532 = vrot.lane.b32.xlu0 %v4527, 126
        %v4533 = vpop.permute.xlu0 %4532
        %v4536 = vadd.f32 %v4445, %v4531
        %v4537 = vadd.f32 %v4446, %v4533
        %v4538 = vstv %s4524
        %v4539 = vmul.f32 %v4538, %v4377
        %v4540 = vmul.f32 %v4538, %v4378
        %4543 = vrot.lane.b32.xlu0 %v4539, 126
        %v4544 = vpop.permute.xlu0 %4543
        %4545 = vrot.lane.b32.xlu0 %v4540, 126
        %v4546 = vpop.permute.xlu0 %4545
        %v4549 = vsub.f32 %v4536, %v4544
        %v4550 = vsub.f32 %v4537, %v4546
        %v4551 = vmul.f32 %v4525, %v4377
        %v4552 = vmul.f32 %v4525, %v4378
        %4555 = vrot.lane.b32.xlu0 %v4551, 126
        %v4556 = vpop.permute.xlu0 %4555
        %4557 = vrot.lane.b32.xlu0 %v4552, 126
        %v4558 = vpop.permute.xlu0 %4557
        %v4561 = vadd.f32 %v4469, %v4556
        %v4562 = vadd.f32 %v4470, %v4558
        %v4563 = vmul.f32 %v4538, %v4375
        %v4564 = vmul.f32 %v4538, %v4376
        %4567 = vrot.lane.b32.xlu0 %v4563, 126
        %v4568 = vpop.permute.xlu0 %4567
        %4569 = vrot.lane.b32.xlu0 %v4564, 126
        %v4570 = vpop.permute.xlu0 %4569
        %v4573 = vadd.f32 %v4561, %v4568
        %v4574 = vadd.f32 %v4562, %v4570
        %s4575 = sld [smem:[#allocation10 + $0x1d]]
        %s4576 = sld [smem:[#allocation11 + $0x1d]]
        %v4577 = vstv %s4575
        %v4578 = vmul.f32 %v4577, %v4375
        %v4579 = vmul.f32 %v4577, %v4376
        %4582 = vrot.lane.b32.xlu0 %v4578, 126
        %v4583 = vpop.permute.xlu0 %4582
        %4584 = vrot.lane.b32.xlu0 %v4579, 126
        %v4585 = vpop.permute.xlu0 %4584
        %v4588 = vadd.f32 %v4497, %v4583
        %v4589 = vadd.f32 %v4498, %v4585
        %v4590 = vstv %s4576
        %v4591 = vmul.f32 %v4590, %v4377
        %v4592 = vmul.f32 %v4590, %v4378
        %4595 = vrot.lane.b32.xlu0 %v4591, 126
        %v4596 = vpop.permute.xlu0 %4595
        %4597 = vrot.lane.b32.xlu0 %v4592, 126
        %v4598 = vpop.permute.xlu0 %4597
        %v4601 = vsub.f32 %v4588, %v4596
        %v4602 = vsub.f32 %v4589, %v4598
        %v4603 = vmul.f32 %v4577, %v4377
        %v4604 = vmul.f32 %v4577, %v4378
        %4607 = vrot.lane.b32.xlu0 %v4603, 126
        %v4608 = vpop.permute.xlu0 %4607
        %4609 = vrot.lane.b32.xlu0 %v4604, 126
        %v4610 = vpop.permute.xlu0 %4609
        %v4613 = vadd.f32 %v4521, %v4608
        %v4614 = vadd.f32 %v4522, %v4610
        %v4615 = vmul.f32 %v4590, %v4375
        %v4616 = vmul.f32 %v4590, %v4376
        %4619 = vrot.lane.b32.xlu0 %v4615, 126
        %v4620 = vpop.permute.xlu0 %4619
        %4621 = vrot.lane.b32.xlu0 %v4616, 126
        %v4622 = vpop.permute.xlu0 %4621
        %v4625 = vadd.f32 %v4613, %v4620
        %v4626 = vadd.f32 %v4614, %v4622
        %v4627 = vld [vmem:[%s489 + $0x1] sm:$0xff]
        %v4628 = vld [vmem:[%s489 + $0x9] sm:$0xff]
        %v4629 = vld [vmem:[%s500 + $0x1] sm:$0xff]
        %v4630 = vld [vmem:[%s500 + $0x9] sm:$0xff]
        %s4631 = sld [smem:[#allocation10 + $0xc]]
        %s4632 = sld [smem:[#allocation11 + $0xc]]
        %v4633 = vstv %s4631
        %v4634 = vmul.f32 %v4633, %v4627
        %v4635 = vmul.f32 %v4633, %v4628
        %v4636 = vadd.f32 %v4549, %v4634
        %v4637 = vadd.f32 %v4550, %v4635
        %v4638 = vstv %s4632
        %v4639 = vmul.f32 %v4638, %v4629
        %v4640 = vmul.f32 %v4638, %v4630
        %v4641 = vsub.f32 %v4636, %v4639
        %v4642 = vsub.f32 %v4637, %v4640
        %v4643 = vmul.f32 %v4633, %v4629
        %v4644 = vmul.f32 %v4633, %v4630
        %v4645 = vadd.f32 %v4573, %v4643
        %v4646 = vadd.f32 %v4574, %v4644
        %v4647 = vmul.f32 %v4638, %v4627
        %v4648 = vmul.f32 %v4638, %v4628
        %v4649 = vadd.f32 %v4645, %v4647
        %v4650 = vadd.f32 %v4646, %v4648
        %s4651 = sld [smem:[#allocation10 + $0x1e]]
        %s4652 = sld [smem:[#allocation11 + $0x1e]]
        %v4653 = vstv %s4651
        %v4654 = vmul.f32 %v4653, %v4627
        %v4655 = vmul.f32 %v4653, %v4628
        %v4656 = vadd.f32 %v4601, %v4654
        %v4657 = vadd.f32 %v4602, %v4655
        %v4658 = vstv %s4652
        %v4659 = vmul.f32 %v4658, %v4629
        %v4660 = vmul.f32 %v4658, %v4630
        %v4661 = vsub.f32 %v4656, %v4659
        %v4662 = vsub.f32 %v4657, %v4660
        %v4663 = vmul.f32 %v4653, %v4629
        %v4664 = vmul.f32 %v4653, %v4630
        %v4665 = vadd.f32 %v4625, %v4663
        %v4666 = vadd.f32 %v4626, %v4664
        %v4667 = vmul.f32 %v4658, %v4627
        %v4668 = vmul.f32 %v4658, %v4628
        %v4669 = vadd.f32 %v4665, %v4667
        %v4670 = vadd.f32 %v4666, %v4668
        %s4671 = sld [smem:[#allocation10 + $0xd]]
        %s4672 = sld [smem:[#allocation11 + $0xd]]
        %v4673 = vstv %s4671
        %v4674 = vmul.f32 %v4673, %v4627
        %v4675 = vmul.f32 %v4673, %v4628
        %4678 = vrot.lane.b32.xlu0 %v4674, 127
        %v4679 = vpop.permute.xlu0 %4678
        %4680 = vrot.lane.b32.xlu0 %v4675, 127
        %v4681 = vpop.permute.xlu0 %4680
        %v4684 = vadd.f32 %v4641, %v4679
        %v4685 = vadd.f32 %v4642, %v4681
        %v4686 = vstv %s4672
        %v4687 = vmul.f32 %v4686, %v4629
        %v4688 = vmul.f32 %v4686, %v4630
        %4691 = vrot.lane.b32.xlu0 %v4687, 127
        %v4692 = vpop.permute.xlu0 %4691
        %4693 = vrot.lane.b32.xlu0 %v4688, 127
        %v4694 = vpop.permute.xlu0 %4693
        %v4697 = vsub.f32 %v4684, %v4692
        %v4698 = vsub.f32 %v4685, %v4694
        %v4699 = vmul.f32 %v4673, %v4629
        %v4700 = vmul.f32 %v4673, %v4630
        %4703 = vrot.lane.b32.xlu0 %v4699, 127
        %v4704 = vpop.permute.xlu0 %4703
        %4705 = vrot.lane.b32.xlu0 %v4700, 127
        %v4706 = vpop.permute.xlu0 %4705
        %v4709 = vadd.f32 %v4649, %v4704
        %v4710 = vadd.f32 %v4650, %v4706
        %v4711 = vmul.f32 %v4686, %v4627
        %v4712 = vmul.f32 %v4686, %v4628
        %4715 = vrot.lane.b32.xlu0 %v4711, 127
        %v4716 = vpop.permute.xlu0 %4715
        %4717 = vrot.lane.b32.xlu0 %v4712, 127
        %v4718 = vpop.permute.xlu0 %4717
        %v4721 = vadd.f32 %v4709, %v4716
        %v4722 = vadd.f32 %v4710, %v4718
        %s4723 = sld [smem:[#allocation10 + $0x1f]]
        %s4724 = sld [smem:[#allocation11 + $0x1f]]
        %v4725 = vstv %s4723
        %v4726 = vmul.f32 %v4725, %v4627
        %v4727 = vmul.f32 %v4725, %v4628
        %4730 = vrot.lane.b32.xlu0 %v4726, 127
        %v4731 = vpop.permute.xlu0 %4730
        %4732 = vrot.lane.b32.xlu0 %v4727, 127
        %v4733 = vpop.permute.xlu0 %4732
        %v4736 = vadd.f32 %v4661, %v4731
        %v4737 = vadd.f32 %v4662, %v4733
        %v4738 = vstv %s4724
        %v4739 = vmul.f32 %v4738, %v4629
        %v4740 = vmul.f32 %v4738, %v4630
        %4743 = vrot.lane.b32.xlu0 %v4739, 127
        %v4744 = vpop.permute.xlu0 %4743
        %4745 = vrot.lane.b32.xlu0 %v4740, 127
        %v4746 = vpop.permute.xlu0 %4745
        %v4749 = vsub.f32 %v4736, %v4744
        %v4750 = vsub.f32 %v4737, %v4746
        %v4751 = vmul.f32 %v4725, %v4629
        %v4752 = vmul.f32 %v4725, %v4630
        %4755 = vrot.lane.b32.xlu0 %v4751, 127
        %v4756 = vpop.permute.xlu0 %4755
        %4757 = vrot.lane.b32.xlu0 %v4752, 127
        %v4758 = vpop.permute.xlu0 %4757
        %v4761 = vadd.f32 %v4669, %v4756
        %v4762 = vadd.f32 %v4670, %v4758
        %v4763 = vmul.f32 %v4738, %v4627
        %v4764 = vmul.f32 %v4738, %v4628
        %4767 = vrot.lane.b32.xlu0 %v4763, 127
        %v4768 = vpop.permute.xlu0 %4767
        %4769 = vrot.lane.b32.xlu0 %v4764, 127
        %v4770 = vpop.permute.xlu0 %4769
        %v4773 = vadd.f32 %v4761, %v4768
        %v4774 = vadd.f32 %v4762, %v4770
        %s4775 = sld [smem:[#allocation10 + $0xe]]
        %s4776 = sld [smem:[#allocation11 + $0xe]]
        %v4777 = vstv %s4775
        %v4778 = vmul.f32 %v4777, %v4627
        %v4779 = vmul.f32 %v4777, %v4628
        %4782 = vrot.lane.b32.xlu0 %v4778, 126
        %v4783 = vpop.permute.xlu0 %4782
        %4784 = vrot.lane.b32.xlu0 %v4779, 126
        %v4785 = vpop.permute.xlu0 %4784
        %v4788 = vadd.f32 %v4697, %v4783
        %v4789 = vadd.f32 %v4698, %v4785
        %v4790 = vstv %s4776
        %v4791 = vmul.f32 %v4790, %v4629
        %v4792 = vmul.f32 %v4790, %v4630
        %4795 = vrot.lane.b32.xlu0 %v4791, 126
        %v4796 = vpop.permute.xlu0 %4795
        %4797 = vrot.lane.b32.xlu0 %v4792, 126
        %v4798 = vpop.permute.xlu0 %4797
        %v4801 = vsub.f32 %v4788, %v4796
        %v4802 = vsub.f32 %v4789, %v4798
        %v4803 = vmul.f32 %v4777, %v4629
        %v4804 = vmul.f32 %v4777, %v4630
        %4807 = vrot.lane.b32.xlu0 %v4803, 126
        %v4808 = vpop.permute.xlu0 %4807
        %4809 = vrot.lane.b32.xlu0 %v4804, 126
        %v4810 = vpop.permute.xlu0 %4809
        %v4813 = vadd.f32 %v4721, %v4808
        %v4814 = vadd.f32 %v4722, %v4810
        %v4815 = vmul.f32 %v4790, %v4627
        %v4816 = vmul.f32 %v4790, %v4628
        %4819 = vrot.lane.b32.xlu0 %v4815, 126
        %v4820 = vpop.permute.xlu0 %4819
        %4821 = vrot.lane.b32.xlu0 %v4816, 126
        %v4822 = vpop.permute.xlu0 %4821
        %v4825 = vadd.f32 %v4813, %v4820
        %v4826 = vadd.f32 %v4814, %v4822
        %s4827 = sld [smem:[#allocation10 + $0x20]]
        %s4828 = sld [smem:[#allocation11 + $0x20]]
        %v4829 = vstv %s4827
        %v4830 = vmul.f32 %v4829, %v4627
        %v4831 = vmul.f32 %v4829, %v4628
        %4834 = vrot.lane.b32.xlu0 %v4830, 126
        %v4835 = vpop.permute.xlu0 %4834
        %4836 = vrot.lane.b32.xlu0 %v4831, 126
        %v4837 = vpop.permute.xlu0 %4836
        %v4840 = vadd.f32 %v4749, %v4835
        %v4841 = vadd.f32 %v4750, %v4837
        %v4842 = vstv %s4828
        %v4843 = vmul.f32 %v4842, %v4629
        %v4844 = vmul.f32 %v4842, %v4630
        %4847 = vrot.lane.b32.xlu0 %v4843, 126
        %v4848 = vpop.permute.xlu0 %4847
        %4849 = vrot.lane.b32.xlu0 %v4844, 126
        %v4850 = vpop.permute.xlu0 %4849
        %v4853 = vsub.f32 %v4840, %v4848
        %v4854 = vsub.f32 %v4841, %v4850
        %v4855 = vmul.f32 %v4829, %v4629
        %v4856 = vmul.f32 %v4829, %v4630
        %4859 = vrot.lane.b32.xlu0 %v4855, 126
        %v4860 = vpop.permute.xlu0 %4859
        %4861 = vrot.lane.b32.xlu0 %v4856, 126
        %v4862 = vpop.permute.xlu0 %4861
        %v4865 = vadd.f32 %v4773, %v4860
        %v4866 = vadd.f32 %v4774, %v4862
        %v4867 = vmul.f32 %v4842, %v4627
        %v4868 = vmul.f32 %v4842, %v4628
        %4871 = vrot.lane.b32.xlu0 %v4867, 126
        %v4872 = vpop.permute.xlu0 %4871
        %4873 = vrot.lane.b32.xlu0 %v4868, 126
        %v4874 = vpop.permute.xlu0 %4873
        %v4877 = vadd.f32 %v4865, %v4872
        %v4878 = vadd.f32 %v4866, %v4874
        %v4879 = vld [vmem:[%s489 + $0x2] sm:$0xff]
        %v4880 = vld [vmem:[%s489 + $0xa] sm:$0xff]
        %v4881 = vld [vmem:[%s500 + $0x2] sm:$0xff]
        %v4882 = vld [vmem:[%s500 + $0xa] sm:$0xff]
        %s4883 = sld [smem:[#allocation10 + $0xf]]
        %s4884 = sld [smem:[#allocation11 + $0xf]]
        %v4885 = vstv %s4883
        %v4886 = vmul.f32 %v4885, %v4879
        %v4887 = vmul.f32 %v4885, %v4880
        %v4888 = vadd.f32 %v4801, %v4886
        %v4889 = vadd.f32 %v4802, %v4887
        %v4890 = vstv %s4884
        %v4891 = vmul.f32 %v4890, %v4881
        %v4892 = vmul.f32 %v4890, %v4882
        %v4893 = vsub.f32 %v4888, %v4891
        %v4894 = vsub.f32 %v4889, %v4892
        %v4895 = vmul.f32 %v4885, %v4881
        %v4896 = vmul.f32 %v4885, %v4882
        %v4897 = vadd.f32 %v4825, %v4895
        %v4898 = vadd.f32 %v4826, %v4896
        %v4899 = vmul.f32 %v4890, %v4879
        %v4900 = vmul.f32 %v4890, %v4880
        %v4901 = vadd.f32 %v4897, %v4899
        %v4902 = vadd.f32 %v4898, %v4900
        %s4903 = sld [smem:[#allocation10 + $0x21]]
        %s4904 = sld [smem:[#allocation11 + $0x21]]
        %v4905 = vstv %s4903
        %v4906 = vmul.f32 %v4905, %v4879
        %v4907 = vmul.f32 %v4905, %v4880
        %v4908 = vadd.f32 %v4853, %v4906
        %v4909 = vadd.f32 %v4854, %v4907
        %v4910 = vstv %s4904
        %v4911 = vmul.f32 %v4910, %v4881
        %v4912 = vmul.f32 %v4910, %v4882
        %v4913 = vsub.f32 %v4908, %v4911
        %v4914 = vsub.f32 %v4909, %v4912
        %v4915 = vmul.f32 %v4905, %v4881
        %v4916 = vmul.f32 %v4905, %v4882
        %v4917 = vadd.f32 %v4877, %v4915
        %v4918 = vadd.f32 %v4878, %v4916
        %v4919 = vmul.f32 %v4910, %v4879
        %v4920 = vmul.f32 %v4910, %v4880
        %v4921 = vadd.f32 %v4917, %v4919
        %v4922 = vadd.f32 %v4918, %v4920
        %s4923 = sld [smem:[#allocation10 + $0x10]]
        %s4924 = sld [smem:[#allocation11 + $0x10]]
        %v4925 = vstv %s4923
        %v4926 = vmul.f32 %v4925, %v4879
        %v4927 = vmul.f32 %v4925, %v4880
        %4930 = vrot.lane.b32.xlu0 %v4926, 127
        %v4931 = vpop.permute.xlu0 %4930
        %4932 = vrot.lane.b32.xlu0 %v4927, 127
        %v4933 = vpop.permute.xlu0 %4932
        %v4936 = vadd.f32 %v4893, %v4931
        %v4937 = vadd.f32 %v4894, %v4933
        %v4938 = vstv %s4924
        %v4939 = vmul.f32 %v4938, %v4881
        %v4940 = vmul.f32 %v4938, %v4882
        %4943 = vrot.lane.b32.xlu0 %v4939, 127
        %v4944 = vpop.permute.xlu0 %4943
        %4945 = vrot.lane.b32.xlu0 %v4940, 127
        %v4946 = vpop.permute.xlu0 %4945
        %v4949 = vsub.f32 %v4936, %v4944
        %v4950 = vsub.f32 %v4937, %v4946
        %v4951 = vmul.f32 %v4925, %v4881
        %v4952 = vmul.f32 %v4925, %v4882
        %4955 = vrot.lane.b32.xlu0 %v4951, 127
        %v4956 = vpop.permute.xlu0 %4955
        %4957 = vrot.lane.b32.xlu0 %v4952, 127
        %v4958 = vpop.permute.xlu0 %4957
        %v4961 = vadd.f32 %v4901, %v4956
        %v4962 = vadd.f32 %v4902, %v4958
        %v4963 = vmul.f32 %v4938, %v4879
        %v4964 = vmul.f32 %v4938, %v4880
        %4967 = vrot.lane.b32.xlu0 %v4963, 127
        %v4968 = vpop.permute.xlu0 %4967
        %4969 = vrot.lane.b32.xlu0 %v4964, 127
        %v4970 = vpop.permute.xlu0 %4969
        %v4973 = vadd.f32 %v4961, %v4968
        %v4974 = vadd.f32 %v4962, %v4970
        %s4975 = sld [smem:[#allocation10 + $0x22]]
        %s4976 = sld [smem:[#allocation11 + $0x22]]
        %v4977 = vstv %s4975
        %v4978 = vmul.f32 %v4977, %v4879
        %v4979 = vmul.f32 %v4977, %v4880
        %4982 = vrot.lane.b32.xlu0 %v4978, 127
        %v4983 = vpop.permute.xlu0 %4982
        %4984 = vrot.lane.b32.xlu0 %v4979, 127
        %v4985 = vpop.permute.xlu0 %4984
        %v4988 = vadd.f32 %v4913, %v4983
        %v4989 = vadd.f32 %v4914, %v4985
        %v4990 = vstv %s4976
        %v4991 = vmul.f32 %v4990, %v4881
        %v4992 = vmul.f32 %v4990, %v4882
        %4995 = vrot.lane.b32.xlu0 %v4991, 127
        %v4996 = vpop.permute.xlu0 %4995
        %4997 = vrot.lane.b32.xlu0 %v4992, 127
        %v4998 = vpop.permute.xlu0 %4997
        %v5001 = vsub.f32 %v4988, %v4996
        %v5002 = vsub.f32 %v4989, %v4998
        %v5003 = vmul.f32 %v4977, %v4881
        %v5004 = vmul.f32 %v4977, %v4882
        %5007 = vrot.lane.b32.xlu0 %v5003, 127
        %v5008 = vpop.permute.xlu0 %5007
        %5009 = vrot.lane.b32.xlu0 %v5004, 127
        %v5010 = vpop.permute.xlu0 %5009
        %v5013 = vadd.f32 %v4921, %v5008
        %v5014 = vadd.f32 %v4922, %v5010
        %v5015 = vmul.f32 %v4990, %v4879
        %v5016 = vmul.f32 %v4990, %v4880
        %5019 = vrot.lane.b32.xlu0 %v5015, 127
        %v5020 = vpop.permute.xlu0 %5019
        %5021 = vrot.lane.b32.xlu0 %v5016, 127
        %v5022 = vpop.permute.xlu0 %5021
        %v5025 = vadd.f32 %v5013, %v5020
        %v5026 = vadd.f32 %v5014, %v5022
        %s5027 = sld [smem:[#allocation10 + $0x11]]
        %s5028 = sld [smem:[#allocation11 + $0x11]]
        %v5029 = vstv %s5027
        %v5030 = vmul.f32 %v5029, %v4879
        %v5031 = vmul.f32 %v5029, %v4880
        %5034 = vrot.lane.b32.xlu0 %v5030, 126
        %v5035 = vpop.permute.xlu0 %5034
        %5036 = vrot.lane.b32.xlu0 %v5031, 126
        %v5037 = vpop.permute.xlu0 %5036
        %v5040 = vadd.f32 %v4949, %v5035
        %v5041 = vadd.f32 %v4950, %v5037
        %v5042 = vstv %s5028
        %v5043 = vmul.f32 %v5042, %v4881
        %v5044 = vmul.f32 %v5042, %v4882
        %5047 = vrot.lane.b32.xlu0 %v5043, 126
        %v5048 = vpop.permute.xlu0 %5047
        %5049 = vrot.lane.b32.xlu0 %v5044, 126
        %v5050 = vpop.permute.xlu0 %5049
        %v5053 = vsub.f32 %v5040, %v5048
        %v5054 = vsub.f32 %v5041, %v5050
        %v5055 = vmul.f32 %v5029, %v4881
        %v5056 = vmul.f32 %v5029, %v4882
        %5059 = vrot.lane.b32.xlu0 %v5055, 126
        %v5060 = vpop.permute.xlu0 %5059
        %5061 = vrot.lane.b32.xlu0 %v5056, 126
        %v5062 = vpop.permute.xlu0 %5061
        %v5065 = vadd.f32 %v4973, %v5060
        %v5066 = vadd.f32 %v4974, %v5062
        %v5067 = vmul.f32 %v5042, %v4879
        %v5068 = vmul.f32 %v5042, %v4880
        %5071 = vrot.lane.b32.xlu0 %v5067, 126
        %v5072 = vpop.permute.xlu0 %5071
        %5073 = vrot.lane.b32.xlu0 %v5068, 126
        %v5074 = vpop.permute.xlu0 %5073
        %v5077 = vadd.f32 %v5065, %v5072
        %v5078 = vadd.f32 %v5066, %v5074
        %s5079 = sld [smem:[#allocation10 + $0x23]]
        %s5080 = sld [smem:[#allocation11 + $0x23]]
        %v5081 = vstv %s5079
        %v5082 = vmul.f32 %v5081, %v4879
        %v5083 = vmul.f32 %v5081, %v4880
        %5086 = vrot.lane.b32.xlu0 %v5082, 126
        %v5087 = vpop.permute.xlu0 %5086
        %5088 = vrot.lane.b32.xlu0 %v5083, 126
        %v5089 = vpop.permute.xlu0 %5088
        %v5092 = vadd.f32 %v5001, %v5087
        %v5093 = vadd.f32 %v5002, %v5089
        %v5094 = vstv %s5080
        %v5095 = vmul.f32 %v5094, %v4881
        %v5096 = vmul.f32 %v5094, %v4882
        %5099 = vrot.lane.b32.xlu0 %v5095, 126
        %v5100 = vpop.permute.xlu0 %5099
        %5101 = vrot.lane.b32.xlu0 %v5096, 126
        %v5102 = vpop.permute.xlu0 %5101
        %v5105 = vsub.f32 %v5092, %v5100
        %v5106 = vsub.f32 %v5093, %v5102
        %v5107 = vmul.f32 %v5081, %v4881
        %v5108 = vmul.f32 %v5081, %v4882
        %5111 = vrot.lane.b32.xlu0 %v5107, 126
        %v5112 = vpop.permute.xlu0 %5111
        %5113 = vrot.lane.b32.xlu0 %v5108, 126
        %v5114 = vpop.permute.xlu0 %5113
        %v5117 = vadd.f32 %v5025, %v5112
        %v5118 = vadd.f32 %v5026, %v5114
        %v5119 = vmul.f32 %v5094, %v4879
        %v5120 = vmul.f32 %v5094, %v4880
        %5123 = vrot.lane.b32.xlu0 %v5119, 126
        %v5124 = vpop.permute.xlu0 %5123
        %5125 = vrot.lane.b32.xlu0 %v5120, 126
        %v5126 = vpop.permute.xlu0 %5125
        %v5129 = vadd.f32 %v5117, %v5124
        %v5130 = vadd.f32 %v5118, %v5126
        %v5131 = vadd.f32 %v5053, %v1941
        %v5132 = vadd.f32 %v5054, %v1942
        %v5133 = vadd.f32 %v5105, %v1993
        %v5134 = vadd.f32 %v5106, %v1994
        %v5135 = vadd.f32 %v5077, %v1965
        %v5136 = vadd.f32 %v5078, %v1966
        %v5137 = vadd.f32 %v5129, %v2017
        %v5138 = vadd.f32 %v5130, %v2018
        %vm5139 = vcmask 130048
        %v5140 = vsel %vm5139, %v5131, 0.0
        %5141 = vadd.xlane.f32.xlu0 %v5140
        %v5142 = vpop.xlane.xlu0 %5141
        %v5143 = vsel %vm5139, %v5132, 0.0
        %5144 = vadd.xlane.f32.xlu0 %v5143
        %v5145 = vpop.xlane.xlu0 %5144
        %v5146 = vrcp.pop 16.0
        %v5147 = vmul.f32 %v5142, %v5146
        %v5148 = vmul.f32 %v5145, %v5146
        %v5149 = vsel %vm5139, %v5135, 0.0
        %5150 = vadd.xlane.f32.xlu0 %v5149
        %v5151 = vpop.xlane.xlu0 %5150
        %v5152 = vsel %vm5139, %v5136, 0.0
        %5153 = vadd.xlane.f32.xlu0 %v5152
        %v5154 = vpop.xlane.xlu0 %5153
        %v5155 = vmul.f32 %v5151, %v5146
        %v5156 = vmul.f32 %v5154, %v5146
        %v5157 = vsub.f32 %v5131, %v5147
        %v5158 = vsub.f32 %v5132, %v5148
        %v5159 = vsub.f32 %v5135, %v5155
        %v5160 = vsub.f32 %v5136, %v5156
        %v5161 = vmul.f32 %v5157, %v5157
        %v5162 = vmul.f32 %v5158, %v5158
        %v5163 = vsel %vm5139, %v5161, 0.0
        %5164 = vadd.xlane.f32.xlu0 %v5163
        %v5165 = vpop.xlane.xlu0 %5164
        %v5166 = vsel %vm5139, %v5162, 0.0
        %5167 = vadd.xlane.f32.xlu0 %v5166
        %v5168 = vpop.xlane.xlu0 %5167
        %v5169 = vmul.f32 %v5165, 0.06666667
        %v5170 = vmul.f32 %v5168, 0.06666667
        %v5171 = vmul.f32 %v5159, %v5159
        %v5172 = vmul.f32 %v5160, %v5160
        %v5173 = vsel %vm5139, %v5171, 0.0
        %5174 = vadd.xlane.f32.xlu0 %v5173
        %v5175 = vpop.xlane.xlu0 %5174
        %v5176 = vsel %vm5139, %v5172, 0.0
        %5177 = vadd.xlane.f32.xlu0 %v5176
        %v5178 = vpop.xlane.xlu0 %5177
        %v5179 = vmul.f32 %v5175, 0.06666667
        %v5180 = vmul.f32 %v5178, 0.06666667
        %v5181 = vmul.f32 %v5157, %v5159
        %v5182 = vmul.f32 %v5158, %v5160
        %v5183 = vsel %vm5139, %v5181, 0.0
        %5184 = vadd.xlane.f32.xlu0 %v5183
        %v5185 = vpop.xlane.xlu0 %5184
        %v5186 = vsel %vm5139, %v5182, 0.0
        %5187 = vadd.xlane.f32.xlu0 %v5186
        %v5188 = vpop.xlane.xlu0 %5187
        %v5189 = vmul.f32 %v5185, %v5146
        %v5190 = vmul.f32 %v5188, %v5146
        %v5191 = vmul.f32 %v5169, %v5179
        %v5192 = vmul.f32 %v5170, %v5180
        %v5193 = vmul.f32 %v5189, %v5189
        %v5194 = vmul.f32 %v5190, %v5190
        %v5195 = vsub.f32 %v5191, %v5193
        %v5196 = vsub.f32 %v5192, %v5194
        %v5197 = vmax.f32 %v5195, 0.0
        %v5198 = vmax.f32 %v5196, 0.0
        %v5199 = vrsqrt.pop %v5197
        %v5200 = vmul.f32 %v5197, %v5199
        %vm5201 = vcmp.eq.f32.partialorder %v5197, inf
        %v5202 = vsel %vm5201, %v5197, %v5200
        %vm5203 = vcmp.eq.f32.partialorder %v5197, 0.0
        %v5204 = vand.u32 %v5197, 2147483648
        %v5205 = vsel %vm5203, %v5204, %v5202
        %v5206 = vrsqrt.pop %v5198
        %v5207 = vmul.f32 %v5198, %v5206
        %vm5208 = vcmp.eq.f32.partialorder %v5198, inf
        %v5209 = vsel %vm5208, %v5198, %v5207
        %vm5210 = vcmp.eq.f32.partialorder %v5198, 0.0
        %v5211 = vand.u32 %v5198, 2147483648
        %v5212 = vsel %vm5210, %v5211, %v5209
        %v5213 = vadd.f32 %v5169, %v5179
        %v5214 = vadd.f32 %v5170, %v5180
        %v5215 = vmul.f32 %v5205, 2.0
        %v5216 = vmul.f32 %v5212, 2.0
        %v5217 = vadd.f32 %v5213, %v5215
        %v5218 = vadd.f32 %v5214, %v5216
        %v5219 = vrsqrt.pop %v5217
        %v5220 = vmul.f32 %v5217, %v5219
        %vm5221 = vcmp.eq.f32.partialorder %v5217, inf
        %v5222 = vsel %vm5221, %v5217, %v5220
        %vm5223 = vcmp.eq.f32.partialorder %v5217, 0.0
        %v5224 = vand.u32 %v5217, 2147483648
        %v5225 = vsel %vm5223, %v5224, %v5222
        %v5226 = vrsqrt.pop %v5218
        %v5227 = vmul.f32 %v5218, %v5226
        %vm5228 = vcmp.eq.f32.partialorder %v5218, inf
        %v5229 = vsel %vm5228, %v5218, %v5227
        %vm5230 = vcmp.eq.f32.partialorder %v5218, 0.0
        %v5231 = vand.u32 %v5218, 2147483648
        %v5232 = vsel %vm5230, %v5231, %v5229
        %v5233 = vadd.f32 %v5169, %v5205
        %v5234 = vadd.f32 %v5170, %v5212
        %v5235 = vrcp.pop %v5225
        %v5236 = vmul.f32 %v5233, %v5235
        %v5237 = vrcp.pop %v5232
        %v5238 = vmul.f32 %v5234, %v5237
        %v5239 = vmul.f32 %v5189, %v5235
        %v5240 = vmul.f32 %v5190, %v5237
        %v5241 = vadd.f32 %v5179, %v5205
        %v5242 = vadd.f32 %v5180, %v5212
        %v5243 = vmul.f32 %v5241, %v5235
        %v5244 = vmul.f32 %v5242, %v5237
        %v5245 = vmul.f32 %v5236, %v5243
        %v5246 = vmul.f32 %v5238, %v5244
        %v5247 = vmul.f32 %v5239, %v5239
        %v5248 = vmul.f32 %v5240, %v5240
        %v5249 = vsub.f32 %v5245, %v5247
        %v5250 = vsub.f32 %v5246, %v5248
        %v5251 = vrcp.pop %v5249
        %v5252 = vmul.f32 %v5243, %v5251
        %v5253 = vrcp.pop %v5250
        %v5254 = vmul.f32 %v5244, %v5253
        %v5255 = vsub.f32 0.0, %v5239
        %v5256 = vsub.f32 0.0, %v5240
        %v5257 = vmul.f32 %v5255, %v5251
        %v5258 = vmul.f32 %v5256, %v5253
        %v5259 = vmul.f32 %v5236, %v5251
        %v5260 = vmul.f32 %v5238, %v5253
        %v5261 = vlaneseq
        %v5262 = vshrl.u32 %v5261, 7
        %v5263 = vsub.s32 0, %v5262
        %v5264 = vrot.slane %v449, %v5263
        %v5265 = vmul.f32 %v5264, %v5252
        %v5266 = vmul.f32 %v5264, %v5254
        %v5267 = vlaneseq
        %v5268 = vshrl.u32 %v5267, 7
        %v5269 = vsub.s32 1, %v5268
        %v5270 = vrot.slane %v449, %v5269
        %v5271 = vmul.f32 %v5270, %v5257
        %v5272 = vmul.f32 %v5270, %v5258
        %v5273 = vadd.f32 %v5265, %v5271
        %v5274 = vadd.f32 %v5266, %v5272
        %v5275 = vmul.f32 %v5264, %v5257
        %v5276 = vmul.f32 %v5264, %v5258
        %v5277 = vmul.f32 %v5270, %v5259
        %v5278 = vmul.f32 %v5270, %v5260
        %v5279 = vadd.f32 %v5275, %v5277
        %v5280 = vadd.f32 %v5276, %v5278
        %v5281 = vmul.f32 %v5270, %v5252
        %v5282 = vmul.f32 %v5270, %v5254
        %v5283 = vlaneseq
        %v5284 = vshrl.u32 %v5283, 7
        %v5285 = vsub.s32 2, %v5284
        %v5286 = vrot.slane %v449, %v5285
        %v5287 = vmul.f32 %v5286, %v5257
        %v5288 = vmul.f32 %v5286, %v5258
        %v5289 = vadd.f32 %v5281, %v5287
        %v5290 = vadd.f32 %v5282, %v5288
        %v5291 = vmul.f32 %v5286, %v5259
        %v5292 = vmul.f32 %v5286, %v5260
        %v5293 = vadd.f32 %v5271, %v5291
        %v5294 = vadd.f32 %v5272, %v5292
        %v5295 = vmul.f32 %v5273, %v5157
        %v5296 = vmul.f32 %v5274, %v5158
        %v5297 = vmul.f32 %v5279, %v5159
        %v5298 = vmul.f32 %v5280, %v5160
        %v5299 = vadd.f32 %v5295, %v5297
        %v5300 = vadd.f32 %v5296, %v5298
        %v5301 = vlaneseq
        %v5302 = vshrl.u32 %v5301, 7
        %v5303 = vsub.s32 3, %v5302
        %v5304 = vrot.slane %v449, %v5303
        %v5305 = vadd.f32 %v5299, %v5304
        %v5306 = vadd.f32 %v5300, %v5304
        %5307 = vst.msk [vmem:[%s419] sm:$0xff] %vm5139, %v5305
        %5308 = vst.msk [vmem:[%s419 + $0x8] sm:$0xff] %vm5139, %v5306
        %v5309 = vmul.f32 %v5289, %v5157
        %v5310 = vmul.f32 %v5290, %v5158
        %v5311 = vmul.f32 %v5293, %v5159
        %v5312 = vmul.f32 %v5294, %v5160
        %v5313 = vadd.f32 %v5309, %v5311
        %v5314 = vadd.f32 %v5310, %v5312
        %v5315 = vlaneseq
        %v5316 = vshrl.u32 %v5315, 7
        %v5317 = vsub.s32 4, %v5316
        %v5318 = vrot.slane %v449, %v5317
        %v5319 = vadd.f32 %v5313, %v5318
        %v5320 = vadd.f32 %v5314, %v5318
        %5321 = vst.msk [vmem:[%s426] sm:$0xff] %vm5139, %v5319
        %5322 = vst.msk [vmem:[%s426 + $0x8] sm:$0xff] %vm5139, %v5320
        %v5323 = vsel %vm5139, %v5133, 0.0
        %5324 = vadd.xlane.f32.xlu0 %v5323
        %v5325 = vpop.xlane.xlu0 %5324
        %v5326 = vsel %vm5139, %v5134, 0.0
        %5327 = vadd.xlane.f32.xlu0 %v5326
        %v5328 = vpop.xlane.xlu0 %5327
        %v5329 = vmul.f32 %v5325, %v5146
        %v5330 = vmul.f32 %v5328, %v5146
        %v5331 = vsel %vm5139, %v5137, 0.0
        %5332 = vadd.xlane.f32.xlu0 %v5331
        %v5333 = vpop.xlane.xlu0 %5332
        %v5334 = vsel %vm5139, %v5138, 0.0
        %5335 = vadd.xlane.f32.xlu0 %v5334
        %v5336 = vpop.xlane.xlu0 %5335
        %v5337 = vmul.f32 %v5333, %v5146
        %v5338 = vmul.f32 %v5336, %v5146
        %v5339 = vsub.f32 %v5133, %v5329
        %v5340 = vsub.f32 %v5134, %v5330
        %v5341 = vsub.f32 %v5137, %v5337
        %v5342 = vsub.f32 %v5138, %v5338
        %v5343 = vmul.f32 %v5339, %v5339
        %v5344 = vmul.f32 %v5340, %v5340
        %v5345 = vsel %vm5139, %v5343, 0.0
        %5346 = vadd.xlane.f32.xlu0 %v5345
        %v5347 = vpop.xlane.xlu0 %5346
        %v5348 = vsel %vm5139, %v5344, 0.0
        %5349 = vadd.xlane.f32.xlu0 %v5348
        %v5350 = vpop.xlane.xlu0 %5349
        %v5351 = vmul.f32 %v5347, 0.06666667
        %v5352 = vmul.f32 %v5350, 0.06666667
        %v5353 = vmul.f32 %v5341, %v5341
        %v5354 = vmul.f32 %v5342, %v5342
        %v5355 = vsel %vm5139, %v5353, 0.0
        %5356 = vadd.xlane.f32.xlu0 %v5355
        %v5357 = vpop.xlane.xlu0 %5356
        %v5358 = vsel %vm5139, %v5354, 0.0
        %5359 = vadd.xlane.f32.xlu0 %v5358
        %v5360 = vpop.xlane.xlu0 %5359
        %v5361 = vmul.f32 %v5357, 0.06666667
        %v5362 = vmul.f32 %v5360, 0.06666667
        %v5363 = vmul.f32 %v5339, %v5341
        %v5364 = vmul.f32 %v5340, %v5342
        %v5365 = vsel %vm5139, %v5363, 0.0
        %5366 = vadd.xlane.f32.xlu0 %v5365
        %v5367 = vpop.xlane.xlu0 %5366
        %v5368 = vsel %vm5139, %v5364, 0.0
        %5369 = vadd.xlane.f32.xlu0 %v5368
        %v5370 = vpop.xlane.xlu0 %5369
        %v5371 = vmul.f32 %v5367, %v5146
        %v5372 = vmul.f32 %v5370, %v5146
        %v5373 = vmul.f32 %v5351, %v5361
        %v5374 = vmul.f32 %v5352, %v5362
        %v5375 = vmul.f32 %v5371, %v5371
        %v5376 = vmul.f32 %v5372, %v5372
        %v5377 = vsub.f32 %v5373, %v5375
        %v5378 = vsub.f32 %v5374, %v5376
        %v5379 = vmax.f32 %v5377, 0.0
        %v5380 = vmax.f32 %v5378, 0.0
        %v5381 = vrsqrt.pop %v5379
        %v5382 = vmul.f32 %v5379, %v5381
        %vm5383 = vcmp.eq.f32.partialorder %v5379, inf
        %v5384 = vsel %vm5383, %v5379, %v5382
        %vm5385 = vcmp.eq.f32.partialorder %v5379, 0.0
        %v5386 = vand.u32 %v5379, 2147483648
        %v5387 = vsel %vm5385, %v5386, %v5384
        %v5388 = vrsqrt.pop %v5380
        %v5389 = vmul.f32 %v5380, %v5388
        %vm5390 = vcmp.eq.f32.partialorder %v5380, inf
        %v5391 = vsel %vm5390, %v5380, %v5389
        %vm5392 = vcmp.eq.f32.partialorder %v5380, 0.0
        %v5393 = vand.u32 %v5380, 2147483648
        %v5394 = vsel %vm5392, %v5393, %v5391
        %v5395 = vadd.f32 %v5351, %v5361
        %v5396 = vadd.f32 %v5352, %v5362
        %v5397 = vmul.f32 %v5387, 2.0
        %v5398 = vmul.f32 %v5394, 2.0
        %v5399 = vadd.f32 %v5395, %v5397
        %v5400 = vadd.f32 %v5396, %v5398
        %v5401 = vrsqrt.pop %v5399
        %v5402 = vmul.f32 %v5399, %v5401
        %vm5403 = vcmp.eq.f32.partialorder %v5399, inf
        %v5404 = vsel %vm5403, %v5399, %v5402
        %vm5405 = vcmp.eq.f32.partialorder %v5399, 0.0
        %v5406 = vand.u32 %v5399, 2147483648
        %v5407 = vsel %vm5405, %v5406, %v5404
        %v5408 = vrsqrt.pop %v5400
        %v5409 = vmul.f32 %v5400, %v5408
        %vm5410 = vcmp.eq.f32.partialorder %v5400, inf
        %v5411 = vsel %vm5410, %v5400, %v5409
        %vm5412 = vcmp.eq.f32.partialorder %v5400, 0.0
        %v5413 = vand.u32 %v5400, 2147483648
        %v5414 = vsel %vm5412, %v5413, %v5411
        %v5415 = vadd.f32 %v5351, %v5387
        %v5416 = vadd.f32 %v5352, %v5394
        %v5417 = vrcp.pop %v5407
        %v5418 = vmul.f32 %v5415, %v5417
        %v5419 = vrcp.pop %v5414
        %v5420 = vmul.f32 %v5416, %v5419
        %v5421 = vmul.f32 %v5371, %v5417
        %v5422 = vmul.f32 %v5372, %v5419
        %v5423 = vadd.f32 %v5361, %v5387
        %v5424 = vadd.f32 %v5362, %v5394
        %v5425 = vmul.f32 %v5423, %v5417
        %v5426 = vmul.f32 %v5424, %v5419
        %v5427 = vmul.f32 %v5418, %v5425
        %v5428 = vmul.f32 %v5420, %v5426
        %v5429 = vmul.f32 %v5421, %v5421
        %v5430 = vmul.f32 %v5422, %v5422
        %v5431 = vsub.f32 %v5427, %v5429
        %v5432 = vsub.f32 %v5428, %v5430
        %v5433 = vrcp.pop %v5431
        %v5434 = vmul.f32 %v5425, %v5433
        %v5435 = vrcp.pop %v5432
        %v5436 = vmul.f32 %v5426, %v5435
        %v5437 = vsub.f32 0.0, %v5421
        %v5438 = vsub.f32 0.0, %v5422
        %v5439 = vmul.f32 %v5437, %v5433
        %v5440 = vmul.f32 %v5438, %v5435
        %v5441 = vmul.f32 %v5418, %v5433
        %v5442 = vmul.f32 %v5420, %v5435
        %v5443 = vmul.f32 %v5264, %v5434
        %v5444 = vmul.f32 %v5264, %v5436
        %v5445 = vmul.f32 %v5270, %v5439
        %v5446 = vmul.f32 %v5270, %v5440
        %v5447 = vadd.f32 %v5443, %v5445
        %v5448 = vadd.f32 %v5444, %v5446
        %v5449 = vmul.f32 %v5264, %v5439
        %v5450 = vmul.f32 %v5264, %v5440
        %v5451 = vmul.f32 %v5270, %v5441
        %v5452 = vmul.f32 %v5270, %v5442
        %v5453 = vadd.f32 %v5449, %v5451
        %v5454 = vadd.f32 %v5450, %v5452
        %v5455 = vmul.f32 %v5270, %v5434
        %v5456 = vmul.f32 %v5270, %v5436
        %v5457 = vmul.f32 %v5286, %v5439
        %v5458 = vmul.f32 %v5286, %v5440
        %v5459 = vadd.f32 %v5455, %v5457
        %v5460 = vadd.f32 %v5456, %v5458
        %v5461 = vmul.f32 %v5286, %v5441
        %v5462 = vmul.f32 %v5286, %v5442
        %v5463 = vadd.f32 %v5445, %v5461
        %v5464 = vadd.f32 %v5446, %v5462
        %v5465 = vmul.f32 %v5447, %v5339
        %v5466 = vmul.f32 %v5448, %v5340
        %v5467 = vmul.f32 %v5453, %v5341
        %v5468 = vmul.f32 %v5454, %v5342
        %v5469 = vadd.f32 %v5465, %v5467
        %v5470 = vadd.f32 %v5466, %v5468
        %v5471 = vadd.f32 %v5469, %v5304
        %v5472 = vadd.f32 %v5470, %v5304
        %s5473 = scalar_lea.vmem %s419, 16 [#allocation16]
        %5474 = vst.msk [vmem:[%s5473] sm:$0xff] %vm5139, %v5471
        %5475 = vst.msk [vmem:[%s5473 + $0x8] sm:$0xff] %vm5139, %v5472
        %v5476 = vmul.f32 %v5459, %v5339
        %v5477 = vmul.f32 %v5460, %v5340
        %v5478 = vmul.f32 %v5463, %v5341
        %v5479 = vmul.f32 %v5464, %v5342
        %v5480 = vadd.f32 %v5476, %v5478
        %v5481 = vadd.f32 %v5477, %v5479
        %v5482 = vadd.f32 %v5480, %v5318
        %v5483 = vadd.f32 %v5481, %v5318
        %s5484 = scalar_lea.vmem %s426, 16 [#allocation17]
        %5485 = vst.msk [vmem:[%s5484] sm:$0xff] %vm5139, %v5482
        %5486 = vst.msk [vmem:[%s5484 + $0x8] sm:$0xff] %vm5139, %v5483
        %s5487 = sand.u32 %s200, 1
        %s5488 = scalar_lea.sflag [#allocation6], %s5487
        %s5489 = sand.u32 %s200, 1
        %s5490 = smul.addr %s5489, 32
        %s5491 = scalar_lea.vmem [#allocation16], %s5490
        %s5492 = sand.u32 %s226, 1
        %s5493 = scalar_lea.sflag [#allocation18], %s5492
        %s5494 = sand.u32 %s226, 1
        %s5495 = smul.addr %s5494, 32
        %s5496 = scalar_lea.vmem [#allocation17], %s5495
        // Predicated region
        $region73: #{tpu_custom_call.1} parent=47 // pred_check
          %p5497 = pneg %p210
        $region74: #{tpu_custom_call.1} parent=47 // pred_check_branch
          %5499 = sbr.rel (%p5497) target = $region76
        $region75: #{tpu_custom_call.1} parent=47 // pred_region
          %s5501 = ssub.s32 512, 512
          %5502 = vsyncadd %s5488, %s5501
          %s5503 = smul.addr %s35, 4
          %s5504 = smul.addr %s5503, 128
          %s5505 = scalar_lea.hbm %s7, %s5504
          %s5506 = sshll.u32 %s5491, 4
          %s5507 = int_to_ptr.vmem [resolvable:$true] %s5506
          %5512 = dma.vmem_to_hbm [thread:$0]  %s5507, 512, %s5505, %s5488, 128, 128, 8
        $region76: #{tpu_custom_call.1} parent=47 // pred_fallthru
          _
        // Predicated region
        $region77: #{tpu_custom_call.1} parent=47 // pred_check
          %p5513 = pneg %p236
        $region78: #{tpu_custom_call.1} parent=47 // pred_check_branch
          %5515 = sbr.rel (%p5513) target = $region80
        $region79: #{tpu_custom_call.1} parent=47 // pred_region
          %s5517 = ssub.s32 512, 512
          %5518 = vsyncadd %s5493, %s5517
          %s5519 = smul.addr %s35, 4
          %s5520 = smul.addr %s5519, 128
          %s5521 = scalar_lea.hbm %s8, %s5520
          %s5522 = sshll.u32 %s5496, 4
          %s5523 = int_to_ptr.vmem [resolvable:$true] %s5522
          %5528 = dma.vmem_to_hbm [thread:$0]  %s5523, 512, %s5521, %s5493, 128, 128, 8
        $region80: #{tpu_custom_call.1} parent=47 // pred_fallthru
          _
      $region48: #{tpu_custom_call.1} parent=5 // pred_fallthru
        _
      %p5529 = scmp.le.s32.totalorder 2, %s30
      // Predicated region
      $region81: #{tpu_custom_call.1} parent=5 // pred_check
        %p5530 = pneg %p5529
      $region82: #{tpu_custom_call.1} parent=5 // pred_check_branch
        %5532 = sbr.rel (%p5530) target = $region84
      $region83: #{tpu_custom_call.1} parent=5 // pred_region
        %s5533 = ssub.s32 %s30, 2
        // Predicated region
        $region85: #{tpu_custom_call.1} parent=83 // pred_check
          %p5534 = pneg %p216
        $region86: #{tpu_custom_call.1} parent=83 // pred_check_branch
          %5536 = sbr.rel (%p5534) target = $region88
        $region87: #{tpu_custom_call.1} parent=83 // pred_region
          %s5537 = sand.u32 %s201, 1
          %s5538 = scalar_lea.sflag [#allocation6], %s5537
          %s5539 = sand.u32 %s201, 1
          %s5540 = smul.addr %s5539, 32
          %s5541 = scalar_lea.vmem [#allocation16], %s5540
          %5542 = dma.done %s5538, 512
        $region88: #{tpu_custom_call.1} parent=83 // pred_fallthru
          _
        // Predicated region
        $region89: #{tpu_custom_call.1} parent=83 // pred_check
          %p5543 = pneg %p242
        $region90: #{tpu_custom_call.1} parent=83 // pred_check_branch
          %5545 = sbr.rel (%p5543) target = $region92
        $region91: #{tpu_custom_call.1} parent=83 // pred_region
          %s5546 = sand.u32 %s227, 1
          %s5547 = scalar_lea.sflag [#allocation18], %s5546
          %s5548 = sand.u32 %s227, 1
          %s5549 = smul.addr %s5548, 32
          %s5550 = scalar_lea.vmem [#allocation17], %s5549
          %5551 = dma.done %s5547, 512
        $region92: #{tpu_custom_call.1} parent=83 // pred_fallthru
          _
      $region84: #{tpu_custom_call.1} parent=5 // pred_fallthru
        _
    $region6: #{tpu_custom_call.1} parent=1 // loop_footer
      %s34 = sadd.s32 1, %s30
    $region7: #{tpu_custom_call.1} parent=1 // loop_footer_branch
      %29 = sbr.rel target = $region3
    $region8: #{tpu_custom_call.1} parent=1 // loop_exit
      _
    %5552 = vsyncpa [#allocation5], 1
    %s5553 = scalar_lea.sflag [#allocation5], 1
    %5554 = vsyncpa %s5553, 1
    %5555 = vsyncpa [#allocation9], 1
    %s5556 = scalar_lea.sflag [#allocation9], 1
    %5557 = vsyncpa %s5556, 1
    %5558 = vsyncpa [#allocation6], 1
    %s5559 = scalar_lea.sflag [#allocation6], 1
    %5560 = vsyncpa %s5559, 1
    %5561 = vsyncpa [#allocation18], 1
    %s5562 = scalar_lea.sflag [#allocation18], 1
    %5563 = vsyncpa %s5562, 1
    %5564 = vsyncpa [#allocation7], 1
    %s5565 = scalar_lea.sflag [#allocation7], 1
    %5566 = vsyncpa %s5565, 1
    %5567 = vsyncpa [#allocation12], 1
    %5568 = vsyncpa [#allocation15], 1

</llo_original>
